<compile_context>
chip_gen: v6e
topology: v6e:2x2x1
jax: 0.10.0
libtpu: 0.0.40
codegen_flags: <defaults>
</compile_context>

<pallas_src>
import jax
import jax.numpy as jnp
from jax.experimental import pallas as pl
from jax.experimental.pallas import tpu as pltpu


# --------------------------------------------------------------------------
# Kernel 1: fused conv1+pool -> conv2(+merged branches)+pool -> conv3(shared)
# --------------------------------------------------------------------------
def _conv_stack_kernel(p1_ref, w1_ref, b1_ref,
                       t2_ref, w2_ref, b2_ref, q2_ref,
                       t3_ref, w3_ref, b3_ref,
                       o_ref):
    f32 = jnp.float32
    bf16 = jnp.bfloat16

    # ---- conv1 + bias + relu + 2x2/s2 max-pool --------------------------
    # p1_ref: (4, M1, 9) pool-position-stacked im2col patches (XLA glue)
    w1 = w1_ref[...]
    b1 = b1_ref[...]
    c1 = None
    for pos in range(4):                       # pool == max over positions
        y = jnp.dot(p1_ref[pos], w1, preferred_element_type=f32)
        y = jnp.maximum(y + b1, 0.0)
        c1 = y if c1 is None else jnp.maximum(c1, y)
    c1 = c1.astype(bf16)                       # (M1=196, C1)

    # ---- conv2_1 | conv2_2 (merged Cout) via 9 tap-shift selection dots --
    M2 = t2_ref.shape[1]
    C2o = w2_ref.shape[2]
    acc2 = jnp.zeros((M2, C2o), f32)
    for t in range(9):
        # one-hot shift matrix -> exact spatial shift of the VMEM activation
        shifted = jnp.dot(t2_ref[t], c1, preferred_element_type=f32).astype(bf16)
        acc2 = acc2 + jnp.dot(shifted, w2_ref[t], preferred_element_type=f32)
    y2 = jnp.maximum(acc2 + b2_ref[...], 0.0).astype(bf16)      # (196, 2*C2)

    # ---- 2x2/s2 max-pool via 4 one-hot pool-position selection dots ------
    c2 = None
    for pos in range(4):
        sel = jnp.dot(q2_ref[pos], y2, preferred_element_type=f32)
        c2 = sel if c2 is None else jnp.maximum(c2, sel)
    c2 = c2.astype(bf16)                       # (M3=49, 2*C2)

    # ---- conv3_1 applied to both branches (block-diagonal tap weights) ---
    M3 = t3_ref.shape[1]
    C3o = w3_ref.shape[2]
    acc3 = jnp.zeros((M3, C3o), f32)
    for t in range(9):
        shifted = jnp.dot(t3_ref[t], c2, preferred_element_type=f32).astype(bf16)
        acc3 = acc3 + jnp.dot(shifted, w3_ref[t], preferred_element_type=f32)
    c3 = jnp.maximum(acc3 + b3_ref[...], 0.0)  # (49, 2*C3) f32
    o_ref[...] = c3.astype(o_ref.dtype)


# --------------------------------------------------------------------------
# Kernel 2: linear1+relu -> linear2+relu -> out -> log_softmax
# --------------------------------------------------------------------------
def _fc_fused_kernel(x_ref, w1_ref, b1_ref, w2_ref, b2_ref, w3_ref, b3_ref,
                     o_ref):
    x = x_ref[...]
    h = jnp.dot(x, w1_ref[...], preferred_element_type=jnp.float32)
    h = jnp.maximum(h + b1_ref[...], 0.0).astype(w2_ref.dtype)
    h = jnp.dot(h, w2_ref[...], preferred_element_type=jnp.float32)
    h = jnp.maximum(h + b2_ref[...], 0.0).astype(w3_ref.dtype)
    o = jnp.dot(h, w3_ref[...], preferred_element_type=jnp.float32)
    o = o + b3_ref[...]
    m = jnp.max(o, axis=-1, keepdims=True)
    z = o - m
    lse = jnp.log(jnp.sum(jnp.exp(z), axis=-1, keepdims=True))
    o_ref[...] = (z - lse).astype(o_ref.dtype)


# --------------------------------------------------------------------------
# Tiny XLA glue (conv1's im2col + pool-position stacking only)
# --------------------------------------------------------------------------
def _im2col_3x3_pad1(x):
    # (N,H,W,C) -> (N,H,W,9C); taps ordered (ky, kx, cin)
    N, H, W, C = x.shape
    xp = jnp.pad(x, ((0, 0), (1, 1), (1, 1), (0, 0)))
    cols = [xp[:, ky:ky + H, kx:kx + W, :] for ky in range(3) for kx in range(3)]
    return jnp.concatenate(cols, axis=-1)


def _pool_position_stack(patches):
    # (N,H,W,K) with even H,W -> (N, 4, Ho*Wo, K); position p = 2*py + px
    N, H, W, K = patches.shape
    Ho, Wo = H // 2, W // 2
    views = [patches[:, py::2, px::2, :].reshape(N, 1, Ho * Wo, K)
             for py in range(2) for px in range(2)]
    return jnp.concatenate(views, axis=1)


# --------------------------------------------------------------------------
# One-time constant builders: tap-shift / pool selection matrices
# --------------------------------------------------------------------------
def _tap_shift_mats(H, W):
    """(9, H*W, H*W) one-hot matrices; T[t] @ A == A shifted by tap t (pad=1)."""
    M = H * W
    idx = jnp.arange(M)
    h, w = idx // W, idx % W
    mats = []
    for ky in range(3):
        for kx in range(3):
            hh, ww = h + ky - 1, w + kx - 1
            valid = ((hh >= 0) & (hh < H) & (ww >= 0) & (ww < W)).astype(jnp.float32)
            src = jnp.clip(hh, 0, H - 1) * W + jnp.clip(ww, 0, W - 1)
            mats.append(jax.nn.one_hot(src, M, dtype=jnp.float32) * valid[:, None])
    return jnp.stack(mats).astype(jnp.bfloat16)


def _pool_select_mats(H, W):
    """(4, (H//2)*(W//2), H*W) one-hot matrices; Q[p] @ A selects pool pos p."""
    Ho, Wo = H // 2, W // 2
    idx = jnp.arange(Ho * Wo)
    ho, wo = idx // Wo, idx % Wo
    mats = []
    for py in range(2):
        for px in range(2):
            src = (2 * ho + py) * W + (2 * wo + px)
            mats.append(jax.nn.one_hot(src, H * W, dtype=jnp.float32))
    return jnp.stack(mats).astype(jnp.bfloat16)


# --------------------------------------------------------------------------
# Pallas-call wrappers
# --------------------------------------------------------------------------
def conv_stack(x_nhwc, prep):
    """x:(N,H,W,Cin) bf16 NHWC -> c3:(N, (H//4)*(W//4), 2*C3) bf16."""
    N, H, W, Cin = x_nhwc.shape
    assert H == W and H % 4 == 0, "expects two rounds of 2x2/stride-2 pooling"
    K1 = 9 * Cin
    M1 = (H // 2) * (W // 2)
    M3 = prep["t3"].shape[1]
    C3o = prep["w3"].shape[2]

    p1 = _pool_position_stack(_im2col_3x3_pad1(x_nhwc))        # (N, 4, M1, K1)

    return pl.pallas_call(
        _conv_stack_kernel,
        out_shape=jax.ShapeDtypeStruct((N, M3, C3o), jnp.bfloat16),
        grid=(N,),
        in_specs=[
            pl.BlockSpec((None, 4, M1, K1), lambda n: (n, 0, 0, 0)),
            pl.BlockSpec(prep["w1"].shape, lambda n: (0, 0)),
            pl.BlockSpec(prep["b1"].shape, lambda n: (0, 0)),
            pl.BlockSpec(prep["t2"].shape, lambda n: (0, 0, 0)),
            pl.BlockSpec(prep["w2"].shape, lambda n: (0, 0, 0)),
            pl.BlockSpec(prep["b2"].shape, lambda n: (0, 0)),
            pl.BlockSpec(prep["q2"].shape, lambda n: (0, 0, 0)),
            pl.BlockSpec(prep["t3"].shape, lambda n: (0, 0, 0)),
            pl.BlockSpec(prep["w3"].shape, lambda n: (0, 0, 0)),
            pl.BlockSpec(prep["b3"].shape, lambda n: (0, 0)),
        ],
        out_specs=pl.BlockSpec((None, M3, C3o), lambda n: (n, 0, 0)),
        compiler_params=pltpu.CompilerParams(
            dimension_semantics=("parallel",)),
    )(p1, prep["w1"], prep["b1"], prep["t2"], prep["w2"], prep["b2"],
      prep["q2"], prep["t3"], prep["w3"], prep["b3"])


def fc_fused(x, w1, b1, w2, b2, w3, b3):
    """Three FC layers (+relu, +relu, +log_softmax) in one pallas_call."""
    N = x.shape[0]
    flops = 2 * N * (x.shape[1] * w1.shape[1]
                     + w1.shape[1] * w2.shape[1]
                     + w2.shape[1] * w3.shape[1])
    bytes_acc = int(sum(int(a.size) * a.dtype.itemsize
                        for a in (x, w1, w2, w3)))
    ce = pl.CostEstimate(flops=flops, transcendentals=N * (w3.shape[1] + 1),
                         bytes_accessed=bytes_acc)
    return pl.pallas_call(
        _fc_fused_kernel,
        out_shape=jax.ShapeDtypeStruct((N, w3.shape[1]), jnp.float32),
        cost_estimate=ce,
    )(x, w1, b1, w2, b2, w3, b3)


# --------------------------------------------------------------------------
# One-time weight preprocessing (off the critical path)
# --------------------------------------------------------------------------
def prepare_params(params, input_size=28):
    """Folds layout / fusion transforms into the parameters:
    - conv weights -> per-tap matmul form, bf16
    - conv2_1 / conv2_2 concatenated along Cout (both consume c1)
    - conv3_1 expanded block-diagonally so one matmul applies it to BOTH
      branch channel groups (matching the reference forward, which calls
      conv3_1_layer on both branches; conv3_2 is unused there)
    - tap-shift / pool one-hot selection matrices for the in-kernel im2col
    - linear1 rows permuted from torch NCHW-flatten order to the kernel's
      channels-last (h, w, c) flatten order
    """
    bf = jnp.bfloat16
    f32 = jnp.float32
    Cin = params["w1"].shape[2]
    C1 = params["w1"].shape[-1]
    C2 = params["w2_1"].shape[-1]
    C3 = params["w3_1"].shape[-1]
    L1 = params["wl1"].shape[-1]
    H2 = input_size // 2          # conv2 spatial grid (14)
    D = input_size // 4           # conv3 spatial grid (7)

    w1 = params["w1"].reshape(9 * Cin, C1).astype(bf)
    b1 = params["b1"].reshape(1, C1).astype(f32)

    w2 = jnp.concatenate([params["w2_1"], params["w2_2"]], axis=3)
    w2 = w2.reshape(9, C1, 2 * C2).astype(bf)
    b2 = jnp.concatenate([params["b2_1"], params["b2_2"]]).reshape(1, 2 * C2).astype(f32)

    w3 = params["w3_1"].reshape(9, C2, C3)
    z = jnp.zeros_like(w3)
    w3b = jnp.concatenate(
        [jnp.concatenate([w3, z], axis=2),     # branch-1 inputs -> branch-1 out
         jnp.concatenate([z, w3], axis=2)],    # branch-2 inputs -> branch-2 out
        axis=1).astype(bf)                     # (9, 2*C2, 2*C3)
    b3 = jnp.concatenate([params["b3_1"], params["b3_1"]]).reshape(1, 2 * C3).astype(f32)

    # torch flatten row index = c*D*D + h*D + w -> new index (h*D + w)*2C3 + c
    wl1 = (params["wl1"].reshape(2 * C3, D, D, L1)
           .transpose(1, 2, 0, 3).reshape(2 * C3 * D * D, L1).astype(bf))

    return {
        "w1": w1, "b1": b1,
        "w2": w2, "b2": b2,
        "w3": w3b, "b3": b3,
        "t2": _tap_shift_mats(H2, H2),     # (9, 196, 196)
        "q2": _pool_select_mats(H2, H2),   # (4, 49, 196)
        "t3": _tap_shift_mats(D, D),       # (9, 49, 49)
        "wl1": wl1, "bl1": params["bl1"].reshape(1, -1).astype(f32),
        "wl2": params["wl2"].astype(bf), "bl2": params["bl2"].reshape(1, -1).astype(f32),
        "wo": params["wo"].astype(bf), "bo": params["bo"].reshape(1, -1).astype(f32),
    }


# --------------------------------------------------------------------------
# Model forward (mirrors PyTorch Model.forward)
# --------------------------------------------------------------------------
def model_forward(prepared, x_nchw):
    x = jnp.transpose(x_nchw, (0, 2, 3, 1)).astype(jnp.bfloat16)   # NCHW->NHWC
    c3 = conv_stack(x, prepared)               # (N, 49, 2*C3), (h,w,c) order
    c5 = c3.reshape(c3.shape[0], -1)           # flatten; order folded into wl1
    return fc_fused(c5, prepared["wl1"], prepared["bl1"],
                    prepared["wl2"], prepared["bl2"],
                    prepared["wo"], prepared["bo"])


# --------------------------------------------------------------------------
# Pure-JAX float32 reference of the PyTorch forward (for validation only)
# --------------------------------------------------------------------------
def reference_forward(params, x_nchw):
    hi = jax.lax.Precision.HIGHEST
    x = jnp.transpose(x_nchw, (0, 2, 3, 1)).astype(jnp.float32)    # NHWC

    def conv(a, w, b):
        y = jax.lax.conv_general_dilated(
            a, w, window_strides=(1, 1), padding=((1, 1), (1, 1)),
            dimension_numbers=("NHWC", "HWIO", "NHWC"), precision=hi)
        return y + b.reshape(1, 1, 1, -1)

    def pool(a):
        return jax.lax.reduce_window(a, -jnp.inf, jax.lax.max,
                                     (1, 2, 2, 1), (1, 2, 2, 1), "VALID")

    relu = jax.nn.relu
    c1 = pool(relu(conv(x, params["w1"], params["b1"])))
    c2_1 = pool(relu(conv(c1, params["w2_1"], params["b2_1"])))
    c2_2 = pool(relu(conv(c1, params["w2_2"], params["b2_2"])))
    c3_1 = relu(conv(c2_1, params["w3_1"], params["b3_1"]))
    c3_2 = relu(conv(c2_2, params["w3_1"], params["b3_1"]))   # conv3_1 on BOTH
    n = x.shape[0]
    c5 = jnp.concatenate(
        [jnp.transpose(c3_1, (0, 3, 1, 2)).reshape(n, -1),    # torch NCHW flatten
         jnp.transpose(c3_2, (0, 3, 1, 2)).reshape(n, -1)], axis=1)
    l1 = relu(jnp.dot(c5, params["wl1"], precision=hi) + params["bl1"])
    l2 = relu(jnp.dot(l1, params["wl2"], precision=hi) + params["bl2"])
    o = jnp.dot(l2, params["wo"], precision=hi) + params["bo"]
    return jax.nn.log_softmax(o, axis=-1)


# --------------------------------------------------------------------------
# Deterministic parameter init (small config, torch-like flatten convention)
# --------------------------------------------------------------------------
def init_params(key, c1, c2, c3, l1, l2, c3_dim):
    ks = jax.random.split(key, 14)

    def conv_w(k, cin, cout):
        return jax.random.normal(k, (3, 3, cin, cout), jnp.float32) / jnp.sqrt(9.0 * cin)

    def lin_w(k, din, dout):
        return jax.random.normal(k, (din, dout), jnp.float32) / jnp.sqrt(float(din))

    flat = c3 * 2 * c3_dim * c3_dim   # torch NCHW-flatten length
    return {
        "w1": conv_w(ks[0], 1, c1),
        "b1": 0.01 * jax.random.normal(ks[1], (c1,), jnp.float32),
        "w2_1": conv_w(ks[2], c1, c2),
        "b2_1": 0.01 * jax.random.normal(ks[3], (c2,), jnp.float32),
        "w2_2": conv_w(ks[4], c1, c2),
        "b2_2": 0.01 * jax.random.normal(ks[5], (c2,), jnp.float32),
        "w3_1": conv_w(ks[6], c2, c3),
        "b3_1": 0.01 * jax.random.normal(ks[7], (c3,), jnp.float32),
        "wl1": lin_w(ks[8], flat, l1),
        "bl1": 0.01 * jax.random.normal(ks[9], (l1,), jnp.float32),
        "wl2": lin_w(ks[10], l1, l2),
        "bl2": 0.01 * jax.random.normal(ks[11], (l2,), jnp.float32),
        "wo": lin_w(ks[12], l2, 10),
        "bo": 0.01 * jax.random.normal(ks[13], (10,), jnp.float32),
    }


if __name__ == "__main__":
    key = jax.random.PRNGKey(0)
    kx, kp = jax.random.split(key)

    # Small-shape instantiation of the module's `params` dict:
    #   conv channels 1 -> 8 -> 16 -> 32, linear 3136 -> 64 -> 32 -> 10.
    # input_size is fixed at 28 by the module, so spatial is 28 -> 14 -> 7.
    C1, C2, C3 = 8, 16, 32
    L1, L2 = 64, 32
    INPUT_SIZE = 28

    params = init_params(kp, C1, C2, C3, L1, L2, INPUT_SIZE // 4)
    # Quantize params to bf16-representable values so the f32 reference and the
    # bf16 kernel path share identical weights (activation rounding remains).
    params = jax.tree_util.tree_map(
        lambda a: a.astype(jnp.bfloat16).astype(jnp.float32), params)
    prepared = prepare_params(params, INPUT_SIZE)

    x = jax.random.normal(kx, (2, 1, 28, 28), jnp.float32)   # NCHW, batch=2

    fwd = jax.jit(model_forward)
    out = jax.block_until_ready(fwd(prepared, x))
    assert out.shape == (2, 10), out.shape

    # log_softmax rows must exponentiate-and-sum to 1
    row_sums = jnp.exp(out).sum(axis=-1)
    assert bool(jnp.all(jnp.abs(row_sums - 1.0) < 1e-3)), row_sums

    # compare against a pure-JAX f32 reference (bf16 activation tolerance)
    ref = reference_forward(params, x)
    err = float(jnp.max(jnp.abs(out - ref)))
    assert err < 0.2, f"max |pallas - reference| = {err}"

    print("KERNEL_OK")
</pallas_src>

<mosaic_0001>
module attributes {stable_mosaic.version = 11 : i64} {
  func.func @_conv_stack_kernel(%arg0: i32, %arg1: memref<1x4x196x9xbf16, #tpu.memory_space<vmem>>, %arg2: memref<9x8xbf16, #tpu.memory_space<vmem>>, %arg3: memref<1x8xf32, #tpu.memory_space<vmem>>, %arg4: memref<9x196x196xbf16, #tpu.memory_space<vmem>>, %arg5: memref<9x8x32xbf16, #tpu.memory_space<vmem>>, %arg6: memref<1x32xf32, #tpu.memory_space<vmem>>, %arg7: memref<4x49x196xbf16, #tpu.memory_space<vmem>>, %arg8: memref<9x49x49xbf16, #tpu.memory_space<vmem>>, %arg9: memref<9x32x64xbf16, #tpu.memory_space<vmem>>, %arg10: memref<1x64xf32, #tpu.memory_space<vmem>>, %arg11: memref<1x49x64xbf16, #tpu.memory_space<vmem>>) attributes {dimension_semantics = [#tpu.dimension_semantics<parallel>], iteration_bounds = array<i64: 2>, scalar_prefetch = 0 : i64, scratch_operands = 0 : i64, tpu.core_type = #tpu.core_type<tc>, window_params = [{transform_indices = @transform_0, window_bounds = array<i64: 1, 4, 196, 9>}, {pipeline_mode = #tpu.pipeline_mode<synchronous>, transform_indices = @transform_1, window_bounds = array<i64: 9, 8>}, {pipeline_mode = #tpu.pipeline_mode<synchronous>, transform_indices = @transform_2, window_bounds = array<i64: 1, 8>}, {pipeline_mode = #tpu.pipeline_mode<synchronous>, transform_indices = @transform_3, window_bounds = array<i64: 9, 196, 196>}, {pipeline_mode = #tpu.pipeline_mode<synchronous>, transform_indices = @transform_4, window_bounds = array<i64: 9, 8, 32>}, {pipeline_mode = #tpu.pipeline_mode<synchronous>, transform_indices = @transform_5, window_bounds = array<i64: 1, 32>}, {pipeline_mode = #tpu.pipeline_mode<synchronous>, transform_indices = @transform_6, window_bounds = array<i64: 4, 49, 196>}, {pipeline_mode = #tpu.pipeline_mode<synchronous>, transform_indices = @transform_7, window_bounds = array<i64: 9, 49, 49>}, {pipeline_mode = #tpu.pipeline_mode<synchronous>, transform_indices = @transform_8, window_bounds = array<i64: 9, 32, 64>}, {pipeline_mode = #tpu.pipeline_mode<synchronous>, transform_indices = @transform_9, window_bounds = array<i64: 1, 64>}, {transform_indices = @transform_10, window_bounds = array<i64: 1, 49, 64>}]} {
    %c0 = arith.constant 0 : index
    %c0_0 = arith.constant 0 : index
    %0 = vector.load %arg2[%c0, %c0_0] : memref<9x8xbf16, #tpu.memory_space<vmem>>, vector<9x8xbf16>
    %c0_1 = arith.constant 0 : index
    %c0_2 = arith.constant 0 : index
    %1 = vector.load %arg3[%c0_1, %c0_2] : memref<1x8xf32, #tpu.memory_space<vmem>>, vector<1x8xf32>
    %c0_3 = arith.constant 0 : index
    %c0_4 = arith.constant 0 : index
    %c0_5 = arith.constant 0 : index
    %c0_6 = arith.constant 0 : index
    %2 = vector.load %arg1[%c0_3, %c0_4, %c0_5, %c0_6] : memref<1x4x196x9xbf16, #tpu.memory_space<vmem>>, vector<1x1x196x9xbf16>
    %3 = vector.shape_cast %2 : vector<1x1x196x9xbf16> to vector<196x9xbf16>
    %cst = arith.constant dense<0.000000e+00> : vector<196x8xf32>
    %4 = tpu.matmul %3, %0, %cst {dimension_numbers = #tpu.dot_dimension_numbers<[1], [0], [0], [1], [0, 0, 1, 1], [], []>} : vector<196x9xbf16>, vector<9x8xbf16>, vector<196x8xf32> -> vector<196x8xf32>
    %5 = vector.broadcast %1 : vector<1x8xf32> to vector<196x8xf32>
    %6 = arith.addf %4, %5 : vector<196x8xf32>
    %cst_7 = arith.constant 0.000000e+00 : f32
    %7 = vector.broadcast %cst_7 : f32 to vector<196x8xf32>
    %8 = arith.maximumf %6, %7 : vector<196x8xf32>
    %c0_8 = arith.constant 0 : index
    %c1 = arith.constant 1 : index
    %c0_9 = arith.constant 0 : index
    %c0_10 = arith.constant 0 : index
    %9 = vector.load %arg1[%c0_8, %c1, %c0_9, %c0_10] : memref<1x4x196x9xbf16, #tpu.memory_space<vmem>>, vector<1x1x196x9xbf16>
    %10 = vector.shape_cast %9 : vector<1x1x196x9xbf16> to vector<196x9xbf16>
    %cst_11 = arith.constant dense<0.000000e+00> : vector<196x8xf32>
    %11 = tpu.matmul %10, %0, %cst_11 {dimension_numbers = #tpu.dot_dimension_numbers<[1], [0], [0], [1], [0, 0, 1, 1], [], []>} : vector<196x9xbf16>, vector<9x8xbf16>, vector<196x8xf32> -> vector<196x8xf32>
    %12 = vector.broadcast %1 : vector<1x8xf32> to vector<196x8xf32>
    %13 = arith.addf %11, %12 : vector<196x8xf32>
    %cst_12 = arith.constant 0.000000e+00 : f32
    %14 = vector.broadcast %cst_12 : f32 to vector<196x8xf32>
    %15 = arith.maximumf %13, %14 : vector<196x8xf32>
    %16 = arith.maximumf %8, %15 : vector<196x8xf32>
    %c0_13 = arith.constant 0 : index
    %c2 = arith.constant 2 : index
    %c0_14 = arith.constant 0 : index
    %c0_15 = arith.constant 0 : index
    %17 = vector.load %arg1[%c0_13, %c2, %c0_14, %c0_15] : memref<1x4x196x9xbf16, #tpu.memory_space<vmem>>, vector<1x1x196x9xbf16>
    %18 = vector.shape_cast %17 : vector<1x1x196x9xbf16> to vector<196x9xbf16>
    %cst_16 = arith.constant dense<0.000000e+00> : vector<196x8xf32>
    %19 = tpu.matmul %18, %0, %cst_16 {dimension_numbers = #tpu.dot_dimension_numbers<[1], [0], [0], [1], [0, 0, 1, 1], [], []>} : vector<196x9xbf16>, vector<9x8xbf16>, vector<196x8xf32> -> vector<196x8xf32>
    %20 = vector.broadcast %1 : vector<1x8xf32> to vector<196x8xf32>
    %21 = arith.addf %19, %20 : vector<196x8xf32>
    %cst_17 = arith.constant 0.000000e+00 : f32
    %22 = vector.broadcast %cst_17 : f32 to vector<196x8xf32>
    %23 = arith.maximumf %21, %22 : vector<196x8xf32>
    %24 = arith.maximumf %16, %23 : vector<196x8xf32>
    %c0_18 = arith.constant 0 : index
    %c3 = arith.constant 3 : index
    %c0_19 = arith.constant 0 : index
    %c0_20 = arith.constant 0 : index
    %25 = vector.load %arg1[%c0_18, %c3, %c0_19, %c0_20] : memref<1x4x196x9xbf16, #tpu.memory_space<vmem>>, vector<1x1x196x9xbf16>
    %26 = vector.shape_cast %25 : vector<1x1x196x9xbf16> to vector<196x9xbf16>
    %cst_21 = arith.constant dense<0.000000e+00> : vector<196x8xf32>
    %27 = tpu.matmul %26, %0, %cst_21 {dimension_numbers = #tpu.dot_dimension_numbers<[1], [0], [0], [1], [0, 0, 1, 1], [], []>} : vector<196x9xbf16>, vector<9x8xbf16>, vector<196x8xf32> -> vector<196x8xf32>
    %28 = vector.broadcast %1 : vector<1x8xf32> to vector<196x8xf32>
    %29 = arith.addf %27, %28 : vector<196x8xf32>
    %cst_22 = arith.constant 0.000000e+00 : f32
    %30 = vector.broadcast %cst_22 : f32 to vector<196x8xf32>
    %31 = arith.maximumf %29, %30 : vector<196x8xf32>
    %32 = arith.maximumf %24, %31 : vector<196x8xf32>
    %33 = arith.truncf %32 : vector<196x8xf32> to vector<196x8xbf16>
    %cst_23 = arith.constant 0.000000e+00 : f32
    %34 = vector.broadcast %cst_23 : f32 to vector<196x32xf32>
    %c0_24 = arith.constant 0 : index
    %c0_25 = arith.constant 0 : index
    %c0_26 = arith.constant 0 : index
    %35 = vector.load %arg4[%c0_24, %c0_25, %c0_26] : memref<9x196x196xbf16, #tpu.memory_space<vmem>>, vector<1x196x196xbf16>
    %36 = vector.shape_cast %35 : vector<1x196x196xbf16> to vector<196x196xbf16>
    %cst_27 = arith.constant dense<0.000000e+00> : vector<196x8xf32>
    %37 = tpu.matmul %36, %33, %cst_27 {dimension_numbers = #tpu.dot_dimension_numbers<[1], [0], [0], [1], [0, 0, 1, 1], [], []>} : vector<196x196xbf16>, vector<196x8xbf16>, vector<196x8xf32> -> vector<196x8xf32>
    %38 = arith.truncf %37 : vector<196x8xf32> to vector<196x8xbf16>
    %c0_28 = arith.constant 0 : index
    %c0_29 = arith.constant 0 : index
    %c0_30 = arith.constant 0 : index
    %39 = vector.load %arg5[%c0_28, %c0_29, %c0_30] : memref<9x8x32xbf16, #tpu.memory_space<vmem>>, vector<1x8x32xbf16>
    %40 = vector.shape_cast %39 : vector<1x8x32xbf16> to vector<8x32xbf16>
    %cst_31 = arith.constant dense<0.000000e+00> : vector<196x32xf32>
    %41 = tpu.matmul %38, %40, %cst_31 {dimension_numbers = #tpu.dot_dimension_numbers<[1], [0], [0], [1], [0, 0, 1, 1], [], []>} : vector<196x8xbf16>, vector<8x32xbf16>, vector<196x32xf32> -> vector<196x32xf32>
    %42 = arith.addf %34, %41 : vector<196x32xf32>
    %c1_32 = arith.constant 1 : index
    %c0_33 = arith.constant 0 : index
    %c0_34 = arith.constant 0 : index
    %43 = vector.load %arg4[%c1_32, %c0_33, %c0_34] : memref<9x196x196xbf16, #tpu.memory_space<vmem>>, vector<1x196x196xbf16>
    %44 = vector.shape_cast %43 : vector<1x196x196xbf16> to vector<196x196xbf16>
    %cst_35 = arith.constant dense<0.000000e+00> : vector<196x8xf32>
    %45 = tpu.matmul %44, %33, %cst_35 {dimension_numbers = #tpu.dot_dimension_numbers<[1], [0], [0], [1], [0, 0, 1, 1], [], []>} : vector<196x196xbf16>, vector<196x8xbf16>, vector<196x8xf32> -> vector<196x8xf32>
    %46 = arith.truncf %45 : vector<196x8xf32> to vector<196x8xbf16>
    %c1_36 = arith.constant 1 : index
    %c0_37 = arith.constant 0 : index
    %c0_38 = arith.constant 0 : index
    %47 = vector.load %arg5[%c1_36, %c0_37, %c0_38] : memref<9x8x32xbf16, #tpu.memory_space<vmem>>, vector<1x8x32xbf16>
    %48 = vector.shape_cast %47 : vector<1x8x32xbf16> to vector<8x32xbf16>
    %cst_39 = arith.constant dense<0.000000e+00> : vector<196x32xf32>
    %49 = tpu.matmul %46, %48, %cst_39 {dimension_numbers = #tpu.dot_dimension_numbers<[1], [0], [0], [1], [0, 0, 1, 1], [], []>} : vector<196x8xbf16>, vector<8x32xbf16>, vector<196x32xf32> -> vector<196x32xf32>
    %50 = arith.addf %42, %49 : vector<196x32xf32>
    %c2_40 = arith.constant 2 : index
    %c0_41 = arith.constant 0 : index
    %c0_42 = arith.constant 0 : index
    %51 = vector.load %arg4[%c2_40, %c0_41, %c0_42] : memref<9x196x196xbf16, #tpu.memory_space<vmem>>, vector<1x196x196xbf16>
    %52 = vector.shape_cast %51 : vector<1x196x196xbf16> to vector<196x196xbf16>
    %cst_43 = arith.constant dense<0.000000e+00> : vector<196x8xf32>
    %53 = tpu.matmul %52, %33, %cst_43 {dimension_numbers = #tpu.dot_dimension_numbers<[1], [0], [0], [1], [0, 0, 1, 1], [], []>} : vector<196x196xbf16>, vector<196x8xbf16>, vector<196x8xf32> -> vector<196x8xf32>
    %54 = arith.truncf %53 : vector<196x8xf32> to vector<196x8xbf16>
    %c2_44 = arith.constant 2 : index
    %c0_45 = arith.constant 0 : index
    %c0_46 = arith.constant 0 : index
    %55 = vector.load %arg5[%c2_44, %c0_45, %c0_46] : memref<9x8x32xbf16, #tpu.memory_space<vmem>>, vector<1x8x32xbf16>
    %56 = vector.shape_cast %55 : vector<1x8x32xbf16> to vector<8x32xbf16>
    %cst_47 = arith.constant dense<0.000000e+00> : vector<196x32xf32>
    %57 = tpu.matmul %54, %56, %cst_47 {dimension_numbers = #tpu.dot_dimension_numbers<[1], [0], [0], [1], [0, 0, 1, 1], [], []>} : vector<196x8xbf16>, vector<8x32xbf16>, vector<196x32xf32> -> vector<196x32xf32>
    %58 = arith.addf %50, %57 : vector<196x32xf32>
    %c3_48 = arith.constant 3 : index
    %c0_49 = arith.constant 0 : index
    %c0_50 = arith.constant 0 : index
    %59 = vector.load %arg4[%c3_48, %c0_49, %c0_50] : memref<9x196x196xbf16, #tpu.memory_space<vmem>>, vector<1x196x196xbf16>
    %60 = vector.shape_cast %59 : vector<1x196x196xbf16> to vector<196x196xbf16>
    %cst_51 = arith.constant dense<0.000000e+00> : vector<196x8xf32>
    %61 = tpu.matmul %60, %33, %cst_51 {dimension_numbers = #tpu.dot_dimension_numbers<[1], [0], [0], [1], [0, 0, 1, 1], [], []>} : vector<196x196xbf16>, vector<196x8xbf16>, vector<196x8xf32> -> vector<196x8xf32>
    %62 = arith.truncf %61 : vector<196x8xf32> to vector<196x8xbf16>
    %c3_52 = arith.constant 3 : index
    %c0_53 = arith.constant 0 : index
    %c0_54 = arith.constant 0 : index
    %63 = vector.load %arg5[%c3_52, %c0_53, %c0_54] : memref<9x8x32xbf16, #tpu.memory_space<vmem>>, vector<1x8x32xbf16>
    %64 = vector.shape_cast %63 : vector<1x8x32xbf16> to vector<8x32xbf16>
    %cst_55 = arith.constant dense<0.000000e+00> : vector<196x32xf32>
    %65 = tpu.matmul %62, %64, %cst_55 {dimension_numbers = #tpu.dot_dimension_numbers<[1], [0], [0], [1], [0, 0, 1, 1], [], []>} : vector<196x8xbf16>, vector<8x32xbf16>, vector<196x32xf32> -> vector<196x32xf32>
    %66 = arith.addf %58, %65 : vector<196x32xf32>
    %c4 = arith.constant 4 : index
    %c0_56 = arith.constant 0 : index
    %c0_57 = arith.constant 0 : index
    %67 = vector.load %arg4[%c4, %c0_56, %c0_57] : memref<9x196x196xbf16, #tpu.memory_space<vmem>>, vector<1x196x196xbf16>
    %68 = vector.shape_cast %67 : vector<1x196x196xbf16> to vector<196x196xbf16>
    %cst_58 = arith.constant dense<0.000000e+00> : vector<196x8xf32>
    %69 = tpu.matmul %68, %33, %cst_58 {dimension_numbers = #tpu.dot_dimension_numbers<[1], [0], [0], [1], [0, 0, 1, 1], [], []>} : vector<196x196xbf16>, vector<196x8xbf16>, vector<196x8xf32> -> vector<196x8xf32>
    %70 = arith.truncf %69 : vector<196x8xf32> to vector<196x8xbf16>
    %c4_59 = arith.constant 4 : index
    %c0_60 = arith.constant 0 : index
    %c0_61 = arith.constant 0 : index
    %71 = vector.load %arg5[%c4_59, %c0_60, %c0_61] : memref<9x8x32xbf16, #tpu.memory_space<vmem>>, vector<1x8x32xbf16>
    %72 = vector.shape_cast %71 : vector<1x8x32xbf16> to vector<8x32xbf16>
    %cst_62 = arith.constant dense<0.000000e+00> : vector<196x32xf32>
    %73 = tpu.matmul %70, %72, %cst_62 {dimension_numbers = #tpu.dot_dimension_numbers<[1], [0], [0], [1], [0, 0, 1, 1], [], []>} : vector<196x8xbf16>, vector<8x32xbf16>, vector<196x32xf32> -> vector<196x32xf32>
    %74 = arith.addf %66, %73 : vector<196x32xf32>
    %c5 = arith.constant 5 : index
    %c0_63 = arith.constant 0 : index
    %c0_64 = arith.constant 0 : index
    %75 = vector.load %arg4[%c5, %c0_63, %c0_64] : memref<9x196x196xbf16, #tpu.memory_space<vmem>>, vector<1x196x196xbf16>
    %76 = vector.shape_cast %75 : vector<1x196x196xbf16> to vector<196x196xbf16>
    %cst_65 = arith.constant dense<0.000000e+00> : vector<196x8xf32>
    %77 = tpu.matmul %76, %33, %cst_65 {dimension_numbers = #tpu.dot_dimension_numbers<[1], [0], [0], [1], [0, 0, 1, 1], [], []>} : vector<196x196xbf16>, vector<196x8xbf16>, vector<196x8xf32> -> vector<196x8xf32>
    %78 = arith.truncf %77 : vector<196x8xf32> to vector<196x8xbf16>
    %c5_66 = arith.constant 5 : index
    %c0_67 = arith.constant 0 : index
    %c0_68 = arith.constant 0 : index
    %79 = vector.load %arg5[%c5_66, %c0_67, %c0_68] : memref<9x8x32xbf16, #tpu.memory_space<vmem>>, vector<1x8x32xbf16>
    %80 = vector.shape_cast %79 : vector<1x8x32xbf16> to vector<8x32xbf16>
    %cst_69 = arith.constant dense<0.000000e+00> : vector<196x32xf32>
    %81 = tpu.matmul %78, %80, %cst_69 {dimension_numbers = #tpu.dot_dimension_numbers<[1], [0], [0], [1], [0, 0, 1, 1], [], []>} : vector<196x8xbf16>, vector<8x32xbf16>, vector<196x32xf32> -> vector<196x32xf32>
    %82 = arith.addf %74, %81 : vector<196x32xf32>
    %c6 = arith.constant 6 : index
    %c0_70 = arith.constant 0 : index
    %c0_71 = arith.constant 0 : index
    %83 = vector.load %arg4[%c6, %c0_70, %c0_71] : memref<9x196x196xbf16, #tpu.memory_space<vmem>>, vector<1x196x196xbf16>
    %84 = vector.shape_cast %83 : vector<1x196x196xbf16> to vector<196x196xbf16>
    %cst_72 = arith.constant dense<0.000000e+00> : vector<196x8xf32>
    %85 = tpu.matmul %84, %33, %cst_72 {dimension_numbers = #tpu.dot_dimension_numbers<[1], [0], [0], [1], [0, 0, 1, 1], [], []>} : vector<196x196xbf16>, vector<196x8xbf16>, vector<196x8xf32> -> vector<196x8xf32>
    %86 = arith.truncf %85 : vector<196x8xf32> to vector<196x8xbf16>
    %c6_73 = arith.constant 6 : index
    %c0_74 = arith.constant 0 : index
    %c0_75 = arith.constant 0 : index
    %87 = vector.load %arg5[%c6_73, %c0_74, %c0_75] : memref<9x8x32xbf16, #tpu.memory_space<vmem>>, vector<1x8x32xbf16>
    %88 = vector.shape_cast %87 : vector<1x8x32xbf16> to vector<8x32xbf16>
    %cst_76 = arith.constant dense<0.000000e+00> : vector<196x32xf32>
    %89 = tpu.matmul %86, %88, %cst_76 {dimension_numbers = #tpu.dot_dimension_numbers<[1], [0], [0], [1], [0, 0, 1, 1], [], []>} : vector<196x8xbf16>, vector<8x32xbf16>, vector<196x32xf32> -> vector<196x32xf32>
    %90 = arith.addf %82, %89 : vector<196x32xf32>
    %c7 = arith.constant 7 : index
    %c0_77 = arith.constant 0 : index
    %c0_78 = arith.constant 0 : index
    %91 = vector.load %arg4[%c7, %c0_77, %c0_78] : memref<9x196x196xbf16, #tpu.memory_space<vmem>>, vector<1x196x196xbf16>
    %92 = vector.shape_cast %91 : vector<1x196x196xbf16> to vector<196x196xbf16>
    %cst_79 = arith.constant dense<0.000000e+00> : vector<196x8xf32>
    %93 = tpu.matmul %92, %33, %cst_79 {dimension_numbers = #tpu.dot_dimension_numbers<[1], [0], [0], [1], [0, 0, 1, 1], [], []>} : vector<196x196xbf16>, vector<196x8xbf16>, vector<196x8xf32> -> vector<196x8xf32>
    %94 = arith.truncf %93 : vector<196x8xf32> to vector<196x8xbf16>
    %c7_80 = arith.constant 7 : index
    %c0_81 = arith.constant 0 : index
    %c0_82 = arith.constant 0 : index
    %95 = vector.load %arg5[%c7_80, %c0_81, %c0_82] : memref<9x8x32xbf16, #tpu.memory_space<vmem>>, vector<1x8x32xbf16>
    %96 = vector.shape_cast %95 : vector<1x8x32xbf16> to vector<8x32xbf16>
    %cst_83 = arith.constant dense<0.000000e+00> : vector<196x32xf32>
    %97 = tpu.matmul %94, %96, %cst_83 {dimension_numbers = #tpu.dot_dimension_numbers<[1], [0], [0], [1], [0, 0, 1, 1], [], []>} : vector<196x8xbf16>, vector<8x32xbf16>, vector<196x32xf32> -> vector<196x32xf32>
    %98 = arith.addf %90, %97 : vector<196x32xf32>
    %c8 = arith.constant 8 : index
    %c0_84 = arith.constant 0 : index
    %c0_85 = arith.constant 0 : index
    %99 = vector.load %arg4[%c8, %c0_84, %c0_85] : memref<9x196x196xbf16, #tpu.memory_space<vmem>>, vector<1x196x196xbf16>
    %100 = vector.shape_cast %99 : vector<1x196x196xbf16> to vector<196x196xbf16>
    %cst_86 = arith.constant dense<0.000000e+00> : vector<196x8xf32>
    %101 = tpu.matmul %100, %33, %cst_86 {dimension_numbers = #tpu.dot_dimension_numbers<[1], [0], [0], [1], [0, 0, 1, 1], [], []>} : vector<196x196xbf16>, vector<196x8xbf16>, vector<196x8xf32> -> vector<196x8xf32>
    %102 = arith.truncf %101 : vector<196x8xf32> to vector<196x8xbf16>
    %c8_87 = arith.constant 8 : index
    %c0_88 = arith.constant 0 : index
    %c0_89 = arith.constant 0 : index
    %103 = vector.load %arg5[%c8_87, %c0_88, %c0_89] : memref<9x8x32xbf16, #tpu.memory_space<vmem>>, vector<1x8x32xbf16>
    %104 = vector.shape_cast %103 : vector<1x8x32xbf16> to vector<8x32xbf16>
    %cst_90 = arith.constant dense<0.000000e+00> : vector<196x32xf32>
    %105 = tpu.matmul %102, %104, %cst_90 {dimension_numbers = #tpu.dot_dimension_numbers<[1], [0], [0], [1], [0, 0, 1, 1], [], []>} : vector<196x8xbf16>, vector<8x32xbf16>, vector<196x32xf32> -> vector<196x32xf32>
    %106 = arith.addf %98, %105 : vector<196x32xf32>
    %c0_91 = arith.constant 0 : index
    %c0_92 = arith.constant 0 : index
    %107 = vector.load %arg6[%c0_91, %c0_92] : memref<1x32xf32, #tpu.memory_space<vmem>>, vector<1x32xf32>
    %108 = vector.broadcast %107 : vector<1x32xf32> to vector<196x32xf32>
    %109 = arith.addf %106, %108 : vector<196x32xf32>
    %cst_93 = arith.constant 0.000000e+00 : f32
    %110 = vector.broadcast %cst_93 : f32 to vector<196x32xf32>
    %111 = arith.maximumf %109, %110 : vector<196x32xf32>
    %112 = arith.truncf %111 : vector<196x32xf32> to vector<196x32xbf16>
    %c0_94 = arith.constant 0 : index
    %c0_95 = arith.constant 0 : index
    %c0_96 = arith.constant 0 : index
    %113 = vector.load %arg7[%c0_94, %c0_95, %c0_96] : memref<4x49x196xbf16, #tpu.memory_space<vmem>>, vector<1x49x196xbf16>
    %114 = vector.shape_cast %113 : vector<1x49x196xbf16> to vector<49x196xbf16>
    %cst_97 = arith.constant dense<0.000000e+00> : vector<49x32xf32>
    %115 = tpu.matmul %114, %112, %cst_97 {dimension_numbers = #tpu.dot_dimension_numbers<[1], [0], [0], [1], [0, 0, 1, 1], [], []>} : vector<49x196xbf16>, vector<196x32xbf16>, vector<49x32xf32> -> vector<49x32xf32>
    %c1_98 = arith.constant 1 : index
    %c0_99 = arith.constant 0 : index
    %c0_100 = arith.constant 0 : index
    %116 = vector.load %arg7[%c1_98, %c0_99, %c0_100] : memref<4x49x196xbf16, #tpu.memory_space<vmem>>, vector<1x49x196xbf16>
    %117 = vector.shape_cast %116 : vector<1x49x196xbf16> to vector<49x196xbf16>
    %cst_101 = arith.constant dense<0.000000e+00> : vector<49x32xf32>
    %118 = tpu.matmul %117, %112, %cst_101 {dimension_numbers = #tpu.dot_dimension_numbers<[1], [0], [0], [1], [0, 0, 1, 1], [], []>} : vector<49x196xbf16>, vector<196x32xbf16>, vector<49x32xf32> -> vector<49x32xf32>
    %119 = arith.maximumf %115, %118 : vector<49x32xf32>
    %c2_102 = arith.constant 2 : index
    %c0_103 = arith.constant 0 : index
    %c0_104 = arith.constant 0 : index
    %120 = vector.load %arg7[%c2_102, %c0_103, %c0_104] : memref<4x49x196xbf16, #tpu.memory_space<vmem>>, vector<1x49x196xbf16>
    %121 = vector.shape_cast %120 : vector<1x49x196xbf16> to vector<49x196xbf16>
    %cst_105 = arith.constant dense<0.000000e+00> : vector<49x32xf32>
    %122 = tpu.matmul %121, %112, %cst_105 {dimension_numbers = #tpu.dot_dimension_numbers<[1], [0], [0], [1], [0, 0, 1, 1], [], []>} : vector<49x196xbf16>, vector<196x32xbf16>, vector<49x32xf32> -> vector<49x32xf32>
    %123 = arith.maximumf %119, %122 : vector<49x32xf32>
    %c3_106 = arith.constant 3 : index
    %c0_107 = arith.constant 0 : index
    %c0_108 = arith.constant 0 : index
    %124 = vector.load %arg7[%c3_106, %c0_107, %c0_108] : memref<4x49x196xbf16, #tpu.memory_space<vmem>>, vector<1x49x196xbf16>
    %125 = vector.shape_cast %124 : vector<1x49x196xbf16> to vector<49x196xbf16>
    %cst_109 = arith.constant dense<0.000000e+00> : vector<49x32xf32>
    %126 = tpu.matmul %125, %112, %cst_109 {dimension_numbers = #tpu.dot_dimension_numbers<[1], [0], [0], [1], [0, 0, 1, 1], [], []>} : vector<49x196xbf16>, vector<196x32xbf16>, vector<49x32xf32> -> vector<49x32xf32>
    %127 = arith.maximumf %123, %126 : vector<49x32xf32>
    %128 = arith.truncf %127 : vector<49x32xf32> to vector<49x32xbf16>
    %cst_110 = arith.constant 0.000000e+00 : f32
    %129 = vector.broadcast %cst_110 : f32 to vector<49x64xf32>
    %c0_111 = arith.constant 0 : index
    %c0_112 = arith.constant 0 : index
    %c0_113 = arith.constant 0 : index
    %130 = vector.load %arg8[%c0_111, %c0_112, %c0_113] : memref<9x49x49xbf16, #tpu.memory_space<vmem>>, vector<1x49x49xbf16>
    %131 = vector.shape_cast %130 : vector<1x49x49xbf16> to vector<49x49xbf16>
    %cst_114 = arith.constant dense<0.000000e+00> : vector<49x32xf32>
    %132 = tpu.matmul %131, %128, %cst_114 {dimension_numbers = #tpu.dot_dimension_numbers<[1], [0], [0], [1], [0, 0, 1, 1], [], []>} : vector<49x49xbf16>, vector<49x32xbf16>, vector<49x32xf32> -> vector<49x32xf32>
    %133 = arith.truncf %132 : vector<49x32xf32> to vector<49x32xbf16>
    %c0_115 = arith.constant 0 : index
    %c0_116 = arith.constant 0 : index
    %c0_117 = arith.constant 0 : index
    %134 = vector.load %arg9[%c0_115, %c0_116, %c0_117] : memref<9x32x64xbf16, #tpu.memory_space<vmem>>, vector<1x32x64xbf16>
    %135 = vector.shape_cast %134 : vector<1x32x64xbf16> to vector<32x64xbf16>
    %cst_118 = arith.constant dense<0.000000e+00> : vector<49x64xf32>
    %136 = tpu.matmul %133, %135, %cst_118 {dimension_numbers = #tpu.dot_dimension_numbers<[1], [0], [0], [1], [0, 0, 1, 1], [], []>} : vector<49x32xbf16>, vector<32x64xbf16>, vector<49x64xf32> -> vector<49x64xf32>
    %137 = arith.addf %129, %136 : vector<49x64xf32>
    %c1_119 = arith.constant 1 : index
    %c0_120 = arith.constant 0 : index
    %c0_121 = arith.constant 0 : index
    %138 = vector.load %arg8[%c1_119, %c0_120, %c0_121] : memref<9x49x49xbf16, #tpu.memory_space<vmem>>, vector<1x49x49xbf16>
    %139 = vector.shape_cast %138 : vector<1x49x49xbf16> to vector<49x49xbf16>
    %cst_122 = arith.constant dense<0.000000e+00> : vector<49x32xf32>
    %140 = tpu.matmul %139, %128, %cst_122 {dimension_numbers = #tpu.dot_dimension_numbers<[1], [0], [0], [1], [0, 0, 1, 1], [], []>} : vector<49x49xbf16>, vector<49x32xbf16>, vector<49x32xf32> -> vector<49x32xf32>
    %141 = arith.truncf %140 : vector<49x32xf32> to vector<49x32xbf16>
    %c1_123 = arith.constant 1 : index
    %c0_124 = arith.constant 0 : index
    %c0_125 = arith.constant 0 : index
    %142 = vector.load %arg9[%c1_123, %c0_124, %c0_125] : memref<9x32x64xbf16, #tpu.memory_space<vmem>>, vector<1x32x64xbf16>
    %143 = vector.shape_cast %142 : vector<1x32x64xbf16> to vector<32x64xbf16>
    %cst_126 = arith.constant dense<0.000000e+00> : vector<49x64xf32>
    %144 = tpu.matmul %141, %143, %cst_126 {dimension_numbers = #tpu.dot_dimension_numbers<[1], [0], [0], [1], [0, 0, 1, 1], [], []>} : vector<49x32xbf16>, vector<32x64xbf16>, vector<49x64xf32> -> vector<49x64xf32>
    %145 = arith.addf %137, %144 : vector<49x64xf32>
    %c2_127 = arith.constant 2 : index
    %c0_128 = arith.constant 0 : index
    %c0_129 = arith.constant 0 : index
    %146 = vector.load %arg8[%c2_127, %c0_128, %c0_129] : memref<9x49x49xbf16, #tpu.memory_space<vmem>>, vector<1x49x49xbf16>
    %147 = vector.shape_cast %146 : vector<1x49x49xbf16> to vector<49x49xbf16>
    %cst_130 = arith.constant dense<0.000000e+00> : vector<49x32xf32>
    %148 = tpu.matmul %147, %128, %cst_130 {dimension_numbers = #tpu.dot_dimension_numbers<[1], [0], [0], [1], [0, 0, 1, 1], [], []>} : vector<49x49xbf16>, vector<49x32xbf16>, vector<49x32xf32> -> vector<49x32xf32>
    %149 = arith.truncf %148 : vector<49x32xf32> to vector<49x32xbf16>
    %c2_131 = arith.constant 2 : index
    %c0_132 = arith.constant 0 : index
    %c0_133 = arith.constant 0 : index
    %150 = vector.load %arg9[%c2_131, %c0_132, %c0_133] : memref<9x32x64xbf16, #tpu.memory_space<vmem>>, vector<1x32x64xbf16>
    %151 = vector.shape_cast %150 : vector<1x32x64xbf16> to vector<32x64xbf16>
    %cst_134 = arith.constant dense<0.000000e+00> : vector<49x64xf32>
    %152 = tpu.matmul %149, %151, %cst_134 {dimension_numbers = #tpu.dot_dimension_numbers<[1], [0], [0], [1], [0, 0, 1, 1], [], []>} : vector<49x32xbf16>, vector<32x64xbf16>, vector<49x64xf32> -> vector<49x64xf32>
    %153 = arith.addf %145, %152 : vector<49x64xf32>
    %c3_135 = arith.constant 3 : index
    %c0_136 = arith.constant 0 : index
    %c0_137 = arith.constant 0 : index
    %154 = vector.load %arg8[%c3_135, %c0_136, %c0_137] : memref<9x49x49xbf16, #tpu.memory_space<vmem>>, vector<1x49x49xbf16>
    %155 = vector.shape_cast %154 : vector<1x49x49xbf16> to vector<49x49xbf16>
    %cst_138 = arith.constant dense<0.000000e+00> : vector<49x32xf32>
    %156 = tpu.matmul %155, %128, %cst_138 {dimension_numbers = #tpu.dot_dimension_numbers<[1], [0], [0], [1], [0, 0, 1, 1], [], []>} : vector<49x49xbf16>, vector<49x32xbf16>, vector<49x32xf32> -> vector<49x32xf32>
    %157 = arith.truncf %156 : vector<49x32xf32> to vector<49x32xbf16>
    %c3_139 = arith.constant 3 : index
    %c0_140 = arith.constant 0 : index
    %c0_141 = arith.constant 0 : index
    %158 = vector.load %arg9[%c3_139, %c0_140, %c0_141] : memref<9x32x64xbf16, #tpu.memory_space<vmem>>, vector<1x32x64xbf16>
    %159 = vector.shape_cast %158 : vector<1x32x64xbf16> to vector<32x64xbf16>
    %cst_142 = arith.constant dense<0.000000e+00> : vector<49x64xf32>
    %160 = tpu.matmul %157, %159, %cst_142 {dimension_numbers = #tpu.dot_dimension_numbers<[1], [0], [0], [1], [0, 0, 1, 1], [], []>} : vector<49x32xbf16>, vector<32x64xbf16>, vector<49x64xf32> -> vector<49x64xf32>
    %161 = arith.addf %153, %160 : vector<49x64xf32>
    %c4_143 = arith.constant 4 : index
    %c0_144 = arith.constant 0 : index
    %c0_145 = arith.constant 0 : index
    %162 = vector.load %arg8[%c4_143, %c0_144, %c0_145] : memref<9x49x49xbf16, #tpu.memory_space<vmem>>, vector<1x49x49xbf16>
    %163 = vector.shape_cast %162 : vector<1x49x49xbf16> to vector<49x49xbf16>
    %cst_146 = arith.constant dense<0.000000e+00> : vector<49x32xf32>
    %164 = tpu.matmul %163, %128, %cst_146 {dimension_numbers = #tpu.dot_dimension_numbers<[1], [0], [0], [1], [0, 0, 1, 1], [], []>} : vector<49x49xbf16>, vector<49x32xbf16>, vector<49x32xf32> -> vector<49x32xf32>
    %165 = arith.truncf %164 : vector<49x32xf32> to vector<49x32xbf16>
    %c4_147 = arith.constant 4 : index
    %c0_148 = arith.constant 0 : index
    %c0_149 = arith.constant 0 : index
    %166 = vector.load %arg9[%c4_147, %c0_148, %c0_149] : memref<9x32x64xbf16, #tpu.memory_space<vmem>>, vector<1x32x64xbf16>
    %167 = vector.shape_cast %166 : vector<1x32x64xbf16> to vector<32x64xbf16>
    %cst_150 = arith.constant dense<0.000000e+00> : vector<49x64xf32>
    %168 = tpu.matmul %165, %167, %cst_150 {dimension_numbers = #tpu.dot_dimension_numbers<[1], [0], [0], [1], [0, 0, 1, 1], [], []>} : vector<49x32xbf16>, vector<32x64xbf16>, vector<49x64xf32> -> vector<49x64xf32>
    %169 = arith.addf %161, %168 : vector<49x64xf32>
    %c5_151 = arith.constant 5 : index
    %c0_152 = arith.constant 0 : index
    %c0_153 = arith.constant 0 : index
    %170 = vector.load %arg8[%c5_151, %c0_152, %c0_153] : memref<9x49x49xbf16, #tpu.memory_space<vmem>>, vector<1x49x49xbf16>
    %171 = vector.shape_cast %170 : vector<1x49x49xbf16> to vector<49x49xbf16>
    %cst_154 = arith.constant dense<0.000000e+00> : vector<49x32xf32>
    %172 = tpu.matmul %171, %128, %cst_154 {dimension_numbers = #tpu.dot_dimension_numbers<[1], [0], [0], [1], [0, 0, 1, 1], [], []>} : vector<49x49xbf16>, vector<49x32xbf16>, vector<49x32xf32> -> vector<49x32xf32>
    %173 = arith.truncf %172 : vector<49x32xf32> to vector<49x32xbf16>
    %c5_155 = arith.constant 5 : index
    %c0_156 = arith.constant 0 : index
    %c0_157 = arith.constant 0 : index
    %174 = vector.load %arg9[%c5_155, %c0_156, %c0_157] : memref<9x32x64xbf16, #tpu.memory_space<vmem>>, vector<1x32x64xbf16>
    %175 = vector.shape_cast %174 : vector<1x32x64xbf16> to vector<32x64xbf16>
    %cst_158 = arith.constant dense<0.000000e+00> : vector<49x64xf32>
    %176 = tpu.matmul %173, %175, %cst_158 {dimension_numbers = #tpu.dot_dimension_numbers<[1], [0], [0], [1], [0, 0, 1, 1], [], []>} : vector<49x32xbf16>, vector<32x64xbf16>, vector<49x64xf32> -> vector<49x64xf32>
    %177 = arith.addf %169, %176 : vector<49x64xf32>
    %c6_159 = arith.constant 6 : index
    %c0_160 = arith.constant 0 : index
    %c0_161 = arith.constant 0 : index
    %178 = vector.load %arg8[%c6_159, %c0_160, %c0_161] : memref<9x49x49xbf16, #tpu.memory_space<vmem>>, vector<1x49x49xbf16>
    %179 = vector.shape_cast %178 : vector<1x49x49xbf16> to vector<49x49xbf16>
    %cst_162 = arith.constant dense<0.000000e+00> : vector<49x32xf32>
    %180 = tpu.matmul %179, %128, %cst_162 {dimension_numbers = #tpu.dot_dimension_numbers<[1], [0], [0], [1], [0, 0, 1, 1], [], []>} : vector<49x49xbf16>, vector<49x32xbf16>, vector<49x32xf32> -> vector<49x32xf32>
    %181 = arith.truncf %180 : vector<49x32xf32> to vector<49x32xbf16>
    %c6_163 = arith.constant 6 : index
    %c0_164 = arith.constant 0 : index
    %c0_165 = arith.constant 0 : index
    %182 = vector.load %arg9[%c6_163, %c0_164, %c0_165] : memref<9x32x64xbf16, #tpu.memory_space<vmem>>, vector<1x32x64xbf16>
    %183 = vector.shape_cast %182 : vector<1x32x64xbf16> to vector<32x64xbf16>
    %cst_166 = arith.constant dense<0.000000e+00> : vector<49x64xf32>
    %184 = tpu.matmul %181, %183, %cst_166 {dimension_numbers = #tpu.dot_dimension_numbers<[1], [0], [0], [1], [0, 0, 1, 1], [], []>} : vector<49x32xbf16>, vector<32x64xbf16>, vector<49x64xf32> -> vector<49x64xf32>
    %185 = arith.addf %177, %184 : vector<49x64xf32>
    %c7_167 = arith.constant 7 : index
    %c0_168 = arith.constant 0 : index
    %c0_169 = arith.constant 0 : index
    %186 = vector.load %arg8[%c7_167, %c0_168, %c0_169] : memref<9x49x49xbf16, #tpu.memory_space<vmem>>, vector<1x49x49xbf16>
    %187 = vector.shape_cast %186 : vector<1x49x49xbf16> to vector<49x49xbf16>
    %cst_170 = arith.constant dense<0.000000e+00> : vector<49x32xf32>
    %188 = tpu.matmul %187, %128, %cst_170 {dimension_numbers = #tpu.dot_dimension_numbers<[1], [0], [0], [1], [0, 0, 1, 1], [], []>} : vector<49x49xbf16>, vector<49x32xbf16>, vector<49x32xf32> -> vector<49x32xf32>
    %189 = arith.truncf %188 : vector<49x32xf32> to vector<49x32xbf16>
    %c7_171 = arith.constant 7 : index
    %c0_172 = arith.constant 0 : index
    %c0_173 = arith.constant 0 : index
    %190 = vector.load %arg9[%c7_171, %c0_172, %c0_173] : memref<9x32x64xbf16, #tpu.memory_space<vmem>>, vector<1x32x64xbf16>
    %191 = vector.shape_cast %190 : vector<1x32x64xbf16> to vector<32x64xbf16>
    %cst_174 = arith.constant dense<0.000000e+00> : vector<49x64xf32>
    %192 = tpu.matmul %189, %191, %cst_174 {dimension_numbers = #tpu.dot_dimension_numbers<[1], [0], [0], [1], [0, 0, 1, 1], [], []>} : vector<49x32xbf16>, vector<32x64xbf16>, vector<49x64xf32> -> vector<49x64xf32>
    %193 = arith.addf %185, %192 : vector<49x64xf32>
    %c8_175 = arith.constant 8 : index
    %c0_176 = arith.constant 0 : index
    %c0_177 = arith.constant 0 : index
    %194 = vector.load %arg8[%c8_175, %c0_176, %c0_177] : memref<9x49x49xbf16, #tpu.memory_space<vmem>>, vector<1x49x49xbf16>
    %195 = vector.shape_cast %194 : vector<1x49x49xbf16> to vector<49x49xbf16>
    %cst_178 = arith.constant dense<0.000000e+00> : vector<49x32xf32>
    %196 = tpu.matmul %195, %128, %cst_178 {dimension_numbers = #tpu.dot_dimension_numbers<[1], [0], [0], [1], [0, 0, 1, 1], [], []>} : vector<49x49xbf16>, vector<49x32xbf16>, vector<49x32xf32> -> vector<49x32xf32>
    %197 = arith.truncf %196 : vector<49x32xf32> to vector<49x32xbf16>
    %c8_179 = arith.constant 8 : index
    %c0_180 = arith.constant 0 : index
    %c0_181 = arith.constant 0 : index
    %198 = vector.load %arg9[%c8_179, %c0_180, %c0_181] : memref<9x32x64xbf16, #tpu.memory_space<vmem>>, vector<1x32x64xbf16>
    %199 = vector.shape_cast %198 : vector<1x32x64xbf16> to vector<32x64xbf16>
    %cst_182 = arith.constant dense<0.000000e+00> : vector<49x64xf32>
    %200 = tpu.matmul %197, %199, %cst_182 {dimension_numbers = #tpu.dot_dimension_numbers<[1], [0], [0], [1], [0, 0, 1, 1], [], []>} : vector<49x32xbf16>, vector<32x64xbf16>, vector<49x64xf32> -> vector<49x64xf32>
    %201 = arith.addf %193, %200 : vector<49x64xf32>
    %c0_183 = arith.constant 0 : index
    %c0_184 = arith.constant 0 : index
    %202 = vector.load %arg10[%c0_183, %c0_184] : memref<1x64xf32, #tpu.memory_space<vmem>>, vector<1x64xf32>
    %203 = vector.broadcast %202 : vector<1x64xf32> to vector<49x64xf32>
    %204 = arith.addf %201, %203 : vector<49x64xf32>
    %cst_185 = arith.constant 0.000000e+00 : f32
    %205 = vector.broadcast %cst_185 : f32 to vector<49x64xf32>
    %206 = arith.maximumf %204, %205 : vector<49x64xf32>
    %207 = arith.truncf %206 : vector<49x64xf32> to vector<49x64xbf16>
    %c0_186 = arith.constant 0 : index
    %c0_187 = arith.constant 0 : index
    %c0_188 = arith.constant 0 : index
    %208 = vector.load %arg11[%c0_186, %c0_187, %c0_188] : memref<1x49x64xbf16, #tpu.memory_space<vmem>>, vector<1x49x64xbf16>
    %209 = vector.shape_cast %208 : vector<1x49x64xbf16> to vector<49x64xbf16>
    %210 = vector.shape_cast %207 : vector<49x64xbf16> to vector<1x49x64xbf16>
    tpu.vector_store %arg11[%c0_186, %c0_187, %c0_188], %210 {strides = array<i32>} : memref<1x49x64xbf16, #tpu.memory_space<vmem>>, vector<1x49x64xbf16>,
    return
  }
  func.func @transform_0(%arg0: i32) -> (i32, i32, i32, i32) {
    %c0_i32 = arith.constant 0 : i32
    %c0_i32_0 = arith.constant 0 : i32
    %c0_i32_1 = arith.constant 0 : i32
    %c0_i32_2 = arith.constant 0 : i32
    return %arg0, %c0_i32, %c0_i32_0, %c0_i32_1 : i32, i32, i32, i32
  }
  func.func @transform_1(%arg0: i32) -> (i32, i32) {
    %c0_i32 = arith.constant 0 : i32
    %c0_i32_0 = arith.constant 0 : i32
    %c0_i32_1 = arith.constant 0 : i32
    return %c0_i32, %c0_i32_0 : i32, i32
  }
  func.func @transform_2(%arg0: i32) -> (i32, i32) {
    %c0_i32 = arith.constant 0 : i32
    %c0_i32_0 = arith.constant 0 : i32
    %c0_i32_1 = arith.constant 0 : i32
    return %c0_i32, %c0_i32_0 : i32, i32
  }
  func.func @transform_3(%arg0: i32) -> (i32, i32, i32) {
    %c0_i32 = arith.constant 0 : i32
    %c0_i32_0 = arith.constant 0 : i32
    %c0_i32_1 = arith.constant 0 : i32
    %c0_i32_2 = arith.constant 0 : i32
    return %c0_i32, %c0_i32_0, %c0_i32_1 : i32, i32, i32
  }
  func.func @transform_4(%arg0: i32) -> (i32, i32, i32) {
    %c0_i32 = arith.constant 0 : i32
    %c0_i32_0 = arith.constant 0 : i32
    %c0_i32_1 = arith.constant 0 : i32
    %c0_i32_2 = arith.constant 0 : i32
    return %c0_i32, %c0_i32_0, %c0_i32_1 : i32, i32, i32
  }
  func.func @transform_5(%arg0: i32) -> (i32, i32) {
    %c0_i32 = arith.constant 0 : i32
    %c0_i32_0 = arith.constant 0 : i32
    %c0_i32_1 = arith.constant 0 : i32
    return %c0_i32, %c0_i32_0 : i32, i32
  }
  func.func @transform_6(%arg0: i32) -> (i32, i32, i32) {
    %c0_i32 = arith.constant 0 : i32
    %c0_i32_0 = arith.constant 0 : i32
    %c0_i32_1 = arith.constant 0 : i32
    %c0_i32_2 = arith.constant 0 : i32
    return %c0_i32, %c0_i32_0, %c0_i32_1 : i32, i32, i32
  }
  func.func @transform_7(%arg0: i32) -> (i32, i32, i32) {
    %c0_i32 = arith.constant 0 : i32
    %c0_i32_0 = arith.constant 0 : i32
    %c0_i32_1 = arith.constant 0 : i32
    %c0_i32_2 = arith.constant 0 : i32
    return %c0_i32, %c0_i32_0, %c0_i32_1 : i32, i32, i32
  }
  func.func @transform_8(%arg0: i32) -> (i32, i32, i32) {
    %c0_i32 = arith.constant 0 : i32
    %c0_i32_0 = arith.constant 0 : i32
    %c0_i32_1 = arith.constant 0 : i32
    %c0_i32_2 = arith.constant 0 : i32
    return %c0_i32, %c0_i32_0, %c0_i32_1 : i32, i32, i32
  }
  func.func @transform_9(%arg0: i32) -> (i32, i32) {
    %c0_i32 = arith.constant 0 : i32
    %c0_i32_0 = arith.constant 0 : i32
    %c0_i32_1 = arith.constant 0 : i32
    return %c0_i32, %c0_i32_0 : i32, i32
  }
  func.func @transform_10(%arg0: i32) -> (i32, i32, i32) {
    %c0_i32 = arith.constant 0 : i32
    %c0_i32_0 = arith.constant 0 : i32
    %c0_i32_1 = arith.constant 0 : i32
    return %arg0, %c0_i32, %c0_i32_0 : i32, i32, i32
  }
}

module attributes {stable_mosaic.version = 11 : i64} {
  func.func @_fc_fused_kernel(%arg0: memref<2x3136xbf16, #tpu.memory_space<vmem>>, %arg1: memref<3136x64xbf16, #tpu.memory_space<vmem>>, %arg2: memref<1x64xf32, #tpu.memory_space<vmem>>, %arg3: memref<64x32xbf16, #tpu.memory_space<vmem>>, %arg4: memref<1x32xf32, #tpu.memory_space<vmem>>, %arg5: memref<32x10xbf16, #tpu.memory_space<vmem>>, %arg6: memref<1x10xf32, #tpu.memory_space<vmem>>, %arg7: memref<2x10xf32, #tpu.memory_space<vmem>>) attributes {dimension_semantics = [], scalar_prefetch = 0 : i64, scratch_operands = 0 : i64, tpu.core_type = #tpu.core_type<tc>} {
    %c0 = arith.constant 0 : index
    %c0_0 = arith.constant 0 : index
    %0 = vector.load %arg0[%c0, %c0_0] : memref<2x3136xbf16, #tpu.memory_space<vmem>>, vector<2x3136xbf16>
    %c0_1 = arith.constant 0 : index
    %c0_2 = arith.constant 0 : index
    %1 = vector.load %arg1[%c0_1, %c0_2] : memref<3136x64xbf16, #tpu.memory_space<vmem>>, vector<3136x64xbf16>
    %cst = arith.constant dense<0.000000e+00> : vector<2x64xf32>
    %2 = tpu.matmul %0, %1, %cst {dimension_numbers = #tpu.dot_dimension_numbers<[1], [0], [0], [1], [0, 0, 1, 1], [], []>} : vector<2x3136xbf16>, vector<3136x64xbf16>, vector<2x64xf32> -> vector<2x64xf32>
    %c0_3 = arith.constant 0 : index
    %c0_4 = arith.constant 0 : index
    %3 = vector.load %arg2[%c0_3, %c0_4] : memref<1x64xf32, #tpu.memory_space<vmem>>, vector<1x64xf32>
    %4 = vector.broadcast %3 : vector<1x64xf32> to vector<2x64xf32>
    %5 = arith.addf %2, %4 : vector<2x64xf32>
    %cst_5 = arith.constant 0.000000e+00 : f32
    %6 = vector.broadcast %cst_5 : f32 to vector<2x64xf32>
    %7 = arith.maximumf %5, %6 : vector<2x64xf32>
    %8 = arith.truncf %7 : vector<2x64xf32> to vector<2x64xbf16>
    %c0_6 = arith.constant 0 : index
    %c0_7 = arith.constant 0 : index
    %9 = vector.load %arg3[%c0_6, %c0_7] : memref<64x32xbf16, #tpu.memory_space<vmem>>, vector<64x32xbf16>
    %cst_8 = arith.constant dense<0.000000e+00> : vector<2x32xf32>
    %10 = tpu.matmul %8, %9, %cst_8 {dimension_numbers = #tpu.dot_dimension_numbers<[1], [0], [0], [1], [0, 0, 1, 1], [], []>} : vector<2x64xbf16>, vector<64x32xbf16>, vector<2x32xf32> -> vector<2x32xf32>
    %c0_9 = arith.constant 0 : index
    %c0_10 = arith.constant 0 : index
    %11 = vector.load %arg4[%c0_9, %c0_10] : memref<1x32xf32, #tpu.memory_space<vmem>>, vector<1x32xf32>
    %12 = vector.broadcast %11 : vector<1x32xf32> to vector<2x32xf32>
    %13 = arith.addf %10, %12 : vector<2x32xf32>
    %cst_11 = arith.constant 0.000000e+00 : f32
    %14 = vector.broadcast %cst_11 : f32 to vector<2x32xf32>
    %15 = arith.maximumf %13, %14 : vector<2x32xf32>
    %16 = arith.truncf %15 : vector<2x32xf32> to vector<2x32xbf16>
    %c0_12 = arith.constant 0 : index
    %c0_13 = arith.constant 0 : index
    %17 = vector.load %arg5[%c0_12, %c0_13] : memref<32x10xbf16, #tpu.memory_space<vmem>>, vector<32x10xbf16>
    %cst_14 = arith.constant dense<0.000000e+00> : vector<2x10xf32>
    %18 = tpu.matmul %16, %17, %cst_14 {dimension_numbers = #tpu.dot_dimension_numbers<[1], [0], [0], [1], [0, 0, 1, 1], [], []>} : vector<2x32xbf16>, vector<32x10xbf16>, vector<2x10xf32> -> vector<2x10xf32>
    %c0_15 = arith.constant 0 : index
    %c0_16 = arith.constant 0 : index
    %19 = vector.load %arg6[%c0_15, %c0_16] : memref<1x10xf32, #tpu.memory_space<vmem>>, vector<1x10xf32>
    %20 = vector.broadcast %19 : vector<1x10xf32> to vector<2x10xf32>
    %21 = arith.addf %18, %20 : vector<2x10xf32>
    %cst_17 = arith.constant dense<0xFF800000> : vector<2xf32>
    %22 = vector.multi_reduction <maximumf>, %21, %cst_17 [1] : vector<2x10xf32> to vector<2xf32>
    %23 = vector.shape_cast %22 : vector<2xf32> to vector<2x1xf32>
    %24 = vector.broadcast %23 : vector<2x1xf32> to vector<2x10xf32>
    %25 = arith.subf %21, %24 : vector<2x10xf32>
    %26 = math.exp %25 : vector<2x10xf32>
    %cst_18 = arith.constant dense<0.000000e+00> : vector<2xf32>
    %27 = vector.multi_reduction <add>, %26, %cst_18 [1] : vector<2x10xf32> to vector<2xf32>
    %28 = vector.shape_cast %27 : vector<2xf32> to vector<2x1xf32>
    %29 = math.log %28 : vector<2x1xf32>
    %30 = vector.broadcast %29 : vector<2x1xf32> to vector<2x10xf32>
    %31 = arith.subf %25, %30 : vector<2x10xf32>
    %c0_19 = arith.constant 0 : index
    %c0_20 = arith.constant 0 : index
    %32 = vector.load %arg7[%c0_19, %c0_20] : memref<2x10xf32, #tpu.memory_space<vmem>>, vector<2x10xf32>
    tpu.vector_store %arg7[%c0_19, %c0_20], %31 {strides = array<i32>} : memref<2x10xf32, #tpu.memory_space<vmem>>, vector<2x10xf32>,
    return
  }
}

</mosaic_0001>

<llo_original>
// kernel: model_forward.3
$region0: #{model_forward.3}
  #allocation0 [shape = 'u32[]', space=smem, size = 0x4, offset = 0x4, fixed_abs, tag = 'smem constant byte address 0x4 - core index']
  #allocation1 [shape = 'u32[144,128]{1,0:T(1,128)}', space=vmem, size = 0x12000, scoped, tag = 'internal scratch']
  %s0 = inlined_call_operand.vmem [shape: bf16[2,3136], index: 0, kind: input, shape index: {}]
  %s1 = inlined_call_operand.vmem [shape: bf16[3136,64], index: 1, kind: input, shape index: {}]
  %s2 = inlined_call_operand.vmem [shape: f32[1,64], index: 2, kind: input, shape index: {}]
  %s3 = inlined_call_operand.vmem [shape: bf16[64,32], index: 3, kind: input, shape index: {}]
  %s4 = inlined_call_operand.vmem [shape: f32[1,32], index: 4, kind: input, shape index: {}]
  %s5 = inlined_call_operand.vmem [shape: bf16[32,10], index: 5, kind: input, shape index: {}]
  %s6 = inlined_call_operand.vmem [shape: f32[1,10], index: 6, kind: input, shape index: {}]
  %s7 = inlined_call_operand.hbm [shape: f32[2,10], index: 7, kind: output, shape index: {}]
  %s8 = sld [smem:[#allocation0]]
  $region38: #{model_forward.3} parent=0
    _
  %s10 = ssub.s32 1, %s8
  %s11 = scalar_select 0, %s10, %s8
  $region1: #{model_forward.3} parent=0
    #allocation2 [shape = 'u8[1024]{0}', space=vmem, size = 0x400, scoped, tag = 'output window, operand 0, single buffered']
    #allocation3 [shape = 's32[1]{0}', space=sflag, size = 0x4, scoped, tag = 'scoped memory for model_forward.3']
    %12 = vsyncpa [#allocation3], 0
    // Predicated region
    $region2: #{model_forward.3} parent=1 // pred_check
      _
    $region3: #{model_forward.3} parent=1 // pred_check_branch
      %14 = sbr.rel (0) target = $region5
    $region4: #{model_forward.3} parent=1 // pred_region
      _
    $region5: #{model_forward.3} parent=1 // pred_fallthru
      _
    // Predicated region
    $region6: #{model_forward.3} parent=1 // pred_check
      _
    $region7: #{model_forward.3} parent=1 // pred_check_branch
      %16 = sbr.rel (0) target = $region9
    $region8: #{model_forward.3} parent=1 // pred_region
      _
    $region9: #{model_forward.3} parent=1 // pred_fallthru
      _
    // Predicated region
    $region10: #{model_forward.3} parent=1 // pred_check
      _
    $region11: #{model_forward.3} parent=1 // pred_check_branch
      %18 = sbr.rel (0) target = $region13
    $region12: #{model_forward.3} parent=1 // pred_region
      _
    $region13: #{model_forward.3} parent=1 // pred_fallthru
      _
    // Predicated region
    $region14: #{model_forward.3} parent=1 // pred_check
      _
    $region15: #{model_forward.3} parent=1 // pred_check_branch
      %20 = sbr.rel (0) target = $region17
    $region16: #{model_forward.3} parent=1 // pred_region
      _
    $region17: #{model_forward.3} parent=1 // pred_fallthru
      _
    // Predicated region
    $region18: #{model_forward.3} parent=1 // pred_check
      _
    $region19: #{model_forward.3} parent=1 // pred_check_branch
      %22 = sbr.rel (0) target = $region21
    $region20: #{model_forward.3} parent=1 // pred_region
      _
    $region21: #{model_forward.3} parent=1 // pred_fallthru
      _
    // Predicated region
    $region22: #{model_forward.3} parent=1 // pred_check
      _
    $region23: #{model_forward.3} parent=1 // pred_check_branch
      %24 = sbr.rel (0) target = $region25
    $region24: #{model_forward.3} parent=1 // pred_region
      _
    $region25: #{model_forward.3} parent=1 // pred_fallthru
      _
    // Predicated region
    $region26: #{model_forward.3} parent=1 // pred_check
      _
    $region27: #{model_forward.3} parent=1 // pred_check_branch
      %26 = sbr.rel (0) target = $region29
    $region28: #{model_forward.3} parent=1 // pred_region
      _
    $region29: #{model_forward.3} parent=1 // pred_fallthru
      _
    %v28 = vld [vmem:[%s0] sm:$0xff]
    %v29 = vld [vmem:[%s0 + $0x8] sm:$0xff]
    %v30 = vld [vmem:[%s0 + $0x10] sm:$0xff]
    %v31 = vld [vmem:[%s0 + $0x18] sm:$0x1]
    %v32 = vld [vmem:[%s1] sm:$0xf]
    %v33 = vld [vmem:[%s1 + $0x4] sm:$0xf]
    %v34 = vld [vmem:[%s1 + $0x8] sm:$0xf]
    %v35 = vld [vmem:[%s1 + $0xc] sm:$0xf]
    %v36 = vld [vmem:[%s1 + $0x10] sm:$0xf]
    %v37 = vld [vmem:[%s1 + $0x14] sm:$0xf]
    %v38 = vld [vmem:[%s1 + $0x18] sm:$0xf]
    %v39 = vld [vmem:[%s1 + $0x1c] sm:$0xf]
    %v40 = vld [vmem:[%s1 + $0x20] sm:$0xf]
    %v41 = vld [vmem:[%s1 + $0x24] sm:$0xf]
    %v42 = vld [vmem:[%s1 + $0x28] sm:$0xf]
    %v43 = vld [vmem:[%s1 + $0x2c] sm:$0xf]
    %v44 = vld [vmem:[%s1 + $0x30] sm:$0xf]
    %v45 = vld [vmem:[%s1 + $0x34] sm:$0xf]
    %v46 = vld [vmem:[%s1 + $0x38] sm:$0xf]
    %v47 = vld [vmem:[%s1 + $0x3c] sm:$0xf]
    %v48 = vld [vmem:[%s1 + $0x40] sm:$0xf]
    %v49 = vld [vmem:[%s1 + $0x44] sm:$0xf]
    %v50 = vld [vmem:[%s1 + $0x48] sm:$0xf]
    %v51 = vld [vmem:[%s1 + $0x4c] sm:$0xf]
    %v52 = vld [vmem:[%s1 + $0x50] sm:$0xf]
    %v53 = vld [vmem:[%s1 + $0x54] sm:$0xf]
    %v54 = vld [vmem:[%s1 + $0x58] sm:$0xf]
    %v55 = vld [vmem:[%s1 + $0x5c] sm:$0xf]
    %v56 = vld [vmem:[%s1 + $0x60] sm:$0xf]
    %v57 = vld [vmem:[%s1 + $0x64] sm:$0xf]
    %v58 = vld [vmem:[%s1 + $0x68] sm:$0xf]
    %v59 = vld [vmem:[%s1 + $0x6c] sm:$0xf]
    %v60 = vld [vmem:[%s1 + $0x70] sm:$0xf]
    %v61 = vld [vmem:[%s1 + $0x74] sm:$0xf]
    %v62 = vld [vmem:[%s1 + $0x78] sm:$0xf]
    %v63 = vld [vmem:[%s1 + $0x7c] sm:$0xf]
    %v64 = vld [vmem:[%s1 + $0x80] sm:$0xf]
    %v65 = vld [vmem:[%s1 + $0x84] sm:$0xf]
    %v66 = vld [vmem:[%s1 + $0x88] sm:$0xf]
    %v67 = vld [vmem:[%s1 + $0x8c] sm:$0xf]
    %v68 = vld [vmem:[%s1 + $0x90] sm:$0xf]
    %v69 = vld [vmem:[%s1 + $0x94] sm:$0xf]
    %v70 = vld [vmem:[%s1 + $0x98] sm:$0xf]
    %v71 = vld [vmem:[%s1 + $0x9c] sm:$0xf]
    %v72 = vld [vmem:[%s1 + $0xa0] sm:$0xf]
    %v73 = vld [vmem:[%s1 + $0xa4] sm:$0xf]
    %v74 = vld [vmem:[%s1 + $0xa8] sm:$0xf]
    %v75 = vld [vmem:[%s1 + $0xac] sm:$0xf]
    %v76 = vld [vmem:[%s1 + $0xb0] sm:$0xf]
    %v77 = vld [vmem:[%s1 + $0xb4] sm:$0xf]
    %v78 = vld [vmem:[%s1 + $0xb8] sm:$0xf]
    %v79 = vld [vmem:[%s1 + $0xbc] sm:$0xf]
    %v80 = vld [vmem:[%s1 + $0xc0] sm:$0xf]
    %v81 = vld [vmem:[%s1 + $0xc4] sm:$0xf]
    %v82 = vld [vmem:[%s1 + $0xc8] sm:$0xf]
    %v83 = vld [vmem:[%s1 + $0xcc] sm:$0xf]
    %v84 = vld [vmem:[%s1 + $0xd0] sm:$0xf]
    %v85 = vld [vmem:[%s1 + $0xd4] sm:$0xf]
    %v86 = vld [vmem:[%s1 + $0xd8] sm:$0xf]
    %v87 = vld [vmem:[%s1 + $0xdc] sm:$0xf]
    %v88 = vld [vmem:[%s1 + $0xe0] sm:$0xf]
    %v89 = vld [vmem:[%s1 + $0xe4] sm:$0xf]
    %v90 = vld [vmem:[%s1 + $0xe8] sm:$0xf]
    %v91 = vld [vmem:[%s1 + $0xec] sm:$0xf]
    %v92 = vld [vmem:[%s1 + $0xf0] sm:$0xf]
    %v93 = vld [vmem:[%s1 + $0xf4] sm:$0xf]
    %v94 = vld [vmem:[%s1 + $0xf8] sm:$0xf]
    %v95 = vld [vmem:[%s1 + $0xfc] sm:$0xf]
    %v96 = vld [vmem:[%s1 + $0x100] sm:$0xf]
    %v97 = vld [vmem:[%s1 + $0x104] sm:$0xf]
    %v98 = vld [vmem:[%s1 + $0x108] sm:$0xf]
    %v99 = vld [vmem:[%s1 + $0x10c] sm:$0xf]
    %v100 = vld [vmem:[%s1 + $0x110] sm:$0xf]
    %v101 = vld [vmem:[%s1 + $0x114] sm:$0xf]
    %v102 = vld [vmem:[%s1 + $0x118] sm:$0xf]
    %v103 = vld [vmem:[%s1 + $0x11c] sm:$0xf]
    %v104 = vld [vmem:[%s1 + $0x120] sm:$0xf]
    %v105 = vld [vmem:[%s1 + $0x124] sm:$0xf]
    %v106 = vld [vmem:[%s1 + $0x128] sm:$0xf]
    %v107 = vld [vmem:[%s1 + $0x12c] sm:$0xf]
    %v108 = vld [vmem:[%s1 + $0x130] sm:$0xf]
    %v109 = vld [vmem:[%s1 + $0x134] sm:$0xf]
    %v110 = vld [vmem:[%s1 + $0x138] sm:$0xf]
    %v111 = vld [vmem:[%s1 + $0x13c] sm:$0xf]
    %v112 = vld [vmem:[%s1 + $0x140] sm:$0xf]
    %v113 = vld [vmem:[%s1 + $0x144] sm:$0xf]
    %v114 = vld [vmem:[%s1 + $0x148] sm:$0xf]
    %v115 = vld [vmem:[%s1 + $0x14c] sm:$0xf]
    %v116 = vld [vmem:[%s1 + $0x150] sm:$0xf]
    %v117 = vld [vmem:[%s1 + $0x154] sm:$0xf]
    %v118 = vld [vmem:[%s1 + $0x158] sm:$0xf]
    %v119 = vld [vmem:[%s1 + $0x15c] sm:$0xf]
    %v120 = vld [vmem:[%s1 + $0x160] sm:$0xf]
    %v121 = vld [vmem:[%s1 + $0x164] sm:$0xf]
    %v122 = vld [vmem:[%s1 + $0x168] sm:$0xf]
    %v123 = vld [vmem:[%s1 + $0x16c] sm:$0xf]
    %v124 = vld [vmem:[%s1 + $0x170] sm:$0xf]
    %v125 = vld [vmem:[%s1 + $0x174] sm:$0xf]
    %v126 = vld [vmem:[%s1 + $0x178] sm:$0xf]
    %v127 = vld [vmem:[%s1 + $0x17c] sm:$0xf]
    %v128 = vld [vmem:[%s1 + $0x180] sm:$0xf]
    %v129 = vld [vmem:[%s1 + $0x184] sm:$0xf]
    %v130 = vld [vmem:[%s1 + $0x188] sm:$0xf]
    %v131 = vld [vmem:[%s1 + $0x18c] sm:$0xf]
    %v132 = vld [vmem:[%s1 + $0x190] sm:$0xf]
    %v133 = vld [vmem:[%s1 + $0x194] sm:$0xf]
    %v134 = vld [vmem:[%s1 + $0x198] sm:$0xf]
    %v135 = vld [vmem:[%s1 + $0x19c] sm:$0xf]
    %v136 = vld [vmem:[%s1 + $0x1a0] sm:$0xf]
    %v137 = vld [vmem:[%s1 + $0x1a4] sm:$0xf]
    %v138 = vld [vmem:[%s1 + $0x1a8] sm:$0xf]
    %v139 = vld [vmem:[%s1 + $0x1ac] sm:$0xf]
    %v140 = vld [vmem:[%s1 + $0x1b0] sm:$0xf]
    %v141 = vld [vmem:[%s1 + $0x1b4] sm:$0xf]
    %v142 = vld [vmem:[%s1 + $0x1b8] sm:$0xf]
    %v143 = vld [vmem:[%s1 + $0x1bc] sm:$0xf]
    %v144 = vld [vmem:[%s1 + $0x1c0] sm:$0xf]
    %v145 = vld [vmem:[%s1 + $0x1c4] sm:$0xf]
    %v146 = vld [vmem:[%s1 + $0x1c8] sm:$0xf]
    %v147 = vld [vmem:[%s1 + $0x1cc] sm:$0xf]
    %v148 = vld [vmem:[%s1 + $0x1d0] sm:$0xf]
    %v149 = vld [vmem:[%s1 + $0x1d4] sm:$0xf]
    %v150 = vld [vmem:[%s1 + $0x1d8] sm:$0xf]
    %v151 = vld [vmem:[%s1 + $0x1dc] sm:$0xf]
    %v152 = vld [vmem:[%s1 + $0x1e0] sm:$0xf]
    %v153 = vld [vmem:[%s1 + $0x1e4] sm:$0xf]
    %v154 = vld [vmem:[%s1 + $0x1e8] sm:$0xf]
    %v155 = vld [vmem:[%s1 + $0x1ec] sm:$0xf]
    %v156 = vld [vmem:[%s1 + $0x1f0] sm:$0xf]
    %v157 = vld [vmem:[%s1 + $0x1f4] sm:$0xf]
    %v158 = vld [vmem:[%s1 + $0x1f8] sm:$0xf]
    %v159 = vld [vmem:[%s1 + $0x1fc] sm:$0xf]
    %v160 = vld [vmem:[%s1 + $0x200] sm:$0xf]
    %v161 = vld [vmem:[%s1 + $0x204] sm:$0xf]
    %v162 = vld [vmem:[%s1 + $0x208] sm:$0xf]
    %v163 = vld [vmem:[%s1 + $0x20c] sm:$0xf]
    %v164 = vld [vmem:[%s1 + $0x210] sm:$0xf]
    %v165 = vld [vmem:[%s1 + $0x214] sm:$0xf]
    %v166 = vld [vmem:[%s1 + $0x218] sm:$0xf]
    %v167 = vld [vmem:[%s1 + $0x21c] sm:$0xf]
    %v168 = vld [vmem:[%s1 + $0x220] sm:$0xf]
    %v169 = vld [vmem:[%s1 + $0x224] sm:$0xf]
    %v170 = vld [vmem:[%s1 + $0x228] sm:$0xf]
    %v171 = vld [vmem:[%s1 + $0x22c] sm:$0xf]
    %v172 = vld [vmem:[%s1 + $0x230] sm:$0xf]
    %v173 = vld [vmem:[%s1 + $0x234] sm:$0xf]
    %v174 = vld [vmem:[%s1 + $0x238] sm:$0xf]
    %v175 = vld [vmem:[%s1 + $0x23c] sm:$0xf]
    %v176 = vld [vmem:[%s1 + $0x240] sm:$0xf]
    %v177 = vld [vmem:[%s1 + $0x244] sm:$0xf]
    %v178 = vld [vmem:[%s1 + $0x248] sm:$0xf]
    %v179 = vld [vmem:[%s1 + $0x24c] sm:$0xf]
    %v180 = vld [vmem:[%s1 + $0x250] sm:$0xf]
    %v181 = vld [vmem:[%s1 + $0x254] sm:$0xf]
    %v182 = vld [vmem:[%s1 + $0x258] sm:$0xf]
    %v183 = vld [vmem:[%s1 + $0x25c] sm:$0xf]
    %v184 = vld [vmem:[%s1 + $0x260] sm:$0xf]
    %v185 = vld [vmem:[%s1 + $0x264] sm:$0xf]
    %v186 = vld [vmem:[%s1 + $0x268] sm:$0xf]
    %v187 = vld [vmem:[%s1 + $0x26c] sm:$0xf]
    %v188 = vld [vmem:[%s1 + $0x270] sm:$0xf]
    %v189 = vld [vmem:[%s1 + $0x274] sm:$0xf]
    %v190 = vld [vmem:[%s1 + $0x278] sm:$0xf]
    %v191 = vld [vmem:[%s1 + $0x27c] sm:$0xf]
    %v192 = vld [vmem:[%s1 + $0x280] sm:$0xf]
    %v193 = vld [vmem:[%s1 + $0x284] sm:$0xf]
    %v194 = vld [vmem:[%s1 + $0x288] sm:$0xf]
    %v195 = vld [vmem:[%s1 + $0x28c] sm:$0xf]
    %v196 = vld [vmem:[%s1 + $0x290] sm:$0xf]
    %v197 = vld [vmem:[%s1 + $0x294] sm:$0xf]
    %v198 = vld [vmem:[%s1 + $0x298] sm:$0xf]
    %v199 = vld [vmem:[%s1 + $0x29c] sm:$0xf]
    %v200 = vld [vmem:[%s1 + $0x2a0] sm:$0xf]
    %v201 = vld [vmem:[%s1 + $0x2a4] sm:$0xf]
    %v202 = vld [vmem:[%s1 + $0x2a8] sm:$0xf]
    %v203 = vld [vmem:[%s1 + $0x2ac] sm:$0xf]
    %v204 = vld [vmem:[%s1 + $0x2b0] sm:$0xf]
    %v205 = vld [vmem:[%s1 + $0x2b4] sm:$0xf]
    %v206 = vld [vmem:[%s1 + $0x2b8] sm:$0xf]
    %v207 = vld [vmem:[%s1 + $0x2bc] sm:$0xf]
    %v208 = vld [vmem:[%s1 + $0x2c0] sm:$0xf]
    %v209 = vld [vmem:[%s1 + $0x2c4] sm:$0xf]
    %v210 = vld [vmem:[%s1 + $0x2c8] sm:$0xf]
    %v211 = vld [vmem:[%s1 + $0x2cc] sm:$0xf]
    %v212 = vld [vmem:[%s1 + $0x2d0] sm:$0xf]
    %v213 = vld [vmem:[%s1 + $0x2d4] sm:$0xf]
    %v214 = vld [vmem:[%s1 + $0x2d8] sm:$0xf]
    %v215 = vld [vmem:[%s1 + $0x2dc] sm:$0xf]
    %v216 = vld [vmem:[%s1 + $0x2e0] sm:$0xf]
    %v217 = vld [vmem:[%s1 + $0x2e4] sm:$0xf]
    %v218 = vld [vmem:[%s1 + $0x2e8] sm:$0xf]
    %v219 = vld [vmem:[%s1 + $0x2ec] sm:$0xf]
    %v220 = vld [vmem:[%s1 + $0x2f0] sm:$0xf]
    %v221 = vld [vmem:[%s1 + $0x2f4] sm:$0xf]
    %v222 = vld [vmem:[%s1 + $0x2f8] sm:$0xf]
    %v223 = vld [vmem:[%s1 + $0x2fc] sm:$0xf]
    %v224 = vld [vmem:[%s1 + $0x300] sm:$0xf]
    %v225 = vld [vmem:[%s1 + $0x304] sm:$0xf]
    %v226 = vld [vmem:[%s1 + $0x308] sm:$0xf]
    %v227 = vld [vmem:[%s1 + $0x30c] sm:$0xf]
    %v228 = vld [vmem:[%s1 + $0x310] sm:$0xf]
    %v229 = vld [vmem:[%s1 + $0x314] sm:$0xf]
    %v230 = vld [vmem:[%s1 + $0x318] sm:$0xf]
    %v231 = vld [vmem:[%s1 + $0x31c] sm:$0xf]
    %v232 = vld [vmem:[%s1 + $0x320] sm:$0xf]
    %v233 = vld [vmem:[%s1 + $0x324] sm:$0xf]
    %v234 = vld [vmem:[%s1 + $0x328] sm:$0xf]
    %v235 = vld [vmem:[%s1 + $0x32c] sm:$0xf]
    %v236 = vld [vmem:[%s1 + $0x330] sm:$0xf]
    %v237 = vld [vmem:[%s1 + $0x334] sm:$0xf]
    %v238 = vld [vmem:[%s1 + $0x338] sm:$0xf]
    %v239 = vld [vmem:[%s1 + $0x33c] sm:$0xf]
    %v240 = vld [vmem:[%s1 + $0x340] sm:$0xf]
    %v241 = vld [vmem:[%s1 + $0x344] sm:$0xf]
    %v242 = vld [vmem:[%s1 + $0x348] sm:$0xf]
    %v243 = vld [vmem:[%s1 + $0x34c] sm:$0xf]
    %v244 = vld [vmem:[%s1 + $0x350] sm:$0xf]
    %v245 = vld [vmem:[%s1 + $0x354] sm:$0xf]
    %v246 = vld [vmem:[%s1 + $0x358] sm:$0xf]
    %v247 = vld [vmem:[%s1 + $0x35c] sm:$0xf]
    %v248 = vld [vmem:[%s1 + $0x360] sm:$0xf]
    %v249 = vld [vmem:[%s1 + $0x364] sm:$0xf]
    %v250 = vld [vmem:[%s1 + $0x368] sm:$0xf]
    %v251 = vld [vmem:[%s1 + $0x36c] sm:$0xf]
    %v252 = vld [vmem:[%s1 + $0x370] sm:$0xf]
    %v253 = vld [vmem:[%s1 + $0x374] sm:$0xf]
    %v254 = vld [vmem:[%s1 + $0x378] sm:$0xf]
    %v255 = vld [vmem:[%s1 + $0x37c] sm:$0xf]
    %v256 = vld [vmem:[%s1 + $0x380] sm:$0xf]
    %v257 = vld [vmem:[%s1 + $0x384] sm:$0xf]
    %v258 = vld [vmem:[%s1 + $0x388] sm:$0xf]
    %v259 = vld [vmem:[%s1 + $0x38c] sm:$0xf]
    %v260 = vld [vmem:[%s1 + $0x390] sm:$0xf]
    %v261 = vld [vmem:[%s1 + $0x394] sm:$0xf]
    %v262 = vld [vmem:[%s1 + $0x398] sm:$0xf]
    %v263 = vld [vmem:[%s1 + $0x39c] sm:$0xf]
    %v264 = vld [vmem:[%s1 + $0x3a0] sm:$0xf]
    %v265 = vld [vmem:[%s1 + $0x3a4] sm:$0xf]
    %v266 = vld [vmem:[%s1 + $0x3a8] sm:$0xf]
    %v267 = vld [vmem:[%s1 + $0x3ac] sm:$0xf]
    %v268 = vld [vmem:[%s1 + $0x3b0] sm:$0xf]
    %v269 = vld [vmem:[%s1 + $0x3b4] sm:$0xf]
    %v270 = vld [vmem:[%s1 + $0x3b8] sm:$0xf]
    %v271 = vld [vmem:[%s1 + $0x3bc] sm:$0xf]
    %v272 = vld [vmem:[%s1 + $0x3c0] sm:$0xf]
    %v273 = vld [vmem:[%s1 + $0x3c4] sm:$0xf]
    %v274 = vld [vmem:[%s1 + $0x3c8] sm:$0xf]
    %v275 = vld [vmem:[%s1 + $0x3cc] sm:$0xf]
    %v276 = vld [vmem:[%s1 + $0x3d0] sm:$0xf]
    %v277 = vld [vmem:[%s1 + $0x3d4] sm:$0xf]
    %v278 = vld [vmem:[%s1 + $0x3d8] sm:$0xf]
    %v279 = vld [vmem:[%s1 + $0x3dc] sm:$0xf]
    %v280 = vld [vmem:[%s1 + $0x3e0] sm:$0xf]
    %v281 = vld [vmem:[%s1 + $0x3e4] sm:$0xf]
    %v282 = vld [vmem:[%s1 + $0x3e8] sm:$0xf]
    %v283 = vld [vmem:[%s1 + $0x3ec] sm:$0xf]
    %v284 = vld [vmem:[%s1 + $0x3f0] sm:$0xf]
    %v285 = vld [vmem:[%s1 + $0x3f4] sm:$0xf]
    %v286 = vld [vmem:[%s1 + $0x3f8] sm:$0xf]
    %v287 = vld [vmem:[%s1 + $0x3fc] sm:$0xf]
    %v288 = vld [vmem:[%s1 + $0x400] sm:$0xf]
    %v289 = vld [vmem:[%s1 + $0x404] sm:$0xf]
    %v290 = vld [vmem:[%s1 + $0x408] sm:$0xf]
    %v291 = vld [vmem:[%s1 + $0x40c] sm:$0xf]
    %v292 = vld [vmem:[%s1 + $0x410] sm:$0xf]
    %v293 = vld [vmem:[%s1 + $0x414] sm:$0xf]
    %v294 = vld [vmem:[%s1 + $0x418] sm:$0xf]
    %v295 = vld [vmem:[%s1 + $0x41c] sm:$0xf]
    %v296 = vld [vmem:[%s1 + $0x420] sm:$0xf]
    %v297 = vld [vmem:[%s1 + $0x424] sm:$0xf]
    %v298 = vld [vmem:[%s1 + $0x428] sm:$0xf]
    %v299 = vld [vmem:[%s1 + $0x42c] sm:$0xf]
    %v300 = vld [vmem:[%s1 + $0x430] sm:$0xf]
    %v301 = vld [vmem:[%s1 + $0x434] sm:$0xf]
    %v302 = vld [vmem:[%s1 + $0x438] sm:$0xf]
    %v303 = vld [vmem:[%s1 + $0x43c] sm:$0xf]
    %v304 = vld [vmem:[%s1 + $0x440] sm:$0xf]
    %v305 = vld [vmem:[%s1 + $0x444] sm:$0xf]
    %v306 = vld [vmem:[%s1 + $0x448] sm:$0xf]
    %v307 = vld [vmem:[%s1 + $0x44c] sm:$0xf]
    %v308 = vld [vmem:[%s1 + $0x450] sm:$0xf]
    %v309 = vld [vmem:[%s1 + $0x454] sm:$0xf]
    %v310 = vld [vmem:[%s1 + $0x458] sm:$0xf]
    %v311 = vld [vmem:[%s1 + $0x45c] sm:$0xf]
    %v312 = vld [vmem:[%s1 + $0x460] sm:$0xf]
    %v313 = vld [vmem:[%s1 + $0x464] sm:$0xf]
    %v314 = vld [vmem:[%s1 + $0x468] sm:$0xf]
    %v315 = vld [vmem:[%s1 + $0x46c] sm:$0xf]
    %v316 = vld [vmem:[%s1 + $0x470] sm:$0xf]
    %v317 = vld [vmem:[%s1 + $0x474] sm:$0xf]
    %v318 = vld [vmem:[%s1 + $0x478] sm:$0xf]
    %v319 = vld [vmem:[%s1 + $0x47c] sm:$0xf]
    %v320 = vld [vmem:[%s1 + $0x480] sm:$0xf]
    %v321 = vld [vmem:[%s1 + $0x484] sm:$0xf]
    %v322 = vld [vmem:[%s1 + $0x488] sm:$0xf]
    %v323 = vld [vmem:[%s1 + $0x48c] sm:$0xf]
    %v324 = vld [vmem:[%s1 + $0x490] sm:$0xf]
    %v325 = vld [vmem:[%s1 + $0x494] sm:$0xf]
    %v326 = vld [vmem:[%s1 + $0x498] sm:$0xf]
    %v327 = vld [vmem:[%s1 + $0x49c] sm:$0xf]
    %v328 = vld [vmem:[%s1 + $0x4a0] sm:$0xf]
    %v329 = vld [vmem:[%s1 + $0x4a4] sm:$0xf]
    %v330 = vld [vmem:[%s1 + $0x4a8] sm:$0xf]
    %v331 = vld [vmem:[%s1 + $0x4ac] sm:$0xf]
    %v332 = vld [vmem:[%s1 + $0x4b0] sm:$0xf]
    %v333 = vld [vmem:[%s1 + $0x4b4] sm:$0xf]
    %v334 = vld [vmem:[%s1 + $0x4b8] sm:$0xf]
    %v335 = vld [vmem:[%s1 + $0x4bc] sm:$0xf]
    %v336 = vld [vmem:[%s1 + $0x4c0] sm:$0xf]
    %v337 = vld [vmem:[%s1 + $0x4c4] sm:$0xf]
    %v338 = vld [vmem:[%s1 + $0x4c8] sm:$0xf]
    %v339 = vld [vmem:[%s1 + $0x4cc] sm:$0xf]
    %v340 = vld [vmem:[%s1 + $0x4d0] sm:$0xf]
    %v341 = vld [vmem:[%s1 + $0x4d4] sm:$0xf]
    %v342 = vld [vmem:[%s1 + $0x4d8] sm:$0xf]
    %v343 = vld [vmem:[%s1 + $0x4dc] sm:$0xf]
    %v344 = vld [vmem:[%s1 + $0x4e0] sm:$0xf]
    %v345 = vld [vmem:[%s1 + $0x4e4] sm:$0xf]
    %v346 = vld [vmem:[%s1 + $0x4e8] sm:$0xf]
    %v347 = vld [vmem:[%s1 + $0x4ec] sm:$0xf]
    %v348 = vld [vmem:[%s1 + $0x4f0] sm:$0xf]
    %v349 = vld [vmem:[%s1 + $0x4f4] sm:$0xf]
    %v350 = vld [vmem:[%s1 + $0x4f8] sm:$0xf]
    %v351 = vld [vmem:[%s1 + $0x4fc] sm:$0xf]
    %v352 = vld [vmem:[%s1 + $0x500] sm:$0xf]
    %v353 = vld [vmem:[%s1 + $0x504] sm:$0xf]
    %v354 = vld [vmem:[%s1 + $0x508] sm:$0xf]
    %v355 = vld [vmem:[%s1 + $0x50c] sm:$0xf]
    %v356 = vld [vmem:[%s1 + $0x510] sm:$0xf]
    %v357 = vld [vmem:[%s1 + $0x514] sm:$0xf]
    %v358 = vld [vmem:[%s1 + $0x518] sm:$0xf]
    %v359 = vld [vmem:[%s1 + $0x51c] sm:$0xf]
    %v360 = vld [vmem:[%s1 + $0x520] sm:$0xf]
    %v361 = vld [vmem:[%s1 + $0x524] sm:$0xf]
    %v362 = vld [vmem:[%s1 + $0x528] sm:$0xf]
    %v363 = vld [vmem:[%s1 + $0x52c] sm:$0xf]
    %v364 = vld [vmem:[%s1 + $0x530] sm:$0xf]
    %v365 = vld [vmem:[%s1 + $0x534] sm:$0xf]
    %v366 = vld [vmem:[%s1 + $0x538] sm:$0xf]
    %v367 = vld [vmem:[%s1 + $0x53c] sm:$0xf]
    %v368 = vld [vmem:[%s1 + $0x540] sm:$0xf]
    %v369 = vld [vmem:[%s1 + $0x544] sm:$0xf]
    %v370 = vld [vmem:[%s1 + $0x548] sm:$0xf]
    %v371 = vld [vmem:[%s1 + $0x54c] sm:$0xf]
    %v372 = vld [vmem:[%s1 + $0x550] sm:$0xf]
    %v373 = vld [vmem:[%s1 + $0x554] sm:$0xf]
    %v374 = vld [vmem:[%s1 + $0x558] sm:$0xf]
    %v375 = vld [vmem:[%s1 + $0x55c] sm:$0xf]
    %v376 = vld [vmem:[%s1 + $0x560] sm:$0xf]
    %v377 = vld [vmem:[%s1 + $0x564] sm:$0xf]
    %v378 = vld [vmem:[%s1 + $0x568] sm:$0xf]
    %v379 = vld [vmem:[%s1 + $0x56c] sm:$0xf]
    %v380 = vld [vmem:[%s1 + $0x570] sm:$0xf]
    %v381 = vld [vmem:[%s1 + $0x574] sm:$0xf]
    %v382 = vld [vmem:[%s1 + $0x578] sm:$0xf]
    %v383 = vld [vmem:[%s1 + $0x57c] sm:$0xf]
    %v384 = vld [vmem:[%s1 + $0x580] sm:$0xf]
    %v385 = vld [vmem:[%s1 + $0x584] sm:$0xf]
    %v386 = vld [vmem:[%s1 + $0x588] sm:$0xf]
    %v387 = vld [vmem:[%s1 + $0x58c] sm:$0xf]
    %v388 = vld [vmem:[%s1 + $0x590] sm:$0xf]
    %v389 = vld [vmem:[%s1 + $0x594] sm:$0xf]
    %v390 = vld [vmem:[%s1 + $0x598] sm:$0xf]
    %v391 = vld [vmem:[%s1 + $0x59c] sm:$0xf]
    %v392 = vld [vmem:[%s1 + $0x5a0] sm:$0xf]
    %v393 = vld [vmem:[%s1 + $0x5a4] sm:$0xf]
    %v394 = vld [vmem:[%s1 + $0x5a8] sm:$0xf]
    %v395 = vld [vmem:[%s1 + $0x5ac] sm:$0xf]
    %v396 = vld [vmem:[%s1 + $0x5b0] sm:$0xf]
    %v397 = vld [vmem:[%s1 + $0x5b4] sm:$0xf]
    %v398 = vld [vmem:[%s1 + $0x5b8] sm:$0xf]
    %v399 = vld [vmem:[%s1 + $0x5bc] sm:$0xf]
    %v400 = vld [vmem:[%s1 + $0x5c0] sm:$0xf]
    %v401 = vld [vmem:[%s1 + $0x5c4] sm:$0xf]
    %v402 = vld [vmem:[%s1 + $0x5c8] sm:$0xf]
    %v403 = vld [vmem:[%s1 + $0x5cc] sm:$0xf]
    %v404 = vld [vmem:[%s1 + $0x5d0] sm:$0xf]
    %v405 = vld [vmem:[%s1 + $0x5d4] sm:$0xf]
    %v406 = vld [vmem:[%s1 + $0x5d8] sm:$0xf]
    %v407 = vld [vmem:[%s1 + $0x5dc] sm:$0xf]
    %v408 = vld [vmem:[%s1 + $0x5e0] sm:$0xf]
    %v409 = vld [vmem:[%s1 + $0x5e4] sm:$0xf]
    %v410 = vld [vmem:[%s1 + $0x5e8] sm:$0xf]
    %v411 = vld [vmem:[%s1 + $0x5ec] sm:$0xf]
    %v412 = vld [vmem:[%s1 + $0x5f0] sm:$0xf]
    %v413 = vld [vmem:[%s1 + $0x5f4] sm:$0xf]
    %v414 = vld [vmem:[%s1 + $0x5f8] sm:$0xf]
    %v415 = vld [vmem:[%s1 + $0x5fc] sm:$0xf]
    %v416 = vld [vmem:[%s1 + $0x600] sm:$0xf]
    %v417 = vld [vmem:[%s1 + $0x604] sm:$0xf]
    %v418 = vld [vmem:[%s1 + $0x608] sm:$0xf]
    %v419 = vld [vmem:[%s1 + $0x60c] sm:$0xf]
    %v420 = vld [vmem:[%s1 + $0x610] sm:$0xf]
    %v421 = vld [vmem:[%s1 + $0x614] sm:$0xf]
    %v422 = vld [vmem:[%s1 + $0x618] sm:$0xf]
    %v423 = vld [vmem:[%s1 + $0x61c] sm:$0xf]
    %v424 = vld [vmem:[%s2] sm:$0x1]
    %v426 = vlaneseq
    %v427 = vshrl.u32 %v426, 7
    %v428 = vsub.s32 0, %v427
    %v429 = vrot.slane %v424, %v428
    %v435 = vcombine.high %v28, %v28
    %v437 = vunpack.c.l.s4 1966171168
    %v438 = vunpack.c.0.s8 %v437
    %v439 = vlaneseq
    %v440 = vshrl.u32 %v439, 7
    %v441 = vsub.s32 %v438, %v440
    %v442 = vrot.slane %v28, %v441
    %v444 = vunpack.c.l.s4 1966171168
    %v445 = vunpack.c.0.s8 %v444
    %v446 = vlaneseq
    %v447 = vshrl.u32 %v446, 7
    %v448 = vsub.s32 %v445, %v447
    %v449 = vrot.slane %v435, %v448
    %v450 = vcombine.high %v442, %v442
    %v451 = vcombine.high %v449, %v449
    %v453 = vunpack.c.l.s4 1966171168
    %v454 = vunpack.c.0.s8 %v453
    %v455 = vlaneseq
    %v456 = vshrl.u32 %v455, 7
    %v457 = vsub.s32 %v454, %v456
    %v458 = vrot.slane %v442, %v457
    %v460 = vunpack.c.l.s4 1966171168
    %v461 = vunpack.c.0.s8 %v460
    %v462 = vlaneseq
    %v463 = vshrl.u32 %v462, 7
    %v464 = vsub.s32 %v461, %v463
    %v465 = vrot.slane %v449, %v464
    %v467 = vunpack.c.l.s4 1966171168
    %v468 = vunpack.c.0.s8 %v467
    %v469 = vlaneseq
    %v470 = vshrl.u32 %v469, 7
    %v471 = vsub.s32 %v468, %v470
    %v472 = vrot.slane %v450, %v471
    %v474 = vunpack.c.l.s4 1966171168
    %v475 = vunpack.c.0.s8 %v474
    %v476 = vlaneseq
    %v477 = vshrl.u32 %v476, 7
    %v478 = vsub.s32 %v475, %v477
    %v479 = vrot.slane %v451, %v478
    %v480 = vcombine.high %v458, %v458
    %v481 = vcombine.high %v465, %v465
    %v482 = vcombine.high %v472, %v472
    %v483 = vcombine.high %v479, %v479
    %v484 = vcombine.high %v29, %v29
    %v486 = vunpack.c.l.s4 1966171168
    %v487 = vunpack.c.0.s8 %v486
    %v488 = vlaneseq
    %v489 = vshrl.u32 %v488, 7
    %v490 = vsub.s32 %v487, %v489
    %v491 = vrot.slane %v29, %v490
    %v493 = vunpack.c.l.s4 1966171168
    %v494 = vunpack.c.0.s8 %v493
    %v495 = vlaneseq
    %v496 = vshrl.u32 %v495, 7
    %v497 = vsub.s32 %v494, %v496
    %v498 = vrot.slane %v484, %v497
    %v499 = vcombine.high %v491, %v491
    %v500 = vcombine.high %v498, %v498
    %v502 = vunpack.c.l.s4 1966171168
    %v503 = vunpack.c.0.s8 %v502
    %v504 = vlaneseq
    %v505 = vshrl.u32 %v504, 7
    %v506 = vsub.s32 %v503, %v505
    %v507 = vrot.slane %v491, %v506
    %v509 = vunpack.c.l.s4 1966171168
    %v510 = vunpack.c.0.s8 %v509
    %v511 = vlaneseq
    %v512 = vshrl.u32 %v511, 7
    %v513 = vsub.s32 %v510, %v512
    %v514 = vrot.slane %v498, %v513
    %v516 = vunpack.c.l.s4 1966171168
    %v517 = vunpack.c.0.s8 %v516
    %v518 = vlaneseq
    %v519 = vshrl.u32 %v518, 7
    %v520 = vsub.s32 %v517, %v519
    %v521 = vrot.slane %v499, %v520
    %v523 = vunpack.c.l.s4 1966171168
    %v524 = vunpack.c.0.s8 %v523
    %v525 = vlaneseq
    %v526 = vshrl.u32 %v525, 7
    %v527 = vsub.s32 %v524, %v526
    %v528 = vrot.slane %v500, %v527
    %v529 = vcombine.high %v507, %v507
    %v530 = vcombine.high %v514, %v514
    %v531 = vcombine.high %v521, %v521
    %v532 = vcombine.high %v528, %v528
    %v533 = vcombine.high %v30, %v30
    %v535 = vunpack.c.l.s4 1966171168
    %v536 = vunpack.c.0.s8 %v535
    %v537 = vlaneseq
    %v538 = vshrl.u32 %v537, 7
    %v539 = vsub.s32 %v536, %v538
    %v540 = vrot.slane %v30, %v539
    %v542 = vunpack.c.l.s4 1966171168
    %v543 = vunpack.c.0.s8 %v542
    %v544 = vlaneseq
    %v545 = vshrl.u32 %v544, 7
    %v546 = vsub.s32 %v543, %v545
    %v547 = vrot.slane %v533, %v546
    %v548 = vcombine.high %v540, %v540
    %v549 = vcombine.high %v547, %v547
    %v551 = vunpack.c.l.s4 1966171168
    %v552 = vunpack.c.0.s8 %v551
    %v553 = vlaneseq
    %v554 = vshrl.u32 %v553, 7
    %v555 = vsub.s32 %v552, %v554
    %v556 = vrot.slane %v540, %v555
    %v558 = vunpack.c.l.s4 1966171168
    %v559 = vunpack.c.0.s8 %v558
    %v560 = vlaneseq
    %v561 = vshrl.u32 %v560, 7
    %v562 = vsub.s32 %v559, %v561
    %v563 = vrot.slane %v547, %v562
    %v565 = vunpack.c.l.s4 1966171168
    %v566 = vunpack.c.0.s8 %v565
    %v567 = vlaneseq
    %v568 = vshrl.u32 %v567, 7
    %v569 = vsub.s32 %v566, %v568
    %v570 = vrot.slane %v548, %v569
    %v572 = vunpack.c.l.s4 1966171168
    %v573 = vunpack.c.0.s8 %v572
    %v574 = vlaneseq
    %v575 = vshrl.u32 %v574, 7
    %v576 = vsub.s32 %v573, %v575
    %v577 = vrot.slane %v549, %v576
    %v578 = vcombine.high %v556, %v556
    %v579 = vcombine.high %v563, %v563
    %v580 = vcombine.high %v570, %v570
    %v581 = vcombine.high %v577, %v577
    %v583 = vunpack.c.l.s4 1966171168
    %v584 = vunpack.c.0.s8 %v583
    %v585 = vlaneseq
    %v586 = vshrl.u32 %v585, 7
    %v587 = vsub.s32 %v584, %v586
    %v588 = vrot.slane %v31, %v587
    %v590 = vunpack.c.l.s4 1966171168
    %v591 = vunpack.c.0.s8 %v590
    %v592 = vlaneseq
    %v593 = vshrl.u32 %v592, 7
    %v594 = vsub.s32 %v591, %v593
    %v595 = vrot.slane %v588, %v594
    %v1012 = vunpack.c.l.b16 %v32
    %v1013 = vunpack.c.l.b16 %v33
    %v1014 = vunpack.c.l.b16 %v34
    %v1015 = vunpack.c.l.b16 %v35
    %v1016 = vunpack.c.l.b16 %v36
    %v1017 = vunpack.c.l.b16 %v37
    %v1018 = vunpack.c.l.b16 %v38
    %v1019 = vunpack.c.l.b16 %v39
    %v1020 = vunpack.c.l.b16 %v40
    %v1021 = vunpack.c.l.b16 %v41
    %v1022 = vunpack.c.l.b16 %v42
    %v1023 = vunpack.c.l.b16 %v43
    %v1024 = vunpack.c.l.b16 %v44
    %v1025 = vunpack.c.l.b16 %v45
    %v1026 = vunpack.c.l.b16 %v46
    %v1027 = vunpack.c.l.b16 %v47
    %v1028 = vunpack.c.l.b16 %v48
    %v1029 = vunpack.c.l.b16 %v49
    %v1030 = vunpack.c.l.b16 %v50
    %v1031 = vunpack.c.l.b16 %v51
    %v1032 = vunpack.c.l.b16 %v52
    %v1033 = vunpack.c.l.b16 %v53
    %v1034 = vunpack.c.l.b16 %v54
    %v1035 = vunpack.c.l.b16 %v55
    %v1036 = vunpack.c.l.b16 %v56
    %v1037 = vunpack.c.l.b16 %v57
    %v1038 = vunpack.c.l.b16 %v58
    %v1039 = vunpack.c.l.b16 %v59
    %v1040 = vunpack.c.l.b16 %v60
    %v1041 = vunpack.c.l.b16 %v61
    %v1042 = vunpack.c.l.b16 %v62
    %v1043 = vunpack.c.l.b16 %v63
    %v1044 = vunpack.c.l.b16 %v64
    %v1045 = vunpack.c.l.b16 %v65
    %v1046 = vunpack.c.l.b16 %v66
    %v1047 = vunpack.c.l.b16 %v67
    %v1048 = vunpack.c.l.b16 %v68
    %v1049 = vunpack.c.l.b16 %v69
    %v1050 = vunpack.c.l.b16 %v70
    %v1051 = vunpack.c.l.b16 %v71
    %v1052 = vunpack.c.l.b16 %v72
    %v1053 = vunpack.c.l.b16 %v73
    %v1054 = vunpack.c.l.b16 %v74
    %v1055 = vunpack.c.l.b16 %v75
    %v1056 = vunpack.c.l.b16 %v76
    %v1057 = vunpack.c.l.b16 %v77
    %v1058 = vunpack.c.l.b16 %v78
    %v1059 = vunpack.c.l.b16 %v79
    %v1060 = vunpack.c.l.b16 %v80
    %v1061 = vunpack.c.l.b16 %v81
    %v1062 = vunpack.c.l.b16 %v82
    %v1063 = vunpack.c.l.b16 %v83
    %v1064 = vunpack.c.l.b16 %v84
    %v1065 = vunpack.c.l.b16 %v85
    %v1066 = vunpack.c.l.b16 %v86
    %v1067 = vunpack.c.l.b16 %v87
    %v1068 = vunpack.c.l.b16 %v88
    %v1069 = vunpack.c.l.b16 %v89
    %v1070 = vunpack.c.l.b16 %v90
    %v1071 = vunpack.c.l.b16 %v91
    %v1072 = vunpack.c.l.b16 %v92
    %v1073 = vunpack.c.l.b16 %v93
    %v1074 = vunpack.c.l.b16 %v94
    %v1075 = vunpack.c.l.b16 %v95
    %v1076 = vunpack.c.l.b16 %v96
    %v1077 = vunpack.c.l.b16 %v97
    %v1078 = vunpack.c.l.b16 %v98
    %v1079 = vunpack.c.l.b16 %v99
    %v1080 = vunpack.c.l.b16 %v100
    %v1081 = vunpack.c.l.b16 %v101
    %v1082 = vunpack.c.l.b16 %v102
    %v1083 = vunpack.c.l.b16 %v103
    %v1084 = vunpack.c.l.b16 %v104
    %v1085 = vunpack.c.l.b16 %v105
    %v1086 = vunpack.c.l.b16 %v106
    %v1087 = vunpack.c.l.b16 %v107
    %v1088 = vunpack.c.l.b16 %v108
    %v1089 = vunpack.c.l.b16 %v109
    %v1090 = vunpack.c.l.b16 %v110
    %v1091 = vunpack.c.l.b16 %v111
    %v1092 = vunpack.c.l.b16 %v112
    %v1093 = vunpack.c.l.b16 %v113
    %v1094 = vunpack.c.l.b16 %v114
    %v1095 = vunpack.c.l.b16 %v115
    %v1096 = vunpack.c.l.b16 %v116
    %v1097 = vunpack.c.l.b16 %v117
    %v1098 = vunpack.c.l.b16 %v118
    %v1099 = vunpack.c.l.b16 %v119
    %v1100 = vunpack.c.l.b16 %v120
    %v1101 = vunpack.c.l.b16 %v121
    %v1102 = vunpack.c.l.b16 %v122
    %v1103 = vunpack.c.l.b16 %v123
    %v1104 = vunpack.c.l.b16 %v124
    %v1105 = vunpack.c.l.b16 %v125
    %v1106 = vunpack.c.l.b16 %v126
    %v1107 = vunpack.c.l.b16 %v127
    %v1108 = vunpack.c.l.b16 %v128
    %v1109 = vunpack.c.l.b16 %v129
    %v1110 = vunpack.c.l.b16 %v130
    %v1111 = vunpack.c.l.b16 %v131
    %v1112 = vunpack.c.l.b16 %v132
    %v1113 = vunpack.c.l.b16 %v133
    %v1114 = vunpack.c.l.b16 %v134
    %v1115 = vunpack.c.l.b16 %v135
    %v1116 = vunpack.c.l.b16 %v136
    %v1117 = vunpack.c.l.b16 %v137
    %v1118 = vunpack.c.l.b16 %v138
    %v1119 = vunpack.c.l.b16 %v139
    %v1120 = vunpack.c.l.b16 %v140
    %v1121 = vunpack.c.l.b16 %v141
    %v1122 = vunpack.c.l.b16 %v142
    %v1123 = vunpack.c.l.b16 %v143
    %v1124 = vunpack.c.l.b16 %v144
    %v1125 = vunpack.c.l.b16 %v145
    %v1126 = vunpack.c.l.b16 %v146
    %v1127 = vunpack.c.l.b16 %v147
    %v1128 = vunpack.c.l.b16 %v148
    %v1129 = vunpack.c.l.b16 %v149
    %v1130 = vunpack.c.l.b16 %v150
    %v1131 = vunpack.c.l.b16 %v151
    %v1132 = vunpack.c.l.b16 %v152
    %v1133 = vunpack.c.l.b16 %v153
    %v1134 = vunpack.c.l.b16 %v154
    %v1135 = vunpack.c.l.b16 %v155
    %v1136 = vunpack.c.l.b16 %v156
    %v1137 = vunpack.c.l.b16 %v157
    %v1138 = vunpack.c.l.b16 %v158
    %v1139 = vunpack.c.l.b16 %v159
    %v1140 = vunpack.c.l.b16 %v160
    %v1141 = vunpack.c.l.b16 %v161
    %v1142 = vunpack.c.l.b16 %v162
    %v1143 = vunpack.c.l.b16 %v163
    %v1144 = vunpack.c.l.b16 %v164
    %v1145 = vunpack.c.l.b16 %v165
    %v1146 = vunpack.c.l.b16 %v166
    %v1147 = vunpack.c.l.b16 %v167
    %v1148 = vunpack.c.l.b16 %v168
    %v1149 = vunpack.c.l.b16 %v169
    %v1150 = vunpack.c.l.b16 %v170
    %v1151 = vunpack.c.l.b16 %v171
    %v1152 = vunpack.c.l.b16 %v172
    %v1153 = vunpack.c.l.b16 %v173
    %v1154 = vunpack.c.l.b16 %v174
    %v1155 = vunpack.c.l.b16 %v175
    %v1156 = vunpack.c.l.b16 %v176
    %v1157 = vunpack.c.l.b16 %v177
    %v1158 = vunpack.c.l.b16 %v178
    %v1159 = vunpack.c.l.b16 %v179
    %v1160 = vunpack.c.l.b16 %v180
    %v1161 = vunpack.c.l.b16 %v181
    %v1162 = vunpack.c.l.b16 %v182
    %v1163 = vunpack.c.l.b16 %v183
    %v1164 = vunpack.c.l.b16 %v184
    %v1165 = vunpack.c.l.b16 %v185
    %v1166 = vunpack.c.l.b16 %v186
    %v1167 = vunpack.c.l.b16 %v187
    %v1168 = vunpack.c.l.b16 %v188
    %v1169 = vunpack.c.l.b16 %v189
    %v1170 = vunpack.c.l.b16 %v190
    %v1171 = vunpack.c.l.b16 %v191
    %v1172 = vunpack.c.l.b16 %v192
    %v1173 = vunpack.c.l.b16 %v193
    %v1174 = vunpack.c.l.b16 %v194
    %v1175 = vunpack.c.l.b16 %v195
    %v1176 = vunpack.c.l.b16 %v196
    %v1177 = vunpack.c.l.b16 %v197
    %v1178 = vunpack.c.l.b16 %v198
    %v1179 = vunpack.c.l.b16 %v199
    %v1180 = vunpack.c.l.b16 %v200
    %v1181 = vunpack.c.l.b16 %v201
    %v1182 = vunpack.c.l.b16 %v202
    %v1183 = vunpack.c.l.b16 %v203
    %v1184 = vunpack.c.l.b16 %v204
    %v1185 = vunpack.c.l.b16 %v205
    %v1186 = vunpack.c.l.b16 %v206
    %v1187 = vunpack.c.l.b16 %v207
    %v1188 = vunpack.c.l.b16 %v208
    %v1189 = vunpack.c.l.b16 %v209
    %v1190 = vunpack.c.l.b16 %v210
    %v1191 = vunpack.c.l.b16 %v211
    %v1192 = vunpack.c.l.b16 %v212
    %v1193 = vunpack.c.l.b16 %v213
    %v1194 = vunpack.c.l.b16 %v214
    %v1195 = vunpack.c.l.b16 %v215
    %v1196 = vunpack.c.l.b16 %v216
    %v1197 = vunpack.c.l.b16 %v217
    %v1198 = vunpack.c.l.b16 %v218
    %v1199 = vunpack.c.l.b16 %v219
    %v1200 = vunpack.c.l.b16 %v220
    %v1201 = vunpack.c.l.b16 %v221
    %v1202 = vunpack.c.l.b16 %v222
    %v1203 = vunpack.c.l.b16 %v223
    %v1204 = vunpack.c.l.b16 %v224
    %v1205 = vunpack.c.l.b16 %v225
    %v1206 = vunpack.c.l.b16 %v226
    %v1207 = vunpack.c.l.b16 %v227
    %v1208 = vunpack.c.l.b16 %v228
    %v1209 = vunpack.c.l.b16 %v229
    %v1210 = vunpack.c.l.b16 %v230
    %v1211 = vunpack.c.l.b16 %v231
    %v1212 = vunpack.c.l.b16 %v232
    %v1213 = vunpack.c.l.b16 %v233
    %v1214 = vunpack.c.l.b16 %v234
    %v1215 = vunpack.c.l.b16 %v235
    %v1216 = vunpack.c.l.b16 %v236
    %v1217 = vunpack.c.l.b16 %v237
    %v1218 = vunpack.c.l.b16 %v238
    %v1219 = vunpack.c.l.b16 %v239
    %v1220 = vunpack.c.l.b16 %v240
    %v1221 = vunpack.c.l.b16 %v241
    %v1222 = vunpack.c.l.b16 %v242
    %v1223 = vunpack.c.l.b16 %v243
    %v1224 = vunpack.c.l.b16 %v244
    %v1225 = vunpack.c.l.b16 %v245
    %v1226 = vunpack.c.l.b16 %v246
    %v1227 = vunpack.c.l.b16 %v247
    %v1228 = vunpack.c.l.b16 %v248
    %v1229 = vunpack.c.l.b16 %v249
    %v1230 = vunpack.c.l.b16 %v250
    %v1231 = vunpack.c.l.b16 %v251
    %v1232 = vunpack.c.l.b16 %v252
    %v1233 = vunpack.c.l.b16 %v253
    %v1234 = vunpack.c.l.b16 %v254
    %v1235 = vunpack.c.l.b16 %v255
    %v1236 = vunpack.c.l.b16 %v256
    %v1237 = vunpack.c.l.b16 %v257
    %v1238 = vunpack.c.l.b16 %v258
    %v1239 = vunpack.c.l.b16 %v259
    %v1240 = vunpack.c.l.b16 %v260
    %v1241 = vunpack.c.l.b16 %v261
    %v1242 = vunpack.c.l.b16 %v262
    %v1243 = vunpack.c.l.b16 %v263
    %v1244 = vunpack.c.l.b16 %v264
    %v1245 = vunpack.c.l.b16 %v265
    %v1246 = vunpack.c.l.b16 %v266
    %v1247 = vunpack.c.l.b16 %v267
    %v1248 = vunpack.c.l.b16 %v268
    %v1249 = vunpack.c.l.b16 %v269
    %v1250 = vunpack.c.l.b16 %v270
    %v1251 = vunpack.c.l.b16 %v271
    %v1252 = vunpack.c.l.b16 %v272
    %v1253 = vunpack.c.l.b16 %v273
    %v1254 = vunpack.c.l.b16 %v274
    %v1255 = vunpack.c.l.b16 %v275
    %v1256 = vunpack.c.l.b16 %v276
    %v1257 = vunpack.c.l.b16 %v277
    %v1258 = vunpack.c.l.b16 %v278
    %v1259 = vunpack.c.l.b16 %v279
    %v1260 = vunpack.c.l.b16 %v280
    %v1261 = vunpack.c.l.b16 %v281
    %v1262 = vunpack.c.l.b16 %v282
    %v1263 = vunpack.c.l.b16 %v283
    %v1264 = vunpack.c.l.b16 %v284
    %v1265 = vunpack.c.l.b16 %v285
    %v1266 = vunpack.c.l.b16 %v286
    %v1267 = vunpack.c.l.b16 %v287
    %v1268 = vunpack.c.l.b16 %v288
    %v1269 = vunpack.c.l.b16 %v289
    %v1270 = vunpack.c.l.b16 %v290
    %v1271 = vunpack.c.l.b16 %v291
    %v1272 = vunpack.c.l.b16 %v292
    %v1273 = vunpack.c.l.b16 %v293
    %v1274 = vunpack.c.l.b16 %v294
    %v1275 = vunpack.c.l.b16 %v295
    %v1276 = vunpack.c.l.b16 %v296
    %v1277 = vunpack.c.l.b16 %v297
    %v1278 = vunpack.c.l.b16 %v298
    %v1279 = vunpack.c.l.b16 %v299
    %v1280 = vunpack.c.l.b16 %v300
    %v1281 = vunpack.c.l.b16 %v301
    %v1282 = vunpack.c.l.b16 %v302
    %v1283 = vunpack.c.l.b16 %v303
    %v1284 = vunpack.c.l.b16 %v304
    %v1285 = vunpack.c.l.b16 %v305
    %v1286 = vunpack.c.l.b16 %v306
    %v1287 = vunpack.c.l.b16 %v307
    %v1288 = vunpack.c.l.b16 %v308
    %v1289 = vunpack.c.l.b16 %v309
    %v1290 = vunpack.c.l.b16 %v310
    %v1291 = vunpack.c.l.b16 %v311
    %v1292 = vunpack.c.l.b16 %v312
    %v1293 = vunpack.c.l.b16 %v313
    %v1294 = vunpack.c.l.b16 %v314
    %v1295 = vunpack.c.l.b16 %v315
    %v1296 = vunpack.c.l.b16 %v316
    %v1297 = vunpack.c.l.b16 %v317
    %v1298 = vunpack.c.l.b16 %v318
    %v1299 = vunpack.c.l.b16 %v319
    %v1300 = vunpack.c.l.b16 %v320
    %v1301 = vunpack.c.l.b16 %v321
    %v1302 = vunpack.c.l.b16 %v322
    %v1303 = vunpack.c.l.b16 %v323
    %v1304 = vunpack.c.l.b16 %v324
    %v1305 = vunpack.c.l.b16 %v325
    %v1306 = vunpack.c.l.b16 %v326
    %v1307 = vunpack.c.l.b16 %v327
    %v1308 = vunpack.c.l.b16 %v328
    %v1309 = vunpack.c.l.b16 %v329
    %v1310 = vunpack.c.l.b16 %v330
    %v1311 = vunpack.c.l.b16 %v331
    %v1312 = vunpack.c.l.b16 %v332
    %v1313 = vunpack.c.l.b16 %v333
    %v1314 = vunpack.c.l.b16 %v334
    %v1315 = vunpack.c.l.b16 %v335
    %v1316 = vunpack.c.l.b16 %v336
    %v1317 = vunpack.c.l.b16 %v337
    %v1318 = vunpack.c.l.b16 %v338
    %v1319 = vunpack.c.l.b16 %v339
    %v1320 = vunpack.c.l.b16 %v340
    %v1321 = vunpack.c.l.b16 %v341
    %v1322 = vunpack.c.l.b16 %v342
    %v1323 = vunpack.c.l.b16 %v343
    %v1324 = vunpack.c.l.b16 %v344
    %v1325 = vunpack.c.l.b16 %v345
    %v1326 = vunpack.c.l.b16 %v346
    %v1327 = vunpack.c.l.b16 %v347
    %v1328 = vunpack.c.l.b16 %v348
    %v1329 = vunpack.c.l.b16 %v349
    %v1330 = vunpack.c.l.b16 %v350
    %v1331 = vunpack.c.l.b16 %v351
    %v1332 = vunpack.c.l.b16 %v352
    %v1333 = vunpack.c.l.b16 %v353
    %v1334 = vunpack.c.l.b16 %v354
    %v1335 = vunpack.c.l.b16 %v355
    %v1336 = vunpack.c.l.b16 %v356
    %v1337 = vunpack.c.l.b16 %v357
    %v1338 = vunpack.c.l.b16 %v358
    %v1339 = vunpack.c.l.b16 %v359
    %v1340 = vunpack.c.l.b16 %v360
    %v1341 = vunpack.c.l.b16 %v361
    %v1342 = vunpack.c.l.b16 %v362
    %v1343 = vunpack.c.l.b16 %v363
    %v1344 = vunpack.c.l.b16 %v364
    %v1345 = vunpack.c.l.b16 %v365
    %v1346 = vunpack.c.l.b16 %v366
    %v1347 = vunpack.c.l.b16 %v367
    %v1348 = vunpack.c.l.b16 %v368
    %v1349 = vunpack.c.l.b16 %v369
    %v1350 = vunpack.c.l.b16 %v370
    %v1351 = vunpack.c.l.b16 %v371
    %v1352 = vunpack.c.l.b16 %v372
    %v1353 = vunpack.c.l.b16 %v373
    %v1354 = vunpack.c.l.b16 %v374
    %v1355 = vunpack.c.l.b16 %v375
    %v1356 = vunpack.c.l.b16 %v376
    %v1357 = vunpack.c.l.b16 %v377
    %v1358 = vunpack.c.l.b16 %v378
    %v1359 = vunpack.c.l.b16 %v379
    %v1360 = vunpack.c.l.b16 %v380
    %v1361 = vunpack.c.l.b16 %v381
    %v1362 = vunpack.c.l.b16 %v382
    %v1363 = vunpack.c.l.b16 %v383
    %v1364 = vunpack.c.l.b16 %v384
    %v1365 = vunpack.c.l.b16 %v385
    %v1366 = vunpack.c.l.b16 %v386
    %v1367 = vunpack.c.l.b16 %v387
    %v1368 = vunpack.c.l.b16 %v388
    %v1369 = vunpack.c.l.b16 %v389
    %v1370 = vunpack.c.l.b16 %v390
    %v1371 = vunpack.c.l.b16 %v391
    %v1372 = vunpack.c.l.b16 %v392
    %v1373 = vunpack.c.l.b16 %v393
    %v1374 = vunpack.c.l.b16 %v394
    %v1375 = vunpack.c.l.b16 %v395
    %v1376 = vunpack.c.l.b16 %v396
    %v1377 = vunpack.c.l.b16 %v397
    %v1378 = vunpack.c.l.b16 %v398
    %v1379 = vunpack.c.l.b16 %v399
    %v1380 = vunpack.c.l.b16 %v400
    %v1381 = vunpack.c.l.b16 %v401
    %v1382 = vunpack.c.l.b16 %v402
    %v1383 = vunpack.c.l.b16 %v403
    %v1384 = vunpack.c.l.b16 %v404
    %v1385 = vunpack.c.l.b16 %v405
    %v1386 = vunpack.c.l.b16 %v406
    %v1387 = vunpack.c.l.b16 %v407
    %v1388 = vunpack.c.l.b16 %v408
    %v1389 = vunpack.c.l.b16 %v409
    %v1390 = vunpack.c.l.b16 %v410
    %v1391 = vunpack.c.l.b16 %v411
    %v1392 = vunpack.c.l.b16 %v412
    %v1393 = vunpack.c.l.b16 %v413
    %v1394 = vunpack.c.l.b16 %v414
    %v1395 = vunpack.c.l.b16 %v415
    %v1396 = vunpack.c.l.b16 %v416
    %v1397 = vunpack.c.l.b16 %v417
    %v1398 = vunpack.c.l.b16 %v418
    %v1399 = vunpack.c.l.b16 %v419
    %v1400 = vunpack.c.l.b16 %v420
    %v1401 = vunpack.c.l.b16 %v421
    %v1402 = vunpack.c.l.b16 %v422
    %v1403 = vunpack.c.l.b16 %v423
    %v1404 = vpack.c.b16 %v1013, %v1012
    %v1405 = vpack.c.b16 %v1015, %v1014
    %v1406 = vpack.c.b16 %v1017, %v1016
    %v1407 = vpack.c.b16 %v1019, %v1018
    %v1408 = vpack.c.b16 %v1021, %v1020
    %v1409 = vpack.c.b16 %v1023, %v1022
    %v1410 = vpack.c.b16 %v1025, %v1024
    %v1411 = vpack.c.b16 %v1027, %v1026
    %v1412 = vpack.c.b16 %v1029, %v1028
    %v1413 = vpack.c.b16 %v1031, %v1030
    %v1414 = vpack.c.b16 %v1033, %v1032
    %v1415 = vpack.c.b16 %v1035, %v1034
    %v1416 = vpack.c.b16 %v1037, %v1036
    %v1417 = vpack.c.b16 %v1039, %v1038
    %v1418 = vpack.c.b16 %v1041, %v1040
    %v1419 = vpack.c.b16 %v1043, %v1042
    %v1420 = vpack.c.b16 %v1045, %v1044
    %v1421 = vpack.c.b16 %v1047, %v1046
    %v1422 = vpack.c.b16 %v1049, %v1048
    %v1423 = vpack.c.b16 %v1051, %v1050
    %v1424 = vpack.c.b16 %v1053, %v1052
    %v1425 = vpack.c.b16 %v1055, %v1054
    %v1426 = vpack.c.b16 %v1057, %v1056
    %v1427 = vpack.c.b16 %v1059, %v1058
    %v1428 = vpack.c.b16 %v1061, %v1060
    %v1429 = vpack.c.b16 %v1063, %v1062
    %v1430 = vpack.c.b16 %v1065, %v1064
    %v1431 = vpack.c.b16 %v1067, %v1066
    %v1432 = vpack.c.b16 %v1069, %v1068
    %v1433 = vpack.c.b16 %v1071, %v1070
    %v1434 = vpack.c.b16 %v1073, %v1072
    %v1435 = vpack.c.b16 %v1075, %v1074
    %v1436 = vpack.c.b16 %v1077, %v1076
    %v1437 = vpack.c.b16 %v1079, %v1078
    %v1438 = vpack.c.b16 %v1081, %v1080
    %v1439 = vpack.c.b16 %v1083, %v1082
    %v1440 = vpack.c.b16 %v1085, %v1084
    %v1441 = vpack.c.b16 %v1087, %v1086
    %v1442 = vpack.c.b16 %v1089, %v1088
    %v1443 = vpack.c.b16 %v1091, %v1090
    %v1444 = vpack.c.b16 %v1093, %v1092
    %v1445 = vpack.c.b16 %v1095, %v1094
    %v1446 = vpack.c.b16 %v1097, %v1096
    %v1447 = vpack.c.b16 %v1099, %v1098
    %v1448 = vpack.c.b16 %v1101, %v1100
    %v1449 = vpack.c.b16 %v1103, %v1102
    %v1450 = vpack.c.b16 %v1105, %v1104
    %v1451 = vpack.c.b16 %v1107, %v1106
    %v1452 = vpack.c.b16 %v1109, %v1108
    %v1453 = vpack.c.b16 %v1111, %v1110
    %v1454 = vpack.c.b16 %v1113, %v1112
    %v1455 = vpack.c.b16 %v1115, %v1114
    %v1456 = vpack.c.b16 %v1117, %v1116
    %v1457 = vpack.c.b16 %v1119, %v1118
    %v1458 = vpack.c.b16 %v1121, %v1120
    %v1459 = vpack.c.b16 %v1123, %v1122
    %v1460 = vpack.c.b16 %v1125, %v1124
    %v1461 = vpack.c.b16 %v1127, %v1126
    %v1462 = vpack.c.b16 %v1129, %v1128
    %v1463 = vpack.c.b16 %v1131, %v1130
    %v1464 = vpack.c.b16 %v1133, %v1132
    %v1465 = vpack.c.b16 %v1135, %v1134
    %v1466 = vpack.c.b16 %v1137, %v1136
    %v1467 = vpack.c.b16 %v1139, %v1138
    %v1468 = vpack.c.b16 %v1141, %v1140
    %v1469 = vpack.c.b16 %v1143, %v1142
    %v1470 = vpack.c.b16 %v1145, %v1144
    %v1471 = vpack.c.b16 %v1147, %v1146
    %v1472 = vpack.c.b16 %v1149, %v1148
    %v1473 = vpack.c.b16 %v1151, %v1150
    %v1474 = vpack.c.b16 %v1153, %v1152
    %v1475 = vpack.c.b16 %v1155, %v1154
    %v1476 = vpack.c.b16 %v1157, %v1156
    %v1477 = vpack.c.b16 %v1159, %v1158
    %v1478 = vpack.c.b16 %v1161, %v1160
    %v1479 = vpack.c.b16 %v1163, %v1162
    %v1480 = vpack.c.b16 %v1165, %v1164
    %v1481 = vpack.c.b16 %v1167, %v1166
    %v1482 = vpack.c.b16 %v1169, %v1168
    %v1483 = vpack.c.b16 %v1171, %v1170
    %v1484 = vpack.c.b16 %v1173, %v1172
    %v1485 = vpack.c.b16 %v1175, %v1174
    %v1486 = vpack.c.b16 %v1177, %v1176
    %v1487 = vpack.c.b16 %v1179, %v1178
    %v1488 = vpack.c.b16 %v1181, %v1180
    %v1489 = vpack.c.b16 %v1183, %v1182
    %v1490 = vpack.c.b16 %v1185, %v1184
    %v1491 = vpack.c.b16 %v1187, %v1186
    %v1492 = vpack.c.b16 %v1189, %v1188
    %v1493 = vpack.c.b16 %v1191, %v1190
    %v1494 = vpack.c.b16 %v1193, %v1192
    %v1495 = vpack.c.b16 %v1195, %v1194
    %v1496 = vpack.c.b16 %v1197, %v1196
    %v1497 = vpack.c.b16 %v1199, %v1198
    %v1498 = vpack.c.b16 %v1201, %v1200
    %v1499 = vpack.c.b16 %v1203, %v1202
    %v1500 = vpack.c.b16 %v1205, %v1204
    %v1501 = vpack.c.b16 %v1207, %v1206
    %v1502 = vpack.c.b16 %v1209, %v1208
    %v1503 = vpack.c.b16 %v1211, %v1210
    %v1504 = vpack.c.b16 %v1213, %v1212
    %v1505 = vpack.c.b16 %v1215, %v1214
    %v1506 = vpack.c.b16 %v1217, %v1216
    %v1507 = vpack.c.b16 %v1219, %v1218
    %v1508 = vpack.c.b16 %v1221, %v1220
    %v1509 = vpack.c.b16 %v1223, %v1222
    %v1510 = vpack.c.b16 %v1225, %v1224
    %v1511 = vpack.c.b16 %v1227, %v1226
    %v1512 = vpack.c.b16 %v1229, %v1228
    %v1513 = vpack.c.b16 %v1231, %v1230
    %v1514 = vpack.c.b16 %v1233, %v1232
    %v1515 = vpack.c.b16 %v1235, %v1234
    %v1516 = vpack.c.b16 %v1237, %v1236
    %v1517 = vpack.c.b16 %v1239, %v1238
    %v1518 = vpack.c.b16 %v1241, %v1240
    %v1519 = vpack.c.b16 %v1243, %v1242
    %v1520 = vpack.c.b16 %v1245, %v1244
    %v1521 = vpack.c.b16 %v1247, %v1246
    %v1522 = vpack.c.b16 %v1249, %v1248
    %v1523 = vpack.c.b16 %v1251, %v1250
    %v1524 = vpack.c.b16 %v1253, %v1252
    %v1525 = vpack.c.b16 %v1255, %v1254
    %v1526 = vpack.c.b16 %v1257, %v1256
    %v1527 = vpack.c.b16 %v1259, %v1258
    %v1528 = vpack.c.b16 %v1261, %v1260
    %v1529 = vpack.c.b16 %v1263, %v1262
    %v1530 = vpack.c.b16 %v1265, %v1264
    %v1531 = vpack.c.b16 %v1267, %v1266
    %v1532 = vpack.c.b16 %v1269, %v1268
    %v1533 = vpack.c.b16 %v1271, %v1270
    %v1534 = vpack.c.b16 %v1273, %v1272
    %v1535 = vpack.c.b16 %v1275, %v1274
    %v1536 = vpack.c.b16 %v1277, %v1276
    %v1537 = vpack.c.b16 %v1279, %v1278
    %v1538 = vpack.c.b16 %v1281, %v1280
    %v1539 = vpack.c.b16 %v1283, %v1282
    %v1540 = vpack.c.b16 %v1285, %v1284
    %v1541 = vpack.c.b16 %v1287, %v1286
    %v1542 = vpack.c.b16 %v1289, %v1288
    %v1543 = vpack.c.b16 %v1291, %v1290
    %v1544 = vpack.c.b16 %v1293, %v1292
    %v1545 = vpack.c.b16 %v1295, %v1294
    %v1546 = vpack.c.b16 %v1297, %v1296
    %v1547 = vpack.c.b16 %v1299, %v1298
    %v1548 = vpack.c.b16 %v1301, %v1300
    %v1549 = vpack.c.b16 %v1303, %v1302
    %v1550 = vpack.c.b16 %v1305, %v1304
    %v1551 = vpack.c.b16 %v1307, %v1306
    %v1552 = vpack.c.b16 %v1309, %v1308
    %v1553 = vpack.c.b16 %v1311, %v1310
    %v1554 = vpack.c.b16 %v1313, %v1312
    %v1555 = vpack.c.b16 %v1315, %v1314
    %v1556 = vpack.c.b16 %v1317, %v1316
    %v1557 = vpack.c.b16 %v1319, %v1318
    %v1558 = vpack.c.b16 %v1321, %v1320
    %v1559 = vpack.c.b16 %v1323, %v1322
    %v1560 = vpack.c.b16 %v1325, %v1324
    %v1561 = vpack.c.b16 %v1327, %v1326
    %v1562 = vpack.c.b16 %v1329, %v1328
    %v1563 = vpack.c.b16 %v1331, %v1330
    %v1564 = vpack.c.b16 %v1333, %v1332
    %v1565 = vpack.c.b16 %v1335, %v1334
    %v1566 = vpack.c.b16 %v1337, %v1336
    %v1567 = vpack.c.b16 %v1339, %v1338
    %v1568 = vpack.c.b16 %v1341, %v1340
    %v1569 = vpack.c.b16 %v1343, %v1342
    %v1570 = vpack.c.b16 %v1345, %v1344
    %v1571 = vpack.c.b16 %v1347, %v1346
    %v1572 = vpack.c.b16 %v1349, %v1348
    %v1573 = vpack.c.b16 %v1351, %v1350
    %v1574 = vpack.c.b16 %v1353, %v1352
    %v1575 = vpack.c.b16 %v1355, %v1354
    %v1576 = vpack.c.b16 %v1357, %v1356
    %v1577 = vpack.c.b16 %v1359, %v1358
    %v1578 = vpack.c.b16 %v1361, %v1360
    %v1579 = vpack.c.b16 %v1363, %v1362
    %v1580 = vpack.c.b16 %v1365, %v1364
    %v1581 = vpack.c.b16 %v1367, %v1366
    %v1582 = vpack.c.b16 %v1369, %v1368
    %v1583 = vpack.c.b16 %v1371, %v1370
    %v1584 = vpack.c.b16 %v1373, %v1372
    %v1585 = vpack.c.b16 %v1375, %v1374
    %v1586 = vpack.c.b16 %v1377, %v1376
    %v1587 = vpack.c.b16 %v1379, %v1378
    %v1588 = vpack.c.b16 %v1381, %v1380
    %v1589 = vpack.c.b16 %v1383, %v1382
    %v1590 = vpack.c.b16 %v1385, %v1384
    %v1591 = vpack.c.b16 %v1387, %v1386
    %v1592 = vpack.c.b16 %v1389, %v1388
    %v1593 = vpack.c.b16 %v1391, %v1390
    %v1594 = vpack.c.b16 %v1393, %v1392
    %v1595 = vpack.c.b16 %v1395, %v1394
    %v1596 = vpack.c.b16 %v1397, %v1396
    %v1597 = vpack.c.b16 %v1399, %v1398
    %v1598 = vpack.c.b16 %v1401, %v1400
    %v1599 = vpack.c.b16 %v1403, %v1402
    %vm1796 = vcmask 523264
    %v1798 = vsel %vm1796, %v595, 0
    %1800 = vmatprep.subr.bf16.mxu0 0
    %1801 = vmatpush1.bf16.msra.mxu0 %v1411
    %1802 = vmatprep.subr.bf16.mxu0 0
    %1803 = vmatpush1.bf16.msra.mxu0 %v1410
    %1804 = vmatprep.subr.bf16.mxu0 0
    %1805 = vmatpush1.bf16.msra.mxu0 %v1409
    %1806 = vmatprep.subr.bf16.mxu0 0
    %1807 = vmatpush1.bf16.msra.mxu0 %v1408
    %1808 = vmatprep.subr.bf16.mxu0 0
    %1809 = vmatpush1.bf16.msra.mxu0 %v1407
    %1810 = vmatprep.subr.bf16.mxu0 0
    %1811 = vmatpush1.bf16.msra.mxu0 %v1406
    %1812 = vmatprep.subr.bf16.mxu0 0
    %1813 = vmatpush1.bf16.msra.mxu0 %v1405
    %1814 = vmatprep.subr.bf16.mxu0 0
    %1815 = vmatpush1.bf16.msra.mxu0 %v1404
    %1816 = vmatprep.subr.bf16.mxu0 0
    %1817 = vmatpush2.bf16.msra.mxu0 %v1419
    %1818 = vmatprep.subr.bf16.mxu0 0
    %1819 = vmatpush2.bf16.msra.mxu0 %v1418
    %1820 = vmatprep.subr.bf16.mxu0 0
    %1821 = vmatpush2.bf16.msra.mxu0 %v1417
    %1822 = vmatprep.subr.bf16.mxu0 0
    %1823 = vmatpush2.bf16.msra.mxu0 %v1416
    %1824 = vmatprep.subr.bf16.mxu0 0
    %1825 = vmatpush2.bf16.msra.mxu0 %v1415
    %1826 = vmatprep.subr.bf16.mxu0 0
    %1827 = vmatpush2.bf16.msra.mxu0 %v1414
    %1828 = vmatprep.subr.bf16.mxu0 0
    %1829 = vmatpush2.bf16.msra.mxu0 %v1413
    %1830 = vmatprep.subr.bf16.mxu0 0
    %1831 = vmatpush2.bf16.msra.mxu0 %v1412
    %1832 = vmatprep.mubr.bf16.mxu0 %v472
    %1833 = vmatmul.mubr.bf16.gmra.mxu0 %v458
    %v1834 = vpop.f32.mrf.mxu0
    %v1835 = vadd.f32 %v429, %v1834
    %v1836 = vpop.f32.mrf.mxu0
    %v1837 = vpop.f32.mrf.mxu0
    %v1838 = vpop.f32.mrf.mxu0
    %1839 = vdwg.mxu0
    %1840 = vmatprep.subr.bf16.mxu0 0
    %1841 = vmatpush1.bf16.msra.mxu0 %v1427
    %1842 = vmatprep.subr.bf16.mxu0 0
    %1843 = vmatpush1.bf16.msra.mxu0 %v1426
    %1844 = vmatprep.subr.bf16.mxu0 0
    %1845 = vmatpush1.bf16.msra.mxu0 %v1425
    %1846 = vmatprep.subr.bf16.mxu0 0
    %1847 = vmatpush1.bf16.msra.mxu0 %v1424
    %1848 = vmatprep.subr.bf16.mxu0 0
    %1849 = vmatpush1.bf16.msra.mxu0 %v1423
    %1850 = vmatprep.subr.bf16.mxu0 0
    %1851 = vmatpush1.bf16.msra.mxu0 %v1422
    %1852 = vmatprep.subr.bf16.mxu0 0
    %1853 = vmatpush1.bf16.msra.mxu0 %v1421
    %1854 = vmatprep.subr.bf16.mxu0 0
    %1855 = vmatpush1.bf16.msra.mxu0 %v1420
    %1856 = vmatprep.subr.bf16.mxu0 0
    %1857 = vmatpush2.bf16.msra.mxu0 %v1435
    %1858 = vmatprep.subr.bf16.mxu0 0
    %1859 = vmatpush2.bf16.msra.mxu0 %v1434
    %1860 = vmatprep.subr.bf16.mxu0 0
    %1861 = vmatpush2.bf16.msra.mxu0 %v1433
    %1862 = vmatprep.subr.bf16.mxu0 0
    %1863 = vmatpush2.bf16.msra.mxu0 %v1432
    %1864 = vmatprep.subr.bf16.mxu0 0
    %1865 = vmatpush2.bf16.msra.mxu0 %v1431
    %1866 = vmatprep.subr.bf16.mxu0 0
    %1867 = vmatpush2.bf16.msra.mxu0 %v1430
    %1868 = vmatprep.subr.bf16.mxu0 0
    %1869 = vmatpush2.bf16.msra.mxu0 %v1429
    %1870 = vmatprep.subr.bf16.mxu0 0
    %1871 = vmatpush2.bf16.msra.mxu0 %v1428
    %1872 = vmatprep.mubr.bf16.mxu0 %v482
    %1873 = vmatmul.mubr.bf16.gmra.mxu0 %v480
    %v1874 = vpop.f32.mrf.mxu0
    %v1875 = vadd.f32 %v1835, %v1874
    %v1876 = vpop.f32.mrf.mxu0
    %v1877 = vpop.f32.mrf.mxu0
    %v1878 = vpop.f32.mrf.mxu0
    %1879 = vdwg.mxu0
    %1880 = vmatprep.subr.bf16.mxu0 0
    %1881 = vmatpush1.bf16.msra.mxu0 %v1443
    %1882 = vmatprep.subr.bf16.mxu0 0
    %1883 = vmatpush1.bf16.msra.mxu0 %v1442
    %1884 = vmatprep.subr.bf16.mxu0 0
    %1885 = vmatpush1.bf16.msra.mxu0 %v1441
    %1886 = vmatprep.subr.bf16.mxu0 0
    %1887 = vmatpush1.bf16.msra.mxu0 %v1440
    %1888 = vmatprep.subr.bf16.mxu0 0
    %1889 = vmatpush1.bf16.msra.mxu0 %v1439
    %1890 = vmatprep.subr.bf16.mxu0 0
    %1891 = vmatpush1.bf16.msra.mxu0 %v1438
    %1892 = vmatprep.subr.bf16.mxu0 0
    %1893 = vmatpush1.bf16.msra.mxu0 %v1437
    %1894 = vmatprep.subr.bf16.mxu0 0
    %1895 = vmatpush1.bf16.msra.mxu0 %v1436
    %1896 = vmatprep.subr.bf16.mxu0 0
    %1897 = vmatpush2.bf16.msra.mxu0 %v1451
    %1898 = vmatprep.subr.bf16.mxu0 0
    %1899 = vmatpush2.bf16.msra.mxu0 %v1450
    %1900 = vmatprep.subr.bf16.mxu0 0
    %1901 = vmatpush2.bf16.msra.mxu0 %v1449
    %1902 = vmatprep.subr.bf16.mxu0 0
    %1903 = vmatpush2.bf16.msra.mxu0 %v1448
    %1904 = vmatprep.subr.bf16.mxu0 0
    %1905 = vmatpush2.bf16.msra.mxu0 %v1447
    %1906 = vmatprep.subr.bf16.mxu0 0
    %1907 = vmatpush2.bf16.msra.mxu0 %v1446
    %1908 = vmatprep.subr.bf16.mxu0 0
    %1909 = vmatpush2.bf16.msra.mxu0 %v1445
    %1910 = vmatprep.subr.bf16.mxu0 0
    %1911 = vmatpush2.bf16.msra.mxu0 %v1444
    %1912 = vmatprep.mubr.bf16.mxu0 %v479
    %1913 = vmatmul.mubr.bf16.gmra.mxu0 %v465
    %v1914 = vpop.f32.mrf.mxu0
    %v1915 = vadd.f32 %v1875, %v1914
    %v1916 = vpop.f32.mrf.mxu0
    %v1917 = vpop.f32.mrf.mxu0
    %v1918 = vpop.f32.mrf.mxu0
    %1919 = vdwg.mxu0
    %1920 = vmatprep.subr.bf16.mxu0 0
    %1921 = vmatpush1.bf16.msra.mxu0 %v1459
    %1922 = vmatprep.subr.bf16.mxu0 0
    %1923 = vmatpush1.bf16.msra.mxu0 %v1458
    %1924 = vmatprep.subr.bf16.mxu0 0
    %1925 = vmatpush1.bf16.msra.mxu0 %v1457
    %1926 = vmatprep.subr.bf16.mxu0 0
    %1927 = vmatpush1.bf16.msra.mxu0 %v1456
    %1928 = vmatprep.subr.bf16.mxu0 0
    %1929 = vmatpush1.bf16.msra.mxu0 %v1455
    %1930 = vmatprep.subr.bf16.mxu0 0
    %1931 = vmatpush1.bf16.msra.mxu0 %v1454
    %1932 = vmatprep.subr.bf16.mxu0 0
    %1933 = vmatpush1.bf16.msra.mxu0 %v1453
    %1934 = vmatprep.subr.bf16.mxu0 0
    %1935 = vmatpush1.bf16.msra.mxu0 %v1452
    %1936 = vmatprep.subr.bf16.mxu0 0
    %1937 = vmatpush2.bf16.msra.mxu0 %v1467
    %1938 = vmatprep.subr.bf16.mxu0 0
    %1939 = vmatpush2.bf16.msra.mxu0 %v1466
    %1940 = vmatprep.subr.bf16.mxu0 0
    %1941 = vmatpush2.bf16.msra.mxu0 %v1465
    %1942 = vmatprep.subr.bf16.mxu0 0
    %1943 = vmatpush2.bf16.msra.mxu0 %v1464
    %1944 = vmatprep.subr.bf16.mxu0 0
    %1945 = vmatpush2.bf16.msra.mxu0 %v1463
    %1946 = vmatprep.subr.bf16.mxu0 0
    %1947 = vmatpush2.bf16.msra.mxu0 %v1462
    %1948 = vmatprep.subr.bf16.mxu0 0
    %1949 = vmatpush2.bf16.msra.mxu0 %v1461
    %1950 = vmatprep.subr.bf16.mxu0 0
    %1951 = vmatpush2.bf16.msra.mxu0 %v1460
    %1952 = vmatprep.mubr.bf16.mxu0 %v483
    %1953 = vmatmul.mubr.bf16.gmra.mxu0 %v481
    %v1954 = vpop.f32.mrf.mxu0
    %v1955 = vadd.f32 %v1915, %v1954
    %v1956 = vpop.f32.mrf.mxu0
    %v1957 = vpop.f32.mrf.mxu0
    %v1958 = vpop.f32.mrf.mxu0
    %1959 = vdwg.mxu0
    %1960 = vmatprep.subr.bf16.mxu0 0
    %1961 = vmatpush1.bf16.msra.mxu0 %v1475
    %1962 = vmatprep.subr.bf16.mxu0 0
    %1963 = vmatpush1.bf16.msra.mxu0 %v1474
    %1964 = vmatprep.subr.bf16.mxu0 0
    %1965 = vmatpush1.bf16.msra.mxu0 %v1473
    %1966 = vmatprep.subr.bf16.mxu0 0
    %1967 = vmatpush1.bf16.msra.mxu0 %v1472
    %1968 = vmatprep.subr.bf16.mxu0 0
    %1969 = vmatpush1.bf16.msra.mxu0 %v1471
    %1970 = vmatprep.subr.bf16.mxu0 0
    %1971 = vmatpush1.bf16.msra.mxu0 %v1470
    %1972 = vmatprep.subr.bf16.mxu0 0
    %1973 = vmatpush1.bf16.msra.mxu0 %v1469
    %1974 = vmatprep.subr.bf16.mxu0 0
    %1975 = vmatpush1.bf16.msra.mxu0 %v1468
    %1976 = vmatprep.subr.bf16.mxu0 0
    %1977 = vmatpush2.bf16.msra.mxu0 %v1483
    %1978 = vmatprep.subr.bf16.mxu0 0
    %1979 = vmatpush2.bf16.msra.mxu0 %v1482
    %1980 = vmatprep.subr.bf16.mxu0 0
    %1981 = vmatpush2.bf16.msra.mxu0 %v1481
    %1982 = vmatprep.subr.bf16.mxu0 0
    %1983 = vmatpush2.bf16.msra.mxu0 %v1480
    %1984 = vmatprep.subr.bf16.mxu0 0
    %1985 = vmatpush2.bf16.msra.mxu0 %v1479
    %1986 = vmatprep.subr.bf16.mxu0 0
    %1987 = vmatpush2.bf16.msra.mxu0 %v1478
    %1988 = vmatprep.subr.bf16.mxu0 0
    %1989 = vmatpush2.bf16.msra.mxu0 %v1477
    %1990 = vmatprep.subr.bf16.mxu0 0
    %1991 = vmatpush2.bf16.msra.mxu0 %v1476
    %1992 = vmatprep.mubr.bf16.mxu0 %v521
    %1993 = vmatmul.mubr.bf16.gmra.mxu0 %v507
    %v1994 = vpop.f32.mrf.mxu0
    %v1995 = vadd.f32 %v1955, %v1994
    %v1996 = vpop.f32.mrf.mxu0
    %v1997 = vpop.f32.mrf.mxu0
    %v1998 = vpop.f32.mrf.mxu0
    %1999 = vdwg.mxu0
    %2000 = vmatprep.subr.bf16.mxu0 0
    %2001 = vmatpush1.bf16.msra.mxu0 %v1491
    %2002 = vmatprep.subr.bf16.mxu0 0
    %2003 = vmatpush1.bf16.msra.mxu0 %v1490
    %2004 = vmatprep.subr.bf16.mxu0 0
    %2005 = vmatpush1.bf16.msra.mxu0 %v1489
    %2006 = vmatprep.subr.bf16.mxu0 0
    %2007 = vmatpush1.bf16.msra.mxu0 %v1488
    %2008 = vmatprep.subr.bf16.mxu0 0
    %2009 = vmatpush1.bf16.msra.mxu0 %v1487
    %2010 = vmatprep.subr.bf16.mxu0 0
    %2011 = vmatpush1.bf16.msra.mxu0 %v1486
    %2012 = vmatprep.subr.bf16.mxu0 0
    %2013 = vmatpush1.bf16.msra.mxu0 %v1485
    %2014 = vmatprep.subr.bf16.mxu0 0
    %2015 = vmatpush1.bf16.msra.mxu0 %v1484
    %2016 = vmatprep.subr.bf16.mxu0 0
    %2017 = vmatpush2.bf16.msra.mxu0 %v1499
    %2018 = vmatprep.subr.bf16.mxu0 0
    %2019 = vmatpush2.bf16.msra.mxu0 %v1498
    %2020 = vmatprep.subr.bf16.mxu0 0
    %2021 = vmatpush2.bf16.msra.mxu0 %v1497
    %2022 = vmatprep.subr.bf16.mxu0 0
    %2023 = vmatpush2.bf16.msra.mxu0 %v1496
    %2024 = vmatprep.subr.bf16.mxu0 0
    %2025 = vmatpush2.bf16.msra.mxu0 %v1495
    %2026 = vmatprep.subr.bf16.mxu0 0
    %2027 = vmatpush2.bf16.msra.mxu0 %v1494
    %2028 = vmatprep.subr.bf16.mxu0 0
    %2029 = vmatpush2.bf16.msra.mxu0 %v1493
    %2030 = vmatprep.subr.bf16.mxu0 0
    %2031 = vmatpush2.bf16.msra.mxu0 %v1492
    %2032 = vmatprep.mubr.bf16.mxu0 %v531
    %2033 = vmatmul.mubr.bf16.gmra.mxu0 %v529
    %v2034 = vpop.f32.mrf.mxu0
    %v2035 = vadd.f32 %v1995, %v2034
    %v2036 = vpop.f32.mrf.mxu0
    %v2037 = vpop.f32.mrf.mxu0
    %v2038 = vpop.f32.mrf.mxu0
    %2039 = vdwg.mxu0
    %2040 = vmatprep.subr.bf16.mxu0 0
    %2041 = vmatpush1.bf16.msra.mxu0 %v1507
    %2042 = vmatprep.subr.bf16.mxu0 0
    %2043 = vmatpush1.bf16.msra.mxu0 %v1506
    %2044 = vmatprep.subr.bf16.mxu0 0
    %2045 = vmatpush1.bf16.msra.mxu0 %v1505
    %2046 = vmatprep.subr.bf16.mxu0 0
    %2047 = vmatpush1.bf16.msra.mxu0 %v1504
    %2048 = vmatprep.subr.bf16.mxu0 0
    %2049 = vmatpush1.bf16.msra.mxu0 %v1503
    %2050 = vmatprep.subr.bf16.mxu0 0
    %2051 = vmatpush1.bf16.msra.mxu0 %v1502
    %2052 = vmatprep.subr.bf16.mxu0 0
    %2053 = vmatpush1.bf16.msra.mxu0 %v1501
    %2054 = vmatprep.subr.bf16.mxu0 0
    %2055 = vmatpush1.bf16.msra.mxu0 %v1500
    %2056 = vmatprep.subr.bf16.mxu0 0
    %2057 = vmatpush2.bf16.msra.mxu0 %v1515
    %2058 = vmatprep.subr.bf16.mxu0 0
    %2059 = vmatpush2.bf16.msra.mxu0 %v1514
    %2060 = vmatprep.subr.bf16.mxu0 0
    %2061 = vmatpush2.bf16.msra.mxu0 %v1513
    %2062 = vmatprep.subr.bf16.mxu0 0
    %2063 = vmatpush2.bf16.msra.mxu0 %v1512
    %2064 = vmatprep.subr.bf16.mxu0 0
    %2065 = vmatpush2.bf16.msra.mxu0 %v1511
    %2066 = vmatprep.subr.bf16.mxu0 0
    %2067 = vmatpush2.bf16.msra.mxu0 %v1510
    %2068 = vmatprep.subr.bf16.mxu0 0
    %2069 = vmatpush2.bf16.msra.mxu0 %v1509
    %2070 = vmatprep.subr.bf16.mxu0 0
    %2071 = vmatpush2.bf16.msra.mxu0 %v1508
    %2072 = vmatprep.mubr.bf16.mxu0 %v528
    %2073 = vmatmul.mubr.bf16.gmra.mxu0 %v514
    %v2074 = vpop.f32.mrf.mxu0
    %v2075 = vadd.f32 %v2035, %v2074
    %v2076 = vpop.f32.mrf.mxu0
    %v2077 = vpop.f32.mrf.mxu0
    %v2078 = vpop.f32.mrf.mxu0
    %2079 = vdwg.mxu0
    %2080 = vmatprep.subr.bf16.mxu0 0
    %2081 = vmatpush1.bf16.msra.mxu0 %v1523
    %2082 = vmatprep.subr.bf16.mxu0 0
    %2083 = vmatpush1.bf16.msra.mxu0 %v1522
    %2084 = vmatprep.subr.bf16.mxu0 0
    %2085 = vmatpush1.bf16.msra.mxu0 %v1521
    %2086 = vmatprep.subr.bf16.mxu0 0
    %2087 = vmatpush1.bf16.msra.mxu0 %v1520
    %2088 = vmatprep.subr.bf16.mxu0 0
    %2089 = vmatpush1.bf16.msra.mxu0 %v1519
    %2090 = vmatprep.subr.bf16.mxu0 0
    %2091 = vmatpush1.bf16.msra.mxu0 %v1518
    %2092 = vmatprep.subr.bf16.mxu0 0
    %2093 = vmatpush1.bf16.msra.mxu0 %v1517
    %2094 = vmatprep.subr.bf16.mxu0 0
    %2095 = vmatpush1.bf16.msra.mxu0 %v1516
    %2096 = vmatprep.subr.bf16.mxu0 0
    %2097 = vmatpush2.bf16.msra.mxu0 %v1531
    %2098 = vmatprep.subr.bf16.mxu0 0
    %2099 = vmatpush2.bf16.msra.mxu0 %v1530
    %2100 = vmatprep.subr.bf16.mxu0 0
    %2101 = vmatpush2.bf16.msra.mxu0 %v1529
    %2102 = vmatprep.subr.bf16.mxu0 0
    %2103 = vmatpush2.bf16.msra.mxu0 %v1528
    %2104 = vmatprep.subr.bf16.mxu0 0
    %2105 = vmatpush2.bf16.msra.mxu0 %v1527
    %2106 = vmatprep.subr.bf16.mxu0 0
    %2107 = vmatpush2.bf16.msra.mxu0 %v1526
    %2108 = vmatprep.subr.bf16.mxu0 0
    %2109 = vmatpush2.bf16.msra.mxu0 %v1525
    %2110 = vmatprep.subr.bf16.mxu0 0
    %2111 = vmatpush2.bf16.msra.mxu0 %v1524
    %2112 = vmatprep.mubr.bf16.mxu0 %v532
    %2113 = vmatmul.mubr.bf16.gmra.mxu0 %v530
    %v2114 = vpop.f32.mrf.mxu0
    %v2115 = vadd.f32 %v2075, %v2114
    %v2116 = vpop.f32.mrf.mxu0
    %v2117 = vpop.f32.mrf.mxu0
    %v2118 = vpop.f32.mrf.mxu0
    %2119 = vdwg.mxu0
    %2120 = vmatprep.subr.bf16.mxu0 0
    %2121 = vmatpush1.bf16.msra.mxu0 %v1539
    %2122 = vmatprep.subr.bf16.mxu0 0
    %2123 = vmatpush1.bf16.msra.mxu0 %v1538
    %2124 = vmatprep.subr.bf16.mxu0 0
    %2125 = vmatpush1.bf16.msra.mxu0 %v1537
    %2126 = vmatprep.subr.bf16.mxu0 0
    %2127 = vmatpush1.bf16.msra.mxu0 %v1536
    %2128 = vmatprep.subr.bf16.mxu0 0
    %2129 = vmatpush1.bf16.msra.mxu0 %v1535
    %2130 = vmatprep.subr.bf16.mxu0 0
    %2131 = vmatpush1.bf16.msra.mxu0 %v1534
    %2132 = vmatprep.subr.bf16.mxu0 0
    %2133 = vmatpush1.bf16.msra.mxu0 %v1533
    %2134 = vmatprep.subr.bf16.mxu0 0
    %2135 = vmatpush1.bf16.msra.mxu0 %v1532
    %2136 = vmatprep.subr.bf16.mxu0 0
    %2137 = vmatpush2.bf16.msra.mxu0 %v1547
    %2138 = vmatprep.subr.bf16.mxu0 0
    %2139 = vmatpush2.bf16.msra.mxu0 %v1546
    %2140 = vmatprep.subr.bf16.mxu0 0
    %2141 = vmatpush2.bf16.msra.mxu0 %v1545
    %2142 = vmatprep.subr.bf16.mxu0 0
    %2143 = vmatpush2.bf16.msra.mxu0 %v1544
    %2144 = vmatprep.subr.bf16.mxu0 0
    %2145 = vmatpush2.bf16.msra.mxu0 %v1543
    %2146 = vmatprep.subr.bf16.mxu0 0
    %2147 = vmatpush2.bf16.msra.mxu0 %v1542
    %2148 = vmatprep.subr.bf16.mxu0 0
    %2149 = vmatpush2.bf16.msra.mxu0 %v1541
    %2150 = vmatprep.subr.bf16.mxu0 0
    %2151 = vmatpush2.bf16.msra.mxu0 %v1540
    %2152 = vmatprep.mubr.bf16.mxu0 %v570
    %2153 = vmatmul.mubr.bf16.gmra.mxu0 %v556
    %v2154 = vpop.f32.mrf.mxu0
    %v2155 = vadd.f32 %v2115, %v2154
    %v2156 = vpop.f32.mrf.mxu0
    %v2157 = vpop.f32.mrf.mxu0
    %v2158 = vpop.f32.mrf.mxu0
    %2159 = vdwg.mxu0
    %2160 = vmatprep.subr.bf16.mxu0 0
    %2161 = vmatpush1.bf16.msra.mxu0 %v1555
    %2162 = vmatprep.subr.bf16.mxu0 0
    %2163 = vmatpush1.bf16.msra.mxu0 %v1554
    %2164 = vmatprep.subr.bf16.mxu0 0
    %2165 = vmatpush1.bf16.msra.mxu0 %v1553
    %2166 = vmatprep.subr.bf16.mxu0 0
    %2167 = vmatpush1.bf16.msra.mxu0 %v1552
    %2168 = vmatprep.subr.bf16.mxu0 0
    %2169 = vmatpush1.bf16.msra.mxu0 %v1551
    %2170 = vmatprep.subr.bf16.mxu0 0
    %2171 = vmatpush1.bf16.msra.mxu0 %v1550
    %2172 = vmatprep.subr.bf16.mxu0 0
    %2173 = vmatpush1.bf16.msra.mxu0 %v1549
    %2174 = vmatprep.subr.bf16.mxu0 0
    %2175 = vmatpush1.bf16.msra.mxu0 %v1548
    %2176 = vmatprep.subr.bf16.mxu0 0
    %2177 = vmatpush2.bf16.msra.mxu0 %v1563
    %2178 = vmatprep.subr.bf16.mxu0 0
    %2179 = vmatpush2.bf16.msra.mxu0 %v1562
    %2180 = vmatprep.subr.bf16.mxu0 0
    %2181 = vmatpush2.bf16.msra.mxu0 %v1561
    %2182 = vmatprep.subr.bf16.mxu0 0
    %2183 = vmatpush2.bf16.msra.mxu0 %v1560
    %2184 = vmatprep.subr.bf16.mxu0 0
    %2185 = vmatpush2.bf16.msra.mxu0 %v1559
    %2186 = vmatprep.subr.bf16.mxu0 0
    %2187 = vmatpush2.bf16.msra.mxu0 %v1558
    %2188 = vmatprep.subr.bf16.mxu0 0
    %2189 = vmatpush2.bf16.msra.mxu0 %v1557
    %2190 = vmatprep.subr.bf16.mxu0 0
    %2191 = vmatpush2.bf16.msra.mxu0 %v1556
    %2192 = vmatprep.mubr.bf16.mxu0 %v580
    %2193 = vmatmul.mubr.bf16.gmra.mxu0 %v578
    %v2194 = vpop.f32.mrf.mxu0
    %v2195 = vadd.f32 %v2155, %v2194
    %v2196 = vpop.f32.mrf.mxu0
    %v2197 = vpop.f32.mrf.mxu0
    %v2198 = vpop.f32.mrf.mxu0
    %2199 = vdwg.mxu0
    %2200 = vmatprep.subr.bf16.mxu0 0
    %2201 = vmatpush1.bf16.msra.mxu0 %v1571
    %2202 = vmatprep.subr.bf16.mxu0 0
    %2203 = vmatpush1.bf16.msra.mxu0 %v1570
    %2204 = vmatprep.subr.bf16.mxu0 0
    %2205 = vmatpush1.bf16.msra.mxu0 %v1569
    %2206 = vmatprep.subr.bf16.mxu0 0
    %2207 = vmatpush1.bf16.msra.mxu0 %v1568
    %2208 = vmatprep.subr.bf16.mxu0 0
    %2209 = vmatpush1.bf16.msra.mxu0 %v1567
    %2210 = vmatprep.subr.bf16.mxu0 0
    %2211 = vmatpush1.bf16.msra.mxu0 %v1566
    %2212 = vmatprep.subr.bf16.mxu0 0
    %2213 = vmatpush1.bf16.msra.mxu0 %v1565
    %2214 = vmatprep.subr.bf16.mxu0 0
    %2215 = vmatpush1.bf16.msra.mxu0 %v1564
    %2216 = vmatprep.subr.bf16.mxu0 0
    %2217 = vmatpush2.bf16.msra.mxu0 %v1579
    %2218 = vmatprep.subr.bf16.mxu0 0
    %2219 = vmatpush2.bf16.msra.mxu0 %v1578
    %2220 = vmatprep.subr.bf16.mxu0 0
    %2221 = vmatpush2.bf16.msra.mxu0 %v1577
    %2222 = vmatprep.subr.bf16.mxu0 0
    %2223 = vmatpush2.bf16.msra.mxu0 %v1576
    %2224 = vmatprep.subr.bf16.mxu0 0
    %2225 = vmatpush2.bf16.msra.mxu0 %v1575
    %2226 = vmatprep.subr.bf16.mxu0 0
    %2227 = vmatpush2.bf16.msra.mxu0 %v1574
    %2228 = vmatprep.subr.bf16.mxu0 0
    %2229 = vmatpush2.bf16.msra.mxu0 %v1573
    %2230 = vmatprep.subr.bf16.mxu0 0
    %2231 = vmatpush2.bf16.msra.mxu0 %v1572
    %2232 = vmatprep.mubr.bf16.mxu0 %v577
    %2233 = vmatmul.mubr.bf16.gmra.mxu0 %v563
    %v2234 = vpop.f32.mrf.mxu0
    %v2235 = vadd.f32 %v2195, %v2234
    %v2236 = vpop.f32.mrf.mxu0
    %v2237 = vpop.f32.mrf.mxu0
    %v2238 = vpop.f32.mrf.mxu0
    %2239 = vdwg.mxu0
    %2240 = vmatprep.subr.bf16.mxu0 0
    %2241 = vmatpush1.bf16.msra.mxu0 %v1587
    %2242 = vmatprep.subr.bf16.mxu0 0
    %2243 = vmatpush1.bf16.msra.mxu0 %v1586
    %2244 = vmatprep.subr.bf16.mxu0 0
    %2245 = vmatpush1.bf16.msra.mxu0 %v1585
    %2246 = vmatprep.subr.bf16.mxu0 0
    %2247 = vmatpush1.bf16.msra.mxu0 %v1584
    %2248 = vmatprep.subr.bf16.mxu0 0
    %2249 = vmatpush1.bf16.msra.mxu0 %v1583
    %2250 = vmatprep.subr.bf16.mxu0 0
    %2251 = vmatpush1.bf16.msra.mxu0 %v1582
    %2252 = vmatprep.subr.bf16.mxu0 0
    %2253 = vmatpush1.bf16.msra.mxu0 %v1581
    %2254 = vmatprep.subr.bf16.mxu0 0
    %2255 = vmatpush1.bf16.msra.mxu0 %v1580
    %2256 = vmatprep.subr.bf16.mxu0 0
    %2257 = vmatpush2.bf16.msra.mxu0 %v1595
    %2258 = vmatprep.subr.bf16.mxu0 0
    %2259 = vmatpush2.bf16.msra.mxu0 %v1594
    %2260 = vmatprep.subr.bf16.mxu0 0
    %2261 = vmatpush2.bf16.msra.mxu0 %v1593
    %2262 = vmatprep.subr.bf16.mxu0 0
    %2263 = vmatpush2.bf16.msra.mxu0 %v1592
    %2264 = vmatprep.subr.bf16.mxu0 0
    %2265 = vmatpush2.bf16.msra.mxu0 %v1591
    %2266 = vmatprep.subr.bf16.mxu0 0
    %2267 = vmatpush2.bf16.msra.mxu0 %v1590
    %2268 = vmatprep.subr.bf16.mxu0 0
    %2269 = vmatpush2.bf16.msra.mxu0 %v1589
    %2270 = vmatprep.subr.bf16.mxu0 0
    %2271 = vmatpush2.bf16.msra.mxu0 %v1588
    %2272 = vmatprep.mubr.bf16.mxu0 %v581
    %2273 = vmatmul.mubr.bf16.gmra.mxu0 %v579
    %v2274 = vpop.f32.mrf.mxu0
    %v2275 = vadd.f32 %v2235, %v2274
    %v2276 = vpop.f32.mrf.mxu0
    %v2277 = vpop.f32.mrf.mxu0
    %v2278 = vpop.f32.mrf.mxu0
    %2279 = vdwg.mxu0
    %2280 = vmatprep.subr.bf16.mxu0 0
    %2281 = vmatpush1.bf16.msra.mxu0 0
    %2282 = vmatprep.subr.bf16.mxu0 0
    %2283 = vmatpush1.bf16.msra.mxu0 0
    %2284 = vmatprep.subr.bf16.mxu0 0
    %2285 = vmatpush1.bf16.msra.mxu0 0
    %2286 = vmatprep.subr.bf16.mxu0 0
    %2287 = vmatpush1.bf16.msra.mxu0 0
    %2288 = vmatprep.subr.bf16.mxu0 0
    %2289 = vmatpush1.bf16.msra.mxu0 %v1599
    %2290 = vmatprep.subr.bf16.mxu0 0
    %2291 = vmatpush1.bf16.msra.mxu0 %v1598
    %2292 = vmatprep.subr.bf16.mxu0 0
    %2293 = vmatpush1.bf16.msra.mxu0 %v1597
    %2294 = vmatprep.subr.bf16.mxu0 0
    %2295 = vmatpush1.bf16.msra.mxu0 %v1596
    %2296 = vmatprep.subr.bf16.mxu0 0
    %2297 = vmatpush2.bf16.msra.mxu0 0
    %2298 = vmatprep.subr.bf16.mxu0 0
    %2299 = vmatpush2.bf16.msra.mxu0 0
    %2300 = vmatprep.subr.bf16.mxu0 0
    %2301 = vmatpush2.bf16.msra.mxu0 0
    %2302 = vmatprep.subr.bf16.mxu0 0
    %2303 = vmatpush2.bf16.msra.mxu0 0
    %2304 = vmatprep.subr.bf16.mxu0 0
    %2305 = vmatpush2.bf16.msra.mxu0 0
    %2306 = vmatprep.subr.bf16.mxu0 0
    %2307 = vmatpush2.bf16.msra.mxu0 0
    %2308 = vmatprep.subr.bf16.mxu0 0
    %2309 = vmatpush2.bf16.msra.mxu0 0
    %2310 = vmatprep.subr.bf16.mxu0 0
    %2311 = vmatpush2.bf16.msra.mxu0 0
    %2312 = vmatprep.mubr.bf16.mxu0 0
    %2313 = vmatmul.mubr.bf16.gmra.mxu0 %v1798
    %v2314 = vpop.f32.mrf.mxu0
    %v2315 = vadd.f32 %v2275, %v2314
    %v2316 = vpop.f32.mrf.mxu0
    %v2317 = vpop.f32.mrf.mxu0
    %v2318 = vpop.f32.mrf.mxu0
    %2319 = vdwg.mxu0
    %v2320 = vmax.f32 %v2315, 0.0
    %v2321 = vpack.c.bf16 %v2320, %v2320
    %v2322 = vld [vmem:[%s3] sm:$0xf]
    %v2323 = vld [vmem:[%s3 + $0x4] sm:$0xf]
    %v2324 = vld [vmem:[%s3 + $0x8] sm:$0xf]
    %v2325 = vld [vmem:[%s3 + $0xc] sm:$0xf]
    %v2326 = vld [vmem:[%s3 + $0x10] sm:$0xf]
    %v2327 = vld [vmem:[%s3 + $0x14] sm:$0xf]
    %v2328 = vld [vmem:[%s3 + $0x18] sm:$0xf]
    %v2329 = vld [vmem:[%s3 + $0x1c] sm:$0xf]
    %v2330 = vld [vmem:[%s4] sm:$0x1]
    %v2332 = vlaneseq
    %v2333 = vshrl.u32 %v2332, 7
    %v2334 = vsub.s32 0, %v2333
    %v2335 = vrot.slane %v2330, %v2334
    %v2345 = vunpack.c.l.b16 %v2322
    %v2346 = vunpack.c.l.b16 %v2323
    %v2347 = vunpack.c.l.b16 %v2324
    %v2348 = vunpack.c.l.b16 %v2325
    %v2349 = vunpack.c.l.b16 %v2326
    %v2350 = vunpack.c.l.b16 %v2327
    %v2351 = vunpack.c.l.b16 %v2328
    %v2352 = vunpack.c.l.b16 %v2329
    %v2353 = vpack.c.b16 %v2346, %v2345
    %v2354 = vpack.c.b16 %v2348, %v2347
    %v2355 = vpack.c.b16 %v2350, %v2349
    %v2356 = vpack.c.b16 %v2352, %v2351
    %v2362 = vsel %vm1796, %v2321, 0
    %2364 = vmatprep.subr.bf16.mxu0 0
    %2365 = vmatpush1.bf16.msra.mxu0 0
    %2366 = vmatprep.subr.bf16.mxu0 0
    %2367 = vmatpush1.bf16.msra.mxu0 0
    %2368 = vmatprep.subr.bf16.mxu0 0
    %2369 = vmatpush1.bf16.msra.mxu0 0
    %2370 = vmatprep.subr.bf16.mxu0 0
    %2371 = vmatpush1.bf16.msra.mxu0 0
    %2372 = vmatprep.subr.bf16.mxu0 0
    %2373 = vmatpush1.bf16.msra.mxu0 %v2356
    %2374 = vmatprep.subr.bf16.mxu0 0
    %2375 = vmatpush1.bf16.msra.mxu0 %v2355
    %2376 = vmatprep.subr.bf16.mxu0 0
    %2377 = vmatpush1.bf16.msra.mxu0 %v2354
    %2378 = vmatprep.subr.bf16.mxu0 0
    %2379 = vmatpush1.bf16.msra.mxu0 %v2353
    %2380 = vmatprep.subr.bf16.mxu0 0
    %2381 = vmatpush2.bf16.msra.mxu0 0
    %2382 = vmatprep.subr.bf16.mxu0 0
    %2383 = vmatpush2.bf16.msra.mxu0 0
    %2384 = vmatprep.subr.bf16.mxu0 0
    %2385 = vmatpush2.bf16.msra.mxu0 0
    %2386 = vmatprep.subr.bf16.mxu0 0
    %2387 = vmatpush2.bf16.msra.mxu0 0
    %2388 = vmatprep.subr.bf16.mxu0 0
    %2389 = vmatpush2.bf16.msra.mxu0 0
    %2390 = vmatprep.subr.bf16.mxu0 0
    %2391 = vmatpush2.bf16.msra.mxu0 0
    %2392 = vmatprep.subr.bf16.mxu0 0
    %2393 = vmatpush2.bf16.msra.mxu0 0
    %2394 = vmatprep.subr.bf16.mxu0 0
    %2395 = vmatpush2.bf16.msra.mxu0 0
    %2396 = vmatprep.mubr.bf16.mxu0 0
    %2397 = vmatmul.mubr.bf16.gmra.mxu0 %v2362
    %v2398 = vpop.f32.mrf.mxu0
    %v2399 = vadd.f32 %v2335, %v2398
    %v2400 = vpop.f32.mrf.mxu0
    %v2401 = vpop.f32.mrf.mxu0
    %v2402 = vpop.f32.mrf.mxu0
    %2403 = vdwg.mxu0
    %v2404 = vmax.f32 %v2399, 0.0
    %v2405 = vpack.c.bf16 %v2404, %v2404
    %v2406 = vld [vmem:[%s5] sm:$0xf]
    %v2407 = vld [vmem:[%s5 + $0x4] sm:$0xf]
    %v2408 = vld [vmem:[%s5 + $0x8] sm:$0xf]
    %v2409 = vld [vmem:[%s5 + $0xc] sm:$0xf]
    %v2410 = vld [vmem:[%s6] sm:$0x1]
    %v2412 = vlaneseq
    %v2413 = vshrl.u32 %v2412, 7
    %v2414 = vsub.s32 0, %v2413
    %v2415 = vrot.slane %v2410, %v2414
    %v2421 = vunpack.c.l.b16 %v2406
    %v2422 = vunpack.c.l.b16 %v2407
    %v2423 = vunpack.c.l.b16 %v2408
    %v2424 = vunpack.c.l.b16 %v2409
    %v2425 = vpack.c.b16 %v2422, %v2421
    %v2426 = vpack.c.b16 %v2424, %v2423
    %vm2429 = vcmask 261120
    %v2431 = vsel %vm2429, %v2405, 0
    %2433 = vmatprep.subr.bf16.mxu0 0
    %2434 = vmatpush1.bf16.msra.mxu0 0
    %2435 = vmatprep.subr.bf16.mxu0 0
    %2436 = vmatpush1.bf16.msra.mxu0 0
    %2437 = vmatprep.subr.bf16.mxu0 0
    %2438 = vmatpush1.bf16.msra.mxu0 0
    %2439 = vmatprep.subr.bf16.mxu0 0
    %2440 = vmatpush1.bf16.msra.mxu0 0
    %2441 = vmatprep.subr.bf16.mxu0 0
    %2442 = vmatpush1.bf16.msra.mxu0 0
    %2443 = vmatprep.subr.bf16.mxu0 0
    %2444 = vmatpush1.bf16.msra.mxu0 0
    %2445 = vmatprep.subr.bf16.mxu0 0
    %2446 = vmatpush1.bf16.msra.mxu0 %v2426
    %2447 = vmatprep.subr.bf16.mxu0 0
    %2448 = vmatpush1.bf16.msra.mxu0 %v2425
    %2449 = vmatprep.subr.bf16.mxu0 0
    %2450 = vmatpush2.bf16.msra.mxu0 0
    %2451 = vmatprep.subr.bf16.mxu0 0
    %2452 = vmatpush2.bf16.msra.mxu0 0
    %2453 = vmatprep.subr.bf16.mxu0 0
    %2454 = vmatpush2.bf16.msra.mxu0 0
    %2455 = vmatprep.subr.bf16.mxu0 0
    %2456 = vmatpush2.bf16.msra.mxu0 0
    %2457 = vmatprep.subr.bf16.mxu0 0
    %2458 = vmatpush2.bf16.msra.mxu0 0
    %2459 = vmatprep.subr.bf16.mxu0 0
    %2460 = vmatpush2.bf16.msra.mxu0 0
    %2461 = vmatprep.subr.bf16.mxu0 0
    %2462 = vmatpush2.bf16.msra.mxu0 0
    %2463 = vmatprep.subr.bf16.mxu0 0
    %2464 = vmatpush2.bf16.msra.mxu0 0
    %2465 = vmatprep.mubr.bf16.mxu0 0
    %2466 = vmatmul.mubr.bf16.gmra.mxu0 %v2431
    %v2467 = vpop.f32.mrf.mxu0
    %v2468 = vadd.f32 %v2415, %v2467
    %v2469 = vpop.f32.mrf.mxu0
    %v2470 = vpop.f32.mrf.mxu0
    %v2471 = vpop.f32.mrf.mxu0
    %2472 = vdwg.mxu0
    %vm2473 = vcmask 74752
    %v2474 = vsel %vm2473, %v2468, -inf
    %2475 = vmax.xlane.f32.xlu0 %v2474
    %v2476 = vpop.xlane.xlu0 %2475
    %v2477 = vsub.f32 %v2468, %v2476
    %v2478 = vmul.f32 %v2477, 1.442695
    %v2479 = vpow.pop %v2478
    %v2480 = vsel %vm2473, %v2479, 0.0
    %2481 = vadd.xlane.f32.xlu0 %v2480
    %v2482 = vpop.xlane.xlu0 %2481
    %v2483 = vlog2.pop %v2482
    %v2484 = vmul.f32 %v2483, 0.6931472
    %v2485 = vsub.f32 %v2477, %v2484
    %2486 = vst.msk [vmem:[#allocation2] sm:$0x3] %vm2473, %v2485
    // Predicated region
    $region30: #{model_forward.3} parent=1 // pred_check
      _
    $region31: #{model_forward.3} parent=1 // pred_check_branch
      %2488 = sbr.rel (0) target = $region33
    $region32: #{model_forward.3} parent=1 // pred_region
      %s2490 = ssub.s32 32, 32
      %2491 = vsyncadd [#allocation3], %s2490
      %s2493 = sshll.u32 [#allocation2], 4
      %s2494 = int_to_ptr.vmem [resolvable:$true] %s2493
      %2496 = dma.vmem_to_hbm [thread:$0]  %s2494, 32, %s7, [#allocation3]
    $region33: #{model_forward.3} parent=1 // pred_fallthru
      _
    // Predicated region
    $region34: #{model_forward.3} parent=1 // pred_check
      _
    $region35: #{model_forward.3} parent=1 // pred_check_branch
      %2498 = sbr.rel (0) target = $region37
    $region36: #{model_forward.3} parent=1 // pred_region
      %2499 = dma.done [#allocation3], 32
    $region37: #{model_forward.3} parent=1 // pred_fallthru
      _
    %2500 = vsyncpa [#allocation3], 1

// kernel: model_forward.2
$region0: #{model_forward.2}
  #allocation0 [shape = 'u32[]', space=smem, size = 0x4, offset = 0x4, fixed_abs, tag = 'smem constant byte address 0x4 - core index']
  #allocation1 [shape = 'u32[144,128]{1,0:T(1,128)}', space=vmem, size = 0x12000, scoped, tag = 'internal scratch']
  %s0 = inlined_call_operand.vmem [shape: bf16[2,4,196,9], index: 0, kind: input, shape index: {}]
  %s1 = inlined_call_operand.vmem [shape: bf16[9,8], index: 1, kind: input, shape index: {}]
  %s2 = inlined_call_operand.vmem [shape: f32[1,8], index: 2, kind: input, shape index: {}]
  %s3 = inlined_call_operand.vmem [shape: bf16[9,196,196], index: 3, kind: input, shape index: {}]
  %s4 = inlined_call_operand.vmem [shape: bf16[9,8,32], index: 4, kind: input, shape index: {}]
  %s5 = inlined_call_operand.vmem [shape: f32[1,32], index: 5, kind: input, shape index: {}]
  %s6 = inlined_call_operand.vmem [shape: bf16[4,49,196], index: 6, kind: input, shape index: {}]
  %s7 = inlined_call_operand.vmem [shape: bf16[9,49,49], index: 7, kind: input, shape index: {}]
  %s8 = inlined_call_operand.vmem [shape: bf16[9,32,64], index: 8, kind: input, shape index: {}]
  %s9 = inlined_call_operand.vmem [shape: f32[1,64], index: 9, kind: input, shape index: {}]
  %s10 = inlined_call_operand.vmem [shape: bf16[2,49,64], index: 10, kind: output, shape index: {}]
  %s11 = sld [smem:[#allocation0]]
  $region73: #{model_forward.2} parent=0
    _
  %s13 = ssub.s32 1, %s11
  %s14 = scalar_select 0, %s13, %s11
  loop: start=0, step=1, limit=4
  $region2: #{model_forward.2} parent=0 // loop_pre_header
    _
  $region3: #{model_forward.2} parent=0 // loop_header
    %s16 = sphi 0, %s20
    %p17 = scmp.ge.s32.totalorder %s16, 4
    %s26 = sphi 0, %s28
    %s29 = sphi 0, %s26
    %s30 = sphi 0, %s29
    %s46 = sphi 0, %s30
    %s50 = sphi 0, %s50
    %s52 = sphi 0, %s50
    %s53 = sphi 0, %s52
    %s67 = sphi 0, %s53
    %s71 = sphi 0, %s71
    %s73 = sphi 0, %s71
    %s74 = sphi 0, %s73
    %s88 = sphi 0, %s74
    %s92 = sphi 0, %s92
    %s94 = sphi 0, %s92
    %s95 = sphi 0, %s94
    %s109 = sphi 0, %s95
    %s113 = sphi 0, %s113
    %s115 = sphi 0, %s113
    %s116 = sphi 0, %s115
    %s130 = sphi 0, %s116
    %s134 = sphi 0, %s134
    %s136 = sphi 0, %s134
    %s137 = sphi 0, %s136
    %s151 = sphi 0, %s137
    %s155 = sphi 0, %s155
    %s157 = sphi 0, %s155
    %s158 = sphi 0, %s157
    %s172 = sphi 0, %s158
    %s176 = sphi 0, %s176
    %s178 = sphi 0, %s176
    %s179 = sphi 0, %s178
    %s193 = sphi 0, %s179
    %s197 = sphi 0, %s197
    %s199 = sphi 0, %s197
    %s200 = sphi 0, %s199
    %s214 = sphi 0, %s200
    %s218 = sphi 0, %s218
    %s220 = sphi 0, %s218
    %s221 = sphi 0, %s220
    %s235 = sphi 0, %s221
    %s241 = sphi 0, %s243
    %s244 = sphi 0, %s241
    %s245 = sphi 0, %s244
    %s261 = sphi 0, %s245
  $region4: #{model_forward.2} parent=0 // loop_header_branch
    %19 = sbr.rel (%p17) target = $region8
  $region5: #{model_forward.2} parent=0 // loop_body
    %s21 = ssub.s32 %s16, 1
    %s22 = ssub.s32 %s16, 2
    %s23 = sadd.s32 %s16, 1
    %s24 = ssub.s32 %s16, %s23
    %p25 = scmp.eq.s32.totalorder %s24, 0
    %s27 = sadd.s32 %s26, 1
    %s28 = scalar_select %p25, %s26, %s27
    %p31 = pneg %p25
    %p32 = scmp.eq.s32.totalorder %s16, 1
    %p33 = por %p31, %p32
    %p34 = scmp.ne.s32.totalorder %s26, %s29
    %p35 = scmp.eq.s32.totalorder %s16, 0
    %p36 = por %p34, %p35
    %p37 = scmp.ne.s32.totalorder %s26, %s29
    %p38 = scmp.eq.s32.totalorder %s21, 1
    %p39 = por %p37, %p38
    %p40 = scmp.ne.s32.totalorder %s29, %s30
    %p41 = scmp.eq.s32.totalorder %s21, 0
    %p42 = por %p40, %p41
    %p43 = scmp.ne.s32.totalorder %s29, %s30
    %p44 = scmp.eq.s32.totalorder %s22, 1
    %p45 = por %p43, %p44
    %p47 = scmp.ne.s32.totalorder %s30, %s46
    %p48 = scmp.eq.s32.totalorder %s22, 0
    %p49 = por %p47, %p48
    %s51 = sadd.s32 %s50, 1
    %p54 = scmp.eq.s32.totalorder %s16, 1
    %p55 = scmp.ne.s32.totalorder %s50, %s52
    %p56 = scmp.eq.s32.totalorder %s16, 0
    %p57 = por %p55, %p56
    %p58 = scmp.ne.s32.totalorder %s50, %s52
    %p59 = scmp.eq.s32.totalorder %s21, 1
    %p60 = por %p58, %p59
    %p61 = scmp.ne.s32.totalorder %s52, %s53
    %p62 = scmp.eq.s32.totalorder %s21, 0
    %p63 = por %p61, %p62
    %p64 = scmp.ne.s32.totalorder %s52, %s53
    %p65 = scmp.eq.s32.totalorder %s22, 1
    %p66 = por %p64, %p65
    %p68 = scmp.ne.s32.totalorder %s53, %s67
    %p69 = scmp.eq.s32.totalorder %s22, 0
    %p70 = por %p68, %p69
    %s72 = sadd.s32 %s71, 1
    %p75 = scmp.eq.s32.totalorder %s16, 1
    %p76 = scmp.ne.s32.totalorder %s71, %s73
    %p77 = scmp.eq.s32.totalorder %s16, 0
    %p78 = por %p76, %p77
    %p79 = scmp.ne.s32.totalorder %s71, %s73
    %p80 = scmp.eq.s32.totalorder %s21, 1
    %p81 = por %p79, %p80
    %p82 = scmp.ne.s32.totalorder %s73, %s74
    %p83 = scmp.eq.s32.totalorder %s21, 0
    %p84 = por %p82, %p83
    %p85 = scmp.ne.s32.totalorder %s73, %s74
    %p86 = scmp.eq.s32.totalorder %s22, 1
    %p87 = por %p85, %p86
    %p89 = scmp.ne.s32.totalorder %s74, %s88
    %p90 = scmp.eq.s32.totalorder %s22, 0
    %p91 = por %p89, %p90
    %s93 = sadd.s32 %s92, 1
    %p96 = scmp.eq.s32.totalorder %s16, 1
    %p97 = scmp.ne.s32.totalorder %s92, %s94
    %p98 = scmp.eq.s32.totalorder %s16, 0
    %p99 = por %p97, %p98
    %p100 = scmp.ne.s32.totalorder %s92, %s94
    %p101 = scmp.eq.s32.totalorder %s21, 1
    %p102 = por %p100, %p101
    %p103 = scmp.ne.s32.totalorder %s94, %s95
    %p104 = scmp.eq.s32.totalorder %s21, 0
    %p105 = por %p103, %p104
    %p106 = scmp.ne.s32.totalorder %s94, %s95
    %p107 = scmp.eq.s32.totalorder %s22, 1
    %p108 = por %p106, %p107
    %p110 = scmp.ne.s32.totalorder %s95, %s109
    %p111 = scmp.eq.s32.totalorder %s22, 0
    %p112 = por %p110, %p111
    %s114 = sadd.s32 %s113, 1
    %p117 = scmp.eq.s32.totalorder %s16, 1
    %p118 = scmp.ne.s32.totalorder %s113, %s115
    %p119 = scmp.eq.s32.totalorder %s16, 0
    %p120 = por %p118, %p119
    %p121 = scmp.ne.s32.totalorder %s113, %s115
    %p122 = scmp.eq.s32.totalorder %s21, 1
    %p123 = por %p121, %p122
    %p124 = scmp.ne.s32.totalorder %s115, %s116
    %p125 = scmp.eq.s32.totalorder %s21, 0
    %p126 = por %p124, %p125
    %p127 = scmp.ne.s32.totalorder %s115, %s116
    %p128 = scmp.eq.s32.totalorder %s22, 1
    %p129 = por %p127, %p128
    %p131 = scmp.ne.s32.totalorder %s116, %s130
    %p132 = scmp.eq.s32.totalorder %s22, 0
    %p133 = por %p131, %p132
    %s135 = sadd.s32 %s134, 1
    %p138 = scmp.eq.s32.totalorder %s16, 1
    %p139 = scmp.ne.s32.totalorder %s134, %s136
    %p140 = scmp.eq.s32.totalorder %s16, 0
    %p141 = por %p139, %p140
    %p142 = scmp.ne.s32.totalorder %s134, %s136
    %p143 = scmp.eq.s32.totalorder %s21, 1
    %p144 = por %p142, %p143
    %p145 = scmp.ne.s32.totalorder %s136, %s137
    %p146 = scmp.eq.s32.totalorder %s21, 0
    %p147 = por %p145, %p146
    %p148 = scmp.ne.s32.totalorder %s136, %s137
    %p149 = scmp.eq.s32.totalorder %s22, 1
    %p150 = por %p148, %p149
    %p152 = scmp.ne.s32.totalorder %s137, %s151
    %p153 = scmp.eq.s32.totalorder %s22, 0
    %p154 = por %p152, %p153
    %s156 = sadd.s32 %s155, 1
    %p159 = scmp.eq.s32.totalorder %s16, 1
    %p160 = scmp.ne.s32.totalorder %s155, %s157
    %p161 = scmp.eq.s32.totalorder %s16, 0
    %p162 = por %p160, %p161
    %p163 = scmp.ne.s32.totalorder %s155, %s157
    %p164 = scmp.eq.s32.totalorder %s21, 1
    %p165 = por %p163, %p164
    %p166 = scmp.ne.s32.totalorder %s157, %s158
    %p167 = scmp.eq.s32.totalorder %s21, 0
    %p168 = por %p166, %p167
    %p169 = scmp.ne.s32.totalorder %s157, %s158
    %p170 = scmp.eq.s32.totalorder %s22, 1
    %p171 = por %p169, %p170
    %p173 = scmp.ne.s32.totalorder %s158, %s172
    %p174 = scmp.eq.s32.totalorder %s22, 0
    %p175 = por %p173, %p174
    %s177 = sadd.s32 %s176, 1
    %p180 = scmp.eq.s32.totalorder %s16, 1
    %p181 = scmp.ne.s32.totalorder %s176, %s178
    %p182 = scmp.eq.s32.totalorder %s16, 0
    %p183 = por %p181, %p182
    %p184 = scmp.ne.s32.totalorder %s176, %s178
    %p185 = scmp.eq.s32.totalorder %s21, 1
    %p186 = por %p184, %p185
    %p187 = scmp.ne.s32.totalorder %s178, %s179
    %p188 = scmp.eq.s32.totalorder %s21, 0
    %p189 = por %p187, %p188
    %p190 = scmp.ne.s32.totalorder %s178, %s179
    %p191 = scmp.eq.s32.totalorder %s22, 1
    %p192 = por %p190, %p191
    %p194 = scmp.ne.s32.totalorder %s179, %s193
    %p195 = scmp.eq.s32.totalorder %s22, 0
    %p196 = por %p194, %p195
    %s198 = sadd.s32 %s197, 1
    %p201 = scmp.eq.s32.totalorder %s16, 1
    %p202 = scmp.ne.s32.totalorder %s197, %s199
    %p203 = scmp.eq.s32.totalorder %s16, 0
    %p204 = por %p202, %p203
    %p205 = scmp.ne.s32.totalorder %s197, %s199
    %p206 = scmp.eq.s32.totalorder %s21, 1
    %p207 = por %p205, %p206
    %p208 = scmp.ne.s32.totalorder %s199, %s200
    %p209 = scmp.eq.s32.totalorder %s21, 0
    %p210 = por %p208, %p209
    %p211 = scmp.ne.s32.totalorder %s199, %s200
    %p212 = scmp.eq.s32.totalorder %s22, 1
    %p213 = por %p211, %p212
    %p215 = scmp.ne.s32.totalorder %s200, %s214
    %p216 = scmp.eq.s32.totalorder %s22, 0
    %p217 = por %p215, %p216
    %s219 = sadd.s32 %s218, 1
    %p222 = scmp.eq.s32.totalorder %s16, 1
    %p223 = scmp.ne.s32.totalorder %s218, %s220
    %p224 = scmp.eq.s32.totalorder %s16, 0
    %p225 = por %p223, %p224
    %p226 = scmp.ne.s32.totalorder %s218, %s220
    %p227 = scmp.eq.s32.totalorder %s21, 1
    %p228 = por %p226, %p227
    %p229 = scmp.ne.s32.totalorder %s220, %s221
    %p230 = scmp.eq.s32.totalorder %s21, 0
    %p231 = por %p229, %p230
    %p232 = scmp.ne.s32.totalorder %s220, %s221
    %p233 = scmp.eq.s32.totalorder %s22, 1
    %p234 = por %p232, %p233
    %p236 = scmp.ne.s32.totalorder %s221, %s235
    %p237 = scmp.eq.s32.totalorder %s22, 0
    %p238 = por %p236, %p237
    %s239 = ssub.s32 %s16, %s23
    %p240 = scmp.eq.s32.totalorder %s239, 0
    %s242 = sadd.s32 %s241, 1
    %s243 = scalar_select %p240, %s241, %s242
    %p246 = pneg %p240
    %p247 = scmp.eq.s32.totalorder %s16, 1
    %p248 = por %p246, %p247
    %p249 = scmp.ne.s32.totalorder %s241, %s244
    %p250 = scmp.eq.s32.totalorder %s16, 0
    %p251 = por %p249, %p250
    %p252 = scmp.ne.s32.totalorder %s241, %s244
    %p253 = scmp.eq.s32.totalorder %s21, 1
    %p254 = por %p252, %p253
    %p255 = scmp.ne.s32.totalorder %s244, %s245
    %p256 = scmp.eq.s32.totalorder %s21, 0
    %p257 = por %p255, %p256
    %p258 = scmp.ne.s32.totalorder %s244, %s245
    %p259 = scmp.eq.s32.totalorder %s22, 1
    %p260 = por %p258, %p259
    %p262 = scmp.ne.s32.totalorder %s245, %s261
    %p263 = scmp.eq.s32.totalorder %s22, 0
    %p264 = por %p262, %p263
    %p265 = scmp.le.s32.totalorder 1, %s16
    %p266 = scmp.lt.s32.totalorder %s16, 3
    %p267 = pnand %p265, %p266
    %p268 = pneg %p267
    // Predicated region
    $region9: #{model_forward.2} parent=5 // pred_check
      _
    $region10: #{model_forward.2} parent=5 // pred_check_branch
      %270 = sbr.rel (%p267) target = $region12
    $region11: #{model_forward.2} parent=5 // pred_region
      %s271 = ssub.s32 %s16, 1
      // Predicated region
      $region13: #{model_forward.2} parent=11 // pred_check
        %p272 = pneg %p63
      $region14: #{model_forward.2} parent=11 // pred_check_branch
        %274 = sbr.rel (%p272) target = $region16
      $region15: #{model_forward.2} parent=11 // pred_region
        _
      $region16: #{model_forward.2} parent=11 // pred_fallthru
        _
      // Predicated region
      $region17: #{model_forward.2} parent=11 // pred_check
        %p275 = pneg %p84
      $region18: #{model_forward.2} parent=11 // pred_check_branch
        %277 = sbr.rel (%p275) target = $region20
      $region19: #{model_forward.2} parent=11 // pred_region
        _
      $region20: #{model_forward.2} parent=11 // pred_fallthru
        _
      // Predicated region
      $region21: #{model_forward.2} parent=11 // pred_check
        %p278 = pneg %p105
      $region22: #{model_forward.2} parent=11 // pred_check_branch
        %280 = sbr.rel (%p278) target = $region24
      $region23: #{model_forward.2} parent=11 // pred_region
        _
      $region24: #{model_forward.2} parent=11 // pred_fallthru
        _
      // Predicated region
      $region25: #{model_forward.2} parent=11 // pred_check
        %p281 = pneg %p126
      $region26: #{model_forward.2} parent=11 // pred_check_branch
        %283 = sbr.rel (%p281) target = $region28
      $region27: #{model_forward.2} parent=11 // pred_region
        _
      $region28: #{model_forward.2} parent=11 // pred_fallthru
        _
      // Predicated region
      $region29: #{model_forward.2} parent=11 // pred_check
        %p284 = pneg %p147
      $region30: #{model_forward.2} parent=11 // pred_check_branch
        %286 = sbr.rel (%p284) target = $region32
      $region31: #{model_forward.2} parent=11 // pred_region
        _
      $region32: #{model_forward.2} parent=11 // pred_fallthru
        _
      // Predicated region
      $region33: #{model_forward.2} parent=11 // pred_check
        %p287 = pneg %p168
      $region34: #{model_forward.2} parent=11 // pred_check_branch
        %289 = sbr.rel (%p287) target = $region36
      $region35: #{model_forward.2} parent=11 // pred_region
        _
      $region36: #{model_forward.2} parent=11 // pred_fallthru
        _
      // Predicated region
      $region37: #{model_forward.2} parent=11 // pred_check
        %p290 = pneg %p189
      $region38: #{model_forward.2} parent=11 // pred_check_branch
        %292 = sbr.rel (%p290) target = $region40
      $region39: #{model_forward.2} parent=11 // pred_region
        _
      $region40: #{model_forward.2} parent=11 // pred_fallthru
        _
      // Predicated region
      $region41: #{model_forward.2} parent=11 // pred_check
        %p293 = pneg %p210
      $region42: #{model_forward.2} parent=11 // pred_check_branch
        %295 = sbr.rel (%p293) target = $region44
      $region43: #{model_forward.2} parent=11 // pred_region
        _
      $region44: #{model_forward.2} parent=11 // pred_fallthru
        _
      // Predicated region
      $region45: #{model_forward.2} parent=11 // pred_check
        %p296 = pneg %p231
      $region46: #{model_forward.2} parent=11 // pred_check_branch
        %298 = sbr.rel (%p296) target = $region48
      $region47: #{model_forward.2} parent=11 // pred_region
        _
      $region48: #{model_forward.2} parent=11 // pred_fallthru
        _
    $region12: #{model_forward.2} parent=5 // pred_fallthru
      _
    %p299 = scmp.lt.s32.totalorder %s16, 2
    // Predicated region
    $region49: #{model_forward.2} parent=5 // pred_check
      %p300 = pneg %p299
    $region50: #{model_forward.2} parent=5 // pred_check_branch
      %302 = sbr.rel (%p300) target = $region52
    $region51: #{model_forward.2} parent=5 // pred_region
      // Predicated region
      $region53: #{model_forward.2} parent=51 // pred_check
        %p303 = pneg %p36
      $region54: #{model_forward.2} parent=51 // pred_check_branch
        %305 = sbr.rel (%p303) target = $region56
      $region55: #{model_forward.2} parent=51 // pred_region
        %p306 = scmp.lt.s32.totalorder %s16, 1
        %s307 = scalar_select %p306, %s16, 1
        %s308 = smul.addr %s307, 100
        %s309 = smul.addr %s308, 4
        %s310 = scalar_lea.vmem %s0, %s309
      $region56: #{model_forward.2} parent=51 // pred_fallthru
        _
    $region52: #{model_forward.2} parent=5 // pred_fallthru
      _
    %p311 = scmp.le.s32.totalorder 1, %s16
    %p312 = scmp.lt.s32.totalorder %s16, 3
    %p313 = pnand %p311, %p312
    %p314 = pneg %p313
    // Predicated region
    $region57: #{model_forward.2} parent=5 // pred_check
      _
    $region58: #{model_forward.2} parent=5 // pred_check_branch
      %316 = sbr.rel (%p313) target = $region60
    $region59: #{model_forward.2} parent=5 // pred_region
      %s317 = ssub.s32 %s16, 1
      %p318 = scmp.lt.s32.totalorder %s21, 1
      %s319 = scalar_select %p318, %s21, 1
      %s320 = smul.addr %s319, 100
      %s321 = smul.addr %s320, 4
      %s322 = scalar_lea.vmem %s0, %s321
      %p323 = pneg %p42
      %p324 = pneg %p39
      %p325 = pneg %p63
      %p326 = pneg %p60
      %p327 = pneg %p84
      %p328 = pneg %p81
      %p329 = pneg %p105
      %p330 = pneg %p102
      %p331 = pneg %p126
      %p332 = pneg %p123
      %p333 = pneg %p147
      %p334 = pneg %p144
      %p335 = pneg %p168
      %p336 = pneg %p165
      %p337 = pneg %p189
      %p338 = pneg %p186
      %p339 = pneg %p210
      %p340 = pneg %p207
      %p341 = pneg %p231
      %p342 = pneg %p228
      %p343 = pneg %p257
      %p344 = pneg %p254
      %p345 = scmp.lt.s32.totalorder %s21, 1
      %s346 = scalar_select %p345, %s21, 1
      %s347 = smul.addr %s346, 7
      %s348 = smul.addr %s347, 4
      %s349 = scalar_lea.vmem %s10, %s348
      %p350 = scmp.lt.s32.totalorder %s21, 1
      %s351 = scalar_select %p350, %s21, 1
      %s352 = smul.addr %s351, 100
      %s353 = smul.addr %s352, 4
      %s354 = scalar_lea.vmem %s0, %s353
      %p355 = scmp.lt.s32.totalorder %s21, 1
      %s356 = scalar_select %p355, %s21, 1
      %s357 = smul.addr %s356, 7
      %s358 = smul.addr %s357, 4
      %s359 = scalar_lea.vmem %s10, %s358
      %v361 = vld [vmem:[%s1] sm:$0xf]
      %v362 = vld [vmem:[%s1 + $0x4] sm:$0x1]
      %v363 = vld [vmem:[%s2] sm:$0x1]
      %v364 = vld [vmem:[%s354] sm:$0xf]
      %v365 = vld [vmem:[%s354 + $0x4] sm:$0xf]
      %v366 = vld [vmem:[%s354 + $0x8] sm:$0xf]
      %v367 = vld [vmem:[%s354 + $0xc] sm:$0xf]
      %v368 = vld [vmem:[%s354 + $0x10] sm:$0xf]
      %v369 = vld [vmem:[%s354 + $0x14] sm:$0xf]
      %v370 = vld [vmem:[%s354 + $0x18] sm:$0xf]
      %v371 = vld [vmem:[%s354 + $0x1c] sm:$0xf]
      %v372 = vld [vmem:[%s354 + $0x20] sm:$0xf]
      %v373 = vld [vmem:[%s354 + $0x24] sm:$0xf]
      %v374 = vld [vmem:[%s354 + $0x28] sm:$0xf]
      %v375 = vld [vmem:[%s354 + $0x2c] sm:$0xf]
      %v376 = vld [vmem:[%s354 + $0x30] sm:$0xf]
      %v377 = vld [vmem:[%s354 + $0x34] sm:$0xf]
      %v378 = vld [vmem:[%s354 + $0x38] sm:$0xf]
      %v379 = vld [vmem:[%s354 + $0x3c] sm:$0xf]
      %v380 = vld [vmem:[%s354 + $0x40] sm:$0xf]
      %v381 = vld [vmem:[%s354 + $0x44] sm:$0xf]
      %v382 = vld [vmem:[%s354 + $0x48] sm:$0xf]
      %v383 = vld [vmem:[%s354 + $0x4c] sm:$0xf]
      %v384 = vld [vmem:[%s354 + $0x50] sm:$0xf]
      %v385 = vld [vmem:[%s354 + $0x54] sm:$0xf]
      %v386 = vld [vmem:[%s354 + $0x58] sm:$0xf]
      %v387 = vld [vmem:[%s354 + $0x5c] sm:$0xf]
      %v388 = vld [vmem:[%s354 + $0x60] sm:$0x3]
      %v390 = vlaneseq
      %v391 = vshrl.u32 %v390, 7
      %v392 = vsub.s32 0, %v391
      %v393 = vrot.slane %v363, %v392
      %v420 = vunpack.c.l.b16 %v364
      %v421 = vunpack.c.l.b16 %v365
      %v422 = vunpack.c.l.b16 %v366
      %v423 = vunpack.c.l.b16 %v367
      %v424 = vunpack.c.l.b16 %v368
      %v425 = vunpack.c.l.b16 %v369
      %v426 = vunpack.c.l.b16 %v370
      %v427 = vunpack.c.l.b16 %v371
      %v428 = vunpack.c.l.b16 %v372
      %v429 = vunpack.c.l.b16 %v373
      %v430 = vunpack.c.l.b16 %v374
      %v431 = vunpack.c.l.b16 %v375
      %v432 = vunpack.c.l.b16 %v376
      %v433 = vunpack.c.l.b16 %v377
      %v434 = vunpack.c.l.b16 %v378
      %v435 = vunpack.c.l.b16 %v379
      %v436 = vunpack.c.l.b16 %v380
      %v437 = vunpack.c.l.b16 %v381
      %v438 = vunpack.c.l.b16 %v382
      %v439 = vunpack.c.l.b16 %v383
      %v440 = vunpack.c.l.b16 %v384
      %v441 = vunpack.c.l.b16 %v385
      %v442 = vunpack.c.l.b16 %v386
      %v443 = vunpack.c.l.b16 %v387
      %v444 = vunpack.c.l.b16 %v388
      %v445 = vpack.c.b16 %v421, %v420
      %v446 = vpack.c.b16 %v423, %v422
      %v447 = vpack.c.b16 %v425, %v424
      %v448 = vpack.c.b16 %v427, %v426
      %v449 = vpack.c.b16 %v429, %v428
      %v450 = vpack.c.b16 %v431, %v430
      %v451 = vpack.c.b16 %v433, %v432
      %v452 = vpack.c.b16 %v435, %v434
      %v453 = vpack.c.b16 %v437, %v436
      %v454 = vpack.c.b16 %v439, %v438
      %v455 = vpack.c.b16 %v441, %v440
      %v456 = vpack.c.b16 %v443, %v442
      %v457 = vpack.c.b16 %v444, %v444
      %v460 = vunpack.c.l.b16 %v361
      %v461 = vunpack.c.l.b16 %v362
      %v462 = vpack.c.b16 %v461, %v460
      %vm463 = vcmask 72704
      %v465 = vsel %vm463, %v445, 0
      %v468 = vsel %vm463, %v446, 0
      %v471 = vsel %vm463, %v447, 0
      %v474 = vsel %vm463, %v448, 0
      %v477 = vsel %vm463, %v449, 0
      %v480 = vsel %vm463, %v450, 0
      %v483 = vsel %vm463, %v451, 0
      %v486 = vsel %vm463, %v452, 0
      %v489 = vsel %vm463, %v453, 0
      %v492 = vsel %vm463, %v454, 0
      %v495 = vsel %vm463, %v455, 0
      %v498 = vsel %vm463, %v456, 0
      %v501 = vsel %vm463, %v457, 0
      %vm503 = vcmask 1043456
      %vm504 = vcmask 1044480
      %v505 = vsel %vm503, 4294967295, 65535
      %v506 = vsel %vm504, %v505, 0
      %v508 = vand.u32 %v462, %v506
      %510 = vmatprep.subr.bf16.mxu0 0
      %511 = vmatpush1.bf16.msra.mxu0 0
      %512 = vmatprep.subr.bf16.mxu0 0
      %513 = vmatpush1.bf16.msra.mxu0 0
      %514 = vmatprep.subr.bf16.mxu0 0
      %515 = vmatpush1.bf16.msra.mxu0 0
      %516 = vmatprep.subr.bf16.mxu0 0
      %517 = vmatpush1.bf16.msra.mxu0 0
      %518 = vmatprep.subr.bf16.mxu0 0
      %519 = vmatpush1.bf16.msra.mxu0 0
      %520 = vmatprep.subr.bf16.mxu0 0
      %521 = vmatpush1.bf16.msra.mxu0 0
      %522 = vmatprep.subr.bf16.mxu0 0
      %523 = vmatpush1.bf16.msra.mxu0 0
      %524 = vmatprep.subr.bf16.mxu0 0
      %525 = vmatpush1.bf16.msra.mxu0 %v508
      %526 = vmatprep.subr.bf16.mxu0 0
      %527 = vmatpush2.bf16.msra.mxu0 0
      %528 = vmatprep.subr.bf16.mxu0 0
      %529 = vmatpush2.bf16.msra.mxu0 0
      %530 = vmatprep.subr.bf16.mxu0 0
      %531 = vmatpush2.bf16.msra.mxu0 0
      %532 = vmatprep.subr.bf16.mxu0 0
      %533 = vmatpush2.bf16.msra.mxu0 0
      %534 = vmatprep.subr.bf16.mxu0 0
      %535 = vmatpush2.bf16.msra.mxu0 0
      %536 = vmatprep.subr.bf16.mxu0 0
      %537 = vmatpush2.bf16.msra.mxu0 0
      %538 = vmatprep.subr.bf16.mxu0 0
      %539 = vmatpush2.bf16.msra.mxu0 0
      %540 = vmatprep.subr.bf16.mxu0 0
      %541 = vmatpush2.bf16.msra.mxu0 0
      %542 = vmatprep.mubr.bf16.mxu0 0
      %543 = vmatmul.mubr.bf16.gmra.mxu0 %v465
      %v544 = vpop.f32.mrf.mxu0
      %v545 = vadd.f32 %v393, %v544
      %v546 = vpop.f32.mrf.mxu0
      %v547 = vpop.f32.mrf.mxu0
      %v548 = vadd.f32 %v393, %v547
      %v549 = vpop.f32.mrf.mxu0
      %550 = vmatprep.mubr.bf16.mxu0 0
      %551 = vmatmul.mubr.bf16.gmra.mxu0 %v468
      %v552 = vpop.f32.mrf.mxu0
      %v553 = vadd.f32 %v393, %v552
      %v554 = vpop.f32.mrf.mxu0
      %v555 = vpop.f32.mrf.mxu0
      %v556 = vadd.f32 %v393, %v555
      %v557 = vpop.f32.mrf.mxu0
      %558 = vmatprep.mubr.bf16.mxu0 0
      %559 = vmatmul.mubr.bf16.gmra.mxu0 %v471
      %v560 = vpop.f32.mrf.mxu0
      %v561 = vadd.f32 %v393, %v560
      %v562 = vpop.f32.mrf.mxu0
      %v563 = vpop.f32.mrf.mxu0
      %v564 = vadd.f32 %v393, %v563
      %v565 = vpop.f32.mrf.mxu0
      %566 = vmatprep.mubr.bf16.mxu0 0
      %567 = vmatmul.mubr.bf16.gmra.mxu0 %v474
      %v568 = vpop.f32.mrf.mxu0
      %v569 = vadd.f32 %v393, %v568
      %v570 = vpop.f32.mrf.mxu0
      %v571 = vpop.f32.mrf.mxu0
      %v572 = vadd.f32 %v393, %v571
      %v573 = vpop.f32.mrf.mxu0
      %574 = vmatprep.mubr.bf16.mxu0 0
      %575 = vmatmul.mubr.bf16.gmra.mxu0 %v477
      %v576 = vpop.f32.mrf.mxu0
      %v577 = vadd.f32 %v393, %v576
      %v578 = vpop.f32.mrf.mxu0
      %v579 = vpop.f32.mrf.mxu0
      %v580 = vadd.f32 %v393, %v579
      %v581 = vpop.f32.mrf.mxu0
      %582 = vmatprep.mubr.bf16.mxu0 0
      %583 = vmatmul.mubr.bf16.gmra.mxu0 %v480
      %v584 = vpop.f32.mrf.mxu0
      %v585 = vadd.f32 %v393, %v584
      %v586 = vpop.f32.mrf.mxu0
      %v587 = vpop.f32.mrf.mxu0
      %v588 = vadd.f32 %v393, %v587
      %v589 = vpop.f32.mrf.mxu0
      %590 = vmatprep.mubr.bf16.mxu0 0
      %591 = vmatmul.mubr.bf16.gmra.mxu0 %v483
      %v592 = vpop.f32.mrf.mxu0
      %v593 = vadd.f32 %v393, %v592
      %v594 = vpop.f32.mrf.mxu0
      %v595 = vpop.f32.mrf.mxu0
      %v596 = vadd.f32 %v393, %v595
      %v597 = vpop.f32.mrf.mxu0
      %598 = vmatprep.mubr.bf16.mxu0 0
      %599 = vmatmul.mubr.bf16.gmra.mxu0 %v486
      %v600 = vpop.f32.mrf.mxu0
      %v601 = vadd.f32 %v393, %v600
      %v602 = vpop.f32.mrf.mxu0
      %v603 = vpop.f32.mrf.mxu0
      %v604 = vadd.f32 %v393, %v603
      %v605 = vpop.f32.mrf.mxu0
      %606 = vmatprep.mubr.bf16.mxu0 0
      %607 = vmatmul.mubr.bf16.gmra.mxu0 %v489
      %v608 = vpop.f32.mrf.mxu0
      %v609 = vadd.f32 %v393, %v608
      %v610 = vpop.f32.mrf.mxu0
      %v611 = vpop.f32.mrf.mxu0
      %v612 = vadd.f32 %v393, %v611
      %v613 = vpop.f32.mrf.mxu0
      %614 = vmatprep.mubr.bf16.mxu0 0
      %615 = vmatmul.mubr.bf16.gmra.mxu0 %v492
      %v616 = vpop.f32.mrf.mxu0
      %v617 = vadd.f32 %v393, %v616
      %v618 = vpop.f32.mrf.mxu0
      %v619 = vpop.f32.mrf.mxu0
      %v620 = vadd.f32 %v393, %v619
      %v621 = vpop.f32.mrf.mxu0
      %622 = vmatprep.mubr.bf16.mxu0 0
      %623 = vmatmul.mubr.bf16.gmra.mxu0 %v495
      %v624 = vpop.f32.mrf.mxu0
      %v625 = vadd.f32 %v393, %v624
      %v626 = vpop.f32.mrf.mxu0
      %v627 = vpop.f32.mrf.mxu0
      %v628 = vadd.f32 %v393, %v627
      %v629 = vpop.f32.mrf.mxu0
      %630 = vmatprep.mubr.bf16.mxu0 0
      %631 = vmatmul.mubr.bf16.gmra.mxu0 %v498
      %v632 = vpop.f32.mrf.mxu0
      %v633 = vadd.f32 %v393, %v632
      %v634 = vpop.f32.mrf.mxu0
      %v635 = vpop.f32.mrf.mxu0
      %v636 = vadd.f32 %v393, %v635
      %v637 = vpop.f32.mrf.mxu0
      %638 = vmatprep.mubr.bf16.mxu0 0
      %639 = vmatmul.mubr.bf16.gmra.mxu0 %v501
      %v640 = vpop.f32.mrf.mxu0
      %v641 = vadd.f32 %v393, %v640
      %v642 = vpop.f32.mrf.mxu0
      %v643 = vpop.f32.mrf.mxu0
      %v644 = vpop.f32.mrf.mxu0
      %645 = vdwg.mxu0
      %v646 = vmax.f32 %v545, 0.0
      %v647 = vmax.f32 %v548, 0.0
      %v648 = vmax.f32 %v553, 0.0
      %v649 = vmax.f32 %v556, 0.0
      %v650 = vmax.f32 %v561, 0.0
      %v651 = vmax.f32 %v564, 0.0
      %v652 = vmax.f32 %v569, 0.0
      %v653 = vmax.f32 %v572, 0.0
      %v654 = vmax.f32 %v577, 0.0
      %v655 = vmax.f32 %v580, 0.0
      %v656 = vmax.f32 %v585, 0.0
      %v657 = vmax.f32 %v588, 0.0
      %v658 = vmax.f32 %v593, 0.0
      %v659 = vmax.f32 %v596, 0.0
      %v660 = vmax.f32 %v601, 0.0
      %v661 = vmax.f32 %v604, 0.0
      %v662 = vmax.f32 %v609, 0.0
      %v663 = vmax.f32 %v612, 0.0
      %v664 = vmax.f32 %v617, 0.0
      %v665 = vmax.f32 %v620, 0.0
      %v666 = vmax.f32 %v625, 0.0
      %v667 = vmax.f32 %v628, 0.0
      %v668 = vmax.f32 %v633, 0.0
      %v669 = vmax.f32 %v636, 0.0
      %v670 = vmax.f32 %v641, 0.0
      %s671 = scalar_lea.vmem %s354, 100
      %v672 = vld [vmem:[%s671] sm:$0xf]
      %v673 = vld [vmem:[%s671 + $0x4] sm:$0xf]
      %v674 = vld [vmem:[%s671 + $0x8] sm:$0xf]
      %v675 = vld [vmem:[%s671 + $0xc] sm:$0xf]
      %v676 = vld [vmem:[%s671 + $0x10] sm:$0xf]
      %v677 = vld [vmem:[%s671 + $0x14] sm:$0xf]
      %v678 = vld [vmem:[%s671 + $0x18] sm:$0xf]
      %v679 = vld [vmem:[%s671 + $0x1c] sm:$0xf]
      %v680 = vld [vmem:[%s671 + $0x20] sm:$0xf]
      %v681 = vld [vmem:[%s671 + $0x24] sm:$0xf]
      %v682 = vld [vmem:[%s671 + $0x28] sm:$0xf]
      %v683 = vld [vmem:[%s671 + $0x2c] sm:$0xf]
      %v684 = vld [vmem:[%s671 + $0x30] sm:$0xf]
      %v685 = vld [vmem:[%s671 + $0x34] sm:$0xf]
      %v686 = vld [vmem:[%s671 + $0x38] sm:$0xf]
      %v687 = vld [vmem:[%s671 + $0x3c] sm:$0xf]
      %v688 = vld [vmem:[%s671 + $0x40] sm:$0xf]
      %v689 = vld [vmem:[%s671 + $0x44] sm:$0xf]
      %v690 = vld [vmem:[%s671 + $0x48] sm:$0xf]
      %v691 = vld [vmem:[%s671 + $0x4c] sm:$0xf]
      %v692 = vld [vmem:[%s671 + $0x50] sm:$0xf]
      %v693 = vld [vmem:[%s671 + $0x54] sm:$0xf]
      %v694 = vld [vmem:[%s671 + $0x58] sm:$0xf]
      %v695 = vld [vmem:[%s671 + $0x5c] sm:$0xf]
      %v696 = vld [vmem:[%s671 + $0x60] sm:$0x3]
      %v722 = vunpack.c.l.b16 %v672
      %v723 = vunpack.c.l.b16 %v673
      %v724 = vunpack.c.l.b16 %v674
      %v725 = vunpack.c.l.b16 %v675
      %v726 = vunpack.c.l.b16 %v676
      %v727 = vunpack.c.l.b16 %v677
      %v728 = vunpack.c.l.b16 %v678
      %v729 = vunpack.c.l.b16 %v679
      %v730 = vunpack.c.l.b16 %v680
      %v731 = vunpack.c.l.b16 %v681
      %v732 = vunpack.c.l.b16 %v682
      %v733 = vunpack.c.l.b16 %v683
      %v734 = vunpack.c.l.b16 %v684
      %v735 = vunpack.c.l.b16 %v685
      %v736 = vunpack.c.l.b16 %v686
      %v737 = vunpack.c.l.b16 %v687
      %v738 = vunpack.c.l.b16 %v688
      %v739 = vunpack.c.l.b16 %v689
      %v740 = vunpack.c.l.b16 %v690
      %v741 = vunpack.c.l.b16 %v691
      %v742 = vunpack.c.l.b16 %v692
      %v743 = vunpack.c.l.b16 %v693
      %v744 = vunpack.c.l.b16 %v694
      %v745 = vunpack.c.l.b16 %v695
      %v746 = vunpack.c.l.b16 %v696
      %v747 = vpack.c.b16 %v723, %v722
      %v748 = vpack.c.b16 %v725, %v724
      %v749 = vpack.c.b16 %v727, %v726
      %v750 = vpack.c.b16 %v729, %v728
      %v751 = vpack.c.b16 %v731, %v730
      %v752 = vpack.c.b16 %v733, %v732
      %v753 = vpack.c.b16 %v735, %v734
      %v754 = vpack.c.b16 %v737, %v736
      %v755 = vpack.c.b16 %v739, %v738
      %v756 = vpack.c.b16 %v741, %v740
      %v757 = vpack.c.b16 %v743, %v742
      %v758 = vpack.c.b16 %v745, %v744
      %v759 = vpack.c.b16 %v746, %v746
      %v761 = vsel %vm463, %v747, 0
      %v764 = vsel %vm463, %v748, 0
      %v767 = vsel %vm463, %v749, 0
      %v770 = vsel %vm463, %v750, 0
      %v773 = vsel %vm463, %v751, 0
      %v776 = vsel %vm463, %v752, 0
      %v779 = vsel %vm463, %v753, 0
      %v782 = vsel %vm463, %v754, 0
      %v785 = vsel %vm463, %v755, 0
      %v788 = vsel %vm463, %v756, 0
      %v791 = vsel %vm463, %v757, 0
      %v794 = vsel %vm463, %v758, 0
      %v797 = vsel %vm463, %v759, 0
      %799 = vmatprep.subr.bf16.mxu0 0
      %800 = vmatpush1.bf16.msra.mxu0 0
      %801 = vmatprep.subr.bf16.mxu0 0
      %802 = vmatpush1.bf16.msra.mxu0 0
      %803 = vmatprep.subr.bf16.mxu0 0
      %804 = vmatpush1.bf16.msra.mxu0 0
      %805 = vmatprep.subr.bf16.mxu0 0
      %806 = vmatpush1.bf16.msra.mxu0 0
      %807 = vmatprep.subr.bf16.mxu0 0
      %808 = vmatpush1.bf16.msra.mxu0 0
      %809 = vmatprep.subr.bf16.mxu0 0
      %810 = vmatpush1.bf16.msra.mxu0 0
      %811 = vmatprep.subr.bf16.mxu0 0
      %812 = vmatpush1.bf16.msra.mxu0 0
      %813 = vmatprep.subr.bf16.mxu0 0
      %814 = vmatpush1.bf16.msra.mxu0 %v508
      %815 = vmatprep.subr.bf16.mxu0 0
      %816 = vmatpush2.bf16.msra.mxu0 0
      %817 = vmatprep.subr.bf16.mxu0 0
      %818 = vmatpush2.bf16.msra.mxu0 0
      %819 = vmatprep.subr.bf16.mxu0 0
      %820 = vmatpush2.bf16.msra.mxu0 0
      %821 = vmatprep.subr.bf16.mxu0 0
      %822 = vmatpush2.bf16.msra.mxu0 0
      %823 = vmatprep.subr.bf16.mxu0 0
      %824 = vmatpush2.bf16.msra.mxu0 0
      %825 = vmatprep.subr.bf16.mxu0 0
      %826 = vmatpush2.bf16.msra.mxu0 0
      %827 = vmatprep.subr.bf16.mxu0 0
      %828 = vmatpush2.bf16.msra.mxu0 0
      %829 = vmatprep.subr.bf16.mxu0 0
      %830 = vmatpush2.bf16.msra.mxu0 0
      %831 = vmatprep.mubr.bf16.mxu0 0
      %832 = vmatmul.mubr.bf16.gmra.mxu0 %v761
      %v833 = vpop.f32.mrf.mxu0
      %v834 = vadd.f32 %v393, %v833
      %v835 = vpop.f32.mrf.mxu0
      %v836 = vpop.f32.mrf.mxu0
      %v837 = vadd.f32 %v393, %v836
      %v838 = vpop.f32.mrf.mxu0
      %839 = vmatprep.mubr.bf16.mxu0 0
      %840 = vmatmul.mubr.bf16.gmra.mxu0 %v764
      %v841 = vpop.f32.mrf.mxu0
      %v842 = vadd.f32 %v393, %v841
      %v843 = vpop.f32.mrf.mxu0
      %v844 = vpop.f32.mrf.mxu0
      %v845 = vadd.f32 %v393, %v844
      %v846 = vpop.f32.mrf.mxu0
      %847 = vmatprep.mubr.bf16.mxu0 0
      %848 = vmatmul.mubr.bf16.gmra.mxu0 %v767
      %v849 = vpop.f32.mrf.mxu0
      %v850 = vadd.f32 %v393, %v849
      %v851 = vpop.f32.mrf.mxu0
      %v852 = vpop.f32.mrf.mxu0
      %v853 = vadd.f32 %v393, %v852
      %v854 = vpop.f32.mrf.mxu0
      %855 = vmatprep.mubr.bf16.mxu0 0
      %856 = vmatmul.mubr.bf16.gmra.mxu0 %v770
      %v857 = vpop.f32.mrf.mxu0
      %v858 = vadd.f32 %v393, %v857
      %v859 = vpop.f32.mrf.mxu0
      %v860 = vpop.f32.mrf.mxu0
      %v861 = vadd.f32 %v393, %v860
      %v862 = vpop.f32.mrf.mxu0
      %863 = vmatprep.mubr.bf16.mxu0 0
      %864 = vmatmul.mubr.bf16.gmra.mxu0 %v773
      %v865 = vpop.f32.mrf.mxu0
      %v866 = vadd.f32 %v393, %v865
      %v867 = vpop.f32.mrf.mxu0
      %v868 = vpop.f32.mrf.mxu0
      %v869 = vadd.f32 %v393, %v868
      %v870 = vpop.f32.mrf.mxu0
      %871 = vmatprep.mubr.bf16.mxu0 0
      %872 = vmatmul.mubr.bf16.gmra.mxu0 %v776
      %v873 = vpop.f32.mrf.mxu0
      %v874 = vadd.f32 %v393, %v873
      %v875 = vpop.f32.mrf.mxu0
      %v876 = vpop.f32.mrf.mxu0
      %v877 = vadd.f32 %v393, %v876
      %v878 = vpop.f32.mrf.mxu0
      %879 = vmatprep.mubr.bf16.mxu0 0
      %880 = vmatmul.mubr.bf16.gmra.mxu0 %v779
      %v881 = vpop.f32.mrf.mxu0
      %v882 = vadd.f32 %v393, %v881
      %v883 = vpop.f32.mrf.mxu0
      %v884 = vpop.f32.mrf.mxu0
      %v885 = vadd.f32 %v393, %v884
      %v886 = vpop.f32.mrf.mxu0
      %887 = vmatprep.mubr.bf16.mxu0 0
      %888 = vmatmul.mubr.bf16.gmra.mxu0 %v782
      %v889 = vpop.f32.mrf.mxu0
      %v890 = vadd.f32 %v393, %v889
      %v891 = vpop.f32.mrf.mxu0
      %v892 = vpop.f32.mrf.mxu0
      %v893 = vadd.f32 %v393, %v892
      %v894 = vpop.f32.mrf.mxu0
      %895 = vmatprep.mubr.bf16.mxu0 0
      %896 = vmatmul.mubr.bf16.gmra.mxu0 %v785
      %v897 = vpop.f32.mrf.mxu0
      %v898 = vadd.f32 %v393, %v897
      %v899 = vpop.f32.mrf.mxu0
      %v900 = vpop.f32.mrf.mxu0
      %v901 = vadd.f32 %v393, %v900
      %v902 = vpop.f32.mrf.mxu0
      %903 = vmatprep.mubr.bf16.mxu0 0
      %904 = vmatmul.mubr.bf16.gmra.mxu0 %v788
      %v905 = vpop.f32.mrf.mxu0
      %v906 = vadd.f32 %v393, %v905
      %v907 = vpop.f32.mrf.mxu0
      %v908 = vpop.f32.mrf.mxu0
      %v909 = vadd.f32 %v393, %v908
      %v910 = vpop.f32.mrf.mxu0
      %911 = vmatprep.mubr.bf16.mxu0 0
      %912 = vmatmul.mubr.bf16.gmra.mxu0 %v791
      %v913 = vpop.f32.mrf.mxu0
      %v914 = vadd.f32 %v393, %v913
      %v915 = vpop.f32.mrf.mxu0
      %v916 = vpop.f32.mrf.mxu0
      %v917 = vadd.f32 %v393, %v916
      %v918 = vpop.f32.mrf.mxu0
      %919 = vmatprep.mubr.bf16.mxu0 0
      %920 = vmatmul.mubr.bf16.gmra.mxu0 %v794
      %v921 = vpop.f32.mrf.mxu0
      %v922 = vadd.f32 %v393, %v921
      %v923 = vpop.f32.mrf.mxu0
      %v924 = vpop.f32.mrf.mxu0
      %v925 = vadd.f32 %v393, %v924
      %v926 = vpop.f32.mrf.mxu0
      %927 = vmatprep.mubr.bf16.mxu0 0
      %928 = vmatmul.mubr.bf16.gmra.mxu0 %v797
      %v929 = vpop.f32.mrf.mxu0
      %v930 = vadd.f32 %v393, %v929
      %v931 = vpop.f32.mrf.mxu0
      %v932 = vpop.f32.mrf.mxu0
      %v933 = vpop.f32.mrf.mxu0
      %934 = vdwg.mxu0
      %v935 = vmax.f32 %v834, 0.0
      %v936 = vmax.f32 %v837, 0.0
      %v937 = vmax.f32 %v842, 0.0
      %v938 = vmax.f32 %v845, 0.0
      %v939 = vmax.f32 %v850, 0.0
      %v940 = vmax.f32 %v853, 0.0
      %v941 = vmax.f32 %v858, 0.0
      %v942 = vmax.f32 %v861, 0.0
      %v943 = vmax.f32 %v866, 0.0
      %v944 = vmax.f32 %v869, 0.0
      %v945 = vmax.f32 %v874, 0.0
      %v946 = vmax.f32 %v877, 0.0
      %v947 = vmax.f32 %v882, 0.0
      %v948 = vmax.f32 %v885, 0.0
      %v949 = vmax.f32 %v890, 0.0
      %v950 = vmax.f32 %v893, 0.0
      %v951 = vmax.f32 %v898, 0.0
      %v952 = vmax.f32 %v901, 0.0
      %v953 = vmax.f32 %v906, 0.0
      %v954 = vmax.f32 %v909, 0.0
      %v955 = vmax.f32 %v914, 0.0
      %v956 = vmax.f32 %v917, 0.0
      %v957 = vmax.f32 %v922, 0.0
      %v958 = vmax.f32 %v925, 0.0
      %v959 = vmax.f32 %v930, 0.0
      %v960 = vmax.f32 %v646, %v935
      %v961 = vmax.f32 %v647, %v936
      %v962 = vmax.f32 %v648, %v937
      %v963 = vmax.f32 %v649, %v938
      %v964 = vmax.f32 %v650, %v939
      %v965 = vmax.f32 %v651, %v940
      %v966 = vmax.f32 %v652, %v941
      %v967 = vmax.f32 %v653, %v942
      %v968 = vmax.f32 %v654, %v943
      %v969 = vmax.f32 %v655, %v944
      %v970 = vmax.f32 %v656, %v945
      %v971 = vmax.f32 %v657, %v946
      %v972 = vmax.f32 %v658, %v947
      %v973 = vmax.f32 %v659, %v948
      %v974 = vmax.f32 %v660, %v949
      %v975 = vmax.f32 %v661, %v950
      %v976 = vmax.f32 %v662, %v951
      %v977 = vmax.f32 %v663, %v952
      %v978 = vmax.f32 %v664, %v953
      %v979 = vmax.f32 %v665, %v954
      %v980 = vmax.f32 %v666, %v955
      %v981 = vmax.f32 %v667, %v956
      %v982 = vmax.f32 %v668, %v957
      %v983 = vmax.f32 %v669, %v958
      %v984 = vmax.f32 %v670, %v959
      %s985 = scalar_lea.vmem %s354, 200
      %v986 = vld [vmem:[%s985] sm:$0xf]
      %v987 = vld [vmem:[%s985 + $0x4] sm:$0xf]
      %v988 = vld [vmem:[%s985 + $0x8] sm:$0xf]
      %v989 = vld [vmem:[%s985 + $0xc] sm:$0xf]
      %v990 = vld [vmem:[%s985 + $0x10] sm:$0xf]
      %v991 = vld [vmem:[%s985 + $0x14] sm:$0xf]
      %v992 = vld [vmem:[%s985 + $0x18] sm:$0xf]
      %v993 = vld [vmem:[%s985 + $0x1c] sm:$0xf]
      %v994 = vld [vmem:[%s985 + $0x20] sm:$0xf]
      %v995 = vld [vmem:[%s985 + $0x24] sm:$0xf]
      %v996 = vld [vmem:[%s985 + $0x28] sm:$0xf]
      %v997 = vld [vmem:[%s985 + $0x2c] sm:$0xf]
      %v998 = vld [vmem:[%s985 + $0x30] sm:$0xf]
      %v999 = vld [vmem:[%s985 + $0x34] sm:$0xf]
      %v1000 = vld [vmem:[%s985 + $0x38] sm:$0xf]
      %v1001 = vld [vmem:[%s985 + $0x3c] sm:$0xf]
      %v1002 = vld [vmem:[%s985 + $0x40] sm:$0xf]
      %v1003 = vld [vmem:[%s985 + $0x44] sm:$0xf]
      %v1004 = vld [vmem:[%s985 + $0x48] sm:$0xf]
      %v1005 = vld [vmem:[%s985 + $0x4c] sm:$0xf]
      %v1006 = vld [vmem:[%s985 + $0x50] sm:$0xf]
      %v1007 = vld [vmem:[%s985 + $0x54] sm:$0xf]
      %v1008 = vld [vmem:[%s985 + $0x58] sm:$0xf]
      %v1009 = vld [vmem:[%s985 + $0x5c] sm:$0xf]
      %v1010 = vld [vmem:[%s985 + $0x60] sm:$0x3]
      %v1036 = vunpack.c.l.b16 %v986
      %v1037 = vunpack.c.l.b16 %v987
      %v1038 = vunpack.c.l.b16 %v988
      %v1039 = vunpack.c.l.b16 %v989
      %v1040 = vunpack.c.l.b16 %v990
      %v1041 = vunpack.c.l.b16 %v991
      %v1042 = vunpack.c.l.b16 %v992
      %v1043 = vunpack.c.l.b16 %v993
      %v1044 = vunpack.c.l.b16 %v994
      %v1045 = vunpack.c.l.b16 %v995
      %v1046 = vunpack.c.l.b16 %v996
      %v1047 = vunpack.c.l.b16 %v997
      %v1048 = vunpack.c.l.b16 %v998
      %v1049 = vunpack.c.l.b16 %v999
      %v1050 = vunpack.c.l.b16 %v1000
      %v1051 = vunpack.c.l.b16 %v1001
      %v1052 = vunpack.c.l.b16 %v1002
      %v1053 = vunpack.c.l.b16 %v1003
      %v1054 = vunpack.c.l.b16 %v1004
      %v1055 = vunpack.c.l.b16 %v1005
      %v1056 = vunpack.c.l.b16 %v1006
      %v1057 = vunpack.c.l.b16 %v1007
      %v1058 = vunpack.c.l.b16 %v1008
      %v1059 = vunpack.c.l.b16 %v1009
      %v1060 = vunpack.c.l.b16 %v1010
      %v1061 = vpack.c.b16 %v1037, %v1036
      %v1062 = vpack.c.b16 %v1039, %v1038
      %v1063 = vpack.c.b16 %v1041, %v1040
      %v1064 = vpack.c.b16 %v1043, %v1042
      %v1065 = vpack.c.b16 %v1045, %v1044
      %v1066 = vpack.c.b16 %v1047, %v1046
      %v1067 = vpack.c.b16 %v1049, %v1048
      %v1068 = vpack.c.b16 %v1051, %v1050
      %v1069 = vpack.c.b16 %v1053, %v1052
      %v1070 = vpack.c.b16 %v1055, %v1054
      %v1071 = vpack.c.b16 %v1057, %v1056
      %v1072 = vpack.c.b16 %v1059, %v1058
      %v1073 = vpack.c.b16 %v1060, %v1060
      %v1075 = vsel %vm463, %v1061, 0
      %v1078 = vsel %vm463, %v1062, 0
      %v1081 = vsel %vm463, %v1063, 0
      %v1084 = vsel %vm463, %v1064, 0
      %v1087 = vsel %vm463, %v1065, 0
      %v1090 = vsel %vm463, %v1066, 0
      %v1093 = vsel %vm463, %v1067, 0
      %v1096 = vsel %vm463, %v1068, 0
      %v1099 = vsel %vm463, %v1069, 0
      %v1102 = vsel %vm463, %v1070, 0
      %v1105 = vsel %vm463, %v1071, 0
      %v1108 = vsel %vm463, %v1072, 0
      %v1111 = vsel %vm463, %v1073, 0
      %1113 = vmatprep.subr.bf16.mxu0 0
      %1114 = vmatpush1.bf16.msra.mxu0 0
      %1115 = vmatprep.subr.bf16.mxu0 0
      %1116 = vmatpush1.bf16.msra.mxu0 0
      %1117 = vmatprep.subr.bf16.mxu0 0
      %1118 = vmatpush1.bf16.msra.mxu0 0
      %1119 = vmatprep.subr.bf16.mxu0 0
      %1120 = vmatpush1.bf16.msra.mxu0 0
      %1121 = vmatprep.subr.bf16.mxu0 0
      %1122 = vmatpush1.bf16.msra.mxu0 0
      %1123 = vmatprep.subr.bf16.mxu0 0
      %1124 = vmatpush1.bf16.msra.mxu0 0
      %1125 = vmatprep.subr.bf16.mxu0 0
      %1126 = vmatpush1.bf16.msra.mxu0 0
      %1127 = vmatprep.subr.bf16.mxu0 0
      %1128 = vmatpush1.bf16.msra.mxu0 %v508
      %1129 = vmatprep.subr.bf16.mxu0 0
      %1130 = vmatpush2.bf16.msra.mxu0 0
      %1131 = vmatprep.subr.bf16.mxu0 0
      %1132 = vmatpush2.bf16.msra.mxu0 0
      %1133 = vmatprep.subr.bf16.mxu0 0
      %1134 = vmatpush2.bf16.msra.mxu0 0
      %1135 = vmatprep.subr.bf16.mxu0 0
      %1136 = vmatpush2.bf16.msra.mxu0 0
      %1137 = vmatprep.subr.bf16.mxu0 0
      %1138 = vmatpush2.bf16.msra.mxu0 0
      %1139 = vmatprep.subr.bf16.mxu0 0
      %1140 = vmatpush2.bf16.msra.mxu0 0
      %1141 = vmatprep.subr.bf16.mxu0 0
      %1142 = vmatpush2.bf16.msra.mxu0 0
      %1143 = vmatprep.subr.bf16.mxu0 0
      %1144 = vmatpush2.bf16.msra.mxu0 0
      %1145 = vmatprep.mubr.bf16.mxu0 0
      %1146 = vmatmul.mubr.bf16.gmra.mxu0 %v1075
      %v1147 = vpop.f32.mrf.mxu0
      %v1148 = vadd.f32 %v393, %v1147
      %v1149 = vpop.f32.mrf.mxu0
      %v1150 = vpop.f32.mrf.mxu0
      %v1151 = vadd.f32 %v393, %v1150
      %v1152 = vpop.f32.mrf.mxu0
      %1153 = vmatprep.mubr.bf16.mxu0 0
      %1154 = vmatmul.mubr.bf16.gmra.mxu0 %v1078
      %v1155 = vpop.f32.mrf.mxu0
      %v1156 = vadd.f32 %v393, %v1155
      %v1157 = vpop.f32.mrf.mxu0
      %v1158 = vpop.f32.mrf.mxu0
      %v1159 = vadd.f32 %v393, %v1158
      %v1160 = vpop.f32.mrf.mxu0
      %1161 = vmatprep.mubr.bf16.mxu0 0
      %1162 = vmatmul.mubr.bf16.gmra.mxu0 %v1081
      %v1163 = vpop.f32.mrf.mxu0
      %v1164 = vadd.f32 %v393, %v1163
      %v1165 = vpop.f32.mrf.mxu0
      %v1166 = vpop.f32.mrf.mxu0
      %v1167 = vadd.f32 %v393, %v1166
      %v1168 = vpop.f32.mrf.mxu0
      %1169 = vmatprep.mubr.bf16.mxu0 0
      %1170 = vmatmul.mubr.bf16.gmra.mxu0 %v1084
      %v1171 = vpop.f32.mrf.mxu0
      %v1172 = vadd.f32 %v393, %v1171
      %v1173 = vpop.f32.mrf.mxu0
      %v1174 = vpop.f32.mrf.mxu0
      %v1175 = vadd.f32 %v393, %v1174
      %v1176 = vpop.f32.mrf.mxu0
      %1177 = vmatprep.mubr.bf16.mxu0 0
      %1178 = vmatmul.mubr.bf16.gmra.mxu0 %v1087
      %v1179 = vpop.f32.mrf.mxu0
      %v1180 = vadd.f32 %v393, %v1179
      %v1181 = vpop.f32.mrf.mxu0
      %v1182 = vpop.f32.mrf.mxu0
      %v1183 = vadd.f32 %v393, %v1182
      %v1184 = vpop.f32.mrf.mxu0
      %1185 = vmatprep.mubr.bf16.mxu0 0
      %1186 = vmatmul.mubr.bf16.gmra.mxu0 %v1090
      %v1187 = vpop.f32.mrf.mxu0
      %v1188 = vadd.f32 %v393, %v1187
      %v1189 = vpop.f32.mrf.mxu0
      %v1190 = vpop.f32.mrf.mxu0
      %v1191 = vadd.f32 %v393, %v1190
      %v1192 = vpop.f32.mrf.mxu0
      %1193 = vmatprep.mubr.bf16.mxu0 0
      %1194 = vmatmul.mubr.bf16.gmra.mxu0 %v1093
      %v1195 = vpop.f32.mrf.mxu0
      %v1196 = vadd.f32 %v393, %v1195
      %v1197 = vpop.f32.mrf.mxu0
      %v1198 = vpop.f32.mrf.mxu0
      %v1199 = vadd.f32 %v393, %v1198
      %v1200 = vpop.f32.mrf.mxu0
      %1201 = vmatprep.mubr.bf16.mxu0 0
      %1202 = vmatmul.mubr.bf16.gmra.mxu0 %v1096
      %v1203 = vpop.f32.mrf.mxu0
      %v1204 = vadd.f32 %v393, %v1203
      %v1205 = vpop.f32.mrf.mxu0
      %v1206 = vpop.f32.mrf.mxu0
      %v1207 = vadd.f32 %v393, %v1206
      %v1208 = vpop.f32.mrf.mxu0
      %1209 = vmatprep.mubr.bf16.mxu0 0
      %1210 = vmatmul.mubr.bf16.gmra.mxu0 %v1099
      %v1211 = vpop.f32.mrf.mxu0
      %v1212 = vadd.f32 %v393, %v1211
      %v1213 = vpop.f32.mrf.mxu0
      %v1214 = vpop.f32.mrf.mxu0
      %v1215 = vadd.f32 %v393, %v1214
      %v1216 = vpop.f32.mrf.mxu0
      %1217 = vmatprep.mubr.bf16.mxu0 0
      %1218 = vmatmul.mubr.bf16.gmra.mxu0 %v1102
      %v1219 = vpop.f32.mrf.mxu0
      %v1220 = vadd.f32 %v393, %v1219
      %v1221 = vpop.f32.mrf.mxu0
      %v1222 = vpop.f32.mrf.mxu0
      %v1223 = vadd.f32 %v393, %v1222
      %v1224 = vpop.f32.mrf.mxu0
      %1225 = vmatprep.mubr.bf16.mxu0 0
      %1226 = vmatmul.mubr.bf16.gmra.mxu0 %v1105
      %v1227 = vpop.f32.mrf.mxu0
      %v1228 = vadd.f32 %v393, %v1227
      %v1229 = vpop.f32.mrf.mxu0
      %v1230 = vpop.f32.mrf.mxu0
      %v1231 = vadd.f32 %v393, %v1230
      %v1232 = vpop.f32.mrf.mxu0
      %1233 = vmatprep.mubr.bf16.mxu0 0
      %1234 = vmatmul.mubr.bf16.gmra.mxu0 %v1108
      %v1235 = vpop.f32.mrf.mxu0
      %v1236 = vadd.f32 %v393, %v1235
      %v1237 = vpop.f32.mrf.mxu0
      %v1238 = vpop.f32.mrf.mxu0
      %v1239 = vadd.f32 %v393, %v1238
      %v1240 = vpop.f32.mrf.mxu0
      %1241 = vmatprep.mubr.bf16.mxu0 0
      %1242 = vmatmul.mubr.bf16.gmra.mxu0 %v1111
      %v1243 = vpop.f32.mrf.mxu0
      %v1244 = vadd.f32 %v393, %v1243
      %v1245 = vpop.f32.mrf.mxu0
      %v1246 = vpop.f32.mrf.mxu0
      %v1247 = vpop.f32.mrf.mxu0
      %1248 = vdwg.mxu0
      %v1249 = vmax.f32 %v1148, 0.0
      %v1250 = vmax.f32 %v1151, 0.0
      %v1251 = vmax.f32 %v1156, 0.0
      %v1252 = vmax.f32 %v1159, 0.0
      %v1253 = vmax.f32 %v1164, 0.0
      %v1254 = vmax.f32 %v1167, 0.0
      %v1255 = vmax.f32 %v1172, 0.0
      %v1256 = vmax.f32 %v1175, 0.0
      %v1257 = vmax.f32 %v1180, 0.0
      %v1258 = vmax.f32 %v1183, 0.0
      %v1259 = vmax.f32 %v1188, 0.0
      %v1260 = vmax.f32 %v1191, 0.0
      %v1261 = vmax.f32 %v1196, 0.0
      %v1262 = vmax.f32 %v1199, 0.0
      %v1263 = vmax.f32 %v1204, 0.0
      %v1264 = vmax.f32 %v1207, 0.0
      %v1265 = vmax.f32 %v1212, 0.0
      %v1266 = vmax.f32 %v1215, 0.0
      %v1267 = vmax.f32 %v1220, 0.0
      %v1268 = vmax.f32 %v1223, 0.0
      %v1269 = vmax.f32 %v1228, 0.0
      %v1270 = vmax.f32 %v1231, 0.0
      %v1271 = vmax.f32 %v1236, 0.0
      %v1272 = vmax.f32 %v1239, 0.0
      %v1273 = vmax.f32 %v1244, 0.0
      %v1274 = vmax.f32 %v960, %v1249
      %v1275 = vmax.f32 %v961, %v1250
      %v1276 = vmax.f32 %v962, %v1251
      %v1277 = vmax.f32 %v963, %v1252
      %v1278 = vmax.f32 %v964, %v1253
      %v1279 = vmax.f32 %v965, %v1254
      %v1280 = vmax.f32 %v966, %v1255
      %v1281 = vmax.f32 %v967, %v1256
      %v1282 = vmax.f32 %v968, %v1257
      %v1283 = vmax.f32 %v969, %v1258
      %v1284 = vmax.f32 %v970, %v1259
      %v1285 = vmax.f32 %v971, %v1260
      %v1286 = vmax.f32 %v972, %v1261
      %v1287 = vmax.f32 %v973, %v1262
      %v1288 = vmax.f32 %v974, %v1263
      %v1289 = vmax.f32 %v975, %v1264
      %v1290 = vmax.f32 %v976, %v1265
      %v1291 = vmax.f32 %v977, %v1266
      %v1292 = vmax.f32 %v978, %v1267
      %v1293 = vmax.f32 %v979, %v1268
      %v1294 = vmax.f32 %v980, %v1269
      %v1295 = vmax.f32 %v981, %v1270
      %v1296 = vmax.f32 %v982, %v1271
      %v1297 = vmax.f32 %v983, %v1272
      %v1298 = vmax.f32 %v984, %v1273
      %s1299 = scalar_lea.vmem %s354, 300
      %v1300 = vld [vmem:[%s1299] sm:$0xf]
      %v1301 = vld [vmem:[%s1299 + $0x4] sm:$0xf]
      %v1302 = vld [vmem:[%s1299 + $0x8] sm:$0xf]
      %v1303 = vld [vmem:[%s1299 + $0xc] sm:$0xf]
      %v1304 = vld [vmem:[%s1299 + $0x10] sm:$0xf]
      %v1305 = vld [vmem:[%s1299 + $0x14] sm:$0xf]
      %v1306 = vld [vmem:[%s1299 + $0x18] sm:$0xf]
      %v1307 = vld [vmem:[%s1299 + $0x1c] sm:$0xf]
      %v1308 = vld [vmem:[%s1299 + $0x20] sm:$0xf]
      %v1309 = vld [vmem:[%s1299 + $0x24] sm:$0xf]
      %v1310 = vld [vmem:[%s1299 + $0x28] sm:$0xf]
      %v1311 = vld [vmem:[%s1299 + $0x2c] sm:$0xf]
      %v1312 = vld [vmem:[%s1299 + $0x30] sm:$0xf]
      %v1313 = vld [vmem:[%s1299 + $0x34] sm:$0xf]
      %v1314 = vld [vmem:[%s1299 + $0x38] sm:$0xf]
      %v1315 = vld [vmem:[%s1299 + $0x3c] sm:$0xf]
      %v1316 = vld [vmem:[%s1299 + $0x40] sm:$0xf]
      %v1317 = vld [vmem:[%s1299 + $0x44] sm:$0xf]
      %v1318 = vld [vmem:[%s1299 + $0x48] sm:$0xf]
      %v1319 = vld [vmem:[%s1299 + $0x4c] sm:$0xf]
      %v1320 = vld [vmem:[%s1299 + $0x50] sm:$0xf]
      %v1321 = vld [vmem:[%s1299 + $0x54] sm:$0xf]
      %v1322 = vld [vmem:[%s1299 + $0x58] sm:$0xf]
      %v1323 = vld [vmem:[%s1299 + $0x5c] sm:$0xf]
      %v1324 = vld [vmem:[%s1299 + $0x60] sm:$0x3]
      %v1350 = vunpack.c.l.b16 %v1300
      %v1351 = vunpack.c.l.b16 %v1301
      %v1352 = vunpack.c.l.b16 %v1302
      %v1353 = vunpack.c.l.b16 %v1303
      %v1354 = vunpack.c.l.b16 %v1304
      %v1355 = vunpack.c.l.b16 %v1305
      %v1356 = vunpack.c.l.b16 %v1306
      %v1357 = vunpack.c.l.b16 %v1307
      %v1358 = vunpack.c.l.b16 %v1308
      %v1359 = vunpack.c.l.b16 %v1309
      %v1360 = vunpack.c.l.b16 %v1310
      %v1361 = vunpack.c.l.b16 %v1311
      %v1362 = vunpack.c.l.b16 %v1312
      %v1363 = vunpack.c.l.b16 %v1313
      %v1364 = vunpack.c.l.b16 %v1314
      %v1365 = vunpack.c.l.b16 %v1315
      %v1366 = vunpack.c.l.b16 %v1316
      %v1367 = vunpack.c.l.b16 %v1317
      %v1368 = vunpack.c.l.b16 %v1318
      %v1369 = vunpack.c.l.b16 %v1319
      %v1370 = vunpack.c.l.b16 %v1320
      %v1371 = vunpack.c.l.b16 %v1321
      %v1372 = vunpack.c.l.b16 %v1322
      %v1373 = vunpack.c.l.b16 %v1323
      %v1374 = vunpack.c.l.b16 %v1324
      %v1375 = vpack.c.b16 %v1351, %v1350
      %v1376 = vpack.c.b16 %v1353, %v1352
      %v1377 = vpack.c.b16 %v1355, %v1354
      %v1378 = vpack.c.b16 %v1357, %v1356
      %v1379 = vpack.c.b16 %v1359, %v1358
      %v1380 = vpack.c.b16 %v1361, %v1360
      %v1381 = vpack.c.b16 %v1363, %v1362
      %v1382 = vpack.c.b16 %v1365, %v1364
      %v1383 = vpack.c.b16 %v1367, %v1366
      %v1384 = vpack.c.b16 %v1369, %v1368
      %v1385 = vpack.c.b16 %v1371, %v1370
      %v1386 = vpack.c.b16 %v1373, %v1372
      %v1387 = vpack.c.b16 %v1374, %v1374
      %v1389 = vsel %vm463, %v1375, 0
      %v1392 = vsel %vm463, %v1376, 0
      %v1395 = vsel %vm463, %v1377, 0
      %v1398 = vsel %vm463, %v1378, 0
      %v1401 = vsel %vm463, %v1379, 0
      %v1404 = vsel %vm463, %v1380, 0
      %v1407 = vsel %vm463, %v1381, 0
      %v1410 = vsel %vm463, %v1382, 0
      %v1413 = vsel %vm463, %v1383, 0
      %v1416 = vsel %vm463, %v1384, 0
      %v1419 = vsel %vm463, %v1385, 0
      %v1422 = vsel %vm463, %v1386, 0
      %v1425 = vsel %vm463, %v1387, 0
      %1427 = vmatprep.subr.bf16.mxu0 0
      %1428 = vmatpush1.bf16.msra.mxu0 0
      %1429 = vmatprep.subr.bf16.mxu0 0
      %1430 = vmatpush1.bf16.msra.mxu0 0
      %1431 = vmatprep.subr.bf16.mxu0 0
      %1432 = vmatpush1.bf16.msra.mxu0 0
      %1433 = vmatprep.subr.bf16.mxu0 0
      %1434 = vmatpush1.bf16.msra.mxu0 0
      %1435 = vmatprep.subr.bf16.mxu0 0
      %1436 = vmatpush1.bf16.msra.mxu0 0
      %1437 = vmatprep.subr.bf16.mxu0 0
      %1438 = vmatpush1.bf16.msra.mxu0 0
      %1439 = vmatprep.subr.bf16.mxu0 0
      %1440 = vmatpush1.bf16.msra.mxu0 0
      %1441 = vmatprep.subr.bf16.mxu0 0
      %1442 = vmatpush1.bf16.msra.mxu0 %v508
      %1443 = vmatprep.subr.bf16.mxu0 0
      %1444 = vmatpush2.bf16.msra.mxu0 0
      %1445 = vmatprep.subr.bf16.mxu0 0
      %1446 = vmatpush2.bf16.msra.mxu0 0
      %1447 = vmatprep.subr.bf16.mxu0 0
      %1448 = vmatpush2.bf16.msra.mxu0 0
      %1449 = vmatprep.subr.bf16.mxu0 0
      %1450 = vmatpush2.bf16.msra.mxu0 0
      %1451 = vmatprep.subr.bf16.mxu0 0
      %1452 = vmatpush2.bf16.msra.mxu0 0
      %1453 = vmatprep.subr.bf16.mxu0 0
      %1454 = vmatpush2.bf16.msra.mxu0 0
      %1455 = vmatprep.subr.bf16.mxu0 0
      %1456 = vmatpush2.bf16.msra.mxu0 0
      %1457 = vmatprep.subr.bf16.mxu0 0
      %1458 = vmatpush2.bf16.msra.mxu0 0
      %1459 = vmatprep.mubr.bf16.mxu0 0
      %1460 = vmatmul.mubr.bf16.gmra.mxu0 %v1389
      %v1461 = vpop.f32.mrf.mxu0
      %v1462 = vadd.f32 %v393, %v1461
      %v1463 = vpop.f32.mrf.mxu0
      %v1464 = vpop.f32.mrf.mxu0
      %v1465 = vadd.f32 %v393, %v1464
      %v1466 = vpop.f32.mrf.mxu0
      %1467 = vmatprep.mubr.bf16.mxu0 0
      %1468 = vmatmul.mubr.bf16.gmra.mxu0 %v1392
      %v1469 = vpop.f32.mrf.mxu0
      %v1470 = vadd.f32 %v393, %v1469
      %v1471 = vpop.f32.mrf.mxu0
      %v1472 = vpop.f32.mrf.mxu0
      %v1473 = vadd.f32 %v393, %v1472
      %v1474 = vpop.f32.mrf.mxu0
      %1475 = vmatprep.mubr.bf16.mxu0 0
      %1476 = vmatmul.mubr.bf16.gmra.mxu0 %v1395
      %v1477 = vpop.f32.mrf.mxu0
      %v1478 = vadd.f32 %v393, %v1477
      %v1479 = vpop.f32.mrf.mxu0
      %v1480 = vpop.f32.mrf.mxu0
      %v1481 = vadd.f32 %v393, %v1480
      %v1482 = vpop.f32.mrf.mxu0
      %1483 = vmatprep.mubr.bf16.mxu0 0
      %1484 = vmatmul.mubr.bf16.gmra.mxu0 %v1398
      %v1485 = vpop.f32.mrf.mxu0
      %v1486 = vadd.f32 %v393, %v1485
      %v1487 = vpop.f32.mrf.mxu0
      %v1488 = vpop.f32.mrf.mxu0
      %v1489 = vadd.f32 %v393, %v1488
      %v1490 = vpop.f32.mrf.mxu0
      %1491 = vmatprep.mubr.bf16.mxu0 0
      %1492 = vmatmul.mubr.bf16.gmra.mxu0 %v1401
      %v1493 = vpop.f32.mrf.mxu0
      %v1494 = vadd.f32 %v393, %v1493
      %v1495 = vpop.f32.mrf.mxu0
      %v1496 = vpop.f32.mrf.mxu0
      %v1497 = vadd.f32 %v393, %v1496
      %v1498 = vpop.f32.mrf.mxu0
      %1499 = vmatprep.mubr.bf16.mxu0 0
      %1500 = vmatmul.mubr.bf16.gmra.mxu0 %v1404
      %v1501 = vpop.f32.mrf.mxu0
      %v1502 = vadd.f32 %v393, %v1501
      %v1503 = vpop.f32.mrf.mxu0
      %v1504 = vpop.f32.mrf.mxu0
      %v1505 = vadd.f32 %v393, %v1504
      %v1506 = vpop.f32.mrf.mxu0
      %1507 = vmatprep.mubr.bf16.mxu0 0
      %1508 = vmatmul.mubr.bf16.gmra.mxu0 %v1407
      %v1509 = vpop.f32.mrf.mxu0
      %v1510 = vadd.f32 %v393, %v1509
      %v1511 = vpop.f32.mrf.mxu0
      %v1512 = vpop.f32.mrf.mxu0
      %v1513 = vadd.f32 %v393, %v1512
      %v1514 = vpop.f32.mrf.mxu0
      %1515 = vmatprep.mubr.bf16.mxu0 0
      %1516 = vmatmul.mubr.bf16.gmra.mxu0 %v1410
      %v1517 = vpop.f32.mrf.mxu0
      %v1518 = vadd.f32 %v393, %v1517
      %v1519 = vpop.f32.mrf.mxu0
      %v1520 = vpop.f32.mrf.mxu0
      %v1521 = vadd.f32 %v393, %v1520
      %v1522 = vpop.f32.mrf.mxu0
      %1523 = vmatprep.mubr.bf16.mxu0 0
      %1524 = vmatmul.mubr.bf16.gmra.mxu0 %v1413
      %v1525 = vpop.f32.mrf.mxu0
      %v1526 = vadd.f32 %v393, %v1525
      %v1527 = vpop.f32.mrf.mxu0
      %v1528 = vpop.f32.mrf.mxu0
      %v1529 = vadd.f32 %v393, %v1528
      %v1530 = vpop.f32.mrf.mxu0
      %1531 = vmatprep.mubr.bf16.mxu0 0
      %1532 = vmatmul.mubr.bf16.gmra.mxu0 %v1416
      %v1533 = vpop.f32.mrf.mxu0
      %v1534 = vadd.f32 %v393, %v1533
      %v1535 = vpop.f32.mrf.mxu0
      %v1536 = vpop.f32.mrf.mxu0
      %v1537 = vadd.f32 %v393, %v1536
      %v1538 = vpop.f32.mrf.mxu0
      %1539 = vmatprep.mubr.bf16.mxu0 0
      %1540 = vmatmul.mubr.bf16.gmra.mxu0 %v1419
      %v1541 = vpop.f32.mrf.mxu0
      %v1542 = vadd.f32 %v393, %v1541
      %v1543 = vpop.f32.mrf.mxu0
      %v1544 = vpop.f32.mrf.mxu0
      %v1545 = vadd.f32 %v393, %v1544
      %v1546 = vpop.f32.mrf.mxu0
      %1547 = vmatprep.mubr.bf16.mxu0 0
      %1548 = vmatmul.mubr.bf16.gmra.mxu0 %v1422
      %v1549 = vpop.f32.mrf.mxu0
      %v1550 = vadd.f32 %v393, %v1549
      %v1551 = vpop.f32.mrf.mxu0
      %v1552 = vpop.f32.mrf.mxu0
      %v1553 = vadd.f32 %v393, %v1552
      %v1554 = vpop.f32.mrf.mxu0
      %1555 = vmatprep.mubr.bf16.mxu0 0
      %1556 = vmatmul.mubr.bf16.gmra.mxu0 %v1425
      %v1557 = vpop.f32.mrf.mxu0
      %v1558 = vadd.f32 %v393, %v1557
      %v1559 = vpop.f32.mrf.mxu0
      %v1560 = vpop.f32.mrf.mxu0
      %v1561 = vpop.f32.mrf.mxu0
      %1562 = vdwg.mxu0
      %v1563 = vmax.f32 %v1462, 0.0
      %v1564 = vmax.f32 %v1465, 0.0
      %v1565 = vmax.f32 %v1470, 0.0
      %v1566 = vmax.f32 %v1473, 0.0
      %v1567 = vmax.f32 %v1478, 0.0
      %v1568 = vmax.f32 %v1481, 0.0
      %v1569 = vmax.f32 %v1486, 0.0
      %v1570 = vmax.f32 %v1489, 0.0
      %v1571 = vmax.f32 %v1494, 0.0
      %v1572 = vmax.f32 %v1497, 0.0
      %v1573 = vmax.f32 %v1502, 0.0
      %v1574 = vmax.f32 %v1505, 0.0
      %v1575 = vmax.f32 %v1510, 0.0
      %v1576 = vmax.f32 %v1513, 0.0
      %v1577 = vmax.f32 %v1518, 0.0
      %v1578 = vmax.f32 %v1521, 0.0
      %v1579 = vmax.f32 %v1526, 0.0
      %v1580 = vmax.f32 %v1529, 0.0
      %v1581 = vmax.f32 %v1534, 0.0
      %v1582 = vmax.f32 %v1537, 0.0
      %v1583 = vmax.f32 %v1542, 0.0
      %v1584 = vmax.f32 %v1545, 0.0
      %v1585 = vmax.f32 %v1550, 0.0
      %v1586 = vmax.f32 %v1553, 0.0
      %v1587 = vmax.f32 %v1558, 0.0
      %v1588 = vmax.f32 %v1274, %v1563
      %v1589 = vmax.f32 %v1275, %v1564
      %v1590 = vmax.f32 %v1276, %v1565
      %v1591 = vmax.f32 %v1277, %v1566
      %v1592 = vmax.f32 %v1278, %v1567
      %v1593 = vmax.f32 %v1279, %v1568
      %v1594 = vmax.f32 %v1280, %v1569
      %v1595 = vmax.f32 %v1281, %v1570
      %v1596 = vmax.f32 %v1282, %v1571
      %v1597 = vmax.f32 %v1283, %v1572
      %v1598 = vmax.f32 %v1284, %v1573
      %v1599 = vmax.f32 %v1285, %v1574
      %v1600 = vmax.f32 %v1286, %v1575
      %v1601 = vmax.f32 %v1287, %v1576
      %v1602 = vmax.f32 %v1288, %v1577
      %v1603 = vmax.f32 %v1289, %v1578
      %v1604 = vmax.f32 %v1290, %v1579
      %v1605 = vmax.f32 %v1291, %v1580
      %v1606 = vmax.f32 %v1292, %v1581
      %v1607 = vmax.f32 %v1293, %v1582
      %v1608 = vmax.f32 %v1294, %v1583
      %v1609 = vmax.f32 %v1295, %v1584
      %v1610 = vmax.f32 %v1296, %v1585
      %v1611 = vmax.f32 %v1297, %v1586
      %v1612 = vmax.f32 %v1298, %v1587
      %v1613 = vpack.c.bf16 %v1589, %v1588
      %v1614 = vpack.c.bf16 %v1591, %v1590
      %v1615 = vpack.c.bf16 %v1593, %v1592
      %v1616 = vpack.c.bf16 %v1595, %v1594
      %v1617 = vpack.c.bf16 %v1597, %v1596
      %v1618 = vpack.c.bf16 %v1599, %v1598
      %v1619 = vpack.c.bf16 %v1601, %v1600
      %v1620 = vpack.c.bf16 %v1603, %v1602
      %v1621 = vpack.c.bf16 %v1605, %v1604
      %v1622 = vpack.c.bf16 %v1607, %v1606
      %v1623 = vpack.c.bf16 %v1609, %v1608
      %v1624 = vpack.c.bf16 %v1611, %v1610
      %v1625 = vpack.c.bf16 %v1612, %v1612
      %v1626 = vld [vmem:[%s3] sm:$0xff]
      %v1627 = vld [vmem:[%s3 + $0x8] sm:$0xff]
      %v1628 = vld [vmem:[%s3 + $0x10] sm:$0xff]
      %v1629 = vld [vmem:[%s3 + $0x18] sm:$0xff]
      %v1630 = vld [vmem:[%s3 + $0x20] sm:$0xff]
      %v1631 = vld [vmem:[%s3 + $0x28] sm:$0xff]
      %v1632 = vld [vmem:[%s3 + $0x30] sm:$0xff]
      %v1633 = vld [vmem:[%s3 + $0x38] sm:$0xff]
      %v1634 = vld [vmem:[%s3 + $0x40] sm:$0xff]
      %v1635 = vld [vmem:[%s3 + $0x48] sm:$0xff]
      %v1636 = vld [vmem:[%s3 + $0x50] sm:$0xff]
      %v1637 = vld [vmem:[%s3 + $0x58] sm:$0xff]
      %v1638 = vld [vmem:[%s3 + $0x60] sm:$0xff]
      %v1639 = vld [vmem:[%s3 + $0x68] sm:$0xff]
      %v1640 = vld [vmem:[%s3 + $0x70] sm:$0xff]
      %v1641 = vld [vmem:[%s3 + $0x78] sm:$0xff]
      %v1642 = vld [vmem:[%s3 + $0x80] sm:$0xff]
      %v1643 = vld [vmem:[%s3 + $0x88] sm:$0xff]
      %v1644 = vld [vmem:[%s3 + $0x90] sm:$0xff]
      %v1645 = vld [vmem:[%s3 + $0x98] sm:$0xff]
      %v1646 = vld [vmem:[%s3 + $0xa0] sm:$0xff]
      %v1647 = vld [vmem:[%s3 + $0xa8] sm:$0xff]
      %v1648 = vld [vmem:[%s3 + $0xb0] sm:$0xff]
      %v1649 = vld [vmem:[%s3 + $0xb8] sm:$0xff]
      %v1650 = vld [vmem:[%s3 + $0xc0] sm:$0x33]
      %v1676 = vunpack.c.l.b16 %v1626
      %v1677 = vunpack.c.h.b16 %v1626
      %v1678 = vunpack.c.l.b16 %v1627
      %v1679 = vunpack.c.h.b16 %v1627
      %v1680 = vunpack.c.l.b16 %v1628
      %v1681 = vunpack.c.h.b16 %v1628
      %v1682 = vunpack.c.l.b16 %v1629
      %v1683 = vunpack.c.h.b16 %v1629
      %v1684 = vunpack.c.l.b16 %v1630
      %v1685 = vunpack.c.h.b16 %v1630
      %v1686 = vunpack.c.l.b16 %v1631
      %v1687 = vunpack.c.h.b16 %v1631
      %v1688 = vunpack.c.l.b16 %v1632
      %v1689 = vunpack.c.h.b16 %v1632
      %v1690 = vunpack.c.l.b16 %v1633
      %v1691 = vunpack.c.h.b16 %v1633
      %v1692 = vunpack.c.l.b16 %v1634
      %v1693 = vunpack.c.h.b16 %v1634
      %v1694 = vunpack.c.l.b16 %v1635
      %v1695 = vunpack.c.h.b16 %v1635
      %v1696 = vunpack.c.l.b16 %v1636
      %v1697 = vunpack.c.h.b16 %v1636
      %v1698 = vunpack.c.l.b16 %v1637
      %v1699 = vunpack.c.h.b16 %v1637
      %v1700 = vunpack.c.l.b16 %v1638
      %v1701 = vunpack.c.h.b16 %v1638
      %v1702 = vunpack.c.l.b16 %v1639
      %v1703 = vunpack.c.h.b16 %v1639
      %v1704 = vunpack.c.l.b16 %v1640
      %v1705 = vunpack.c.h.b16 %v1640
      %v1706 = vunpack.c.l.b16 %v1641
      %v1707 = vunpack.c.h.b16 %v1641
      %v1708 = vunpack.c.l.b16 %v1642
      %v1709 = vunpack.c.h.b16 %v1642
      %v1710 = vunpack.c.l.b16 %v1643
      %v1711 = vunpack.c.h.b16 %v1643
      %v1712 = vunpack.c.l.b16 %v1644
      %v1713 = vunpack.c.h.b16 %v1644
      %v1714 = vunpack.c.l.b16 %v1645
      %v1715 = vunpack.c.h.b16 %v1645
      %v1716 = vunpack.c.l.b16 %v1646
      %v1717 = vunpack.c.h.b16 %v1646
      %v1718 = vunpack.c.l.b16 %v1647
      %v1719 = vunpack.c.h.b16 %v1647
      %v1720 = vunpack.c.l.b16 %v1648
      %v1721 = vunpack.c.h.b16 %v1648
      %v1722 = vunpack.c.l.b16 %v1649
      %v1723 = vunpack.c.h.b16 %v1649
      %v1724 = vunpack.c.l.b16 %v1650
      %v1725 = vunpack.c.h.b16 %v1650
      %v1726 = vpack.c.b16 %v1678, %v1676
      %v1727 = vpack.c.b16 %v1679, %v1677
      %v1728 = vpack.c.b16 %v1682, %v1680
      %v1729 = vpack.c.b16 %v1683, %v1681
      %v1730 = vpack.c.b16 %v1686, %v1684
      %v1731 = vpack.c.b16 %v1687, %v1685
      %v1732 = vpack.c.b16 %v1690, %v1688
      %v1733 = vpack.c.b16 %v1691, %v1689
      %v1734 = vpack.c.b16 %v1694, %v1692
      %v1735 = vpack.c.b16 %v1695, %v1693
      %v1736 = vpack.c.b16 %v1698, %v1696
      %v1737 = vpack.c.b16 %v1699, %v1697
      %v1738 = vpack.c.b16 %v1702, %v1700
      %v1739 = vpack.c.b16 %v1703, %v1701
      %v1740 = vpack.c.b16 %v1706, %v1704
      %v1741 = vpack.c.b16 %v1707, %v1705
      %v1742 = vpack.c.b16 %v1710, %v1708
      %v1743 = vpack.c.b16 %v1711, %v1709
      %v1744 = vpack.c.b16 %v1714, %v1712
      %v1745 = vpack.c.b16 %v1715, %v1713
      %v1746 = vpack.c.b16 %v1718, %v1716
      %v1747 = vpack.c.b16 %v1719, %v1717
      %v1748 = vpack.c.b16 %v1722, %v1720
      %v1749 = vpack.c.b16 %v1723, %v1721
      %v1750 = vpack.c.b16 %v1724, %v1724
      %v1751 = vpack.c.b16 %v1725, %v1725
      %vm1765 = vcmask 556032
      %v1767 = vsel %vm1765, %v1727, 0
      %v1770 = vsel %vm1765, %v1729, 0
      %v1773 = vsel %vm1765, %v1731, 0
      %v1776 = vsel %vm1765, %v1733, 0
      %v1779 = vsel %vm1765, %v1735, 0
      %v1782 = vsel %vm1765, %v1737, 0
      %v1785 = vsel %vm1765, %v1739, 0
      %v1788 = vsel %vm1765, %v1741, 0
      %v1791 = vsel %vm1765, %v1743, 0
      %v1794 = vsel %vm1765, %v1745, 0
      %v1797 = vsel %vm1765, %v1747, 0
      %v1800 = vsel %vm1765, %v1749, 0
      %v1803 = vsel %vm1765, %v1751, 0
      %vm1805 = vcmask 1041408
      %v1807 = vsel %vm1805, %v1625, 0
      %1809 = vmatprep.subr.bf16.mxu0 0
      %1810 = vmatpush1.bf16.msra.mxu0 %v1620
      %1811 = vmatprep.subr.bf16.mxu0 0
      %1812 = vmatpush1.bf16.msra.mxu0 %v1619
      %1813 = vmatprep.subr.bf16.mxu0 0
      %1814 = vmatpush1.bf16.msra.mxu0 %v1618
      %1815 = vmatprep.subr.bf16.mxu0 0
      %1816 = vmatpush1.bf16.msra.mxu0 %v1617
      %1817 = vmatprep.subr.bf16.mxu0 0
      %1818 = vmatpush1.bf16.msra.mxu0 %v1616
      %1819 = vmatprep.subr.bf16.mxu0 0
      %1820 = vmatpush1.bf16.msra.mxu0 %v1615
      %1821 = vmatprep.subr.bf16.mxu0 0
      %1822 = vmatpush1.bf16.msra.mxu0 %v1614
      %1823 = vmatprep.subr.bf16.mxu0 0
      %1824 = vmatpush1.bf16.msra.mxu0 %v1613
      %1825 = vmatprep.subr.bf16.mxu0 0
      %1826 = vmatpush2.bf16.msra.mxu0 0
      %1827 = vmatprep.subr.bf16.mxu0 0
      %1828 = vmatpush2.bf16.msra.mxu0 0
      %1829 = vmatprep.subr.bf16.mxu0 0
      %1830 = vmatpush2.bf16.msra.mxu0 0
      %1831 = vmatprep.subr.bf16.mxu0 0
      %1832 = vmatpush2.bf16.msra.mxu0 %v1807
      %1833 = vmatprep.subr.bf16.mxu0 0
      %1834 = vmatpush2.bf16.msra.mxu0 %v1624
      %1835 = vmatprep.subr.bf16.mxu0 0
      %1836 = vmatpush2.bf16.msra.mxu0 %v1623
      %1837 = vmatprep.subr.bf16.mxu0 0
      %1838 = vmatpush2.bf16.msra.mxu0 %v1622
      %1839 = vmatprep.subr.bf16.mxu0 0
      %1840 = vmatpush2.bf16.msra.mxu0 %v1621
      %1841 = vmatprep.mubr.bf16.mxu0 %v1767
      %1842 = vmatmul.mubr.bf16.gmra.mxu0 %v1726
      %v1843 = vpop.f32.mrf.mxu0
      %v1844 = vadd.f32 0.0, %v1843
      %v1845 = vpop.f32.mrf.mxu0
      %v1846 = vpop.f32.mrf.mxu0
      %v1847 = vadd.f32 0.0, %v1846
      %v1848 = vpop.f32.mrf.mxu0
      %1849 = vmatprep.mubr.bf16.mxu0 %v1770
      %1850 = vmatmul.mubr.bf16.gmra.mxu0 %v1728
      %v1851 = vpop.f32.mrf.mxu0
      %v1852 = vadd.f32 0.0, %v1851
      %v1853 = vpop.f32.mrf.mxu0
      %v1854 = vpop.f32.mrf.mxu0
      %v1855 = vadd.f32 0.0, %v1854
      %v1856 = vpop.f32.mrf.mxu0
      %1857 = vmatprep.mubr.bf16.mxu0 %v1773
      %1858 = vmatmul.mubr.bf16.gmra.mxu0 %v1730
      %v1859 = vpop.f32.mrf.mxu0
      %v1860 = vadd.f32 0.0, %v1859
      %v1861 = vpop.f32.mrf.mxu0
      %v1862 = vpop.f32.mrf.mxu0
      %v1863 = vadd.f32 0.0, %v1862
      %v1864 = vpop.f32.mrf.mxu0
      %1865 = vmatprep.mubr.bf16.mxu0 %v1776
      %1866 = vmatmul.mubr.bf16.gmra.mxu0 %v1732
      %v1867 = vpop.f32.mrf.mxu0
      %v1868 = vadd.f32 0.0, %v1867
      %v1869 = vpop.f32.mrf.mxu0
      %v1870 = vpop.f32.mrf.mxu0
      %v1871 = vadd.f32 0.0, %v1870
      %v1872 = vpop.f32.mrf.mxu0
      %1873 = vmatprep.mubr.bf16.mxu0 %v1779
      %1874 = vmatmul.mubr.bf16.gmra.mxu0 %v1734
      %v1875 = vpop.f32.mrf.mxu0
      %v1876 = vadd.f32 0.0, %v1875
      %v1877 = vpop.f32.mrf.mxu0
      %v1878 = vpop.f32.mrf.mxu0
      %v1879 = vadd.f32 0.0, %v1878
      %v1880 = vpop.f32.mrf.mxu0
      %1881 = vmatprep.mubr.bf16.mxu0 %v1782
      %1882 = vmatmul.mubr.bf16.gmra.mxu0 %v1736
      %v1883 = vpop.f32.mrf.mxu0
      %v1884 = vadd.f32 0.0, %v1883
      %v1885 = vpop.f32.mrf.mxu0
      %v1886 = vpop.f32.mrf.mxu0
      %v1887 = vadd.f32 0.0, %v1886
      %v1888 = vpop.f32.mrf.mxu0
      %1889 = vmatprep.mubr.bf16.mxu0 %v1785
      %1890 = vmatmul.mubr.bf16.gmra.mxu0 %v1738
      %v1891 = vpop.f32.mrf.mxu0
      %v1892 = vadd.f32 0.0, %v1891
      %v1893 = vpop.f32.mrf.mxu0
      %v1894 = vpop.f32.mrf.mxu0
      %v1895 = vadd.f32 0.0, %v1894
      %v1896 = vpop.f32.mrf.mxu0
      %1897 = vmatprep.mubr.bf16.mxu0 %v1788
      %1898 = vmatmul.mubr.bf16.gmra.mxu0 %v1740
      %v1899 = vpop.f32.mrf.mxu0
      %v1900 = vadd.f32 0.0, %v1899
      %v1901 = vpop.f32.mrf.mxu0
      %v1902 = vpop.f32.mrf.mxu0
      %v1903 = vadd.f32 0.0, %v1902
      %v1904 = vpop.f32.mrf.mxu0
      %1905 = vmatprep.mubr.bf16.mxu0 %v1791
      %1906 = vmatmul.mubr.bf16.gmra.mxu0 %v1742
      %v1907 = vpop.f32.mrf.mxu0
      %v1908 = vadd.f32 0.0, %v1907
      %v1909 = vpop.f32.mrf.mxu0
      %v1910 = vpop.f32.mrf.mxu0
      %v1911 = vadd.f32 0.0, %v1910
      %v1912 = vpop.f32.mrf.mxu0
      %1913 = vmatprep.mubr.bf16.mxu0 %v1794
      %1914 = vmatmul.mubr.bf16.gmra.mxu0 %v1744
      %v1915 = vpop.f32.mrf.mxu0
      %v1916 = vadd.f32 0.0, %v1915
      %v1917 = vpop.f32.mrf.mxu0
      %v1918 = vpop.f32.mrf.mxu0
      %v1919 = vadd.f32 0.0, %v1918
      %v1920 = vpop.f32.mrf.mxu0
      %1921 = vmatprep.mubr.bf16.mxu0 %v1797
      %1922 = vmatmul.mubr.bf16.gmra.mxu0 %v1746
      %v1923 = vpop.f32.mrf.mxu0
      %v1924 = vadd.f32 0.0, %v1923
      %v1925 = vpop.f32.mrf.mxu0
      %v1926 = vpop.f32.mrf.mxu0
      %v1927 = vadd.f32 0.0, %v1926
      %v1928 = vpop.f32.mrf.mxu0
      %1929 = vmatprep.mubr.bf16.mxu0 %v1800
      %1930 = vmatmul.mubr.bf16.gmra.mxu0 %v1748
      %v1931 = vpop.f32.mrf.mxu0
      %v1932 = vadd.f32 0.0, %v1931
      %v1933 = vpop.f32.mrf.mxu0
      %v1934 = vpop.f32.mrf.mxu0
      %v1935 = vadd.f32 0.0, %v1934
      %v1936 = vpop.f32.mrf.mxu0
      %1937 = vmatprep.mubr.bf16.mxu0 %v1803
      %1938 = vmatmul.mubr.bf16.gmra.mxu0 %v1750
      %v1939 = vpop.f32.mrf.mxu0
      %v1940 = vadd.f32 0.0, %v1939
      %v1941 = vpop.f32.mrf.mxu0
      %v1942 = vpop.f32.mrf.mxu0
      %v1943 = vpop.f32.mrf.mxu0
      %1944 = vdwg.mxu0
      %v1945 = vpack.c.bf16 %v1847, %v1844
      %v1946 = vpack.c.bf16 %v1855, %v1852
      %v1947 = vpack.c.bf16 %v1863, %v1860
      %v1948 = vpack.c.bf16 %v1871, %v1868
      %v1949 = vpack.c.bf16 %v1879, %v1876
      %v1950 = vpack.c.bf16 %v1887, %v1884
      %v1951 = vpack.c.bf16 %v1895, %v1892
      %v1952 = vpack.c.bf16 %v1903, %v1900
      %v1953 = vpack.c.bf16 %v1911, %v1908
      %v1954 = vpack.c.bf16 %v1919, %v1916
      %v1955 = vpack.c.bf16 %v1927, %v1924
      %v1956 = vpack.c.bf16 %v1935, %v1932
      %v1957 = vpack.c.bf16 %v1940, %v1940
      %v1958 = vld [vmem:[%s4] sm:$0xf]
      %s1959 = scalar_lea.vmem %s3, 200
      %v1960 = vld [vmem:[%s1959] sm:$0xff]
      %v1961 = vld [vmem:[%s1959 + $0x8] sm:$0xff]
      %v1962 = vld [vmem:[%s1959 + $0x10] sm:$0xff]
      %v1963 = vld [vmem:[%s1959 + $0x18] sm:$0xff]
      %v1964 = vld [vmem:[%s1959 + $0x20] sm:$0xff]
      %v1965 = vld [vmem:[%s1959 + $0x28] sm:$0xff]
      %v1966 = vld [vmem:[%s1959 + $0x30] sm:$0xff]
      %v1967 = vld [vmem:[%s1959 + $0x38] sm:$0xff]
      %v1968 = vld [vmem:[%s1959 + $0x40] sm:$0xff]
      %v1969 = vld [vmem:[%s1959 + $0x48] sm:$0xff]
      %v1970 = vld [vmem:[%s1959 + $0x50] sm:$0xff]
      %v1971 = vld [vmem:[%s1959 + $0x58] sm:$0xff]
      %v1972 = vld [vmem:[%s1959 + $0x60] sm:$0xff]
      %v1973 = vld [vmem:[%s1959 + $0x68] sm:$0xff]
      %v1974 = vld [vmem:[%s1959 + $0x70] sm:$0xff]
      %v1975 = vld [vmem:[%s1959 + $0x78] sm:$0xff]
      %v1976 = vld [vmem:[%s1959 + $0x80] sm:$0xff]
      %v1977 = vld [vmem:[%s1959 + $0x88] sm:$0xff]
      %v1978 = vld [vmem:[%s1959 + $0x90] sm:$0xff]
      %v1979 = vld [vmem:[%s1959 + $0x98] sm:$0xff]
      %v1980 = vld [vmem:[%s1959 + $0xa0] sm:$0xff]
      %v1981 = vld [vmem:[%s1959 + $0xa8] sm:$0xff]
      %v1982 = vld [vmem:[%s1959 + $0xb0] sm:$0xff]
      %v1983 = vld [vmem:[%s1959 + $0xb8] sm:$0xff]
      %v1984 = vld [vmem:[%s1959 + $0xc0] sm:$0x33]
      %v2010 = vunpack.c.l.b16 %v1960
      %v2011 = vunpack.c.h.b16 %v1960
      %v2012 = vunpack.c.l.b16 %v1961
      %v2013 = vunpack.c.h.b16 %v1961
      %v2014 = vunpack.c.l.b16 %v1962
      %v2015 = vunpack.c.h.b16 %v1962
      %v2016 = vunpack.c.l.b16 %v1963
      %v2017 = vunpack.c.h.b16 %v1963
      %v2018 = vunpack.c.l.b16 %v1964
      %v2019 = vunpack.c.h.b16 %v1964
      %v2020 = vunpack.c.l.b16 %v1965
      %v2021 = vunpack.c.h.b16 %v1965
      %v2022 = vunpack.c.l.b16 %v1966
      %v2023 = vunpack.c.h.b16 %v1966
      %v2024 = vunpack.c.l.b16 %v1967
      %v2025 = vunpack.c.h.b16 %v1967
      %v2026 = vunpack.c.l.b16 %v1968
      %v2027 = vunpack.c.h.b16 %v1968
      %v2028 = vunpack.c.l.b16 %v1969
      %v2029 = vunpack.c.h.b16 %v1969
      %v2030 = vunpack.c.l.b16 %v1970
      %v2031 = vunpack.c.h.b16 %v1970
      %v2032 = vunpack.c.l.b16 %v1971
      %v2033 = vunpack.c.h.b16 %v1971
      %v2034 = vunpack.c.l.b16 %v1972
      %v2035 = vunpack.c.h.b16 %v1972
      %v2036 = vunpack.c.l.b16 %v1973
      %v2037 = vunpack.c.h.b16 %v1973
      %v2038 = vunpack.c.l.b16 %v1974
      %v2039 = vunpack.c.h.b16 %v1974
      %v2040 = vunpack.c.l.b16 %v1975
      %v2041 = vunpack.c.h.b16 %v1975
      %v2042 = vunpack.c.l.b16 %v1976
      %v2043 = vunpack.c.h.b16 %v1976
      %v2044 = vunpack.c.l.b16 %v1977
      %v2045 = vunpack.c.h.b16 %v1977
      %v2046 = vunpack.c.l.b16 %v1978
      %v2047 = vunpack.c.h.b16 %v1978
      %v2048 = vunpack.c.l.b16 %v1979
      %v2049 = vunpack.c.h.b16 %v1979
      %v2050 = vunpack.c.l.b16 %v1980
      %v2051 = vunpack.c.h.b16 %v1980
      %v2052 = vunpack.c.l.b16 %v1981
      %v2053 = vunpack.c.h.b16 %v1981
      %v2054 = vunpack.c.l.b16 %v1982
      %v2055 = vunpack.c.h.b16 %v1982
      %v2056 = vunpack.c.l.b16 %v1983
      %v2057 = vunpack.c.h.b16 %v1983
      %v2058 = vunpack.c.l.b16 %v1984
      %v2059 = vunpack.c.h.b16 %v1984
      %v2060 = vpack.c.b16 %v2012, %v2010
      %v2061 = vpack.c.b16 %v2013, %v2011
      %v2062 = vpack.c.b16 %v2016, %v2014
      %v2063 = vpack.c.b16 %v2017, %v2015
      %v2064 = vpack.c.b16 %v2020, %v2018
      %v2065 = vpack.c.b16 %v2021, %v2019
      %v2066 = vpack.c.b16 %v2024, %v2022
      %v2067 = vpack.c.b16 %v2025, %v2023
      %v2068 = vpack.c.b16 %v2028, %v2026
      %v2069 = vpack.c.b16 %v2029, %v2027
      %v2070 = vpack.c.b16 %v2032, %v2030
      %v2071 = vpack.c.b16 %v2033, %v2031
      %v2072 = vpack.c.b16 %v2036, %v2034
      %v2073 = vpack.c.b16 %v2037, %v2035
      %v2074 = vpack.c.b16 %v2040, %v2038
      %v2075 = vpack.c.b16 %v2041, %v2039
      %v2076 = vpack.c.b16 %v2044, %v2042
      %v2077 = vpack.c.b16 %v2045, %v2043
      %v2078 = vpack.c.b16 %v2048, %v2046
      %v2079 = vpack.c.b16 %v2049, %v2047
      %v2080 = vpack.c.b16 %v2052, %v2050
      %v2081 = vpack.c.b16 %v2053, %v2051
      %v2082 = vpack.c.b16 %v2056, %v2054
      %v2083 = vpack.c.b16 %v2057, %v2055
      %v2084 = vpack.c.b16 %v2058, %v2058
      %v2085 = vpack.c.b16 %v2059, %v2059
      %v2100 = vsel %vm1765, %v2061, 0
      %v2103 = vsel %vm1765, %v2063, 0
      %v2106 = vsel %vm1765, %v2065, 0
      %v2109 = vsel %vm1765, %v2067, 0
      %v2112 = vsel %vm1765, %v2069, 0
      %v2115 = vsel %vm1765, %v2071, 0
      %v2118 = vsel %vm1765, %v2073, 0
      %v2121 = vsel %vm1765, %v2075, 0
      %v2124 = vsel %vm1765, %v2077, 0
      %v2127 = vsel %vm1765, %v2079, 0
      %v2130 = vsel %vm1765, %v2081, 0
      %v2133 = vsel %vm1765, %v2083, 0
      %v2136 = vsel %vm1765, %v2085, 0
      %2138 = vmatprep.subr.bf16.mxu0 0
      %2139 = vmatpush1.bf16.msra.mxu0 %v1620
      %2140 = vmatprep.subr.bf16.mxu0 0
      %2141 = vmatpush1.bf16.msra.mxu0 %v1619
      %2142 = vmatprep.subr.bf16.mxu0 0
      %2143 = vmatpush1.bf16.msra.mxu0 %v1618
      %2144 = vmatprep.subr.bf16.mxu0 0
      %2145 = vmatpush1.bf16.msra.mxu0 %v1617
      %2146 = vmatprep.subr.bf16.mxu0 0
      %2147 = vmatpush1.bf16.msra.mxu0 %v1616
      %2148 = vmatprep.subr.bf16.mxu0 0
      %2149 = vmatpush1.bf16.msra.mxu0 %v1615
      %2150 = vmatprep.subr.bf16.mxu0 0
      %2151 = vmatpush1.bf16.msra.mxu0 %v1614
      %2152 = vmatprep.subr.bf16.mxu0 0
      %2153 = vmatpush1.bf16.msra.mxu0 %v1613
      %2154 = vmatprep.subr.bf16.mxu0 0
      %2155 = vmatpush2.bf16.msra.mxu0 0
      %2156 = vmatprep.subr.bf16.mxu0 0
      %2157 = vmatpush2.bf16.msra.mxu0 0
      %2158 = vmatprep.subr.bf16.mxu0 0
      %2159 = vmatpush2.bf16.msra.mxu0 0
      %2160 = vmatprep.subr.bf16.mxu0 0
      %2161 = vmatpush2.bf16.msra.mxu0 %v1807
      %2162 = vmatprep.subr.bf16.mxu0 0
      %2163 = vmatpush2.bf16.msra.mxu0 %v1624
      %2164 = vmatprep.subr.bf16.mxu0 0
      %2165 = vmatpush2.bf16.msra.mxu0 %v1623
      %2166 = vmatprep.subr.bf16.mxu0 0
      %2167 = vmatpush2.bf16.msra.mxu0 %v1622
      %2168 = vmatprep.subr.bf16.mxu0 0
      %2169 = vmatpush2.bf16.msra.mxu0 %v1621
      %2170 = vmatprep.mubr.bf16.mxu0 %v2100
      %2171 = vmatmul.mubr.bf16.gmra.mxu0 %v2060
      %v2172 = vpop.f32.mrf.mxu0
      %v2173 = vadd.f32 0.0, %v2172
      %v2174 = vpop.f32.mrf.mxu0
      %v2175 = vpop.f32.mrf.mxu0
      %v2176 = vadd.f32 0.0, %v2175
      %v2177 = vpop.f32.mrf.mxu0
      %2178 = vmatprep.mubr.bf16.mxu0 %v2103
      %2179 = vmatmul.mubr.bf16.gmra.mxu0 %v2062
      %v2180 = vpop.f32.mrf.mxu0
      %v2181 = vadd.f32 0.0, %v2180
      %v2182 = vpop.f32.mrf.mxu0
      %v2183 = vpop.f32.mrf.mxu0
      %v2184 = vadd.f32 0.0, %v2183
      %v2185 = vpop.f32.mrf.mxu0
      %2186 = vmatprep.mubr.bf16.mxu0 %v2106
      %2187 = vmatmul.mubr.bf16.gmra.mxu0 %v2064
      %v2188 = vpop.f32.mrf.mxu0
      %v2189 = vadd.f32 0.0, %v2188
      %v2190 = vpop.f32.mrf.mxu0
      %v2191 = vpop.f32.mrf.mxu0
      %v2192 = vadd.f32 0.0, %v2191
      %v2193 = vpop.f32.mrf.mxu0
      %2194 = vmatprep.mubr.bf16.mxu0 %v2109
      %2195 = vmatmul.mubr.bf16.gmra.mxu0 %v2066
      %v2196 = vpop.f32.mrf.mxu0
      %v2197 = vadd.f32 0.0, %v2196
      %v2198 = vpop.f32.mrf.mxu0
      %v2199 = vpop.f32.mrf.mxu0
      %v2200 = vadd.f32 0.0, %v2199
      %v2201 = vpop.f32.mrf.mxu0
      %2202 = vmatprep.mubr.bf16.mxu0 %v2112
      %2203 = vmatmul.mubr.bf16.gmra.mxu0 %v2068
      %v2204 = vpop.f32.mrf.mxu0
      %v2205 = vadd.f32 0.0, %v2204
      %v2206 = vpop.f32.mrf.mxu0
      %v2207 = vpop.f32.mrf.mxu0
      %v2208 = vadd.f32 0.0, %v2207
      %v2209 = vpop.f32.mrf.mxu0
      %2210 = vmatprep.mubr.bf16.mxu0 %v2115
      %2211 = vmatmul.mubr.bf16.gmra.mxu0 %v2070
      %v2212 = vpop.f32.mrf.mxu0
      %v2213 = vadd.f32 0.0, %v2212
      %v2214 = vpop.f32.mrf.mxu0
      %v2215 = vpop.f32.mrf.mxu0
      %v2216 = vadd.f32 0.0, %v2215
      %v2217 = vpop.f32.mrf.mxu0
      %2218 = vmatprep.mubr.bf16.mxu0 %v2118
      %2219 = vmatmul.mubr.bf16.gmra.mxu0 %v2072
      %v2220 = vpop.f32.mrf.mxu0
      %v2221 = vadd.f32 0.0, %v2220
      %v2222 = vpop.f32.mrf.mxu0
      %v2223 = vpop.f32.mrf.mxu0
      %v2224 = vadd.f32 0.0, %v2223
      %v2225 = vpop.f32.mrf.mxu0
      %2226 = vmatprep.mubr.bf16.mxu0 %v2121
      %2227 = vmatmul.mubr.bf16.gmra.mxu0 %v2074
      %v2228 = vpop.f32.mrf.mxu0
      %v2229 = vadd.f32 0.0, %v2228
      %v2230 = vpop.f32.mrf.mxu0
      %v2231 = vpop.f32.mrf.mxu0
      %v2232 = vadd.f32 0.0, %v2231
      %v2233 = vpop.f32.mrf.mxu0
      %2234 = vmatprep.mubr.bf16.mxu0 %v2124
      %2235 = vmatmul.mubr.bf16.gmra.mxu0 %v2076
      %v2236 = vpop.f32.mrf.mxu0
      %v2237 = vadd.f32 0.0, %v2236
      %v2238 = vpop.f32.mrf.mxu0
      %v2239 = vpop.f32.mrf.mxu0
      %v2240 = vadd.f32 0.0, %v2239
      %v2241 = vpop.f32.mrf.mxu0
      %2242 = vmatprep.mubr.bf16.mxu0 %v2127
      %2243 = vmatmul.mubr.bf16.gmra.mxu0 %v2078
      %v2244 = vpop.f32.mrf.mxu0
      %v2245 = vadd.f32 0.0, %v2244
      %v2246 = vpop.f32.mrf.mxu0
      %v2247 = vpop.f32.mrf.mxu0
      %v2248 = vadd.f32 0.0, %v2247
      %v2249 = vpop.f32.mrf.mxu0
      %2250 = vmatprep.mubr.bf16.mxu0 %v2130
      %2251 = vmatmul.mubr.bf16.gmra.mxu0 %v2080
      %v2252 = vpop.f32.mrf.mxu0
      %v2253 = vadd.f32 0.0, %v2252
      %v2254 = vpop.f32.mrf.mxu0
      %v2255 = vpop.f32.mrf.mxu0
      %v2256 = vadd.f32 0.0, %v2255
      %v2257 = vpop.f32.mrf.mxu0
      %2258 = vmatprep.mubr.bf16.mxu0 %v2133
      %2259 = vmatmul.mubr.bf16.gmra.mxu0 %v2082
      %v2260 = vpop.f32.mrf.mxu0
      %v2261 = vadd.f32 0.0, %v2260
      %v2262 = vpop.f32.mrf.mxu0
      %v2263 = vpop.f32.mrf.mxu0
      %v2264 = vadd.f32 0.0, %v2263
      %v2265 = vpop.f32.mrf.mxu0
      %2266 = vmatprep.mubr.bf16.mxu0 %v2136
      %2267 = vmatmul.mubr.bf16.gmra.mxu0 %v2084
      %v2268 = vpop.f32.mrf.mxu0
      %v2269 = vadd.f32 0.0, %v2268
      %v2270 = vpop.f32.mrf.mxu0
      %v2271 = vpop.f32.mrf.mxu0
      %v2272 = vpop.f32.mrf.mxu0
      %2273 = vdwg.mxu0
      %v2274 = vpack.c.bf16 %v2176, %v2173
      %v2275 = vpack.c.bf16 %v2184, %v2181
      %v2276 = vpack.c.bf16 %v2192, %v2189
      %v2277 = vpack.c.bf16 %v2200, %v2197
      %v2278 = vpack.c.bf16 %v2208, %v2205
      %v2279 = vpack.c.bf16 %v2216, %v2213
      %v2280 = vpack.c.bf16 %v2224, %v2221
      %v2281 = vpack.c.bf16 %v2232, %v2229
      %v2282 = vpack.c.bf16 %v2240, %v2237
      %v2283 = vpack.c.bf16 %v2248, %v2245
      %v2284 = vpack.c.bf16 %v2256, %v2253
      %v2285 = vpack.c.bf16 %v2264, %v2261
      %v2286 = vpack.c.bf16 %v2269, %v2269
      %s2287 = scalar_lea.vmem %s4, 4
      %v2288 = vld [vmem:[%s2287] sm:$0xf]
      %vm2289 = vcmask 64512
      %v2291 = vsel %vm2289, %v2274, 0
      %v2294 = vsel %vm2289, %v2275, 0
      %v2297 = vsel %vm2289, %v2276, 0
      %v2300 = vsel %vm2289, %v2277, 0
      %v2303 = vsel %vm2289, %v2278, 0
      %v2306 = vsel %vm2289, %v2279, 0
      %v2309 = vsel %vm2289, %v2280, 0
      %v2312 = vsel %vm2289, %v2281, 0
      %v2315 = vsel %vm2289, %v2282, 0
      %v2318 = vsel %vm2289, %v2283, 0
      %v2321 = vsel %vm2289, %v2284, 0
      %v2324 = vsel %vm2289, %v2285, 0
      %v2327 = vsel %vm2289, %v2286, 0
      %v2330 = vsel %vm503, %v2288, 0
      %2332 = vmatprep.subr.bf16.mxu0 0
      %2333 = vmatpush1.bf16.msra.mxu0 0
      %2334 = vmatprep.subr.bf16.mxu0 0
      %2335 = vmatpush1.bf16.msra.mxu0 0
      %2336 = vmatprep.subr.bf16.mxu0 0
      %2337 = vmatpush1.bf16.msra.mxu0 0
      %2338 = vmatprep.subr.bf16.mxu0 0
      %2339 = vmatpush1.bf16.msra.mxu0 0
      %2340 = vmatprep.subr.bf16.mxu0 0
      %2341 = vmatpush1.bf16.msra.mxu0 0
      %2342 = vmatprep.subr.bf16.mxu0 0
      %2343 = vmatpush1.bf16.msra.mxu0 0
      %2344 = vmatprep.subr.bf16.mxu0 0
      %2345 = vmatpush1.bf16.msra.mxu0 0
      %2346 = vmatprep.subr.bf16.mxu0 0
      %2347 = vmatpush1.bf16.msra.mxu0 %v2330
      %2348 = vmatprep.subr.bf16.mxu0 0
      %2349 = vmatpush2.bf16.msra.mxu0 0
      %2350 = vmatprep.subr.bf16.mxu0 0
      %2351 = vmatpush2.bf16.msra.mxu0 0
      %2352 = vmatprep.subr.bf16.mxu0 0
      %2353 = vmatpush2.bf16.msra.mxu0 0
      %2354 = vmatprep.subr.bf16.mxu0 0
      %2355 = vmatpush2.bf16.msra.mxu0 0
      %2356 = vmatprep.subr.bf16.mxu0 0
      %2357 = vmatpush2.bf16.msra.mxu0 0
      %2358 = vmatprep.subr.bf16.mxu0 0
      %2359 = vmatpush2.bf16.msra.mxu0 0
      %2360 = vmatprep.subr.bf16.mxu0 0
      %2361 = vmatpush2.bf16.msra.mxu0 0
      %2362 = vmatprep.subr.bf16.mxu0 0
      %2363 = vmatpush2.bf16.msra.mxu0 0
      %2364 = vmatprep.mubr.bf16.mxu0 0
      %2365 = vmatmul.mubr.bf16.gmra.mxu0 %v2291
      %v2366 = vpop.f32.mrf.mxu0
      %v2367 = vadd.f32 0.0, %v2366
      %v2368 = vpop.f32.mrf.mxu0
      %v2369 = vpop.f32.mrf.mxu0
      %v2370 = vadd.f32 0.0, %v2369
      %v2371 = vpop.f32.mrf.mxu0
      %2372 = vmatprep.mubr.bf16.mxu0 0
      %2373 = vmatmul.mubr.bf16.gmra.mxu0 %v2294
      %v2374 = vpop.f32.mrf.mxu0
      %v2375 = vadd.f32 0.0, %v2374
      %v2376 = vpop.f32.mrf.mxu0
      %v2377 = vpop.f32.mrf.mxu0
      %v2378 = vadd.f32 0.0, %v2377
      %v2379 = vpop.f32.mrf.mxu0
      %2380 = vmatprep.mubr.bf16.mxu0 0
      %2381 = vmatmul.mubr.bf16.gmra.mxu0 %v2297
      %v2382 = vpop.f32.mrf.mxu0
      %v2383 = vadd.f32 0.0, %v2382
      %v2384 = vpop.f32.mrf.mxu0
      %v2385 = vpop.f32.mrf.mxu0
      %v2386 = vadd.f32 0.0, %v2385
      %v2387 = vpop.f32.mrf.mxu0
      %2388 = vmatprep.mubr.bf16.mxu0 0
      %2389 = vmatmul.mubr.bf16.gmra.mxu0 %v2300
      %v2390 = vpop.f32.mrf.mxu0
      %v2391 = vadd.f32 0.0, %v2390
      %v2392 = vpop.f32.mrf.mxu0
      %v2393 = vpop.f32.mrf.mxu0
      %v2394 = vadd.f32 0.0, %v2393
      %v2395 = vpop.f32.mrf.mxu0
      %2396 = vmatprep.mubr.bf16.mxu0 0
      %2397 = vmatmul.mubr.bf16.gmra.mxu0 %v2303
      %v2398 = vpop.f32.mrf.mxu0
      %v2399 = vadd.f32 0.0, %v2398
      %v2400 = vpop.f32.mrf.mxu0
      %v2401 = vpop.f32.mrf.mxu0
      %v2402 = vadd.f32 0.0, %v2401
      %v2403 = vpop.f32.mrf.mxu0
      %2404 = vmatprep.mubr.bf16.mxu0 0
      %2405 = vmatmul.mubr.bf16.gmra.mxu0 %v2306
      %v2406 = vpop.f32.mrf.mxu0
      %v2407 = vadd.f32 0.0, %v2406
      %v2408 = vpop.f32.mrf.mxu0
      %v2409 = vpop.f32.mrf.mxu0
      %v2410 = vadd.f32 0.0, %v2409
      %v2411 = vpop.f32.mrf.mxu0
      %2412 = vmatprep.mubr.bf16.mxu0 0
      %2413 = vmatmul.mubr.bf16.gmra.mxu0 %v2309
      %v2414 = vpop.f32.mrf.mxu0
      %v2415 = vadd.f32 0.0, %v2414
      %v2416 = vpop.f32.mrf.mxu0
      %v2417 = vpop.f32.mrf.mxu0
      %v2418 = vadd.f32 0.0, %v2417
      %v2419 = vpop.f32.mrf.mxu0
      %2420 = vmatprep.mubr.bf16.mxu0 0
      %2421 = vmatmul.mubr.bf16.gmra.mxu0 %v2312
      %v2422 = vpop.f32.mrf.mxu0
      %v2423 = vadd.f32 0.0, %v2422
      %v2424 = vpop.f32.mrf.mxu0
      %v2425 = vpop.f32.mrf.mxu0
      %v2426 = vadd.f32 0.0, %v2425
      %v2427 = vpop.f32.mrf.mxu0
      %2428 = vmatprep.mubr.bf16.mxu0 0
      %2429 = vmatmul.mubr.bf16.gmra.mxu0 %v2315
      %v2430 = vpop.f32.mrf.mxu0
      %v2431 = vadd.f32 0.0, %v2430
      %v2432 = vpop.f32.mrf.mxu0
      %v2433 = vpop.f32.mrf.mxu0
      %v2434 = vadd.f32 0.0, %v2433
      %v2435 = vpop.f32.mrf.mxu0
      %2436 = vmatprep.mubr.bf16.mxu0 0
      %2437 = vmatmul.mubr.bf16.gmra.mxu0 %v2318
      %v2438 = vpop.f32.mrf.mxu0
      %v2439 = vadd.f32 0.0, %v2438
      %v2440 = vpop.f32.mrf.mxu0
      %v2441 = vpop.f32.mrf.mxu0
      %v2442 = vadd.f32 0.0, %v2441
      %v2443 = vpop.f32.mrf.mxu0
      %2444 = vmatprep.mubr.bf16.mxu0 0
      %2445 = vmatmul.mubr.bf16.gmra.mxu0 %v2321
      %v2446 = vpop.f32.mrf.mxu0
      %v2447 = vadd.f32 0.0, %v2446
      %v2448 = vpop.f32.mrf.mxu0
      %v2449 = vpop.f32.mrf.mxu0
      %v2450 = vadd.f32 0.0, %v2449
      %v2451 = vpop.f32.mrf.mxu0
      %2452 = vmatprep.mubr.bf16.mxu0 0
      %2453 = vmatmul.mubr.bf16.gmra.mxu0 %v2324
      %v2454 = vpop.f32.mrf.mxu0
      %v2455 = vadd.f32 0.0, %v2454
      %v2456 = vpop.f32.mrf.mxu0
      %v2457 = vpop.f32.mrf.mxu0
      %v2458 = vadd.f32 0.0, %v2457
      %v2459 = vpop.f32.mrf.mxu0
      %2460 = vmatprep.mubr.bf16.mxu0 0
      %2461 = vmatmul.mubr.bf16.gmra.mxu0 %v2327
      %v2462 = vpop.f32.mrf.mxu0
      %v2463 = vadd.f32 0.0, %v2462
      %v2464 = vpop.f32.mrf.mxu0
      %v2465 = vpop.f32.mrf.mxu0
      %v2466 = vpop.f32.mrf.mxu0
      %2467 = vdwg.mxu0
      %v2469 = vsel %vm2289, %v1945, 0
      %v2472 = vsel %vm2289, %v1946, 0
      %v2475 = vsel %vm2289, %v1947, 0
      %v2478 = vsel %vm2289, %v1948, 0
      %v2481 = vsel %vm2289, %v1949, 0
      %v2484 = vsel %vm2289, %v1950, 0
      %v2487 = vsel %vm2289, %v1951, 0
      %v2490 = vsel %vm2289, %v1952, 0
      %v2493 = vsel %vm2289, %v1953, 0
      %v2496 = vsel %vm2289, %v1954, 0
      %v2499 = vsel %vm2289, %v1955, 0
      %v2502 = vsel %vm2289, %v1956, 0
      %v2505 = vsel %vm2289, %v1957, 0
      %v2508 = vsel %vm503, %v1958, 0
      %2510 = vmatprep.subr.bf16.mxu0 0
      %2511 = vmatpush1.bf16.msra.mxu0 0
      %2512 = vmatprep.subr.bf16.mxu0 0
      %2513 = vmatpush1.bf16.msra.mxu0 0
      %2514 = vmatprep.subr.bf16.mxu0 0
      %2515 = vmatpush1.bf16.msra.mxu0 0
      %2516 = vmatprep.subr.bf16.mxu0 0
      %2517 = vmatpush1.bf16.msra.mxu0 0
      %2518 = vmatprep.subr.bf16.mxu0 0
      %2519 = vmatpush1.bf16.msra.mxu0 0
      %2520 = vmatprep.subr.bf16.mxu0 0
      %2521 = vmatpush1.bf16.msra.mxu0 0
      %2522 = vmatprep.subr.bf16.mxu0 0
      %2523 = vmatpush1.bf16.msra.mxu0 0
      %2524 = vmatprep.subr.bf16.mxu0 0
      %2525 = vmatpush1.bf16.msra.mxu0 %v2508
      %2526 = vmatprep.subr.bf16.mxu0 0
      %2527 = vmatpush2.bf16.msra.mxu0 0
      %2528 = vmatprep.subr.bf16.mxu0 0
      %2529 = vmatpush2.bf16.msra.mxu0 0
      %2530 = vmatprep.subr.bf16.mxu0 0
      %2531 = vmatpush2.bf16.msra.mxu0 0
      %2532 = vmatprep.subr.bf16.mxu0 0
      %2533 = vmatpush2.bf16.msra.mxu0 0
      %2534 = vmatprep.subr.bf16.mxu0 0
      %2535 = vmatpush2.bf16.msra.mxu0 0
      %2536 = vmatprep.subr.bf16.mxu0 0
      %2537 = vmatpush2.bf16.msra.mxu0 0
      %2538 = vmatprep.subr.bf16.mxu0 0
      %2539 = vmatpush2.bf16.msra.mxu0 0
      %2540 = vmatprep.subr.bf16.mxu0 0
      %2541 = vmatpush2.bf16.msra.mxu0 0
      %2542 = vmatprep.mubr.bf16.mxu0 0
      %2543 = vmatmul.mubr.bf16.gmra.mxu0 %v2469
      %v2544 = vpop.f32.mrf.mxu0
      %v2545 = vadd.f32 %v2367, %v2544
      %v2546 = vpop.f32.mrf.mxu0
      %v2547 = vpop.f32.mrf.mxu0
      %v2548 = vadd.f32 %v2370, %v2547
      %v2549 = vpop.f32.mrf.mxu0
      %2550 = vmatprep.mubr.bf16.mxu0 0
      %2551 = vmatmul.mubr.bf16.gmra.mxu0 %v2472
      %v2552 = vpop.f32.mrf.mxu0
      %v2553 = vadd.f32 %v2375, %v2552
      %v2554 = vpop.f32.mrf.mxu0
      %v2555 = vpop.f32.mrf.mxu0
      %v2556 = vadd.f32 %v2378, %v2555
      %v2557 = vpop.f32.mrf.mxu0
      %2558 = vmatprep.mubr.bf16.mxu0 0
      %2559 = vmatmul.mubr.bf16.gmra.mxu0 %v2475
      %v2560 = vpop.f32.mrf.mxu0
      %v2561 = vadd.f32 %v2383, %v2560
      %v2562 = vpop.f32.mrf.mxu0
      %v2563 = vpop.f32.mrf.mxu0
      %v2564 = vadd.f32 %v2386, %v2563
      %v2565 = vpop.f32.mrf.mxu0
      %2566 = vmatprep.mubr.bf16.mxu0 0
      %2567 = vmatmul.mubr.bf16.gmra.mxu0 %v2478
      %v2568 = vpop.f32.mrf.mxu0
      %v2569 = vadd.f32 %v2391, %v2568
      %v2570 = vpop.f32.mrf.mxu0
      %v2571 = vpop.f32.mrf.mxu0
      %v2572 = vadd.f32 %v2394, %v2571
      %v2573 = vpop.f32.mrf.mxu0
      %2574 = vmatprep.mubr.bf16.mxu0 0
      %2575 = vmatmul.mubr.bf16.gmra.mxu0 %v2481
      %v2576 = vpop.f32.mrf.mxu0
      %v2577 = vadd.f32 %v2399, %v2576
      %v2578 = vpop.f32.mrf.mxu0
      %v2579 = vpop.f32.mrf.mxu0
      %v2580 = vadd.f32 %v2402, %v2579
      %v2581 = vpop.f32.mrf.mxu0
      %2582 = vmatprep.mubr.bf16.mxu0 0
      %2583 = vmatmul.mubr.bf16.gmra.mxu0 %v2484
      %v2584 = vpop.f32.mrf.mxu0
      %v2585 = vadd.f32 %v2407, %v2584
      %v2586 = vpop.f32.mrf.mxu0
      %v2587 = vpop.f32.mrf.mxu0
      %v2588 = vadd.f32 %v2410, %v2587
      %v2589 = vpop.f32.mrf.mxu0
      %2590 = vmatprep.mubr.bf16.mxu0 0
      %2591 = vmatmul.mubr.bf16.gmra.mxu0 %v2487
      %v2592 = vpop.f32.mrf.mxu0
      %v2593 = vadd.f32 %v2415, %v2592
      %v2594 = vpop.f32.mrf.mxu0
      %v2595 = vpop.f32.mrf.mxu0
      %v2596 = vadd.f32 %v2418, %v2595
      %v2597 = vpop.f32.mrf.mxu0
      %2598 = vmatprep.mubr.bf16.mxu0 0
      %2599 = vmatmul.mubr.bf16.gmra.mxu0 %v2490
      %v2600 = vpop.f32.mrf.mxu0
      %v2601 = vadd.f32 %v2423, %v2600
      %v2602 = vpop.f32.mrf.mxu0
      %v2603 = vpop.f32.mrf.mxu0
      %v2604 = vadd.f32 %v2426, %v2603
      %v2605 = vpop.f32.mrf.mxu0
      %2606 = vmatprep.mubr.bf16.mxu0 0
      %2607 = vmatmul.mubr.bf16.gmra.mxu0 %v2493
      %v2608 = vpop.f32.mrf.mxu0
      %v2609 = vadd.f32 %v2431, %v2608
      %v2610 = vpop.f32.mrf.mxu0
      %v2611 = vpop.f32.mrf.mxu0
      %v2612 = vadd.f32 %v2434, %v2611
      %v2613 = vpop.f32.mrf.mxu0
      %2614 = vmatprep.mubr.bf16.mxu0 0
      %2615 = vmatmul.mubr.bf16.gmra.mxu0 %v2496
      %v2616 = vpop.f32.mrf.mxu0
      %v2617 = vadd.f32 %v2439, %v2616
      %v2618 = vpop.f32.mrf.mxu0
      %v2619 = vpop.f32.mrf.mxu0
      %v2620 = vadd.f32 %v2442, %v2619
      %v2621 = vpop.f32.mrf.mxu0
      %2622 = vmatprep.mubr.bf16.mxu0 0
      %2623 = vmatmul.mubr.bf16.gmra.mxu0 %v2499
      %v2624 = vpop.f32.mrf.mxu0
      %v2625 = vadd.f32 %v2447, %v2624
      %v2626 = vpop.f32.mrf.mxu0
      %v2627 = vpop.f32.mrf.mxu0
      %v2628 = vadd.f32 %v2450, %v2627
      %v2629 = vpop.f32.mrf.mxu0
      %2630 = vmatprep.mubr.bf16.mxu0 0
      %2631 = vmatmul.mubr.bf16.gmra.mxu0 %v2502
      %v2632 = vpop.f32.mrf.mxu0
      %v2633 = vadd.f32 %v2455, %v2632
      %v2634 = vpop.f32.mrf.mxu0
      %v2635 = vpop.f32.mrf.mxu0
      %v2636 = vadd.f32 %v2458, %v2635
      %v2637 = vpop.f32.mrf.mxu0
      %2638 = vmatprep.mubr.bf16.mxu0 0
      %2639 = vmatmul.mubr.bf16.gmra.mxu0 %v2505
      %v2640 = vpop.f32.mrf.mxu0
      %v2641 = vadd.f32 %v2463, %v2640
      %v2642 = vpop.f32.mrf.mxu0
      %v2643 = vpop.f32.mrf.mxu0
      %v2644 = vpop.f32.mrf.mxu0
      %2645 = vdwg.mxu0
      %s2646 = scalar_lea.vmem %s3, 400
      %v2647 = vld [vmem:[%s2646] sm:$0xff]
      %v2648 = vld [vmem:[%s2646 + $0x8] sm:$0xff]
      %v2649 = vld [vmem:[%s2646 + $0x10] sm:$0xff]
      %v2650 = vld [vmem:[%s2646 + $0x18] sm:$0xff]
      %v2651 = vld [vmem:[%s2646 + $0x20] sm:$0xff]
      %v2652 = vld [vmem:[%s2646 + $0x28] sm:$0xff]
      %v2653 = vld [vmem:[%s2646 + $0x30] sm:$0xff]
      %v2654 = vld [vmem:[%s2646 + $0x38] sm:$0xff]
      %v2655 = vld [vmem:[%s2646 + $0x40] sm:$0xff]
      %v2656 = vld [vmem:[%s2646 + $0x48] sm:$0xff]
      %v2657 = vld [vmem:[%s2646 + $0x50] sm:$0xff]
      %v2658 = vld [vmem:[%s2646 + $0x58] sm:$0xff]
      %v2659 = vld [vmem:[%s2646 + $0x60] sm:$0xff]
      %v2660 = vld [vmem:[%s2646 + $0x68] sm:$0xff]
      %v2661 = vld [vmem:[%s2646 + $0x70] sm:$0xff]
      %v2662 = vld [vmem:[%s2646 + $0x78] sm:$0xff]
      %v2663 = vld [vmem:[%s2646 + $0x80] sm:$0xff]
      %v2664 = vld [vmem:[%s2646 + $0x88] sm:$0xff]
      %v2665 = vld [vmem:[%s2646 + $0x90] sm:$0xff]
      %v2666 = vld [vmem:[%s2646 + $0x98] sm:$0xff]
      %v2667 = vld [vmem:[%s2646 + $0xa0] sm:$0xff]
      %v2668 = vld [vmem:[%s2646 + $0xa8] sm:$0xff]
      %v2669 = vld [vmem:[%s2646 + $0xb0] sm:$0xff]
      %v2670 = vld [vmem:[%s2646 + $0xb8] sm:$0xff]
      %v2671 = vld [vmem:[%s2646 + $0xc0] sm:$0x33]
      %v2697 = vunpack.c.l.b16 %v2647
      %v2698 = vunpack.c.h.b16 %v2647
      %v2699 = vunpack.c.l.b16 %v2648
      %v2700 = vunpack.c.h.b16 %v2648
      %v2701 = vunpack.c.l.b16 %v2649
      %v2702 = vunpack.c.h.b16 %v2649
      %v2703 = vunpack.c.l.b16 %v2650
      %v2704 = vunpack.c.h.b16 %v2650
      %v2705 = vunpack.c.l.b16 %v2651
      %v2706 = vunpack.c.h.b16 %v2651
      %v2707 = vunpack.c.l.b16 %v2652
      %v2708 = vunpack.c.h.b16 %v2652
      %v2709 = vunpack.c.l.b16 %v2653
      %v2710 = vunpack.c.h.b16 %v2653
      %v2711 = vunpack.c.l.b16 %v2654
      %v2712 = vunpack.c.h.b16 %v2654
      %v2713 = vunpack.c.l.b16 %v2655
      %v2714 = vunpack.c.h.b16 %v2655
      %v2715 = vunpack.c.l.b16 %v2656
      %v2716 = vunpack.c.h.b16 %v2656
      %v2717 = vunpack.c.l.b16 %v2657
      %v2718 = vunpack.c.h.b16 %v2657
      %v2719 = vunpack.c.l.b16 %v2658
      %v2720 = vunpack.c.h.b16 %v2658
      %v2721 = vunpack.c.l.b16 %v2659
      %v2722 = vunpack.c.h.b16 %v2659
      %v2723 = vunpack.c.l.b16 %v2660
      %v2724 = vunpack.c.h.b16 %v2660
      %v2725 = vunpack.c.l.b16 %v2661
      %v2726 = vunpack.c.h.b16 %v2661
      %v2727 = vunpack.c.l.b16 %v2662
      %v2728 = vunpack.c.h.b16 %v2662
      %v2729 = vunpack.c.l.b16 %v2663
      %v2730 = vunpack.c.h.b16 %v2663
      %v2731 = vunpack.c.l.b16 %v2664
      %v2732 = vunpack.c.h.b16 %v2664
      %v2733 = vunpack.c.l.b16 %v2665
      %v2734 = vunpack.c.h.b16 %v2665
      %v2735 = vunpack.c.l.b16 %v2666
      %v2736 = vunpack.c.h.b16 %v2666
      %v2737 = vunpack.c.l.b16 %v2667
      %v2738 = vunpack.c.h.b16 %v2667
      %v2739 = vunpack.c.l.b16 %v2668
      %v2740 = vunpack.c.h.b16 %v2668
      %v2741 = vunpack.c.l.b16 %v2669
      %v2742 = vunpack.c.h.b16 %v2669
      %v2743 = vunpack.c.l.b16 %v2670
      %v2744 = vunpack.c.h.b16 %v2670
      %v2745 = vunpack.c.l.b16 %v2671
      %v2746 = vunpack.c.h.b16 %v2671
      %v2747 = vpack.c.b16 %v2699, %v2697
      %v2748 = vpack.c.b16 %v2700, %v2698
      %v2749 = vpack.c.b16 %v2703, %v2701
      %v2750 = vpack.c.b16 %v2704, %v2702
      %v2751 = vpack.c.b16 %v2707, %v2705
      %v2752 = vpack.c.b16 %v2708, %v2706
      %v2753 = vpack.c.b16 %v2711, %v2709
      %v2754 = vpack.c.b16 %v2712, %v2710
      %v2755 = vpack.c.b16 %v2715, %v2713
      %v2756 = vpack.c.b16 %v2716, %v2714
      %v2757 = vpack.c.b16 %v2719, %v2717
      %v2758 = vpack.c.b16 %v2720, %v2718
      %v2759 = vpack.c.b16 %v2723, %v2721
      %v2760 = vpack.c.b16 %v2724, %v2722
      %v2761 = vpack.c.b16 %v2727, %v2725
      %v2762 = vpack.c.b16 %v2728, %v2726
      %v2763 = vpack.c.b16 %v2731, %v2729
      %v2764 = vpack.c.b16 %v2732, %v2730
      %v2765 = vpack.c.b16 %v2735, %v2733
      %v2766 = vpack.c.b16 %v2736, %v2734
      %v2767 = vpack.c.b16 %v2739, %v2737
      %v2768 = vpack.c.b16 %v2740, %v2738
      %v2769 = vpack.c.b16 %v2743, %v2741
      %v2770 = vpack.c.b16 %v2744, %v2742
      %v2771 = vpack.c.b16 %v2745, %v2745
      %v2772 = vpack.c.b16 %v2746, %v2746
      %v2787 = vsel %vm1765, %v2748, 0
      %v2790 = vsel %vm1765, %v2750, 0
      %v2793 = vsel %vm1765, %v2752, 0
      %v2796 = vsel %vm1765, %v2754, 0
      %v2799 = vsel %vm1765, %v2756, 0
      %v2802 = vsel %vm1765, %v2758, 0
      %v2805 = vsel %vm1765, %v2760, 0
      %v2808 = vsel %vm1765, %v2762, 0
      %v2811 = vsel %vm1765, %v2764, 0
      %v2814 = vsel %vm1765, %v2766, 0
      %v2817 = vsel %vm1765, %v2768, 0
      %v2820 = vsel %vm1765, %v2770, 0
      %v2823 = vsel %vm1765, %v2772, 0
      %2825 = vmatprep.subr.bf16.mxu0 0
      %2826 = vmatpush1.bf16.msra.mxu0 %v1620
      %2827 = vmatprep.subr.bf16.mxu0 0
      %2828 = vmatpush1.bf16.msra.mxu0 %v1619
      %2829 = vmatprep.subr.bf16.mxu0 0
      %2830 = vmatpush1.bf16.msra.mxu0 %v1618
      %2831 = vmatprep.subr.bf16.mxu0 0
      %2832 = vmatpush1.bf16.msra.mxu0 %v1617
      %2833 = vmatprep.subr.bf16.mxu0 0
      %2834 = vmatpush1.bf16.msra.mxu0 %v1616
      %2835 = vmatprep.subr.bf16.mxu0 0
      %2836 = vmatpush1.bf16.msra.mxu0 %v1615
      %2837 = vmatprep.subr.bf16.mxu0 0
      %2838 = vmatpush1.bf16.msra.mxu0 %v1614
      %2839 = vmatprep.subr.bf16.mxu0 0
      %2840 = vmatpush1.bf16.msra.mxu0 %v1613
      %2841 = vmatprep.subr.bf16.mxu0 0
      %2842 = vmatpush2.bf16.msra.mxu0 0
      %2843 = vmatprep.subr.bf16.mxu0 0
      %2844 = vmatpush2.bf16.msra.mxu0 0
      %2845 = vmatprep.subr.bf16.mxu0 0
      %2846 = vmatpush2.bf16.msra.mxu0 0
      %2847 = vmatprep.subr.bf16.mxu0 0
      %2848 = vmatpush2.bf16.msra.mxu0 %v1807
      %2849 = vmatprep.subr.bf16.mxu0 0
      %2850 = vmatpush2.bf16.msra.mxu0 %v1624
      %2851 = vmatprep.subr.bf16.mxu0 0
      %2852 = vmatpush2.bf16.msra.mxu0 %v1623
      %2853 = vmatprep.subr.bf16.mxu0 0
      %2854 = vmatpush2.bf16.msra.mxu0 %v1622
      %2855 = vmatprep.subr.bf16.mxu0 0
      %2856 = vmatpush2.bf16.msra.mxu0 %v1621
      %2857 = vmatprep.mubr.bf16.mxu0 %v2787
      %2858 = vmatmul.mubr.bf16.gmra.mxu0 %v2747
      %v2859 = vpop.f32.mrf.mxu0
      %v2860 = vadd.f32 0.0, %v2859
      %v2861 = vpop.f32.mrf.mxu0
      %v2862 = vpop.f32.mrf.mxu0
      %v2863 = vadd.f32 0.0, %v2862
      %v2864 = vpop.f32.mrf.mxu0
      %2865 = vmatprep.mubr.bf16.mxu0 %v2790
      %2866 = vmatmul.mubr.bf16.gmra.mxu0 %v2749
      %v2867 = vpop.f32.mrf.mxu0
      %v2868 = vadd.f32 0.0, %v2867
      %v2869 = vpop.f32.mrf.mxu0
      %v2870 = vpop.f32.mrf.mxu0
      %v2871 = vadd.f32 0.0, %v2870
      %v2872 = vpop.f32.mrf.mxu0
      %2873 = vmatprep.mubr.bf16.mxu0 %v2793
      %2874 = vmatmul.mubr.bf16.gmra.mxu0 %v2751
      %v2875 = vpop.f32.mrf.mxu0
      %v2876 = vadd.f32 0.0, %v2875
      %v2877 = vpop.f32.mrf.mxu0
      %v2878 = vpop.f32.mrf.mxu0
      %v2879 = vadd.f32 0.0, %v2878
      %v2880 = vpop.f32.mrf.mxu0
      %2881 = vmatprep.mubr.bf16.mxu0 %v2796
      %2882 = vmatmul.mubr.bf16.gmra.mxu0 %v2753
      %v2883 = vpop.f32.mrf.mxu0
      %v2884 = vadd.f32 0.0, %v2883
      %v2885 = vpop.f32.mrf.mxu0
      %v2886 = vpop.f32.mrf.mxu0
      %v2887 = vadd.f32 0.0, %v2886
      %v2888 = vpop.f32.mrf.mxu0
      %2889 = vmatprep.mubr.bf16.mxu0 %v2799
      %2890 = vmatmul.mubr.bf16.gmra.mxu0 %v2755
      %v2891 = vpop.f32.mrf.mxu0
      %v2892 = vadd.f32 0.0, %v2891
      %v2893 = vpop.f32.mrf.mxu0
      %v2894 = vpop.f32.mrf.mxu0
      %v2895 = vadd.f32 0.0, %v2894
      %v2896 = vpop.f32.mrf.mxu0
      %2897 = vmatprep.mubr.bf16.mxu0 %v2802
      %2898 = vmatmul.mubr.bf16.gmra.mxu0 %v2757
      %v2899 = vpop.f32.mrf.mxu0
      %v2900 = vadd.f32 0.0, %v2899
      %v2901 = vpop.f32.mrf.mxu0
      %v2902 = vpop.f32.mrf.mxu0
      %v2903 = vadd.f32 0.0, %v2902
      %v2904 = vpop.f32.mrf.mxu0
      %2905 = vmatprep.mubr.bf16.mxu0 %v2805
      %2906 = vmatmul.mubr.bf16.gmra.mxu0 %v2759
      %v2907 = vpop.f32.mrf.mxu0
      %v2908 = vadd.f32 0.0, %v2907
      %v2909 = vpop.f32.mrf.mxu0
      %v2910 = vpop.f32.mrf.mxu0
      %v2911 = vadd.f32 0.0, %v2910
      %v2912 = vpop.f32.mrf.mxu0
      %2913 = vmatprep.mubr.bf16.mxu0 %v2808
      %2914 = vmatmul.mubr.bf16.gmra.mxu0 %v2761
      %v2915 = vpop.f32.mrf.mxu0
      %v2916 = vadd.f32 0.0, %v2915
      %v2917 = vpop.f32.mrf.mxu0
      %v2918 = vpop.f32.mrf.mxu0
      %v2919 = vadd.f32 0.0, %v2918
      %v2920 = vpop.f32.mrf.mxu0
      %2921 = vmatprep.mubr.bf16.mxu0 %v2811
      %2922 = vmatmul.mubr.bf16.gmra.mxu0 %v2763
      %v2923 = vpop.f32.mrf.mxu0
      %v2924 = vadd.f32 0.0, %v2923
      %v2925 = vpop.f32.mrf.mxu0
      %v2926 = vpop.f32.mrf.mxu0
      %v2927 = vadd.f32 0.0, %v2926
      %v2928 = vpop.f32.mrf.mxu0
      %2929 = vmatprep.mubr.bf16.mxu0 %v2814
      %2930 = vmatmul.mubr.bf16.gmra.mxu0 %v2765
      %v2931 = vpop.f32.mrf.mxu0
      %v2932 = vadd.f32 0.0, %v2931
      %v2933 = vpop.f32.mrf.mxu0
      %v2934 = vpop.f32.mrf.mxu0
      %v2935 = vadd.f32 0.0, %v2934
      %v2936 = vpop.f32.mrf.mxu0
      %2937 = vmatprep.mubr.bf16.mxu0 %v2817
      %2938 = vmatmul.mubr.bf16.gmra.mxu0 %v2767
      %v2939 = vpop.f32.mrf.mxu0
      %v2940 = vadd.f32 0.0, %v2939
      %v2941 = vpop.f32.mrf.mxu0
      %v2942 = vpop.f32.mrf.mxu0
      %v2943 = vadd.f32 0.0, %v2942
      %v2944 = vpop.f32.mrf.mxu0
      %2945 = vmatprep.mubr.bf16.mxu0 %v2820
      %2946 = vmatmul.mubr.bf16.gmra.mxu0 %v2769
      %v2947 = vpop.f32.mrf.mxu0
      %v2948 = vadd.f32 0.0, %v2947
      %v2949 = vpop.f32.mrf.mxu0
      %v2950 = vpop.f32.mrf.mxu0
      %v2951 = vadd.f32 0.0, %v2950
      %v2952 = vpop.f32.mrf.mxu0
      %2953 = vmatprep.mubr.bf16.mxu0 %v2823
      %2954 = vmatmul.mubr.bf16.gmra.mxu0 %v2771
      %v2955 = vpop.f32.mrf.mxu0
      %v2956 = vadd.f32 0.0, %v2955
      %v2957 = vpop.f32.mrf.mxu0
      %v2958 = vpop.f32.mrf.mxu0
      %v2959 = vpop.f32.mrf.mxu0
      %2960 = vdwg.mxu0
      %v2961 = vpack.c.bf16 %v2863, %v2860
      %v2962 = vpack.c.bf16 %v2871, %v2868
      %v2963 = vpack.c.bf16 %v2879, %v2876
      %v2964 = vpack.c.bf16 %v2887, %v2884
      %v2965 = vpack.c.bf16 %v2895, %v2892
      %v2966 = vpack.c.bf16 %v2903, %v2900
      %v2967 = vpack.c.bf16 %v2911, %v2908
      %v2968 = vpack.c.bf16 %v2919, %v2916
      %v2969 = vpack.c.bf16 %v2927, %v2924
      %v2970 = vpack.c.bf16 %v2935, %v2932
      %v2971 = vpack.c.bf16 %v2943, %v2940
      %v2972 = vpack.c.bf16 %v2951, %v2948
      %v2973 = vpack.c.bf16 %v2956, %v2956
      %s2974 = scalar_lea.vmem %s4, 8
      %v2975 = vld [vmem:[%s2974] sm:$0xf]
      %v2977 = vsel %vm2289, %v2961, 0
      %v2980 = vsel %vm2289, %v2962, 0
      %v2983 = vsel %vm2289, %v2963, 0
      %v2986 = vsel %vm2289, %v2964, 0
      %v2989 = vsel %vm2289, %v2965, 0
      %v2992 = vsel %vm2289, %v2966, 0
      %v2995 = vsel %vm2289, %v2967, 0
      %v2998 = vsel %vm2289, %v2968, 0
      %v3001 = vsel %vm2289, %v2969, 0
      %v3004 = vsel %vm2289, %v2970, 0
      %v3007 = vsel %vm2289, %v2971, 0
      %v3010 = vsel %vm2289, %v2972, 0
      %v3013 = vsel %vm2289, %v2973, 0
      %v3016 = vsel %vm503, %v2975, 0
      %3018 = vmatprep.subr.bf16.mxu0 0
      %3019 = vmatpush1.bf16.msra.mxu0 0
      %3020 = vmatprep.subr.bf16.mxu0 0
      %3021 = vmatpush1.bf16.msra.mxu0 0
      %3022 = vmatprep.subr.bf16.mxu0 0
      %3023 = vmatpush1.bf16.msra.mxu0 0
      %3024 = vmatprep.subr.bf16.mxu0 0
      %3025 = vmatpush1.bf16.msra.mxu0 0
      %3026 = vmatprep.subr.bf16.mxu0 0
      %3027 = vmatpush1.bf16.msra.mxu0 0
      %3028 = vmatprep.subr.bf16.mxu0 0
      %3029 = vmatpush1.bf16.msra.mxu0 0
      %3030 = vmatprep.subr.bf16.mxu0 0
      %3031 = vmatpush1.bf16.msra.mxu0 0
      %3032 = vmatprep.subr.bf16.mxu0 0
      %3033 = vmatpush1.bf16.msra.mxu0 %v3016
      %3034 = vmatprep.subr.bf16.mxu0 0
      %3035 = vmatpush2.bf16.msra.mxu0 0
      %3036 = vmatprep.subr.bf16.mxu0 0
      %3037 = vmatpush2.bf16.msra.mxu0 0
      %3038 = vmatprep.subr.bf16.mxu0 0
      %3039 = vmatpush2.bf16.msra.mxu0 0
      %3040 = vmatprep.subr.bf16.mxu0 0
      %3041 = vmatpush2.bf16.msra.mxu0 0
      %3042 = vmatprep.subr.bf16.mxu0 0
      %3043 = vmatpush2.bf16.msra.mxu0 0
      %3044 = vmatprep.subr.bf16.mxu0 0
      %3045 = vmatpush2.bf16.msra.mxu0 0
      %3046 = vmatprep.subr.bf16.mxu0 0
      %3047 = vmatpush2.bf16.msra.mxu0 0
      %3048 = vmatprep.subr.bf16.mxu0 0
      %3049 = vmatpush2.bf16.msra.mxu0 0
      %3050 = vmatprep.mubr.bf16.mxu0 0
      %3051 = vmatmul.mubr.bf16.gmra.mxu0 %v2977
      %v3052 = vpop.f32.mrf.mxu0
      %v3053 = vadd.f32 0.0, %v3052
      %v3054 = vpop.f32.mrf.mxu0
      %v3055 = vpop.f32.mrf.mxu0
      %v3056 = vadd.f32 0.0, %v3055
      %v3057 = vpop.f32.mrf.mxu0
      %3058 = vmatprep.mubr.bf16.mxu0 0
      %3059 = vmatmul.mubr.bf16.gmra.mxu0 %v2980
      %v3060 = vpop.f32.mrf.mxu0
      %v3061 = vadd.f32 0.0, %v3060
      %v3062 = vpop.f32.mrf.mxu0
      %v3063 = vpop.f32.mrf.mxu0
      %v3064 = vadd.f32 0.0, %v3063
      %v3065 = vpop.f32.mrf.mxu0
      %3066 = vmatprep.mubr.bf16.mxu0 0
      %3067 = vmatmul.mubr.bf16.gmra.mxu0 %v2983
      %v3068 = vpop.f32.mrf.mxu0
      %v3069 = vadd.f32 0.0, %v3068
      %v3070 = vpop.f32.mrf.mxu0
      %v3071 = vpop.f32.mrf.mxu0
      %v3072 = vadd.f32 0.0, %v3071
      %v3073 = vpop.f32.mrf.mxu0
      %3074 = vmatprep.mubr.bf16.mxu0 0
      %3075 = vmatmul.mubr.bf16.gmra.mxu0 %v2986
      %v3076 = vpop.f32.mrf.mxu0
      %v3077 = vadd.f32 0.0, %v3076
      %v3078 = vpop.f32.mrf.mxu0
      %v3079 = vpop.f32.mrf.mxu0
      %v3080 = vadd.f32 0.0, %v3079
      %v3081 = vpop.f32.mrf.mxu0
      %3082 = vmatprep.mubr.bf16.mxu0 0
      %3083 = vmatmul.mubr.bf16.gmra.mxu0 %v2989
      %v3084 = vpop.f32.mrf.mxu0
      %v3085 = vadd.f32 0.0, %v3084
      %v3086 = vpop.f32.mrf.mxu0
      %v3087 = vpop.f32.mrf.mxu0
      %v3088 = vadd.f32 0.0, %v3087
      %v3089 = vpop.f32.mrf.mxu0
      %3090 = vmatprep.mubr.bf16.mxu0 0
      %3091 = vmatmul.mubr.bf16.gmra.mxu0 %v2992
      %v3092 = vpop.f32.mrf.mxu0
      %v3093 = vadd.f32 0.0, %v3092
      %v3094 = vpop.f32.mrf.mxu0
      %v3095 = vpop.f32.mrf.mxu0
      %v3096 = vadd.f32 0.0, %v3095
      %v3097 = vpop.f32.mrf.mxu0
      %3098 = vmatprep.mubr.bf16.mxu0 0
      %3099 = vmatmul.mubr.bf16.gmra.mxu0 %v2995
      %v3100 = vpop.f32.mrf.mxu0
      %v3101 = vadd.f32 0.0, %v3100
      %v3102 = vpop.f32.mrf.mxu0
      %v3103 = vpop.f32.mrf.mxu0
      %v3104 = vadd.f32 0.0, %v3103
      %v3105 = vpop.f32.mrf.mxu0
      %3106 = vmatprep.mubr.bf16.mxu0 0
      %3107 = vmatmul.mubr.bf16.gmra.mxu0 %v2998
      %v3108 = vpop.f32.mrf.mxu0
      %v3109 = vadd.f32 0.0, %v3108
      %v3110 = vpop.f32.mrf.mxu0
      %v3111 = vpop.f32.mrf.mxu0
      %v3112 = vadd.f32 0.0, %v3111
      %v3113 = vpop.f32.mrf.mxu0
      %3114 = vmatprep.mubr.bf16.mxu0 0
      %3115 = vmatmul.mubr.bf16.gmra.mxu0 %v3001
      %v3116 = vpop.f32.mrf.mxu0
      %v3117 = vadd.f32 0.0, %v3116
      %v3118 = vpop.f32.mrf.mxu0
      %v3119 = vpop.f32.mrf.mxu0
      %v3120 = vadd.f32 0.0, %v3119
      %v3121 = vpop.f32.mrf.mxu0
      %3122 = vmatprep.mubr.bf16.mxu0 0
      %3123 = vmatmul.mubr.bf16.gmra.mxu0 %v3004
      %v3124 = vpop.f32.mrf.mxu0
      %v3125 = vadd.f32 0.0, %v3124
      %v3126 = vpop.f32.mrf.mxu0
      %v3127 = vpop.f32.mrf.mxu0
      %v3128 = vadd.f32 0.0, %v3127
      %v3129 = vpop.f32.mrf.mxu0
      %3130 = vmatprep.mubr.bf16.mxu0 0
      %3131 = vmatmul.mubr.bf16.gmra.mxu0 %v3007
      %v3132 = vpop.f32.mrf.mxu0
      %v3133 = vadd.f32 0.0, %v3132
      %v3134 = vpop.f32.mrf.mxu0
      %v3135 = vpop.f32.mrf.mxu0
      %v3136 = vadd.f32 0.0, %v3135
      %v3137 = vpop.f32.mrf.mxu0
      %3138 = vmatprep.mubr.bf16.mxu0 0
      %3139 = vmatmul.mubr.bf16.gmra.mxu0 %v3010
      %v3140 = vpop.f32.mrf.mxu0
      %v3141 = vadd.f32 0.0, %v3140
      %v3142 = vpop.f32.mrf.mxu0
      %v3143 = vpop.f32.mrf.mxu0
      %v3144 = vadd.f32 0.0, %v3143
      %v3145 = vpop.f32.mrf.mxu0
      %3146 = vmatprep.mubr.bf16.mxu0 0
      %3147 = vmatmul.mubr.bf16.gmra.mxu0 %v3013
      %v3148 = vpop.f32.mrf.mxu0
      %v3149 = vadd.f32 0.0, %v3148
      %v3150 = vpop.f32.mrf.mxu0
      %v3151 = vpop.f32.mrf.mxu0
      %v3152 = vpop.f32.mrf.mxu0
      %3153 = vdwg.mxu0
      %v3154 = vadd.f32 %v2545, %v3053
      %v3155 = vadd.f32 %v2548, %v3056
      %v3156 = vadd.f32 %v2553, %v3061
      %v3157 = vadd.f32 %v2556, %v3064
      %v3158 = vadd.f32 %v2561, %v3069
      %v3159 = vadd.f32 %v2564, %v3072
      %v3160 = vadd.f32 %v2569, %v3077
      %v3161 = vadd.f32 %v2572, %v3080
      %v3162 = vadd.f32 %v2577, %v3085
      %v3163 = vadd.f32 %v2580, %v3088
      %v3164 = vadd.f32 %v2585, %v3093
      %v3165 = vadd.f32 %v2588, %v3096
      %v3166 = vadd.f32 %v2593, %v3101
      %v3167 = vadd.f32 %v2596, %v3104
      %v3168 = vadd.f32 %v2601, %v3109
      %v3169 = vadd.f32 %v2604, %v3112
      %v3170 = vadd.f32 %v2609, %v3117
      %v3171 = vadd.f32 %v2612, %v3120
      %v3172 = vadd.f32 %v2617, %v3125
      %v3173 = vadd.f32 %v2620, %v3128
      %v3174 = vadd.f32 %v2625, %v3133
      %v3175 = vadd.f32 %v2628, %v3136
      %v3176 = vadd.f32 %v2633, %v3141
      %v3177 = vadd.f32 %v2636, %v3144
      %v3178 = vadd.f32 %v2641, %v3149
      %s3179 = scalar_lea.vmem %s3, 600
      %v3180 = vld [vmem:[%s3179] sm:$0xff]
      %v3181 = vld [vmem:[%s3179 + $0x8] sm:$0xff]
      %v3182 = vld [vmem:[%s3179 + $0x10] sm:$0xff]
      %v3183 = vld [vmem:[%s3179 + $0x18] sm:$0xff]
      %v3184 = vld [vmem:[%s3179 + $0x20] sm:$0xff]
      %v3185 = vld [vmem:[%s3179 + $0x28] sm:$0xff]
      %v3186 = vld [vmem:[%s3179 + $0x30] sm:$0xff]
      %v3187 = vld [vmem:[%s3179 + $0x38] sm:$0xff]
      %v3188 = vld [vmem:[%s3179 + $0x40] sm:$0xff]
      %v3189 = vld [vmem:[%s3179 + $0x48] sm:$0xff]
      %v3190 = vld [vmem:[%s3179 + $0x50] sm:$0xff]
      %v3191 = vld [vmem:[%s3179 + $0x58] sm:$0xff]
      %v3192 = vld [vmem:[%s3179 + $0x60] sm:$0xff]
      %v3193 = vld [vmem:[%s3179 + $0x68] sm:$0xff]
      %v3194 = vld [vmem:[%s3179 + $0x70] sm:$0xff]
      %v3195 = vld [vmem:[%s3179 + $0x78] sm:$0xff]
      %v3196 = vld [vmem:[%s3179 + $0x80] sm:$0xff]
      %v3197 = vld [vmem:[%s3179 + $0x88] sm:$0xff]
      %v3198 = vld [vmem:[%s3179 + $0x90] sm:$0xff]
      %v3199 = vld [vmem:[%s3179 + $0x98] sm:$0xff]
      %v3200 = vld [vmem:[%s3179 + $0xa0] sm:$0xff]
      %v3201 = vld [vmem:[%s3179 + $0xa8] sm:$0xff]
      %v3202 = vld [vmem:[%s3179 + $0xb0] sm:$0xff]
      %v3203 = vld [vmem:[%s3179 + $0xb8] sm:$0xff]
      %v3204 = vld [vmem:[%s3179 + $0xc0] sm:$0x33]
      %v3230 = vunpack.c.l.b16 %v3180
      %v3231 = vunpack.c.h.b16 %v3180
      %v3232 = vunpack.c.l.b16 %v3181
      %v3233 = vunpack.c.h.b16 %v3181
      %v3234 = vunpack.c.l.b16 %v3182
      %v3235 = vunpack.c.h.b16 %v3182
      %v3236 = vunpack.c.l.b16 %v3183
      %v3237 = vunpack.c.h.b16 %v3183
      %v3238 = vunpack.c.l.b16 %v3184
      %v3239 = vunpack.c.h.b16 %v3184
      %v3240 = vunpack.c.l.b16 %v3185
      %v3241 = vunpack.c.h.b16 %v3185
      %v3242 = vunpack.c.l.b16 %v3186
      %v3243 = vunpack.c.h.b16 %v3186
      %v3244 = vunpack.c.l.b16 %v3187
      %v3245 = vunpack.c.h.b16 %v3187
      %v3246 = vunpack.c.l.b16 %v3188
      %v3247 = vunpack.c.h.b16 %v3188
      %v3248 = vunpack.c.l.b16 %v3189
      %v3249 = vunpack.c.h.b16 %v3189
      %v3250 = vunpack.c.l.b16 %v3190
      %v3251 = vunpack.c.h.b16 %v3190
      %v3252 = vunpack.c.l.b16 %v3191
      %v3253 = vunpack.c.h.b16 %v3191
      %v3254 = vunpack.c.l.b16 %v3192
      %v3255 = vunpack.c.h.b16 %v3192
      %v3256 = vunpack.c.l.b16 %v3193
      %v3257 = vunpack.c.h.b16 %v3193
      %v3258 = vunpack.c.l.b16 %v3194
      %v3259 = vunpack.c.h.b16 %v3194
      %v3260 = vunpack.c.l.b16 %v3195
      %v3261 = vunpack.c.h.b16 %v3195
      %v3262 = vunpack.c.l.b16 %v3196
      %v3263 = vunpack.c.h.b16 %v3196
      %v3264 = vunpack.c.l.b16 %v3197
      %v3265 = vunpack.c.h.b16 %v3197
      %v3266 = vunpack.c.l.b16 %v3198
      %v3267 = vunpack.c.h.b16 %v3198
      %v3268 = vunpack.c.l.b16 %v3199
      %v3269 = vunpack.c.h.b16 %v3199
      %v3270 = vunpack.c.l.b16 %v3200
      %v3271 = vunpack.c.h.b16 %v3200
      %v3272 = vunpack.c.l.b16 %v3201
      %v3273 = vunpack.c.h.b16 %v3201
      %v3274 = vunpack.c.l.b16 %v3202
      %v3275 = vunpack.c.h.b16 %v3202
      %v3276 = vunpack.c.l.b16 %v3203
      %v3277 = vunpack.c.h.b16 %v3203
      %v3278 = vunpack.c.l.b16 %v3204
      %v3279 = vunpack.c.h.b16 %v3204
      %v3280 = vpack.c.b16 %v3232, %v3230
      %v3281 = vpack.c.b16 %v3233, %v3231
      %v3282 = vpack.c.b16 %v3236, %v3234
      %v3283 = vpack.c.b16 %v3237, %v3235
      %v3284 = vpack.c.b16 %v3240, %v3238
      %v3285 = vpack.c.b16 %v3241, %v3239
      %v3286 = vpack.c.b16 %v3244, %v3242
      %v3287 = vpack.c.b16 %v3245, %v3243
      %v3288 = vpack.c.b16 %v3248, %v3246
      %v3289 = vpack.c.b16 %v3249, %v3247
      %v3290 = vpack.c.b16 %v3252, %v3250
      %v3291 = vpack.c.b16 %v3253, %v3251
      %v3292 = vpack.c.b16 %v3256, %v3254
      %v3293 = vpack.c.b16 %v3257, %v3255
      %v3294 = vpack.c.b16 %v3260, %v3258
      %v3295 = vpack.c.b16 %v3261, %v3259
      %v3296 = vpack.c.b16 %v3264, %v3262
      %v3297 = vpack.c.b16 %v3265, %v3263
      %v3298 = vpack.c.b16 %v3268, %v3266
      %v3299 = vpack.c.b16 %v3269, %v3267
      %v3300 = vpack.c.b16 %v3272, %v3270
      %v3301 = vpack.c.b16 %v3273, %v3271
      %v3302 = vpack.c.b16 %v3276, %v3274
      %v3303 = vpack.c.b16 %v3277, %v3275
      %v3304 = vpack.c.b16 %v3278, %v3278
      %v3305 = vpack.c.b16 %v3279, %v3279
      %v3320 = vsel %vm1765, %v3281, 0
      %v3323 = vsel %vm1765, %v3283, 0
      %v3326 = vsel %vm1765, %v3285, 0
      %v3329 = vsel %vm1765, %v3287, 0
      %v3332 = vsel %vm1765, %v3289, 0
      %v3335 = vsel %vm1765, %v3291, 0
      %v3338 = vsel %vm1765, %v3293, 0
      %v3341 = vsel %vm1765, %v3295, 0
      %v3344 = vsel %vm1765, %v3297, 0
      %v3347 = vsel %vm1765, %v3299, 0
      %v3350 = vsel %vm1765, %v3301, 0
      %v3353 = vsel %vm1765, %v3303, 0
      %v3356 = vsel %vm1765, %v3305, 0
      %3358 = vmatprep.subr.bf16.mxu0 0
      %3359 = vmatpush1.bf16.msra.mxu0 %v1620
      %3360 = vmatprep.subr.bf16.mxu0 0
      %3361 = vmatpush1.bf16.msra.mxu0 %v1619
      %3362 = vmatprep.subr.bf16.mxu0 0
      %3363 = vmatpush1.bf16.msra.mxu0 %v1618
      %3364 = vmatprep.subr.bf16.mxu0 0
      %3365 = vmatpush1.bf16.msra.mxu0 %v1617
      %3366 = vmatprep.subr.bf16.mxu0 0
      %3367 = vmatpush1.bf16.msra.mxu0 %v1616
      %3368 = vmatprep.subr.bf16.mxu0 0
      %3369 = vmatpush1.bf16.msra.mxu0 %v1615
      %3370 = vmatprep.subr.bf16.mxu0 0
      %3371 = vmatpush1.bf16.msra.mxu0 %v1614
      %3372 = vmatprep.subr.bf16.mxu0 0
      %3373 = vmatpush1.bf16.msra.mxu0 %v1613
      %3374 = vmatprep.subr.bf16.mxu0 0
      %3375 = vmatpush2.bf16.msra.mxu0 0
      %3376 = vmatprep.subr.bf16.mxu0 0
      %3377 = vmatpush2.bf16.msra.mxu0 0
      %3378 = vmatprep.subr.bf16.mxu0 0
      %3379 = vmatpush2.bf16.msra.mxu0 0
      %3380 = vmatprep.subr.bf16.mxu0 0
      %3381 = vmatpush2.bf16.msra.mxu0 %v1807
      %3382 = vmatprep.subr.bf16.mxu0 0
      %3383 = vmatpush2.bf16.msra.mxu0 %v1624
      %3384 = vmatprep.subr.bf16.mxu0 0
      %3385 = vmatpush2.bf16.msra.mxu0 %v1623
      %3386 = vmatprep.subr.bf16.mxu0 0
      %3387 = vmatpush2.bf16.msra.mxu0 %v1622
      %3388 = vmatprep.subr.bf16.mxu0 0
      %3389 = vmatpush2.bf16.msra.mxu0 %v1621
      %3390 = vmatprep.mubr.bf16.mxu0 %v3320
      %3391 = vmatmul.mubr.bf16.gmra.mxu0 %v3280
      %v3392 = vpop.f32.mrf.mxu0
      %v3393 = vadd.f32 0.0, %v3392
      %v3394 = vpop.f32.mrf.mxu0
      %v3395 = vpop.f32.mrf.mxu0
      %v3396 = vadd.f32 0.0, %v3395
      %v3397 = vpop.f32.mrf.mxu0
      %3398 = vmatprep.mubr.bf16.mxu0 %v3323
      %3399 = vmatmul.mubr.bf16.gmra.mxu0 %v3282
      %v3400 = vpop.f32.mrf.mxu0
      %v3401 = vadd.f32 0.0, %v3400
      %v3402 = vpop.f32.mrf.mxu0
      %v3403 = vpop.f32.mrf.mxu0
      %v3404 = vadd.f32 0.0, %v3403
      %v3405 = vpop.f32.mrf.mxu0
      %3406 = vmatprep.mubr.bf16.mxu0 %v3326
      %3407 = vmatmul.mubr.bf16.gmra.mxu0 %v3284
      %v3408 = vpop.f32.mrf.mxu0
      %v3409 = vadd.f32 0.0, %v3408
      %v3410 = vpop.f32.mrf.mxu0
      %v3411 = vpop.f32.mrf.mxu0
      %v3412 = vadd.f32 0.0, %v3411
      %v3413 = vpop.f32.mrf.mxu0
      %3414 = vmatprep.mubr.bf16.mxu0 %v3329
      %3415 = vmatmul.mubr.bf16.gmra.mxu0 %v3286
      %v3416 = vpop.f32.mrf.mxu0
      %v3417 = vadd.f32 0.0, %v3416
      %v3418 = vpop.f32.mrf.mxu0
      %v3419 = vpop.f32.mrf.mxu0
      %v3420 = vadd.f32 0.0, %v3419
      %v3421 = vpop.f32.mrf.mxu0
      %3422 = vmatprep.mubr.bf16.mxu0 %v3332
      %3423 = vmatmul.mubr.bf16.gmra.mxu0 %v3288
      %v3424 = vpop.f32.mrf.mxu0
      %v3425 = vadd.f32 0.0, %v3424
      %v3426 = vpop.f32.mrf.mxu0
      %v3427 = vpop.f32.mrf.mxu0
      %v3428 = vadd.f32 0.0, %v3427
      %v3429 = vpop.f32.mrf.mxu0
      %3430 = vmatprep.mubr.bf16.mxu0 %v3335
      %3431 = vmatmul.mubr.bf16.gmra.mxu0 %v3290
      %v3432 = vpop.f32.mrf.mxu0
      %v3433 = vadd.f32 0.0, %v3432
      %v3434 = vpop.f32.mrf.mxu0
      %v3435 = vpop.f32.mrf.mxu0
      %v3436 = vadd.f32 0.0, %v3435
      %v3437 = vpop.f32.mrf.mxu0
      %3438 = vmatprep.mubr.bf16.mxu0 %v3338
      %3439 = vmatmul.mubr.bf16.gmra.mxu0 %v3292
      %v3440 = vpop.f32.mrf.mxu0
      %v3441 = vadd.f32 0.0, %v3440
      %v3442 = vpop.f32.mrf.mxu0
      %v3443 = vpop.f32.mrf.mxu0
      %v3444 = vadd.f32 0.0, %v3443
      %v3445 = vpop.f32.mrf.mxu0
      %3446 = vmatprep.mubr.bf16.mxu0 %v3341
      %3447 = vmatmul.mubr.bf16.gmra.mxu0 %v3294
      %v3448 = vpop.f32.mrf.mxu0
      %v3449 = vadd.f32 0.0, %v3448
      %v3450 = vpop.f32.mrf.mxu0
      %v3451 = vpop.f32.mrf.mxu0
      %v3452 = vadd.f32 0.0, %v3451
      %v3453 = vpop.f32.mrf.mxu0
      %3454 = vmatprep.mubr.bf16.mxu0 %v3344
      %3455 = vmatmul.mubr.bf16.gmra.mxu0 %v3296
      %v3456 = vpop.f32.mrf.mxu0
      %v3457 = vadd.f32 0.0, %v3456
      %v3458 = vpop.f32.mrf.mxu0
      %v3459 = vpop.f32.mrf.mxu0
      %v3460 = vadd.f32 0.0, %v3459
      %v3461 = vpop.f32.mrf.mxu0
      %3462 = vmatprep.mubr.bf16.mxu0 %v3347
      %3463 = vmatmul.mubr.bf16.gmra.mxu0 %v3298
      %v3464 = vpop.f32.mrf.mxu0
      %v3465 = vadd.f32 0.0, %v3464
      %v3466 = vpop.f32.mrf.mxu0
      %v3467 = vpop.f32.mrf.mxu0
      %v3468 = vadd.f32 0.0, %v3467
      %v3469 = vpop.f32.mrf.mxu0
      %3470 = vmatprep.mubr.bf16.mxu0 %v3350
      %3471 = vmatmul.mubr.bf16.gmra.mxu0 %v3300
      %v3472 = vpop.f32.mrf.mxu0
      %v3473 = vadd.f32 0.0, %v3472
      %v3474 = vpop.f32.mrf.mxu0
      %v3475 = vpop.f32.mrf.mxu0
      %v3476 = vadd.f32 0.0, %v3475
      %v3477 = vpop.f32.mrf.mxu0
      %3478 = vmatprep.mubr.bf16.mxu0 %v3353
      %3479 = vmatmul.mubr.bf16.gmra.mxu0 %v3302
      %v3480 = vpop.f32.mrf.mxu0
      %v3481 = vadd.f32 0.0, %v3480
      %v3482 = vpop.f32.mrf.mxu0
      %v3483 = vpop.f32.mrf.mxu0
      %v3484 = vadd.f32 0.0, %v3483
      %v3485 = vpop.f32.mrf.mxu0
      %3486 = vmatprep.mubr.bf16.mxu0 %v3356
      %3487 = vmatmul.mubr.bf16.gmra.mxu0 %v3304
      %v3488 = vpop.f32.mrf.mxu0
      %v3489 = vadd.f32 0.0, %v3488
      %v3490 = vpop.f32.mrf.mxu0
      %v3491 = vpop.f32.mrf.mxu0
      %v3492 = vpop.f32.mrf.mxu0
      %3493 = vdwg.mxu0
      %v3494 = vpack.c.bf16 %v3396, %v3393
      %v3495 = vpack.c.bf16 %v3404, %v3401
      %v3496 = vpack.c.bf16 %v3412, %v3409
      %v3497 = vpack.c.bf16 %v3420, %v3417
      %v3498 = vpack.c.bf16 %v3428, %v3425
      %v3499 = vpack.c.bf16 %v3436, %v3433
      %v3500 = vpack.c.bf16 %v3444, %v3441
      %v3501 = vpack.c.bf16 %v3452, %v3449
      %v3502 = vpack.c.bf16 %v3460, %v3457
      %v3503 = vpack.c.bf16 %v3468, %v3465
      %v3504 = vpack.c.bf16 %v3476, %v3473
      %v3505 = vpack.c.bf16 %v3484, %v3481
      %v3506 = vpack.c.bf16 %v3489, %v3489
      %s3507 = scalar_lea.vmem %s4, 12
      %v3508 = vld [vmem:[%s3507] sm:$0xf]
      %v3510 = vsel %vm2289, %v3494, 0
      %v3513 = vsel %vm2289, %v3495, 0
      %v3516 = vsel %vm2289, %v3496, 0
      %v3519 = vsel %vm2289, %v3497, 0
      %v3522 = vsel %vm2289, %v3498, 0
      %v3525 = vsel %vm2289, %v3499, 0
      %v3528 = vsel %vm2289, %v3500, 0
      %v3531 = vsel %vm2289, %v3501, 0
      %v3534 = vsel %vm2289, %v3502, 0
      %v3537 = vsel %vm2289, %v3503, 0
      %v3540 = vsel %vm2289, %v3504, 0
      %v3543 = vsel %vm2289, %v3505, 0
      %v3546 = vsel %vm2289, %v3506, 0
      %v3549 = vsel %vm503, %v3508, 0
      %3551 = vmatprep.subr.bf16.mxu0 0
      %3552 = vmatpush1.bf16.msra.mxu0 0
      %3553 = vmatprep.subr.bf16.mxu0 0
      %3554 = vmatpush1.bf16.msra.mxu0 0
      %3555 = vmatprep.subr.bf16.mxu0 0
      %3556 = vmatpush1.bf16.msra.mxu0 0
      %3557 = vmatprep.subr.bf16.mxu0 0
      %3558 = vmatpush1.bf16.msra.mxu0 0
      %3559 = vmatprep.subr.bf16.mxu0 0
      %3560 = vmatpush1.bf16.msra.mxu0 0
      %3561 = vmatprep.subr.bf16.mxu0 0
      %3562 = vmatpush1.bf16.msra.mxu0 0
      %3563 = vmatprep.subr.bf16.mxu0 0
      %3564 = vmatpush1.bf16.msra.mxu0 0
      %3565 = vmatprep.subr.bf16.mxu0 0
      %3566 = vmatpush1.bf16.msra.mxu0 %v3549
      %3567 = vmatprep.subr.bf16.mxu0 0
      %3568 = vmatpush2.bf16.msra.mxu0 0
      %3569 = vmatprep.subr.bf16.mxu0 0
      %3570 = vmatpush2.bf16.msra.mxu0 0
      %3571 = vmatprep.subr.bf16.mxu0 0
      %3572 = vmatpush2.bf16.msra.mxu0 0
      %3573 = vmatprep.subr.bf16.mxu0 0
      %3574 = vmatpush2.bf16.msra.mxu0 0
      %3575 = vmatprep.subr.bf16.mxu0 0
      %3576 = vmatpush2.bf16.msra.mxu0 0
      %3577 = vmatprep.subr.bf16.mxu0 0
      %3578 = vmatpush2.bf16.msra.mxu0 0
      %3579 = vmatprep.subr.bf16.mxu0 0
      %3580 = vmatpush2.bf16.msra.mxu0 0
      %3581 = vmatprep.subr.bf16.mxu0 0
      %3582 = vmatpush2.bf16.msra.mxu0 0
      %3583 = vmatprep.mubr.bf16.mxu0 0
      %3584 = vmatmul.mubr.bf16.gmra.mxu0 %v3510
      %v3585 = vpop.f32.mrf.mxu0
      %v3586 = vadd.f32 0.0, %v3585
      %v3587 = vpop.f32.mrf.mxu0
      %v3588 = vpop.f32.mrf.mxu0
      %v3589 = vadd.f32 0.0, %v3588
      %v3590 = vpop.f32.mrf.mxu0
      %3591 = vmatprep.mubr.bf16.mxu0 0
      %3592 = vmatmul.mubr.bf16.gmra.mxu0 %v3513
      %v3593 = vpop.f32.mrf.mxu0
      %v3594 = vadd.f32 0.0, %v3593
      %v3595 = vpop.f32.mrf.mxu0
      %v3596 = vpop.f32.mrf.mxu0
      %v3597 = vadd.f32 0.0, %v3596
      %v3598 = vpop.f32.mrf.mxu0
      %3599 = vmatprep.mubr.bf16.mxu0 0
      %3600 = vmatmul.mubr.bf16.gmra.mxu0 %v3516
      %v3601 = vpop.f32.mrf.mxu0
      %v3602 = vadd.f32 0.0, %v3601
      %v3603 = vpop.f32.mrf.mxu0
      %v3604 = vpop.f32.mrf.mxu0
      %v3605 = vadd.f32 0.0, %v3604
      %v3606 = vpop.f32.mrf.mxu0
      %3607 = vmatprep.mubr.bf16.mxu0 0
      %3608 = vmatmul.mubr.bf16.gmra.mxu0 %v3519
      %v3609 = vpop.f32.mrf.mxu0
      %v3610 = vadd.f32 0.0, %v3609
      %v3611 = vpop.f32.mrf.mxu0
      %v3612 = vpop.f32.mrf.mxu0
      %v3613 = vadd.f32 0.0, %v3612
      %v3614 = vpop.f32.mrf.mxu0
      %3615 = vmatprep.mubr.bf16.mxu0 0
      %3616 = vmatmul.mubr.bf16.gmra.mxu0 %v3522
      %v3617 = vpop.f32.mrf.mxu0
      %v3618 = vadd.f32 0.0, %v3617
      %v3619 = vpop.f32.mrf.mxu0
      %v3620 = vpop.f32.mrf.mxu0
      %v3621 = vadd.f32 0.0, %v3620
      %v3622 = vpop.f32.mrf.mxu0
      %3623 = vmatprep.mubr.bf16.mxu0 0
      %3624 = vmatmul.mubr.bf16.gmra.mxu0 %v3525
      %v3625 = vpop.f32.mrf.mxu0
      %v3626 = vadd.f32 0.0, %v3625
      %v3627 = vpop.f32.mrf.mxu0
      %v3628 = vpop.f32.mrf.mxu0
      %v3629 = vadd.f32 0.0, %v3628
      %v3630 = vpop.f32.mrf.mxu0
      %3631 = vmatprep.mubr.bf16.mxu0 0
      %3632 = vmatmul.mubr.bf16.gmra.mxu0 %v3528
      %v3633 = vpop.f32.mrf.mxu0
      %v3634 = vadd.f32 0.0, %v3633
      %v3635 = vpop.f32.mrf.mxu0
      %v3636 = vpop.f32.mrf.mxu0
      %v3637 = vadd.f32 0.0, %v3636
      %v3638 = vpop.f32.mrf.mxu0
      %3639 = vmatprep.mubr.bf16.mxu0 0
      %3640 = vmatmul.mubr.bf16.gmra.mxu0 %v3531
      %v3641 = vpop.f32.mrf.mxu0
      %v3642 = vadd.f32 0.0, %v3641
      %v3643 = vpop.f32.mrf.mxu0
      %v3644 = vpop.f32.mrf.mxu0
      %v3645 = vadd.f32 0.0, %v3644
      %v3646 = vpop.f32.mrf.mxu0
      %3647 = vmatprep.mubr.bf16.mxu0 0
      %3648 = vmatmul.mubr.bf16.gmra.mxu0 %v3534
      %v3649 = vpop.f32.mrf.mxu0
      %v3650 = vadd.f32 0.0, %v3649
      %v3651 = vpop.f32.mrf.mxu0
      %v3652 = vpop.f32.mrf.mxu0
      %v3653 = vadd.f32 0.0, %v3652
      %v3654 = vpop.f32.mrf.mxu0
      %3655 = vmatprep.mubr.bf16.mxu0 0
      %3656 = vmatmul.mubr.bf16.gmra.mxu0 %v3537
      %v3657 = vpop.f32.mrf.mxu0
      %v3658 = vadd.f32 0.0, %v3657
      %v3659 = vpop.f32.mrf.mxu0
      %v3660 = vpop.f32.mrf.mxu0
      %v3661 = vadd.f32 0.0, %v3660
      %v3662 = vpop.f32.mrf.mxu0
      %3663 = vmatprep.mubr.bf16.mxu0 0
      %3664 = vmatmul.mubr.bf16.gmra.mxu0 %v3540
      %v3665 = vpop.f32.mrf.mxu0
      %v3666 = vadd.f32 0.0, %v3665
      %v3667 = vpop.f32.mrf.mxu0
      %v3668 = vpop.f32.mrf.mxu0
      %v3669 = vadd.f32 0.0, %v3668
      %v3670 = vpop.f32.mrf.mxu0
      %3671 = vmatprep.mubr.bf16.mxu0 0
      %3672 = vmatmul.mubr.bf16.gmra.mxu0 %v3543
      %v3673 = vpop.f32.mrf.mxu0
      %v3674 = vadd.f32 0.0, %v3673
      %v3675 = vpop.f32.mrf.mxu0
      %v3676 = vpop.f32.mrf.mxu0
      %v3677 = vadd.f32 0.0, %v3676
      %v3678 = vpop.f32.mrf.mxu0
      %3679 = vmatprep.mubr.bf16.mxu0 0
      %3680 = vmatmul.mubr.bf16.gmra.mxu0 %v3546
      %v3681 = vpop.f32.mrf.mxu0
      %v3682 = vadd.f32 0.0, %v3681
      %v3683 = vpop.f32.mrf.mxu0
      %v3684 = vpop.f32.mrf.mxu0
      %v3685 = vpop.f32.mrf.mxu0
      %3686 = vdwg.mxu0
      %v3687 = vadd.f32 %v3154, %v3586
      %v3688 = vadd.f32 %v3155, %v3589
      %v3689 = vadd.f32 %v3156, %v3594
      %v3690 = vadd.f32 %v3157, %v3597
      %v3691 = vadd.f32 %v3158, %v3602
      %v3692 = vadd.f32 %v3159, %v3605
      %v3693 = vadd.f32 %v3160, %v3610
      %v3694 = vadd.f32 %v3161, %v3613
      %v3695 = vadd.f32 %v3162, %v3618
      %v3696 = vadd.f32 %v3163, %v3621
      %v3697 = vadd.f32 %v3164, %v3626
      %v3698 = vadd.f32 %v3165, %v3629
      %v3699 = vadd.f32 %v3166, %v3634
      %v3700 = vadd.f32 %v3167, %v3637
      %v3701 = vadd.f32 %v3168, %v3642
      %v3702 = vadd.f32 %v3169, %v3645
      %v3703 = vadd.f32 %v3170, %v3650
      %v3704 = vadd.f32 %v3171, %v3653
      %v3705 = vadd.f32 %v3172, %v3658
      %v3706 = vadd.f32 %v3173, %v3661
      %v3707 = vadd.f32 %v3174, %v3666
      %v3708 = vadd.f32 %v3175, %v3669
      %v3709 = vadd.f32 %v3176, %v3674
      %v3710 = vadd.f32 %v3177, %v3677
      %v3711 = vadd.f32 %v3178, %v3682
      %s3712 = scalar_lea.vmem %s3, 800
      %v3713 = vld [vmem:[%s3712] sm:$0xff]
      %v3714 = vld [vmem:[%s3712 + $0x8] sm:$0xff]
      %v3715 = vld [vmem:[%s3712 + $0x10] sm:$0xff]
      %v3716 = vld [vmem:[%s3712 + $0x18] sm:$0xff]
      %v3717 = vld [vmem:[%s3712 + $0x20] sm:$0xff]
      %v3718 = vld [vmem:[%s3712 + $0x28] sm:$0xff]
      %v3719 = vld [vmem:[%s3712 + $0x30] sm:$0xff]
      %v3720 = vld [vmem:[%s3712 + $0x38] sm:$0xff]
      %v3721 = vld [vmem:[%s3712 + $0x40] sm:$0xff]
      %v3722 = vld [vmem:[%s3712 + $0x48] sm:$0xff]
      %v3723 = vld [vmem:[%s3712 + $0x50] sm:$0xff]
      %v3724 = vld [vmem:[%s3712 + $0x58] sm:$0xff]
      %v3725 = vld [vmem:[%s3712 + $0x60] sm:$0xff]
      %v3726 = vld [vmem:[%s3712 + $0x68] sm:$0xff]
      %v3727 = vld [vmem:[%s3712 + $0x70] sm:$0xff]
      %v3728 = vld [vmem:[%s3712 + $0x78] sm:$0xff]
      %v3729 = vld [vmem:[%s3712 + $0x80] sm:$0xff]
      %v3730 = vld [vmem:[%s3712 + $0x88] sm:$0xff]
      %v3731 = vld [vmem:[%s3712 + $0x90] sm:$0xff]
      %v3732 = vld [vmem:[%s3712 + $0x98] sm:$0xff]
      %v3733 = vld [vmem:[%s3712 + $0xa0] sm:$0xff]
      %v3734 = vld [vmem:[%s3712 + $0xa8] sm:$0xff]
      %v3735 = vld [vmem:[%s3712 + $0xb0] sm:$0xff]
      %v3736 = vld [vmem:[%s3712 + $0xb8] sm:$0xff]
      %v3737 = vld [vmem:[%s3712 + $0xc0] sm:$0x33]
      %v3763 = vunpack.c.l.b16 %v3713
      %v3764 = vunpack.c.h.b16 %v3713
      %v3765 = vunpack.c.l.b16 %v3714
      %v3766 = vunpack.c.h.b16 %v3714
      %v3767 = vunpack.c.l.b16 %v3715
      %v3768 = vunpack.c.h.b16 %v3715
      %v3769 = vunpack.c.l.b16 %v3716
      %v3770 = vunpack.c.h.b16 %v3716
      %v3771 = vunpack.c.l.b16 %v3717
      %v3772 = vunpack.c.h.b16 %v3717
      %v3773 = vunpack.c.l.b16 %v3718
      %v3774 = vunpack.c.h.b16 %v3718
      %v3775 = vunpack.c.l.b16 %v3719
      %v3776 = vunpack.c.h.b16 %v3719
      %v3777 = vunpack.c.l.b16 %v3720
      %v3778 = vunpack.c.h.b16 %v3720
      %v3779 = vunpack.c.l.b16 %v3721
      %v3780 = vunpack.c.h.b16 %v3721
      %v3781 = vunpack.c.l.b16 %v3722
      %v3782 = vunpack.c.h.b16 %v3722
      %v3783 = vunpack.c.l.b16 %v3723
      %v3784 = vunpack.c.h.b16 %v3723
      %v3785 = vunpack.c.l.b16 %v3724
      %v3786 = vunpack.c.h.b16 %v3724
      %v3787 = vunpack.c.l.b16 %v3725
      %v3788 = vunpack.c.h.b16 %v3725
      %v3789 = vunpack.c.l.b16 %v3726
      %v3790 = vunpack.c.h.b16 %v3726
      %v3791 = vunpack.c.l.b16 %v3727
      %v3792 = vunpack.c.h.b16 %v3727
      %v3793 = vunpack.c.l.b16 %v3728
      %v3794 = vunpack.c.h.b16 %v3728
      %v3795 = vunpack.c.l.b16 %v3729
      %v3796 = vunpack.c.h.b16 %v3729
      %v3797 = vunpack.c.l.b16 %v3730
      %v3798 = vunpack.c.h.b16 %v3730
      %v3799 = vunpack.c.l.b16 %v3731
      %v3800 = vunpack.c.h.b16 %v3731
      %v3801 = vunpack.c.l.b16 %v3732
      %v3802 = vunpack.c.h.b16 %v3732
      %v3803 = vunpack.c.l.b16 %v3733
      %v3804 = vunpack.c.h.b16 %v3733
      %v3805 = vunpack.c.l.b16 %v3734
      %v3806 = vunpack.c.h.b16 %v3734
      %v3807 = vunpack.c.l.b16 %v3735
      %v3808 = vunpack.c.h.b16 %v3735
      %v3809 = vunpack.c.l.b16 %v3736
      %v3810 = vunpack.c.h.b16 %v3736
      %v3811 = vunpack.c.l.b16 %v3737
      %v3812 = vunpack.c.h.b16 %v3737
      %v3813 = vpack.c.b16 %v3765, %v3763
      %v3814 = vpack.c.b16 %v3766, %v3764
      %v3815 = vpack.c.b16 %v3769, %v3767
      %v3816 = vpack.c.b16 %v3770, %v3768
      %v3817 = vpack.c.b16 %v3773, %v3771
      %v3818 = vpack.c.b16 %v3774, %v3772
      %v3819 = vpack.c.b16 %v3777, %v3775
      %v3820 = vpack.c.b16 %v3778, %v3776
      %v3821 = vpack.c.b16 %v3781, %v3779
      %v3822 = vpack.c.b16 %v3782, %v3780
      %v3823 = vpack.c.b16 %v3785, %v3783
      %v3824 = vpack.c.b16 %v3786, %v3784
      %v3825 = vpack.c.b16 %v3789, %v3787
      %v3826 = vpack.c.b16 %v3790, %v3788
      %v3827 = vpack.c.b16 %v3793, %v3791
      %v3828 = vpack.c.b16 %v3794, %v3792
      %v3829 = vpack.c.b16 %v3797, %v3795
      %v3830 = vpack.c.b16 %v3798, %v3796
      %v3831 = vpack.c.b16 %v3801, %v3799
      %v3832 = vpack.c.b16 %v3802, %v3800
      %v3833 = vpack.c.b16 %v3805, %v3803
      %v3834 = vpack.c.b16 %v3806, %v3804
      %v3835 = vpack.c.b16 %v3809, %v3807
      %v3836 = vpack.c.b16 %v3810, %v3808
      %v3837 = vpack.c.b16 %v3811, %v3811
      %v3838 = vpack.c.b16 %v3812, %v3812
      %v3853 = vsel %vm1765, %v3814, 0
      %v3856 = vsel %vm1765, %v3816, 0
      %v3859 = vsel %vm1765, %v3818, 0
      %v3862 = vsel %vm1765, %v3820, 0
      %v3865 = vsel %vm1765, %v3822, 0
      %v3868 = vsel %vm1765, %v3824, 0
      %v3871 = vsel %vm1765, %v3826, 0
      %v3874 = vsel %vm1765, %v3828, 0
      %v3877 = vsel %vm1765, %v3830, 0
      %v3880 = vsel %vm1765, %v3832, 0
      %v3883 = vsel %vm1765, %v3834, 0
      %v3886 = vsel %vm1765, %v3836, 0
      %v3889 = vsel %vm1765, %v3838, 0
      %3891 = vmatprep.subr.bf16.mxu0 0
      %3892 = vmatpush1.bf16.msra.mxu0 %v1620
      %3893 = vmatprep.subr.bf16.mxu0 0
      %3894 = vmatpush1.bf16.msra.mxu0 %v1619
      %3895 = vmatprep.subr.bf16.mxu0 0
      %3896 = vmatpush1.bf16.msra.mxu0 %v1618
      %3897 = vmatprep.subr.bf16.mxu0 0
      %3898 = vmatpush1.bf16.msra.mxu0 %v1617
      %3899 = vmatprep.subr.bf16.mxu0 0
      %3900 = vmatpush1.bf16.msra.mxu0 %v1616
      %3901 = vmatprep.subr.bf16.mxu0 0
      %3902 = vmatpush1.bf16.msra.mxu0 %v1615
      %3903 = vmatprep.subr.bf16.mxu0 0
      %3904 = vmatpush1.bf16.msra.mxu0 %v1614
      %3905 = vmatprep.subr.bf16.mxu0 0
      %3906 = vmatpush1.bf16.msra.mxu0 %v1613
      %3907 = vmatprep.subr.bf16.mxu0 0
      %3908 = vmatpush2.bf16.msra.mxu0 0
      %3909 = vmatprep.subr.bf16.mxu0 0
      %3910 = vmatpush2.bf16.msra.mxu0 0
      %3911 = vmatprep.subr.bf16.mxu0 0
      %3912 = vmatpush2.bf16.msra.mxu0 0
      %3913 = vmatprep.subr.bf16.mxu0 0
      %3914 = vmatpush2.bf16.msra.mxu0 %v1807
      %3915 = vmatprep.subr.bf16.mxu0 0
      %3916 = vmatpush2.bf16.msra.mxu0 %v1624
      %3917 = vmatprep.subr.bf16.mxu0 0
      %3918 = vmatpush2.bf16.msra.mxu0 %v1623
      %3919 = vmatprep.subr.bf16.mxu0 0
      %3920 = vmatpush2.bf16.msra.mxu0 %v1622
      %3921 = vmatprep.subr.bf16.mxu0 0
      %3922 = vmatpush2.bf16.msra.mxu0 %v1621
      %3923 = vmatprep.mubr.bf16.mxu0 %v3853
      %3924 = vmatmul.mubr.bf16.gmra.mxu0 %v3813
      %v3925 = vpop.f32.mrf.mxu0
      %v3926 = vadd.f32 0.0, %v3925
      %v3927 = vpop.f32.mrf.mxu0
      %v3928 = vpop.f32.mrf.mxu0
      %v3929 = vadd.f32 0.0, %v3928
      %v3930 = vpop.f32.mrf.mxu0
      %3931 = vmatprep.mubr.bf16.mxu0 %v3856
      %3932 = vmatmul.mubr.bf16.gmra.mxu0 %v3815
      %v3933 = vpop.f32.mrf.mxu0
      %v3934 = vadd.f32 0.0, %v3933
      %v3935 = vpop.f32.mrf.mxu0
      %v3936 = vpop.f32.mrf.mxu0
      %v3937 = vadd.f32 0.0, %v3936
      %v3938 = vpop.f32.mrf.mxu0
      %3939 = vmatprep.mubr.bf16.mxu0 %v3859
      %3940 = vmatmul.mubr.bf16.gmra.mxu0 %v3817
      %v3941 = vpop.f32.mrf.mxu0
      %v3942 = vadd.f32 0.0, %v3941
      %v3943 = vpop.f32.mrf.mxu0
      %v3944 = vpop.f32.mrf.mxu0
      %v3945 = vadd.f32 0.0, %v3944
      %v3946 = vpop.f32.mrf.mxu0
      %3947 = vmatprep.mubr.bf16.mxu0 %v3862
      %3948 = vmatmul.mubr.bf16.gmra.mxu0 %v3819
      %v3949 = vpop.f32.mrf.mxu0
      %v3950 = vadd.f32 0.0, %v3949
      %v3951 = vpop.f32.mrf.mxu0
      %v3952 = vpop.f32.mrf.mxu0
      %v3953 = vadd.f32 0.0, %v3952
      %v3954 = vpop.f32.mrf.mxu0
      %3955 = vmatprep.mubr.bf16.mxu0 %v3865
      %3956 = vmatmul.mubr.bf16.gmra.mxu0 %v3821
      %v3957 = vpop.f32.mrf.mxu0
      %v3958 = vadd.f32 0.0, %v3957
      %v3959 = vpop.f32.mrf.mxu0
      %v3960 = vpop.f32.mrf.mxu0
      %v3961 = vadd.f32 0.0, %v3960
      %v3962 = vpop.f32.mrf.mxu0
      %3963 = vmatprep.mubr.bf16.mxu0 %v3868
      %3964 = vmatmul.mubr.bf16.gmra.mxu0 %v3823
      %v3965 = vpop.f32.mrf.mxu0
      %v3966 = vadd.f32 0.0, %v3965
      %v3967 = vpop.f32.mrf.mxu0
      %v3968 = vpop.f32.mrf.mxu0
      %v3969 = vadd.f32 0.0, %v3968
      %v3970 = vpop.f32.mrf.mxu0
      %3971 = vmatprep.mubr.bf16.mxu0 %v3871
      %3972 = vmatmul.mubr.bf16.gmra.mxu0 %v3825
      %v3973 = vpop.f32.mrf.mxu0
      %v3974 = vadd.f32 0.0, %v3973
      %v3975 = vpop.f32.mrf.mxu0
      %v3976 = vpop.f32.mrf.mxu0
      %v3977 = vadd.f32 0.0, %v3976
      %v3978 = vpop.f32.mrf.mxu0
      %3979 = vmatprep.mubr.bf16.mxu0 %v3874
      %3980 = vmatmul.mubr.bf16.gmra.mxu0 %v3827
      %v3981 = vpop.f32.mrf.mxu0
      %v3982 = vadd.f32 0.0, %v3981
      %v3983 = vpop.f32.mrf.mxu0
      %v3984 = vpop.f32.mrf.mxu0
      %v3985 = vadd.f32 0.0, %v3984
      %v3986 = vpop.f32.mrf.mxu0
      %3987 = vmatprep.mubr.bf16.mxu0 %v3877
      %3988 = vmatmul.mubr.bf16.gmra.mxu0 %v3829
      %v3989 = vpop.f32.mrf.mxu0
      %v3990 = vadd.f32 0.0, %v3989
      %v3991 = vpop.f32.mrf.mxu0
      %v3992 = vpop.f32.mrf.mxu0
      %v3993 = vadd.f32 0.0, %v3992
      %v3994 = vpop.f32.mrf.mxu0
      %3995 = vmatprep.mubr.bf16.mxu0 %v3880
      %3996 = vmatmul.mubr.bf16.gmra.mxu0 %v3831
      %v3997 = vpop.f32.mrf.mxu0
      %v3998 = vadd.f32 0.0, %v3997
      %v3999 = vpop.f32.mrf.mxu0
      %v4000 = vpop.f32.mrf.mxu0
      %v4001 = vadd.f32 0.0, %v4000
      %v4002 = vpop.f32.mrf.mxu0
      %4003 = vmatprep.mubr.bf16.mxu0 %v3883
      %4004 = vmatmul.mubr.bf16.gmra.mxu0 %v3833
      %v4005 = vpop.f32.mrf.mxu0
      %v4006 = vadd.f32 0.0, %v4005
      %v4007 = vpop.f32.mrf.mxu0
      %v4008 = vpop.f32.mrf.mxu0
      %v4009 = vadd.f32 0.0, %v4008
      %v4010 = vpop.f32.mrf.mxu0
      %4011 = vmatprep.mubr.bf16.mxu0 %v3886
      %4012 = vmatmul.mubr.bf16.gmra.mxu0 %v3835
      %v4013 = vpop.f32.mrf.mxu0
      %v4014 = vadd.f32 0.0, %v4013
      %v4015 = vpop.f32.mrf.mxu0
      %v4016 = vpop.f32.mrf.mxu0
      %v4017 = vadd.f32 0.0, %v4016
      %v4018 = vpop.f32.mrf.mxu0
      %4019 = vmatprep.mubr.bf16.mxu0 %v3889
      %4020 = vmatmul.mubr.bf16.gmra.mxu0 %v3837
      %v4021 = vpop.f32.mrf.mxu0
      %v4022 = vadd.f32 0.0, %v4021
      %v4023 = vpop.f32.mrf.mxu0
      %v4024 = vpop.f32.mrf.mxu0
      %v4025 = vpop.f32.mrf.mxu0
      %4026 = vdwg.mxu0
      %v4027 = vpack.c.bf16 %v3929, %v3926
      %v4028 = vpack.c.bf16 %v3937, %v3934
      %v4029 = vpack.c.bf16 %v3945, %v3942
      %v4030 = vpack.c.bf16 %v3953, %v3950
      %v4031 = vpack.c.bf16 %v3961, %v3958
      %v4032 = vpack.c.bf16 %v3969, %v3966
      %v4033 = vpack.c.bf16 %v3977, %v3974
      %v4034 = vpack.c.bf16 %v3985, %v3982
      %v4035 = vpack.c.bf16 %v3993, %v3990
      %v4036 = vpack.c.bf16 %v4001, %v3998
      %v4037 = vpack.c.bf16 %v4009, %v4006
      %v4038 = vpack.c.bf16 %v4017, %v4014
      %v4039 = vpack.c.bf16 %v4022, %v4022
      %s4040 = scalar_lea.vmem %s4, 16
      %v4041 = vld [vmem:[%s4040] sm:$0xf]
      %v4043 = vsel %vm2289, %v4027, 0
      %v4046 = vsel %vm2289, %v4028, 0
      %v4049 = vsel %vm2289, %v4029, 0
      %v4052 = vsel %vm2289, %v4030, 0
      %v4055 = vsel %vm2289, %v4031, 0
      %v4058 = vsel %vm2289, %v4032, 0
      %v4061 = vsel %vm2289, %v4033, 0
      %v4064 = vsel %vm2289, %v4034, 0
      %v4067 = vsel %vm2289, %v4035, 0
      %v4070 = vsel %vm2289, %v4036, 0
      %v4073 = vsel %vm2289, %v4037, 0
      %v4076 = vsel %vm2289, %v4038, 0
      %v4079 = vsel %vm2289, %v4039, 0
      %v4082 = vsel %vm503, %v4041, 0
      %4084 = vmatprep.subr.bf16.mxu0 0
      %4085 = vmatpush1.bf16.msra.mxu0 0
      %4086 = vmatprep.subr.bf16.mxu0 0
      %4087 = vmatpush1.bf16.msra.mxu0 0
      %4088 = vmatprep.subr.bf16.mxu0 0
      %4089 = vmatpush1.bf16.msra.mxu0 0
      %4090 = vmatprep.subr.bf16.mxu0 0
      %4091 = vmatpush1.bf16.msra.mxu0 0
      %4092 = vmatprep.subr.bf16.mxu0 0
      %4093 = vmatpush1.bf16.msra.mxu0 0
      %4094 = vmatprep.subr.bf16.mxu0 0
      %4095 = vmatpush1.bf16.msra.mxu0 0
      %4096 = vmatprep.subr.bf16.mxu0 0
      %4097 = vmatpush1.bf16.msra.mxu0 0
      %4098 = vmatprep.subr.bf16.mxu0 0
      %4099 = vmatpush1.bf16.msra.mxu0 %v4082
      %4100 = vmatprep.subr.bf16.mxu0 0
      %4101 = vmatpush2.bf16.msra.mxu0 0
      %4102 = vmatprep.subr.bf16.mxu0 0
      %4103 = vmatpush2.bf16.msra.mxu0 0
      %4104 = vmatprep.subr.bf16.mxu0 0
      %4105 = vmatpush2.bf16.msra.mxu0 0
      %4106 = vmatprep.subr.bf16.mxu0 0
      %4107 = vmatpush2.bf16.msra.mxu0 0
      %4108 = vmatprep.subr.bf16.mxu0 0
      %4109 = vmatpush2.bf16.msra.mxu0 0
      %4110 = vmatprep.subr.bf16.mxu0 0
      %4111 = vmatpush2.bf16.msra.mxu0 0
      %4112 = vmatprep.subr.bf16.mxu0 0
      %4113 = vmatpush2.bf16.msra.mxu0 0
      %4114 = vmatprep.subr.bf16.mxu0 0
      %4115 = vmatpush2.bf16.msra.mxu0 0
      %4116 = vmatprep.mubr.bf16.mxu0 0
      %4117 = vmatmul.mubr.bf16.gmra.mxu0 %v4043
      %v4118 = vpop.f32.mrf.mxu0
      %v4119 = vadd.f32 0.0, %v4118
      %v4120 = vpop.f32.mrf.mxu0
      %v4121 = vpop.f32.mrf.mxu0
      %v4122 = vadd.f32 0.0, %v4121
      %v4123 = vpop.f32.mrf.mxu0
      %4124 = vmatprep.mubr.bf16.mxu0 0
      %4125 = vmatmul.mubr.bf16.gmra.mxu0 %v4046
      %v4126 = vpop.f32.mrf.mxu0
      %v4127 = vadd.f32 0.0, %v4126
      %v4128 = vpop.f32.mrf.mxu0
      %v4129 = vpop.f32.mrf.mxu0
      %v4130 = vadd.f32 0.0, %v4129
      %v4131 = vpop.f32.mrf.mxu0
      %4132 = vmatprep.mubr.bf16.mxu0 0
      %4133 = vmatmul.mubr.bf16.gmra.mxu0 %v4049
      %v4134 = vpop.f32.mrf.mxu0
      %v4135 = vadd.f32 0.0, %v4134
      %v4136 = vpop.f32.mrf.mxu0
      %v4137 = vpop.f32.mrf.mxu0
      %v4138 = vadd.f32 0.0, %v4137
      %v4139 = vpop.f32.mrf.mxu0
      %4140 = vmatprep.mubr.bf16.mxu0 0
      %4141 = vmatmul.mubr.bf16.gmra.mxu0 %v4052
      %v4142 = vpop.f32.mrf.mxu0
      %v4143 = vadd.f32 0.0, %v4142
      %v4144 = vpop.f32.mrf.mxu0
      %v4145 = vpop.f32.mrf.mxu0
      %v4146 = vadd.f32 0.0, %v4145
      %v4147 = vpop.f32.mrf.mxu0
      %4148 = vmatprep.mubr.bf16.mxu0 0
      %4149 = vmatmul.mubr.bf16.gmra.mxu0 %v4055
      %v4150 = vpop.f32.mrf.mxu0
      %v4151 = vadd.f32 0.0, %v4150
      %v4152 = vpop.f32.mrf.mxu0
      %v4153 = vpop.f32.mrf.mxu0
      %v4154 = vadd.f32 0.0, %v4153
      %v4155 = vpop.f32.mrf.mxu0
      %4156 = vmatprep.mubr.bf16.mxu0 0
      %4157 = vmatmul.mubr.bf16.gmra.mxu0 %v4058
      %v4158 = vpop.f32.mrf.mxu0
      %v4159 = vadd.f32 0.0, %v4158
      %v4160 = vpop.f32.mrf.mxu0
      %v4161 = vpop.f32.mrf.mxu0
      %v4162 = vadd.f32 0.0, %v4161
      %v4163 = vpop.f32.mrf.mxu0
      %4164 = vmatprep.mubr.bf16.mxu0 0
      %4165 = vmatmul.mubr.bf16.gmra.mxu0 %v4061
      %v4166 = vpop.f32.mrf.mxu0
      %v4167 = vadd.f32 0.0, %v4166
      %v4168 = vpop.f32.mrf.mxu0
      %v4169 = vpop.f32.mrf.mxu0
      %v4170 = vadd.f32 0.0, %v4169
      %v4171 = vpop.f32.mrf.mxu0
      %4172 = vmatprep.mubr.bf16.mxu0 0
      %4173 = vmatmul.mubr.bf16.gmra.mxu0 %v4064
      %v4174 = vpop.f32.mrf.mxu0
      %v4175 = vadd.f32 0.0, %v4174
      %v4176 = vpop.f32.mrf.mxu0
      %v4177 = vpop.f32.mrf.mxu0
      %v4178 = vadd.f32 0.0, %v4177
      %v4179 = vpop.f32.mrf.mxu0
      %4180 = vmatprep.mubr.bf16.mxu0 0
      %4181 = vmatmul.mubr.bf16.gmra.mxu0 %v4067
      %v4182 = vpop.f32.mrf.mxu0
      %v4183 = vadd.f32 0.0, %v4182
      %v4184 = vpop.f32.mrf.mxu0
      %v4185 = vpop.f32.mrf.mxu0
      %v4186 = vadd.f32 0.0, %v4185
      %v4187 = vpop.f32.mrf.mxu0
      %4188 = vmatprep.mubr.bf16.mxu0 0
      %4189 = vmatmul.mubr.bf16.gmra.mxu0 %v4070
      %v4190 = vpop.f32.mrf.mxu0
      %v4191 = vadd.f32 0.0, %v4190
      %v4192 = vpop.f32.mrf.mxu0
      %v4193 = vpop.f32.mrf.mxu0
      %v4194 = vadd.f32 0.0, %v4193
      %v4195 = vpop.f32.mrf.mxu0
      %4196 = vmatprep.mubr.bf16.mxu0 0
      %4197 = vmatmul.mubr.bf16.gmra.mxu0 %v4073
      %v4198 = vpop.f32.mrf.mxu0
      %v4199 = vadd.f32 0.0, %v4198
      %v4200 = vpop.f32.mrf.mxu0
      %v4201 = vpop.f32.mrf.mxu0
      %v4202 = vadd.f32 0.0, %v4201
      %v4203 = vpop.f32.mrf.mxu0
      %4204 = vmatprep.mubr.bf16.mxu0 0
      %4205 = vmatmul.mubr.bf16.gmra.mxu0 %v4076
      %v4206 = vpop.f32.mrf.mxu0
      %v4207 = vadd.f32 0.0, %v4206
      %v4208 = vpop.f32.mrf.mxu0
      %v4209 = vpop.f32.mrf.mxu0
      %v4210 = vadd.f32 0.0, %v4209
      %v4211 = vpop.f32.mrf.mxu0
      %4212 = vmatprep.mubr.bf16.mxu0 0
      %4213 = vmatmul.mubr.bf16.gmra.mxu0 %v4079
      %v4214 = vpop.f32.mrf.mxu0
      %v4215 = vadd.f32 0.0, %v4214
      %v4216 = vpop.f32.mrf.mxu0
      %v4217 = vpop.f32.mrf.mxu0
      %v4218 = vpop.f32.mrf.mxu0
      %4219 = vdwg.mxu0
      %v4220 = vadd.f32 %v3687, %v4119
      %v4221 = vadd.f32 %v3688, %v4122
      %v4222 = vadd.f32 %v3689, %v4127
      %v4223 = vadd.f32 %v3690, %v4130
      %v4224 = vadd.f32 %v3691, %v4135
      %v4225 = vadd.f32 %v3692, %v4138
      %v4226 = vadd.f32 %v3693, %v4143
      %v4227 = vadd.f32 %v3694, %v4146
      %v4228 = vadd.f32 %v3695, %v4151
      %v4229 = vadd.f32 %v3696, %v4154
      %v4230 = vadd.f32 %v3697, %v4159
      %v4231 = vadd.f32 %v3698, %v4162
      %v4232 = vadd.f32 %v3699, %v4167
      %v4233 = vadd.f32 %v3700, %v4170
      %v4234 = vadd.f32 %v3701, %v4175
      %v4235 = vadd.f32 %v3702, %v4178
      %v4236 = vadd.f32 %v3703, %v4183
      %v4237 = vadd.f32 %v3704, %v4186
      %v4238 = vadd.f32 %v3705, %v4191
      %v4239 = vadd.f32 %v3706, %v4194
      %v4240 = vadd.f32 %v3707, %v4199
      %v4241 = vadd.f32 %v3708, %v4202
      %v4242 = vadd.f32 %v3709, %v4207
      %v4243 = vadd.f32 %v3710, %v4210
      %v4244 = vadd.f32 %v3711, %v4215
      %s4245 = scalar_lea.vmem %s3, 1000
      %v4246 = vld [vmem:[%s4245] sm:$0xff]
      %v4247 = vld [vmem:[%s4245 + $0x8] sm:$0xff]
      %v4248 = vld [vmem:[%s4245 + $0x10] sm:$0xff]
      %v4249 = vld [vmem:[%s4245 + $0x18] sm:$0xff]
      %v4250 = vld [vmem:[%s4245 + $0x20] sm:$0xff]
      %v4251 = vld [vmem:[%s4245 + $0x28] sm:$0xff]
      %v4252 = vld [vmem:[%s4245 + $0x30] sm:$0xff]
      %v4253 = vld [vmem:[%s4245 + $0x38] sm:$0xff]
      %v4254 = vld [vmem:[%s4245 + $0x40] sm:$0xff]
      %v4255 = vld [vmem:[%s4245 + $0x48] sm:$0xff]
      %v4256 = vld [vmem:[%s4245 + $0x50] sm:$0xff]
      %v4257 = vld [vmem:[%s4245 + $0x58] sm:$0xff]
      %v4258 = vld [vmem:[%s4245 + $0x60] sm:$0xff]
      %v4259 = vld [vmem:[%s4245 + $0x68] sm:$0xff]
      %v4260 = vld [vmem:[%s4245 + $0x70] sm:$0xff]
      %v4261 = vld [vmem:[%s4245 + $0x78] sm:$0xff]
      %v4262 = vld [vmem:[%s4245 + $0x80] sm:$0xff]
      %v4263 = vld [vmem:[%s4245 + $0x88] sm:$0xff]
      %v4264 = vld [vmem:[%s4245 + $0x90] sm:$0xff]
      %v4265 = vld [vmem:[%s4245 + $0x98] sm:$0xff]
      %v4266 = vld [vmem:[%s4245 + $0xa0] sm:$0xff]
      %v4267 = vld [vmem:[%s4245 + $0xa8] sm:$0xff]
      %v4268 = vld [vmem:[%s4245 + $0xb0] sm:$0xff]
      %v4269 = vld [vmem:[%s4245 + $0xb8] sm:$0xff]
      %v4270 = vld [vmem:[%s4245 + $0xc0] sm:$0x33]
      %v4296 = vunpack.c.l.b16 %v4246
      %v4297 = vunpack.c.h.b16 %v4246
      %v4298 = vunpack.c.l.b16 %v4247
      %v4299 = vunpack.c.h.b16 %v4247
      %v4300 = vunpack.c.l.b16 %v4248
      %v4301 = vunpack.c.h.b16 %v4248
      %v4302 = vunpack.c.l.b16 %v4249
      %v4303 = vunpack.c.h.b16 %v4249
      %v4304 = vunpack.c.l.b16 %v4250
      %v4305 = vunpack.c.h.b16 %v4250
      %v4306 = vunpack.c.l.b16 %v4251
      %v4307 = vunpack.c.h.b16 %v4251
      %v4308 = vunpack.c.l.b16 %v4252
      %v4309 = vunpack.c.h.b16 %v4252
      %v4310 = vunpack.c.l.b16 %v4253
      %v4311 = vunpack.c.h.b16 %v4253
      %v4312 = vunpack.c.l.b16 %v4254
      %v4313 = vunpack.c.h.b16 %v4254
      %v4314 = vunpack.c.l.b16 %v4255
      %v4315 = vunpack.c.h.b16 %v4255
      %v4316 = vunpack.c.l.b16 %v4256
      %v4317 = vunpack.c.h.b16 %v4256
      %v4318 = vunpack.c.l.b16 %v4257
      %v4319 = vunpack.c.h.b16 %v4257
      %v4320 = vunpack.c.l.b16 %v4258
      %v4321 = vunpack.c.h.b16 %v4258
      %v4322 = vunpack.c.l.b16 %v4259
      %v4323 = vunpack.c.h.b16 %v4259
      %v4324 = vunpack.c.l.b16 %v4260
      %v4325 = vunpack.c.h.b16 %v4260
      %v4326 = vunpack.c.l.b16 %v4261
      %v4327 = vunpack.c.h.b16 %v4261
      %v4328 = vunpack.c.l.b16 %v4262
      %v4329 = vunpack.c.h.b16 %v4262
      %v4330 = vunpack.c.l.b16 %v4263
      %v4331 = vunpack.c.h.b16 %v4263
      %v4332 = vunpack.c.l.b16 %v4264
      %v4333 = vunpack.c.h.b16 %v4264
      %v4334 = vunpack.c.l.b16 %v4265
      %v4335 = vunpack.c.h.b16 %v4265
      %v4336 = vunpack.c.l.b16 %v4266
      %v4337 = vunpack.c.h.b16 %v4266
      %v4338 = vunpack.c.l.b16 %v4267
      %v4339 = vunpack.c.h.b16 %v4267
      %v4340 = vunpack.c.l.b16 %v4268
      %v4341 = vunpack.c.h.b16 %v4268
      %v4342 = vunpack.c.l.b16 %v4269
      %v4343 = vunpack.c.h.b16 %v4269
      %v4344 = vunpack.c.l.b16 %v4270
      %v4345 = vunpack.c.h.b16 %v4270
      %v4346 = vpack.c.b16 %v4298, %v4296
      %v4347 = vpack.c.b16 %v4299, %v4297
      %v4348 = vpack.c.b16 %v4302, %v4300
      %v4349 = vpack.c.b16 %v4303, %v4301
      %v4350 = vpack.c.b16 %v4306, %v4304
      %v4351 = vpack.c.b16 %v4307, %v4305
      %v4352 = vpack.c.b16 %v4310, %v4308
      %v4353 = vpack.c.b16 %v4311, %v4309
      %v4354 = vpack.c.b16 %v4314, %v4312
      %v4355 = vpack.c.b16 %v4315, %v4313
      %v4356 = vpack.c.b16 %v4318, %v4316
      %v4357 = vpack.c.b16 %v4319, %v4317
      %v4358 = vpack.c.b16 %v4322, %v4320
      %v4359 = vpack.c.b16 %v4323, %v4321
      %v4360 = vpack.c.b16 %v4326, %v4324
      %v4361 = vpack.c.b16 %v4327, %v4325
      %v4362 = vpack.c.b16 %v4330, %v4328
      %v4363 = vpack.c.b16 %v4331, %v4329
      %v4364 = vpack.c.b16 %v4334, %v4332
      %v4365 = vpack.c.b16 %v4335, %v4333
      %v4366 = vpack.c.b16 %v4338, %v4336
      %v4367 = vpack.c.b16 %v4339, %v4337
      %v4368 = vpack.c.b16 %v4342, %v4340
      %v4369 = vpack.c.b16 %v4343, %v4341
      %v4370 = vpack.c.b16 %v4344, %v4344
      %v4371 = vpack.c.b16 %v4345, %v4345
      %v4386 = vsel %vm1765, %v4347, 0
      %v4389 = vsel %vm1765, %v4349, 0
      %v4392 = vsel %vm1765, %v4351, 0
      %v4395 = vsel %vm1765, %v4353, 0
      %v4398 = vsel %vm1765, %v4355, 0
      %v4401 = vsel %vm1765, %v4357, 0
      %v4404 = vsel %vm1765, %v4359, 0
      %v4407 = vsel %vm1765, %v4361, 0
      %v4410 = vsel %vm1765, %v4363, 0
      %v4413 = vsel %vm1765, %v4365, 0
      %v4416 = vsel %vm1765, %v4367, 0
      %v4419 = vsel %vm1765, %v4369, 0
      %v4422 = vsel %vm1765, %v4371, 0
      %4424 = vmatprep.subr.bf16.mxu0 0
      %4425 = vmatpush1.bf16.msra.mxu0 %v1620
      %4426 = vmatprep.subr.bf16.mxu0 0
      %4427 = vmatpush1.bf16.msra.mxu0 %v1619
      %4428 = vmatprep.subr.bf16.mxu0 0
      %4429 = vmatpush1.bf16.msra.mxu0 %v1618
      %4430 = vmatprep.subr.bf16.mxu0 0
      %4431 = vmatpush1.bf16.msra.mxu0 %v1617
      %4432 = vmatprep.subr.bf16.mxu0 0
      %4433 = vmatpush1.bf16.msra.mxu0 %v1616
      %4434 = vmatprep.subr.bf16.mxu0 0
      %4435 = vmatpush1.bf16.msra.mxu0 %v1615
      %4436 = vmatprep.subr.bf16.mxu0 0
      %4437 = vmatpush1.bf16.msra.mxu0 %v1614
      %4438 = vmatprep.subr.bf16.mxu0 0
      %4439 = vmatpush1.bf16.msra.mxu0 %v1613
      %4440 = vmatprep.subr.bf16.mxu0 0
      %4441 = vmatpush2.bf16.msra.mxu0 0
      %4442 = vmatprep.subr.bf16.mxu0 0
      %4443 = vmatpush2.bf16.msra.mxu0 0
      %4444 = vmatprep.subr.bf16.mxu0 0
      %4445 = vmatpush2.bf16.msra.mxu0 0
      %4446 = vmatprep.subr.bf16.mxu0 0
      %4447 = vmatpush2.bf16.msra.mxu0 %v1807
      %4448 = vmatprep.subr.bf16.mxu0 0
      %4449 = vmatpush2.bf16.msra.mxu0 %v1624
      %4450 = vmatprep.subr.bf16.mxu0 0
      %4451 = vmatpush2.bf16.msra.mxu0 %v1623
      %4452 = vmatprep.subr.bf16.mxu0 0
      %4453 = vmatpush2.bf16.msra.mxu0 %v1622
      %4454 = vmatprep.subr.bf16.mxu0 0
      %4455 = vmatpush2.bf16.msra.mxu0 %v1621
      %4456 = vmatprep.mubr.bf16.mxu0 %v4386
      %4457 = vmatmul.mubr.bf16.gmra.mxu0 %v4346
      %v4458 = vpop.f32.mrf.mxu0
      %v4459 = vadd.f32 0.0, %v4458
      %v4460 = vpop.f32.mrf.mxu0
      %v4461 = vpop.f32.mrf.mxu0
      %v4462 = vadd.f32 0.0, %v4461
      %v4463 = vpop.f32.mrf.mxu0
      %4464 = vmatprep.mubr.bf16.mxu0 %v4389
      %4465 = vmatmul.mubr.bf16.gmra.mxu0 %v4348
      %v4466 = vpop.f32.mrf.mxu0
      %v4467 = vadd.f32 0.0, %v4466
      %v4468 = vpop.f32.mrf.mxu0
      %v4469 = vpop.f32.mrf.mxu0
      %v4470 = vadd.f32 0.0, %v4469
      %v4471 = vpop.f32.mrf.mxu0
      %4472 = vmatprep.mubr.bf16.mxu0 %v4392
      %4473 = vmatmul.mubr.bf16.gmra.mxu0 %v4350
      %v4474 = vpop.f32.mrf.mxu0
      %v4475 = vadd.f32 0.0, %v4474
      %v4476 = vpop.f32.mrf.mxu0
      %v4477 = vpop.f32.mrf.mxu0
      %v4478 = vadd.f32 0.0, %v4477
      %v4479 = vpop.f32.mrf.mxu0
      %4480 = vmatprep.mubr.bf16.mxu0 %v4395
      %4481 = vmatmul.mubr.bf16.gmra.mxu0 %v4352
      %v4482 = vpop.f32.mrf.mxu0
      %v4483 = vadd.f32 0.0, %v4482
      %v4484 = vpop.f32.mrf.mxu0
      %v4485 = vpop.f32.mrf.mxu0
      %v4486 = vadd.f32 0.0, %v4485
      %v4487 = vpop.f32.mrf.mxu0
      %4488 = vmatprep.mubr.bf16.mxu0 %v4398
      %4489 = vmatmul.mubr.bf16.gmra.mxu0 %v4354
      %v4490 = vpop.f32.mrf.mxu0
      %v4491 = vadd.f32 0.0, %v4490
      %v4492 = vpop.f32.mrf.mxu0
      %v4493 = vpop.f32.mrf.mxu0
      %v4494 = vadd.f32 0.0, %v4493
      %v4495 = vpop.f32.mrf.mxu0
      %4496 = vmatprep.mubr.bf16.mxu0 %v4401
      %4497 = vmatmul.mubr.bf16.gmra.mxu0 %v4356
      %v4498 = vpop.f32.mrf.mxu0
      %v4499 = vadd.f32 0.0, %v4498
      %v4500 = vpop.f32.mrf.mxu0
      %v4501 = vpop.f32.mrf.mxu0
      %v4502 = vadd.f32 0.0, %v4501
      %v4503 = vpop.f32.mrf.mxu0
      %4504 = vmatprep.mubr.bf16.mxu0 %v4404
      %4505 = vmatmul.mubr.bf16.gmra.mxu0 %v4358
      %v4506 = vpop.f32.mrf.mxu0
      %v4507 = vadd.f32 0.0, %v4506
      %v4508 = vpop.f32.mrf.mxu0
      %v4509 = vpop.f32.mrf.mxu0
      %v4510 = vadd.f32 0.0, %v4509
      %v4511 = vpop.f32.mrf.mxu0
      %4512 = vmatprep.mubr.bf16.mxu0 %v4407
      %4513 = vmatmul.mubr.bf16.gmra.mxu0 %v4360
      %v4514 = vpop.f32.mrf.mxu0
      %v4515 = vadd.f32 0.0, %v4514
      %v4516 = vpop.f32.mrf.mxu0
      %v4517 = vpop.f32.mrf.mxu0
      %v4518 = vadd.f32 0.0, %v4517
      %v4519 = vpop.f32.mrf.mxu0
      %4520 = vmatprep.mubr.bf16.mxu0 %v4410
      %4521 = vmatmul.mubr.bf16.gmra.mxu0 %v4362
      %v4522 = vpop.f32.mrf.mxu0
      %v4523 = vadd.f32 0.0, %v4522
      %v4524 = vpop.f32.mrf.mxu0
      %v4525 = vpop.f32.mrf.mxu0
      %v4526 = vadd.f32 0.0, %v4525
      %v4527 = vpop.f32.mrf.mxu0
      %4528 = vmatprep.mubr.bf16.mxu0 %v4413
      %4529 = vmatmul.mubr.bf16.gmra.mxu0 %v4364
      %v4530 = vpop.f32.mrf.mxu0
      %v4531 = vadd.f32 0.0, %v4530
      %v4532 = vpop.f32.mrf.mxu0
      %v4533 = vpop.f32.mrf.mxu0
      %v4534 = vadd.f32 0.0, %v4533
      %v4535 = vpop.f32.mrf.mxu0
      %4536 = vmatprep.mubr.bf16.mxu0 %v4416
      %4537 = vmatmul.mubr.bf16.gmra.mxu0 %v4366
      %v4538 = vpop.f32.mrf.mxu0
      %v4539 = vadd.f32 0.0, %v4538
      %v4540 = vpop.f32.mrf.mxu0
      %v4541 = vpop.f32.mrf.mxu0
      %v4542 = vadd.f32 0.0, %v4541
      %v4543 = vpop.f32.mrf.mxu0
      %4544 = vmatprep.mubr.bf16.mxu0 %v4419
      %4545 = vmatmul.mubr.bf16.gmra.mxu0 %v4368
      %v4546 = vpop.f32.mrf.mxu0
      %v4547 = vadd.f32 0.0, %v4546
      %v4548 = vpop.f32.mrf.mxu0
      %v4549 = vpop.f32.mrf.mxu0
      %v4550 = vadd.f32 0.0, %v4549
      %v4551 = vpop.f32.mrf.mxu0
      %4552 = vmatprep.mubr.bf16.mxu0 %v4422
      %4553 = vmatmul.mubr.bf16.gmra.mxu0 %v4370
      %v4554 = vpop.f32.mrf.mxu0
      %v4555 = vadd.f32 0.0, %v4554
      %v4556 = vpop.f32.mrf.mxu0
      %v4557 = vpop.f32.mrf.mxu0
      %v4558 = vpop.f32.mrf.mxu0
      %4559 = vdwg.mxu0
      %v4560 = vpack.c.bf16 %v4462, %v4459
      %v4561 = vpack.c.bf16 %v4470, %v4467
      %v4562 = vpack.c.bf16 %v4478, %v4475
      %v4563 = vpack.c.bf16 %v4486, %v4483
      %v4564 = vpack.c.bf16 %v4494, %v4491
      %v4565 = vpack.c.bf16 %v4502, %v4499
      %v4566 = vpack.c.bf16 %v4510, %v4507
      %v4567 = vpack.c.bf16 %v4518, %v4515
      %v4568 = vpack.c.bf16 %v4526, %v4523
      %v4569 = vpack.c.bf16 %v4534, %v4531
      %v4570 = vpack.c.bf16 %v4542, %v4539
      %v4571 = vpack.c.bf16 %v4550, %v4547
      %v4572 = vpack.c.bf16 %v4555, %v4555
      %s4573 = scalar_lea.vmem %s4, 20
      %v4574 = vld [vmem:[%s4573] sm:$0xf]
      %v4576 = vsel %vm2289, %v4560, 0
      %v4579 = vsel %vm2289, %v4561, 0
      %v4582 = vsel %vm2289, %v4562, 0
      %v4585 = vsel %vm2289, %v4563, 0
      %v4588 = vsel %vm2289, %v4564, 0
      %v4591 = vsel %vm2289, %v4565, 0
      %v4594 = vsel %vm2289, %v4566, 0
      %v4597 = vsel %vm2289, %v4567, 0
      %v4600 = vsel %vm2289, %v4568, 0
      %v4603 = vsel %vm2289, %v4569, 0
      %v4606 = vsel %vm2289, %v4570, 0
      %v4609 = vsel %vm2289, %v4571, 0
      %v4612 = vsel %vm2289, %v4572, 0
      %v4615 = vsel %vm503, %v4574, 0
      %4617 = vmatprep.subr.bf16.mxu0 0
      %4618 = vmatpush1.bf16.msra.mxu0 0
      %4619 = vmatprep.subr.bf16.mxu0 0
      %4620 = vmatpush1.bf16.msra.mxu0 0
      %4621 = vmatprep.subr.bf16.mxu0 0
      %4622 = vmatpush1.bf16.msra.mxu0 0
      %4623 = vmatprep.subr.bf16.mxu0 0
      %4624 = vmatpush1.bf16.msra.mxu0 0
      %4625 = vmatprep.subr.bf16.mxu0 0
      %4626 = vmatpush1.bf16.msra.mxu0 0
      %4627 = vmatprep.subr.bf16.mxu0 0
      %4628 = vmatpush1.bf16.msra.mxu0 0
      %4629 = vmatprep.subr.bf16.mxu0 0
      %4630 = vmatpush1.bf16.msra.mxu0 0
      %4631 = vmatprep.subr.bf16.mxu0 0
      %4632 = vmatpush1.bf16.msra.mxu0 %v4615
      %4633 = vmatprep.subr.bf16.mxu0 0
      %4634 = vmatpush2.bf16.msra.mxu0 0
      %4635 = vmatprep.subr.bf16.mxu0 0
      %4636 = vmatpush2.bf16.msra.mxu0 0
      %4637 = vmatprep.subr.bf16.mxu0 0
      %4638 = vmatpush2.bf16.msra.mxu0 0
      %4639 = vmatprep.subr.bf16.mxu0 0
      %4640 = vmatpush2.bf16.msra.mxu0 0
      %4641 = vmatprep.subr.bf16.mxu0 0
      %4642 = vmatpush2.bf16.msra.mxu0 0
      %4643 = vmatprep.subr.bf16.mxu0 0
      %4644 = vmatpush2.bf16.msra.mxu0 0
      %4645 = vmatprep.subr.bf16.mxu0 0
      %4646 = vmatpush2.bf16.msra.mxu0 0
      %4647 = vmatprep.subr.bf16.mxu0 0
      %4648 = vmatpush2.bf16.msra.mxu0 0
      %4649 = vmatprep.mubr.bf16.mxu0 0
      %4650 = vmatmul.mubr.bf16.gmra.mxu0 %v4576
      %v4651 = vpop.f32.mrf.mxu0
      %v4652 = vadd.f32 0.0, %v4651
      %v4653 = vpop.f32.mrf.mxu0
      %v4654 = vpop.f32.mrf.mxu0
      %v4655 = vadd.f32 0.0, %v4654
      %v4656 = vpop.f32.mrf.mxu0
      %4657 = vmatprep.mubr.bf16.mxu0 0
      %4658 = vmatmul.mubr.bf16.gmra.mxu0 %v4579
      %v4659 = vpop.f32.mrf.mxu0
      %v4660 = vadd.f32 0.0, %v4659
      %v4661 = vpop.f32.mrf.mxu0
      %v4662 = vpop.f32.mrf.mxu0
      %v4663 = vadd.f32 0.0, %v4662
      %v4664 = vpop.f32.mrf.mxu0
      %4665 = vmatprep.mubr.bf16.mxu0 0
      %4666 = vmatmul.mubr.bf16.gmra.mxu0 %v4582
      %v4667 = vpop.f32.mrf.mxu0
      %v4668 = vadd.f32 0.0, %v4667
      %v4669 = vpop.f32.mrf.mxu0
      %v4670 = vpop.f32.mrf.mxu0
      %v4671 = vadd.f32 0.0, %v4670
      %v4672 = vpop.f32.mrf.mxu0
      %4673 = vmatprep.mubr.bf16.mxu0 0
      %4674 = vmatmul.mubr.bf16.gmra.mxu0 %v4585
      %v4675 = vpop.f32.mrf.mxu0
      %v4676 = vadd.f32 0.0, %v4675
      %v4677 = vpop.f32.mrf.mxu0
      %v4678 = vpop.f32.mrf.mxu0
      %v4679 = vadd.f32 0.0, %v4678
      %v4680 = vpop.f32.mrf.mxu0
      %4681 = vmatprep.mubr.bf16.mxu0 0
      %4682 = vmatmul.mubr.bf16.gmra.mxu0 %v4588
      %v4683 = vpop.f32.mrf.mxu0
      %v4684 = vadd.f32 0.0, %v4683
      %v4685 = vpop.f32.mrf.mxu0
      %v4686 = vpop.f32.mrf.mxu0
      %v4687 = vadd.f32 0.0, %v4686
      %v4688 = vpop.f32.mrf.mxu0
      %4689 = vmatprep.mubr.bf16.mxu0 0
      %4690 = vmatmul.mubr.bf16.gmra.mxu0 %v4591
      %v4691 = vpop.f32.mrf.mxu0
      %v4692 = vadd.f32 0.0, %v4691
      %v4693 = vpop.f32.mrf.mxu0
      %v4694 = vpop.f32.mrf.mxu0
      %v4695 = vadd.f32 0.0, %v4694
      %v4696 = vpop.f32.mrf.mxu0
      %4697 = vmatprep.mubr.bf16.mxu0 0
      %4698 = vmatmul.mubr.bf16.gmra.mxu0 %v4594
      %v4699 = vpop.f32.mrf.mxu0
      %v4700 = vadd.f32 0.0, %v4699
      %v4701 = vpop.f32.mrf.mxu0
      %v4702 = vpop.f32.mrf.mxu0
      %v4703 = vadd.f32 0.0, %v4702
      %v4704 = vpop.f32.mrf.mxu0
      %4705 = vmatprep.mubr.bf16.mxu0 0
      %4706 = vmatmul.mubr.bf16.gmra.mxu0 %v4597
      %v4707 = vpop.f32.mrf.mxu0
      %v4708 = vadd.f32 0.0, %v4707
      %v4709 = vpop.f32.mrf.mxu0
      %v4710 = vpop.f32.mrf.mxu0
      %v4711 = vadd.f32 0.0, %v4710
      %v4712 = vpop.f32.mrf.mxu0
      %4713 = vmatprep.mubr.bf16.mxu0 0
      %4714 = vmatmul.mubr.bf16.gmra.mxu0 %v4600
      %v4715 = vpop.f32.mrf.mxu0
      %v4716 = vadd.f32 0.0, %v4715
      %v4717 = vpop.f32.mrf.mxu0
      %v4718 = vpop.f32.mrf.mxu0
      %v4719 = vadd.f32 0.0, %v4718
      %v4720 = vpop.f32.mrf.mxu0
      %4721 = vmatprep.mubr.bf16.mxu0 0
      %4722 = vmatmul.mubr.bf16.gmra.mxu0 %v4603
      %v4723 = vpop.f32.mrf.mxu0
      %v4724 = vadd.f32 0.0, %v4723
      %v4725 = vpop.f32.mrf.mxu0
      %v4726 = vpop.f32.mrf.mxu0
      %v4727 = vadd.f32 0.0, %v4726
      %v4728 = vpop.f32.mrf.mxu0
      %4729 = vmatprep.mubr.bf16.mxu0 0
      %4730 = vmatmul.mubr.bf16.gmra.mxu0 %v4606
      %v4731 = vpop.f32.mrf.mxu0
      %v4732 = vadd.f32 0.0, %v4731
      %v4733 = vpop.f32.mrf.mxu0
      %v4734 = vpop.f32.mrf.mxu0
      %v4735 = vadd.f32 0.0, %v4734
      %v4736 = vpop.f32.mrf.mxu0
      %4737 = vmatprep.mubr.bf16.mxu0 0
      %4738 = vmatmul.mubr.bf16.gmra.mxu0 %v4609
      %v4739 = vpop.f32.mrf.mxu0
      %v4740 = vadd.f32 0.0, %v4739
      %v4741 = vpop.f32.mrf.mxu0
      %v4742 = vpop.f32.mrf.mxu0
      %v4743 = vadd.f32 0.0, %v4742
      %v4744 = vpop.f32.mrf.mxu0
      %4745 = vmatprep.mubr.bf16.mxu0 0
      %4746 = vmatmul.mubr.bf16.gmra.mxu0 %v4612
      %v4747 = vpop.f32.mrf.mxu0
      %v4748 = vadd.f32 0.0, %v4747
      %v4749 = vpop.f32.mrf.mxu0
      %v4750 = vpop.f32.mrf.mxu0
      %v4751 = vpop.f32.mrf.mxu0
      %4752 = vdwg.mxu0
      %v4753 = vadd.f32 %v4220, %v4652
      %v4754 = vadd.f32 %v4221, %v4655
      %v4755 = vadd.f32 %v4222, %v4660
      %v4756 = vadd.f32 %v4223, %v4663
      %v4757 = vadd.f32 %v4224, %v4668
      %v4758 = vadd.f32 %v4225, %v4671
      %v4759 = vadd.f32 %v4226, %v4676
      %v4760 = vadd.f32 %v4227, %v4679
      %v4761 = vadd.f32 %v4228, %v4684
      %v4762 = vadd.f32 %v4229, %v4687
      %v4763 = vadd.f32 %v4230, %v4692
      %v4764 = vadd.f32 %v4231, %v4695
      %v4765 = vadd.f32 %v4232, %v4700
      %v4766 = vadd.f32 %v4233, %v4703
      %v4767 = vadd.f32 %v4234, %v4708
      %v4768 = vadd.f32 %v4235, %v4711
      %v4769 = vadd.f32 %v4236, %v4716
      %v4770 = vadd.f32 %v4237, %v4719
      %v4771 = vadd.f32 %v4238, %v4724
      %v4772 = vadd.f32 %v4239, %v4727
      %v4773 = vadd.f32 %v4240, %v4732
      %v4774 = vadd.f32 %v4241, %v4735
      %v4775 = vadd.f32 %v4242, %v4740
      %v4776 = vadd.f32 %v4243, %v4743
      %v4777 = vadd.f32 %v4244, %v4748
      %s4778 = scalar_lea.vmem %s3, 1200
      %v4779 = vld [vmem:[%s4778] sm:$0xff]
      %v4780 = vld [vmem:[%s4778 + $0x8] sm:$0xff]
      %v4781 = vld [vmem:[%s4778 + $0x10] sm:$0xff]
      %v4782 = vld [vmem:[%s4778 + $0x18] sm:$0xff]
      %v4783 = vld [vmem:[%s4778 + $0x20] sm:$0xff]
      %v4784 = vld [vmem:[%s4778 + $0x28] sm:$0xff]
      %v4785 = vld [vmem:[%s4778 + $0x30] sm:$0xff]
      %v4786 = vld [vmem:[%s4778 + $0x38] sm:$0xff]
      %v4787 = vld [vmem:[%s4778 + $0x40] sm:$0xff]
      %v4788 = vld [vmem:[%s4778 + $0x48] sm:$0xff]
      %v4789 = vld [vmem:[%s4778 + $0x50] sm:$0xff]
      %v4790 = vld [vmem:[%s4778 + $0x58] sm:$0xff]
      %v4791 = vld [vmem:[%s4778 + $0x60] sm:$0xff]
      %v4792 = vld [vmem:[%s4778 + $0x68] sm:$0xff]
      %v4793 = vld [vmem:[%s4778 + $0x70] sm:$0xff]
      %v4794 = vld [vmem:[%s4778 + $0x78] sm:$0xff]
      %v4795 = vld [vmem:[%s4778 + $0x80] sm:$0xff]
      %v4796 = vld [vmem:[%s4778 + $0x88] sm:$0xff]
      %v4797 = vld [vmem:[%s4778 + $0x90] sm:$0xff]
      %v4798 = vld [vmem:[%s4778 + $0x98] sm:$0xff]
      %v4799 = vld [vmem:[%s4778 + $0xa0] sm:$0xff]
      %v4800 = vld [vmem:[%s4778 + $0xa8] sm:$0xff]
      %v4801 = vld [vmem:[%s4778 + $0xb0] sm:$0xff]
      %v4802 = vld [vmem:[%s4778 + $0xb8] sm:$0xff]
      %v4803 = vld [vmem:[%s4778 + $0xc0] sm:$0x33]
      %v4829 = vunpack.c.l.b16 %v4779
      %v4830 = vunpack.c.h.b16 %v4779
      %v4831 = vunpack.c.l.b16 %v4780
      %v4832 = vunpack.c.h.b16 %v4780
      %v4833 = vunpack.c.l.b16 %v4781
      %v4834 = vunpack.c.h.b16 %v4781
      %v4835 = vunpack.c.l.b16 %v4782
      %v4836 = vunpack.c.h.b16 %v4782
      %v4837 = vunpack.c.l.b16 %v4783
      %v4838 = vunpack.c.h.b16 %v4783
      %v4839 = vunpack.c.l.b16 %v4784
      %v4840 = vunpack.c.h.b16 %v4784
      %v4841 = vunpack.c.l.b16 %v4785
      %v4842 = vunpack.c.h.b16 %v4785
      %v4843 = vunpack.c.l.b16 %v4786
      %v4844 = vunpack.c.h.b16 %v4786
      %v4845 = vunpack.c.l.b16 %v4787
      %v4846 = vunpack.c.h.b16 %v4787
      %v4847 = vunpack.c.l.b16 %v4788
      %v4848 = vunpack.c.h.b16 %v4788
      %v4849 = vunpack.c.l.b16 %v4789
      %v4850 = vunpack.c.h.b16 %v4789
      %v4851 = vunpack.c.l.b16 %v4790
      %v4852 = vunpack.c.h.b16 %v4790
      %v4853 = vunpack.c.l.b16 %v4791
      %v4854 = vunpack.c.h.b16 %v4791
      %v4855 = vunpack.c.l.b16 %v4792
      %v4856 = vunpack.c.h.b16 %v4792
      %v4857 = vunpack.c.l.b16 %v4793
      %v4858 = vunpack.c.h.b16 %v4793
      %v4859 = vunpack.c.l.b16 %v4794
      %v4860 = vunpack.c.h.b16 %v4794
      %v4861 = vunpack.c.l.b16 %v4795
      %v4862 = vunpack.c.h.b16 %v4795
      %v4863 = vunpack.c.l.b16 %v4796
      %v4864 = vunpack.c.h.b16 %v4796
      %v4865 = vunpack.c.l.b16 %v4797
      %v4866 = vunpack.c.h.b16 %v4797
      %v4867 = vunpack.c.l.b16 %v4798
      %v4868 = vunpack.c.h.b16 %v4798
      %v4869 = vunpack.c.l.b16 %v4799
      %v4870 = vunpack.c.h.b16 %v4799
      %v4871 = vunpack.c.l.b16 %v4800
      %v4872 = vunpack.c.h.b16 %v4800
      %v4873 = vunpack.c.l.b16 %v4801
      %v4874 = vunpack.c.h.b16 %v4801
      %v4875 = vunpack.c.l.b16 %v4802
      %v4876 = vunpack.c.h.b16 %v4802
      %v4877 = vunpack.c.l.b16 %v4803
      %v4878 = vunpack.c.h.b16 %v4803
      %v4879 = vpack.c.b16 %v4831, %v4829
      %v4880 = vpack.c.b16 %v4832, %v4830
      %v4881 = vpack.c.b16 %v4835, %v4833
      %v4882 = vpack.c.b16 %v4836, %v4834
      %v4883 = vpack.c.b16 %v4839, %v4837
      %v4884 = vpack.c.b16 %v4840, %v4838
      %v4885 = vpack.c.b16 %v4843, %v4841
      %v4886 = vpack.c.b16 %v4844, %v4842
      %v4887 = vpack.c.b16 %v4847, %v4845
      %v4888 = vpack.c.b16 %v4848, %v4846
      %v4889 = vpack.c.b16 %v4851, %v4849
      %v4890 = vpack.c.b16 %v4852, %v4850
      %v4891 = vpack.c.b16 %v4855, %v4853
      %v4892 = vpack.c.b16 %v4856, %v4854
      %v4893 = vpack.c.b16 %v4859, %v4857
      %v4894 = vpack.c.b16 %v4860, %v4858
      %v4895 = vpack.c.b16 %v4863, %v4861
      %v4896 = vpack.c.b16 %v4864, %v4862
      %v4897 = vpack.c.b16 %v4867, %v4865
      %v4898 = vpack.c.b16 %v4868, %v4866
      %v4899 = vpack.c.b16 %v4871, %v4869
      %v4900 = vpack.c.b16 %v4872, %v4870
      %v4901 = vpack.c.b16 %v4875, %v4873
      %v4902 = vpack.c.b16 %v4876, %v4874
      %v4903 = vpack.c.b16 %v4877, %v4877
      %v4904 = vpack.c.b16 %v4878, %v4878
      %v4919 = vsel %vm1765, %v4880, 0
      %v4922 = vsel %vm1765, %v4882, 0
      %v4925 = vsel %vm1765, %v4884, 0
      %v4928 = vsel %vm1765, %v4886, 0
      %v4931 = vsel %vm1765, %v4888, 0
      %v4934 = vsel %vm1765, %v4890, 0
      %v4937 = vsel %vm1765, %v4892, 0
      %v4940 = vsel %vm1765, %v4894, 0
      %v4943 = vsel %vm1765, %v4896, 0
      %v4946 = vsel %vm1765, %v4898, 0
      %v4949 = vsel %vm1765, %v4900, 0
      %v4952 = vsel %vm1765, %v4902, 0
      %v4955 = vsel %vm1765, %v4904, 0
      %4957 = vmatprep.subr.bf16.mxu0 0
      %4958 = vmatpush1.bf16.msra.mxu0 %v1620
      %4959 = vmatprep.subr.bf16.mxu0 0
      %4960 = vmatpush1.bf16.msra.mxu0 %v1619
      %4961 = vmatprep.subr.bf16.mxu0 0
      %4962 = vmatpush1.bf16.msra.mxu0 %v1618
      %4963 = vmatprep.subr.bf16.mxu0 0
      %4964 = vmatpush1.bf16.msra.mxu0 %v1617
      %4965 = vmatprep.subr.bf16.mxu0 0
      %4966 = vmatpush1.bf16.msra.mxu0 %v1616
      %4967 = vmatprep.subr.bf16.mxu0 0
      %4968 = vmatpush1.bf16.msra.mxu0 %v1615
      %4969 = vmatprep.subr.bf16.mxu0 0
      %4970 = vmatpush1.bf16.msra.mxu0 %v1614
      %4971 = vmatprep.subr.bf16.mxu0 0
      %4972 = vmatpush1.bf16.msra.mxu0 %v1613
      %4973 = vmatprep.subr.bf16.mxu0 0
      %4974 = vmatpush2.bf16.msra.mxu0 0
      %4975 = vmatprep.subr.bf16.mxu0 0
      %4976 = vmatpush2.bf16.msra.mxu0 0
      %4977 = vmatprep.subr.bf16.mxu0 0
      %4978 = vmatpush2.bf16.msra.mxu0 0
      %4979 = vmatprep.subr.bf16.mxu0 0
      %4980 = vmatpush2.bf16.msra.mxu0 %v1807
      %4981 = vmatprep.subr.bf16.mxu0 0
      %4982 = vmatpush2.bf16.msra.mxu0 %v1624
      %4983 = vmatprep.subr.bf16.mxu0 0
      %4984 = vmatpush2.bf16.msra.mxu0 %v1623
      %4985 = vmatprep.subr.bf16.mxu0 0
      %4986 = vmatpush2.bf16.msra.mxu0 %v1622
      %4987 = vmatprep.subr.bf16.mxu0 0
      %4988 = vmatpush2.bf16.msra.mxu0 %v1621
      %4989 = vmatprep.mubr.bf16.mxu0 %v4919
      %4990 = vmatmul.mubr.bf16.gmra.mxu0 %v4879
      %v4991 = vpop.f32.mrf.mxu0
      %v4992 = vadd.f32 0.0, %v4991
      %v4993 = vpop.f32.mrf.mxu0
      %v4994 = vpop.f32.mrf.mxu0
      %v4995 = vadd.f32 0.0, %v4994
      %v4996 = vpop.f32.mrf.mxu0
      %4997 = vmatprep.mubr.bf16.mxu0 %v4922
      %4998 = vmatmul.mubr.bf16.gmra.mxu0 %v4881
      %v4999 = vpop.f32.mrf.mxu0
      %v5000 = vadd.f32 0.0, %v4999
      %v5001 = vpop.f32.mrf.mxu0
      %v5002 = vpop.f32.mrf.mxu0
      %v5003 = vadd.f32 0.0, %v5002
      %v5004 = vpop.f32.mrf.mxu0
      %5005 = vmatprep.mubr.bf16.mxu0 %v4925
      %5006 = vmatmul.mubr.bf16.gmra.mxu0 %v4883
      %v5007 = vpop.f32.mrf.mxu0
      %v5008 = vadd.f32 0.0, %v5007
      %v5009 = vpop.f32.mrf.mxu0
      %v5010 = vpop.f32.mrf.mxu0
      %v5011 = vadd.f32 0.0, %v5010
      %v5012 = vpop.f32.mrf.mxu0
      %5013 = vmatprep.mubr.bf16.mxu0 %v4928
      %5014 = vmatmul.mubr.bf16.gmra.mxu0 %v4885
      %v5015 = vpop.f32.mrf.mxu0
      %v5016 = vadd.f32 0.0, %v5015
      %v5017 = vpop.f32.mrf.mxu0
      %v5018 = vpop.f32.mrf.mxu0
      %v5019 = vadd.f32 0.0, %v5018
      %v5020 = vpop.f32.mrf.mxu0
      %5021 = vmatprep.mubr.bf16.mxu0 %v4931
      %5022 = vmatmul.mubr.bf16.gmra.mxu0 %v4887
      %v5023 = vpop.f32.mrf.mxu0
      %v5024 = vadd.f32 0.0, %v5023
      %v5025 = vpop.f32.mrf.mxu0
      %v5026 = vpop.f32.mrf.mxu0
      %v5027 = vadd.f32 0.0, %v5026
      %v5028 = vpop.f32.mrf.mxu0
      %5029 = vmatprep.mubr.bf16.mxu0 %v4934
      %5030 = vmatmul.mubr.bf16.gmra.mxu0 %v4889
      %v5031 = vpop.f32.mrf.mxu0
      %v5032 = vadd.f32 0.0, %v5031
      %v5033 = vpop.f32.mrf.mxu0
      %v5034 = vpop.f32.mrf.mxu0
      %v5035 = vadd.f32 0.0, %v5034
      %v5036 = vpop.f32.mrf.mxu0
      %5037 = vmatprep.mubr.bf16.mxu0 %v4937
      %5038 = vmatmul.mubr.bf16.gmra.mxu0 %v4891
      %v5039 = vpop.f32.mrf.mxu0
      %v5040 = vadd.f32 0.0, %v5039
      %v5041 = vpop.f32.mrf.mxu0
      %v5042 = vpop.f32.mrf.mxu0
      %v5043 = vadd.f32 0.0, %v5042
      %v5044 = vpop.f32.mrf.mxu0
      %5045 = vmatprep.mubr.bf16.mxu0 %v4940
      %5046 = vmatmul.mubr.bf16.gmra.mxu0 %v4893
      %v5047 = vpop.f32.mrf.mxu0
      %v5048 = vadd.f32 0.0, %v5047
      %v5049 = vpop.f32.mrf.mxu0
      %v5050 = vpop.f32.mrf.mxu0
      %v5051 = vadd.f32 0.0, %v5050
      %v5052 = vpop.f32.mrf.mxu0
      %5053 = vmatprep.mubr.bf16.mxu0 %v4943
      %5054 = vmatmul.mubr.bf16.gmra.mxu0 %v4895
      %v5055 = vpop.f32.mrf.mxu0
      %v5056 = vadd.f32 0.0, %v5055
      %v5057 = vpop.f32.mrf.mxu0
      %v5058 = vpop.f32.mrf.mxu0
      %v5059 = vadd.f32 0.0, %v5058
      %v5060 = vpop.f32.mrf.mxu0
      %5061 = vmatprep.mubr.bf16.mxu0 %v4946
      %5062 = vmatmul.mubr.bf16.gmra.mxu0 %v4897
      %v5063 = vpop.f32.mrf.mxu0
      %v5064 = vadd.f32 0.0, %v5063
      %v5065 = vpop.f32.mrf.mxu0
      %v5066 = vpop.f32.mrf.mxu0
      %v5067 = vadd.f32 0.0, %v5066
      %v5068 = vpop.f32.mrf.mxu0
      %5069 = vmatprep.mubr.bf16.mxu0 %v4949
      %5070 = vmatmul.mubr.bf16.gmra.mxu0 %v4899
      %v5071 = vpop.f32.mrf.mxu0
      %v5072 = vadd.f32 0.0, %v5071
      %v5073 = vpop.f32.mrf.mxu0
      %v5074 = vpop.f32.mrf.mxu0
      %v5075 = vadd.f32 0.0, %v5074
      %v5076 = vpop.f32.mrf.mxu0
      %5077 = vmatprep.mubr.bf16.mxu0 %v4952
      %5078 = vmatmul.mubr.bf16.gmra.mxu0 %v4901
      %v5079 = vpop.f32.mrf.mxu0
      %v5080 = vadd.f32 0.0, %v5079
      %v5081 = vpop.f32.mrf.mxu0
      %v5082 = vpop.f32.mrf.mxu0
      %v5083 = vadd.f32 0.0, %v5082
      %v5084 = vpop.f32.mrf.mxu0
      %5085 = vmatprep.mubr.bf16.mxu0 %v4955
      %5086 = vmatmul.mubr.bf16.gmra.mxu0 %v4903
      %v5087 = vpop.f32.mrf.mxu0
      %v5088 = vadd.f32 0.0, %v5087
      %v5089 = vpop.f32.mrf.mxu0
      %v5090 = vpop.f32.mrf.mxu0
      %v5091 = vpop.f32.mrf.mxu0
      %5092 = vdwg.mxu0
      %v5093 = vpack.c.bf16 %v4995, %v4992
      %v5094 = vpack.c.bf16 %v5003, %v5000
      %v5095 = vpack.c.bf16 %v5011, %v5008
      %v5096 = vpack.c.bf16 %v5019, %v5016
      %v5097 = vpack.c.bf16 %v5027, %v5024
      %v5098 = vpack.c.bf16 %v5035, %v5032
      %v5099 = vpack.c.bf16 %v5043, %v5040
      %v5100 = vpack.c.bf16 %v5051, %v5048
      %v5101 = vpack.c.bf16 %v5059, %v5056
      %v5102 = vpack.c.bf16 %v5067, %v5064
      %v5103 = vpack.c.bf16 %v5075, %v5072
      %v5104 = vpack.c.bf16 %v5083, %v5080
      %v5105 = vpack.c.bf16 %v5088, %v5088
      %s5106 = scalar_lea.vmem %s4, 24
      %v5107 = vld [vmem:[%s5106] sm:$0xf]
      %v5109 = vsel %vm2289, %v5093, 0
      %v5112 = vsel %vm2289, %v5094, 0
      %v5115 = vsel %vm2289, %v5095, 0
      %v5118 = vsel %vm2289, %v5096, 0
      %v5121 = vsel %vm2289, %v5097, 0
      %v5124 = vsel %vm2289, %v5098, 0
      %v5127 = vsel %vm2289, %v5099, 0
      %v5130 = vsel %vm2289, %v5100, 0
      %v5133 = vsel %vm2289, %v5101, 0
      %v5136 = vsel %vm2289, %v5102, 0
      %v5139 = vsel %vm2289, %v5103, 0
      %v5142 = vsel %vm2289, %v5104, 0
      %v5145 = vsel %vm2289, %v5105, 0
      %v5148 = vsel %vm503, %v5107, 0
      %5150 = vmatprep.subr.bf16.mxu0 0
      %5151 = vmatpush1.bf16.msra.mxu0 0
      %5152 = vmatprep.subr.bf16.mxu0 0
      %5153 = vmatpush1.bf16.msra.mxu0 0
      %5154 = vmatprep.subr.bf16.mxu0 0
      %5155 = vmatpush1.bf16.msra.mxu0 0
      %5156 = vmatprep.subr.bf16.mxu0 0
      %5157 = vmatpush1.bf16.msra.mxu0 0
      %5158 = vmatprep.subr.bf16.mxu0 0
      %5159 = vmatpush1.bf16.msra.mxu0 0
      %5160 = vmatprep.subr.bf16.mxu0 0
      %5161 = vmatpush1.bf16.msra.mxu0 0
      %5162 = vmatprep.subr.bf16.mxu0 0
      %5163 = vmatpush1.bf16.msra.mxu0 0
      %5164 = vmatprep.subr.bf16.mxu0 0
      %5165 = vmatpush1.bf16.msra.mxu0 %v5148
      %5166 = vmatprep.subr.bf16.mxu0 0
      %5167 = vmatpush2.bf16.msra.mxu0 0
      %5168 = vmatprep.subr.bf16.mxu0 0
      %5169 = vmatpush2.bf16.msra.mxu0 0
      %5170 = vmatprep.subr.bf16.mxu0 0
      %5171 = vmatpush2.bf16.msra.mxu0 0
      %5172 = vmatprep.subr.bf16.mxu0 0
      %5173 = vmatpush2.bf16.msra.mxu0 0
      %5174 = vmatprep.subr.bf16.mxu0 0
      %5175 = vmatpush2.bf16.msra.mxu0 0
      %5176 = vmatprep.subr.bf16.mxu0 0
      %5177 = vmatpush2.bf16.msra.mxu0 0
      %5178 = vmatprep.subr.bf16.mxu0 0
      %5179 = vmatpush2.bf16.msra.mxu0 0
      %5180 = vmatprep.subr.bf16.mxu0 0
      %5181 = vmatpush2.bf16.msra.mxu0 0
      %5182 = vmatprep.mubr.bf16.mxu0 0
      %5183 = vmatmul.mubr.bf16.gmra.mxu0 %v5109
      %v5184 = vpop.f32.mrf.mxu0
      %v5185 = vadd.f32 0.0, %v5184
      %v5186 = vpop.f32.mrf.mxu0
      %v5187 = vpop.f32.mrf.mxu0
      %v5188 = vadd.f32 0.0, %v5187
      %v5189 = vpop.f32.mrf.mxu0
      %5190 = vmatprep.mubr.bf16.mxu0 0
      %5191 = vmatmul.mubr.bf16.gmra.mxu0 %v5112
      %v5192 = vpop.f32.mrf.mxu0
      %v5193 = vadd.f32 0.0, %v5192
      %v5194 = vpop.f32.mrf.mxu0
      %v5195 = vpop.f32.mrf.mxu0
      %v5196 = vadd.f32 0.0, %v5195
      %v5197 = vpop.f32.mrf.mxu0
      %5198 = vmatprep.mubr.bf16.mxu0 0
      %5199 = vmatmul.mubr.bf16.gmra.mxu0 %v5115
      %v5200 = vpop.f32.mrf.mxu0
      %v5201 = vadd.f32 0.0, %v5200
      %v5202 = vpop.f32.mrf.mxu0
      %v5203 = vpop.f32.mrf.mxu0
      %v5204 = vadd.f32 0.0, %v5203
      %v5205 = vpop.f32.mrf.mxu0
      %5206 = vmatprep.mubr.bf16.mxu0 0
      %5207 = vmatmul.mubr.bf16.gmra.mxu0 %v5118
      %v5208 = vpop.f32.mrf.mxu0
      %v5209 = vadd.f32 0.0, %v5208
      %v5210 = vpop.f32.mrf.mxu0
      %v5211 = vpop.f32.mrf.mxu0
      %v5212 = vadd.f32 0.0, %v5211
      %v5213 = vpop.f32.mrf.mxu0
      %5214 = vmatprep.mubr.bf16.mxu0 0
      %5215 = vmatmul.mubr.bf16.gmra.mxu0 %v5121
      %v5216 = vpop.f32.mrf.mxu0
      %v5217 = vadd.f32 0.0, %v5216
      %v5218 = vpop.f32.mrf.mxu0
      %v5219 = vpop.f32.mrf.mxu0
      %v5220 = vadd.f32 0.0, %v5219
      %v5221 = vpop.f32.mrf.mxu0
      %5222 = vmatprep.mubr.bf16.mxu0 0
      %5223 = vmatmul.mubr.bf16.gmra.mxu0 %v5124
      %v5224 = vpop.f32.mrf.mxu0
      %v5225 = vadd.f32 0.0, %v5224
      %v5226 = vpop.f32.mrf.mxu0
      %v5227 = vpop.f32.mrf.mxu0
      %v5228 = vadd.f32 0.0, %v5227
      %v5229 = vpop.f32.mrf.mxu0
      %5230 = vmatprep.mubr.bf16.mxu0 0
      %5231 = vmatmul.mubr.bf16.gmra.mxu0 %v5127
      %v5232 = vpop.f32.mrf.mxu0
      %v5233 = vadd.f32 0.0, %v5232
      %v5234 = vpop.f32.mrf.mxu0
      %v5235 = vpop.f32.mrf.mxu0
      %v5236 = vadd.f32 0.0, %v5235
      %v5237 = vpop.f32.mrf.mxu0
      %5238 = vmatprep.mubr.bf16.mxu0 0
      %5239 = vmatmul.mubr.bf16.gmra.mxu0 %v5130
      %v5240 = vpop.f32.mrf.mxu0
      %v5241 = vadd.f32 0.0, %v5240
      %v5242 = vpop.f32.mrf.mxu0
      %v5243 = vpop.f32.mrf.mxu0
      %v5244 = vadd.f32 0.0, %v5243
      %v5245 = vpop.f32.mrf.mxu0
      %5246 = vmatprep.mubr.bf16.mxu0 0
      %5247 = vmatmul.mubr.bf16.gmra.mxu0 %v5133
      %v5248 = vpop.f32.mrf.mxu0
      %v5249 = vadd.f32 0.0, %v5248
      %v5250 = vpop.f32.mrf.mxu0
      %v5251 = vpop.f32.mrf.mxu0
      %v5252 = vadd.f32 0.0, %v5251
      %v5253 = vpop.f32.mrf.mxu0
      %5254 = vmatprep.mubr.bf16.mxu0 0
      %5255 = vmatmul.mubr.bf16.gmra.mxu0 %v5136
      %v5256 = vpop.f32.mrf.mxu0
      %v5257 = vadd.f32 0.0, %v5256
      %v5258 = vpop.f32.mrf.mxu0
      %v5259 = vpop.f32.mrf.mxu0
      %v5260 = vadd.f32 0.0, %v5259
      %v5261 = vpop.f32.mrf.mxu0
      %5262 = vmatprep.mubr.bf16.mxu0 0
      %5263 = vmatmul.mubr.bf16.gmra.mxu0 %v5139
      %v5264 = vpop.f32.mrf.mxu0
      %v5265 = vadd.f32 0.0, %v5264
      %v5266 = vpop.f32.mrf.mxu0
      %v5267 = vpop.f32.mrf.mxu0
      %v5268 = vadd.f32 0.0, %v5267
      %v5269 = vpop.f32.mrf.mxu0
      %5270 = vmatprep.mubr.bf16.mxu0 0
      %5271 = vmatmul.mubr.bf16.gmra.mxu0 %v5142
      %v5272 = vpop.f32.mrf.mxu0
      %v5273 = vadd.f32 0.0, %v5272
      %v5274 = vpop.f32.mrf.mxu0
      %v5275 = vpop.f32.mrf.mxu0
      %v5276 = vadd.f32 0.0, %v5275
      %v5277 = vpop.f32.mrf.mxu0
      %5278 = vmatprep.mubr.bf16.mxu0 0
      %5279 = vmatmul.mubr.bf16.gmra.mxu0 %v5145
      %v5280 = vpop.f32.mrf.mxu0
      %v5281 = vadd.f32 0.0, %v5280
      %v5282 = vpop.f32.mrf.mxu0
      %v5283 = vpop.f32.mrf.mxu0
      %v5284 = vpop.f32.mrf.mxu0
      %5285 = vdwg.mxu0
      %v5286 = vadd.f32 %v4753, %v5185
      %v5287 = vadd.f32 %v4754, %v5188
      %v5288 = vadd.f32 %v4755, %v5193
      %v5289 = vadd.f32 %v4756, %v5196
      %v5290 = vadd.f32 %v4757, %v5201
      %v5291 = vadd.f32 %v4758, %v5204
      %v5292 = vadd.f32 %v4759, %v5209
      %v5293 = vadd.f32 %v4760, %v5212
      %v5294 = vadd.f32 %v4761, %v5217
      %v5295 = vadd.f32 %v4762, %v5220
      %v5296 = vadd.f32 %v4763, %v5225
      %v5297 = vadd.f32 %v4764, %v5228
      %v5298 = vadd.f32 %v4765, %v5233
      %v5299 = vadd.f32 %v4766, %v5236
      %v5300 = vadd.f32 %v4767, %v5241
      %v5301 = vadd.f32 %v4768, %v5244
      %v5302 = vadd.f32 %v4769, %v5249
      %v5303 = vadd.f32 %v4770, %v5252
      %v5304 = vadd.f32 %v4771, %v5257
      %v5305 = vadd.f32 %v4772, %v5260
      %v5306 = vadd.f32 %v4773, %v5265
      %v5307 = vadd.f32 %v4774, %v5268
      %v5308 = vadd.f32 %v4775, %v5273
      %v5309 = vadd.f32 %v4776, %v5276
      %v5310 = vadd.f32 %v4777, %v5281
      %s5311 = scalar_lea.vmem %s3, 1400
      %v5312 = vld [vmem:[%s5311] sm:$0xff]
      %v5313 = vld [vmem:[%s5311 + $0x8] sm:$0xff]
      %v5314 = vld [vmem:[%s5311 + $0x10] sm:$0xff]
      %v5315 = vld [vmem:[%s5311 + $0x18] sm:$0xff]
      %v5316 = vld [vmem:[%s5311 + $0x20] sm:$0xff]
      %v5317 = vld [vmem:[%s5311 + $0x28] sm:$0xff]
      %v5318 = vld [vmem:[%s5311 + $0x30] sm:$0xff]
      %v5319 = vld [vmem:[%s5311 + $0x38] sm:$0xff]
      %v5320 = vld [vmem:[%s5311 + $0x40] sm:$0xff]
      %v5321 = vld [vmem:[%s5311 + $0x48] sm:$0xff]
      %v5322 = vld [vmem:[%s5311 + $0x50] sm:$0xff]
      %v5323 = vld [vmem:[%s5311 + $0x58] sm:$0xff]
      %v5324 = vld [vmem:[%s5311 + $0x60] sm:$0xff]
      %v5325 = vld [vmem:[%s5311 + $0x68] sm:$0xff]
      %v5326 = vld [vmem:[%s5311 + $0x70] sm:$0xff]
      %v5327 = vld [vmem:[%s5311 + $0x78] sm:$0xff]
      %v5328 = vld [vmem:[%s5311 + $0x80] sm:$0xff]
      %v5329 = vld [vmem:[%s5311 + $0x88] sm:$0xff]
      %v5330 = vld [vmem:[%s5311 + $0x90] sm:$0xff]
      %v5331 = vld [vmem:[%s5311 + $0x98] sm:$0xff]
      %v5332 = vld [vmem:[%s5311 + $0xa0] sm:$0xff]
      %v5333 = vld [vmem:[%s5311 + $0xa8] sm:$0xff]
      %v5334 = vld [vmem:[%s5311 + $0xb0] sm:$0xff]
      %v5335 = vld [vmem:[%s5311 + $0xb8] sm:$0xff]
      %v5336 = vld [vmem:[%s5311 + $0xc0] sm:$0x33]
      %v5362 = vunpack.c.l.b16 %v5312
      %v5363 = vunpack.c.h.b16 %v5312
      %v5364 = vunpack.c.l.b16 %v5313
      %v5365 = vunpack.c.h.b16 %v5313
      %v5366 = vunpack.c.l.b16 %v5314
      %v5367 = vunpack.c.h.b16 %v5314
      %v5368 = vunpack.c.l.b16 %v5315
      %v5369 = vunpack.c.h.b16 %v5315
      %v5370 = vunpack.c.l.b16 %v5316
      %v5371 = vunpack.c.h.b16 %v5316
      %v5372 = vunpack.c.l.b16 %v5317
      %v5373 = vunpack.c.h.b16 %v5317
      %v5374 = vunpack.c.l.b16 %v5318
      %v5375 = vunpack.c.h.b16 %v5318
      %v5376 = vunpack.c.l.b16 %v5319
      %v5377 = vunpack.c.h.b16 %v5319
      %v5378 = vunpack.c.l.b16 %v5320
      %v5379 = vunpack.c.h.b16 %v5320
      %v5380 = vunpack.c.l.b16 %v5321
      %v5381 = vunpack.c.h.b16 %v5321
      %v5382 = vunpack.c.l.b16 %v5322
      %v5383 = vunpack.c.h.b16 %v5322
      %v5384 = vunpack.c.l.b16 %v5323
      %v5385 = vunpack.c.h.b16 %v5323
      %v5386 = vunpack.c.l.b16 %v5324
      %v5387 = vunpack.c.h.b16 %v5324
      %v5388 = vunpack.c.l.b16 %v5325
      %v5389 = vunpack.c.h.b16 %v5325
      %v5390 = vunpack.c.l.b16 %v5326
      %v5391 = vunpack.c.h.b16 %v5326
      %v5392 = vunpack.c.l.b16 %v5327
      %v5393 = vunpack.c.h.b16 %v5327
      %v5394 = vunpack.c.l.b16 %v5328
      %v5395 = vunpack.c.h.b16 %v5328
      %v5396 = vunpack.c.l.b16 %v5329
      %v5397 = vunpack.c.h.b16 %v5329
      %v5398 = vunpack.c.l.b16 %v5330
      %v5399 = vunpack.c.h.b16 %v5330
      %v5400 = vunpack.c.l.b16 %v5331
      %v5401 = vunpack.c.h.b16 %v5331
      %v5402 = vunpack.c.l.b16 %v5332
      %v5403 = vunpack.c.h.b16 %v5332
      %v5404 = vunpack.c.l.b16 %v5333
      %v5405 = vunpack.c.h.b16 %v5333
      %v5406 = vunpack.c.l.b16 %v5334
      %v5407 = vunpack.c.h.b16 %v5334
      %v5408 = vunpack.c.l.b16 %v5335
      %v5409 = vunpack.c.h.b16 %v5335
      %v5410 = vunpack.c.l.b16 %v5336
      %v5411 = vunpack.c.h.b16 %v5336
      %v5412 = vpack.c.b16 %v5364, %v5362
      %v5413 = vpack.c.b16 %v5365, %v5363
      %v5414 = vpack.c.b16 %v5368, %v5366
      %v5415 = vpack.c.b16 %v5369, %v5367
      %v5416 = vpack.c.b16 %v5372, %v5370
      %v5417 = vpack.c.b16 %v5373, %v5371
      %v5418 = vpack.c.b16 %v5376, %v5374
      %v5419 = vpack.c.b16 %v5377, %v5375
      %v5420 = vpack.c.b16 %v5380, %v5378
      %v5421 = vpack.c.b16 %v5381, %v5379
      %v5422 = vpack.c.b16 %v5384, %v5382
      %v5423 = vpack.c.b16 %v5385, %v5383
      %v5424 = vpack.c.b16 %v5388, %v5386
      %v5425 = vpack.c.b16 %v5389, %v5387
      %v5426 = vpack.c.b16 %v5392, %v5390
      %v5427 = vpack.c.b16 %v5393, %v5391
      %v5428 = vpack.c.b16 %v5396, %v5394
      %v5429 = vpack.c.b16 %v5397, %v5395
      %v5430 = vpack.c.b16 %v5400, %v5398
      %v5431 = vpack.c.b16 %v5401, %v5399
      %v5432 = vpack.c.b16 %v5404, %v5402
      %v5433 = vpack.c.b16 %v5405, %v5403
      %v5434 = vpack.c.b16 %v5408, %v5406
      %v5435 = vpack.c.b16 %v5409, %v5407
      %v5436 = vpack.c.b16 %v5410, %v5410
      %v5437 = vpack.c.b16 %v5411, %v5411
      %v5452 = vsel %vm1765, %v5413, 0
      %v5455 = vsel %vm1765, %v5415, 0
      %v5458 = vsel %vm1765, %v5417, 0
      %v5461 = vsel %vm1765, %v5419, 0
      %v5464 = vsel %vm1765, %v5421, 0
      %v5467 = vsel %vm1765, %v5423, 0
      %v5470 = vsel %vm1765, %v5425, 0
      %v5473 = vsel %vm1765, %v5427, 0
      %v5476 = vsel %vm1765, %v5429, 0
      %v5479 = vsel %vm1765, %v5431, 0
      %v5482 = vsel %vm1765, %v5433, 0
      %v5485 = vsel %vm1765, %v5435, 0
      %v5488 = vsel %vm1765, %v5437, 0
      %5490 = vmatprep.subr.bf16.mxu0 0
      %5491 = vmatpush1.bf16.msra.mxu0 %v1620
      %5492 = vmatprep.subr.bf16.mxu0 0
      %5493 = vmatpush1.bf16.msra.mxu0 %v1619
      %5494 = vmatprep.subr.bf16.mxu0 0
      %5495 = vmatpush1.bf16.msra.mxu0 %v1618
      %5496 = vmatprep.subr.bf16.mxu0 0
      %5497 = vmatpush1.bf16.msra.mxu0 %v1617
      %5498 = vmatprep.subr.bf16.mxu0 0
      %5499 = vmatpush1.bf16.msra.mxu0 %v1616
      %5500 = vmatprep.subr.bf16.mxu0 0
      %5501 = vmatpush1.bf16.msra.mxu0 %v1615
      %5502 = vmatprep.subr.bf16.mxu0 0
      %5503 = vmatpush1.bf16.msra.mxu0 %v1614
      %5504 = vmatprep.subr.bf16.mxu0 0
      %5505 = vmatpush1.bf16.msra.mxu0 %v1613
      %5506 = vmatprep.subr.bf16.mxu0 0
      %5507 = vmatpush2.bf16.msra.mxu0 0
      %5508 = vmatprep.subr.bf16.mxu0 0
      %5509 = vmatpush2.bf16.msra.mxu0 0
      %5510 = vmatprep.subr.bf16.mxu0 0
      %5511 = vmatpush2.bf16.msra.mxu0 0
      %5512 = vmatprep.subr.bf16.mxu0 0
      %5513 = vmatpush2.bf16.msra.mxu0 %v1807
      %5514 = vmatprep.subr.bf16.mxu0 0
      %5515 = vmatpush2.bf16.msra.mxu0 %v1624
      %5516 = vmatprep.subr.bf16.mxu0 0
      %5517 = vmatpush2.bf16.msra.mxu0 %v1623
      %5518 = vmatprep.subr.bf16.mxu0 0
      %5519 = vmatpush2.bf16.msra.mxu0 %v1622
      %5520 = vmatprep.subr.bf16.mxu0 0
      %5521 = vmatpush2.bf16.msra.mxu0 %v1621
      %5522 = vmatprep.mubr.bf16.mxu0 %v5452
      %5523 = vmatmul.mubr.bf16.gmra.mxu0 %v5412
      %v5524 = vpop.f32.mrf.mxu0
      %v5525 = vadd.f32 0.0, %v5524
      %v5526 = vpop.f32.mrf.mxu0
      %v5527 = vpop.f32.mrf.mxu0
      %v5528 = vadd.f32 0.0, %v5527
      %v5529 = vpop.f32.mrf.mxu0
      %5530 = vmatprep.mubr.bf16.mxu0 %v5455
      %5531 = vmatmul.mubr.bf16.gmra.mxu0 %v5414
      %v5532 = vpop.f32.mrf.mxu0
      %v5533 = vadd.f32 0.0, %v5532
      %v5534 = vpop.f32.mrf.mxu0
      %v5535 = vpop.f32.mrf.mxu0
      %v5536 = vadd.f32 0.0, %v5535
      %v5537 = vpop.f32.mrf.mxu0
      %5538 = vmatprep.mubr.bf16.mxu0 %v5458
      %5539 = vmatmul.mubr.bf16.gmra.mxu0 %v5416
      %v5540 = vpop.f32.mrf.mxu0
      %v5541 = vadd.f32 0.0, %v5540
      %v5542 = vpop.f32.mrf.mxu0
      %v5543 = vpop.f32.mrf.mxu0
      %v5544 = vadd.f32 0.0, %v5543
      %v5545 = vpop.f32.mrf.mxu0
      %5546 = vmatprep.mubr.bf16.mxu0 %v5461
      %5547 = vmatmul.mubr.bf16.gmra.mxu0 %v5418
      %v5548 = vpop.f32.mrf.mxu0
      %v5549 = vadd.f32 0.0, %v5548
      %v5550 = vpop.f32.mrf.mxu0
      %v5551 = vpop.f32.mrf.mxu0
      %v5552 = vadd.f32 0.0, %v5551
      %v5553 = vpop.f32.mrf.mxu0
      %5554 = vmatprep.mubr.bf16.mxu0 %v5464
      %5555 = vmatmul.mubr.bf16.gmra.mxu0 %v5420
      %v5556 = vpop.f32.mrf.mxu0
      %v5557 = vadd.f32 0.0, %v5556
      %v5558 = vpop.f32.mrf.mxu0
      %v5559 = vpop.f32.mrf.mxu0
      %v5560 = vadd.f32 0.0, %v5559
      %v5561 = vpop.f32.mrf.mxu0
      %5562 = vmatprep.mubr.bf16.mxu0 %v5467
      %5563 = vmatmul.mubr.bf16.gmra.mxu0 %v5422
      %v5564 = vpop.f32.mrf.mxu0
      %v5565 = vadd.f32 0.0, %v5564
      %v5566 = vpop.f32.mrf.mxu0
      %v5567 = vpop.f32.mrf.mxu0
      %v5568 = vadd.f32 0.0, %v5567
      %v5569 = vpop.f32.mrf.mxu0
      %5570 = vmatprep.mubr.bf16.mxu0 %v5470
      %5571 = vmatmul.mubr.bf16.gmra.mxu0 %v5424
      %v5572 = vpop.f32.mrf.mxu0
      %v5573 = vadd.f32 0.0, %v5572
      %v5574 = vpop.f32.mrf.mxu0
      %v5575 = vpop.f32.mrf.mxu0
      %v5576 = vadd.f32 0.0, %v5575
      %v5577 = vpop.f32.mrf.mxu0
      %5578 = vmatprep.mubr.bf16.mxu0 %v5473
      %5579 = vmatmul.mubr.bf16.gmra.mxu0 %v5426
      %v5580 = vpop.f32.mrf.mxu0
      %v5581 = vadd.f32 0.0, %v5580
      %v5582 = vpop.f32.mrf.mxu0
      %v5583 = vpop.f32.mrf.mxu0
      %v5584 = vadd.f32 0.0, %v5583
      %v5585 = vpop.f32.mrf.mxu0
      %5586 = vmatprep.mubr.bf16.mxu0 %v5476
      %5587 = vmatmul.mubr.bf16.gmra.mxu0 %v5428
      %v5588 = vpop.f32.mrf.mxu0
      %v5589 = vadd.f32 0.0, %v5588
      %v5590 = vpop.f32.mrf.mxu0
      %v5591 = vpop.f32.mrf.mxu0
      %v5592 = vadd.f32 0.0, %v5591
      %v5593 = vpop.f32.mrf.mxu0
      %5594 = vmatprep.mubr.bf16.mxu0 %v5479
      %5595 = vmatmul.mubr.bf16.gmra.mxu0 %v5430
      %v5596 = vpop.f32.mrf.mxu0
      %v5597 = vadd.f32 0.0, %v5596
      %v5598 = vpop.f32.mrf.mxu0
      %v5599 = vpop.f32.mrf.mxu0
      %v5600 = vadd.f32 0.0, %v5599
      %v5601 = vpop.f32.mrf.mxu0
      %5602 = vmatprep.mubr.bf16.mxu0 %v5482
      %5603 = vmatmul.mubr.bf16.gmra.mxu0 %v5432
      %v5604 = vpop.f32.mrf.mxu0
      %v5605 = vadd.f32 0.0, %v5604
      %v5606 = vpop.f32.mrf.mxu0
      %v5607 = vpop.f32.mrf.mxu0
      %v5608 = vadd.f32 0.0, %v5607
      %v5609 = vpop.f32.mrf.mxu0
      %5610 = vmatprep.mubr.bf16.mxu0 %v5485
      %5611 = vmatmul.mubr.bf16.gmra.mxu0 %v5434
      %v5612 = vpop.f32.mrf.mxu0
      %v5613 = vadd.f32 0.0, %v5612
      %v5614 = vpop.f32.mrf.mxu0
      %v5615 = vpop.f32.mrf.mxu0
      %v5616 = vadd.f32 0.0, %v5615
      %v5617 = vpop.f32.mrf.mxu0
      %5618 = vmatprep.mubr.bf16.mxu0 %v5488
      %5619 = vmatmul.mubr.bf16.gmra.mxu0 %v5436
      %v5620 = vpop.f32.mrf.mxu0
      %v5621 = vadd.f32 0.0, %v5620
      %v5622 = vpop.f32.mrf.mxu0
      %v5623 = vpop.f32.mrf.mxu0
      %v5624 = vpop.f32.mrf.mxu0
      %5625 = vdwg.mxu0
      %v5626 = vpack.c.bf16 %v5528, %v5525
      %v5627 = vpack.c.bf16 %v5536, %v5533
      %v5628 = vpack.c.bf16 %v5544, %v5541
      %v5629 = vpack.c.bf16 %v5552, %v5549
      %v5630 = vpack.c.bf16 %v5560, %v5557
      %v5631 = vpack.c.bf16 %v5568, %v5565
      %v5632 = vpack.c.bf16 %v5576, %v5573
      %v5633 = vpack.c.bf16 %v5584, %v5581
      %v5634 = vpack.c.bf16 %v5592, %v5589
      %v5635 = vpack.c.bf16 %v5600, %v5597
      %v5636 = vpack.c.bf16 %v5608, %v5605
      %v5637 = vpack.c.bf16 %v5616, %v5613
      %v5638 = vpack.c.bf16 %v5621, %v5621
      %s5639 = scalar_lea.vmem %s4, 28
      %v5640 = vld [vmem:[%s5639] sm:$0xf]
      %v5642 = vsel %vm2289, %v5626, 0
      %v5645 = vsel %vm2289, %v5627, 0
      %v5648 = vsel %vm2289, %v5628, 0
      %v5651 = vsel %vm2289, %v5629, 0
      %v5654 = vsel %vm2289, %v5630, 0
      %v5657 = vsel %vm2289, %v5631, 0
      %v5660 = vsel %vm2289, %v5632, 0
      %v5663 = vsel %vm2289, %v5633, 0
      %v5666 = vsel %vm2289, %v5634, 0
      %v5669 = vsel %vm2289, %v5635, 0
      %v5672 = vsel %vm2289, %v5636, 0
      %v5675 = vsel %vm2289, %v5637, 0
      %v5678 = vsel %vm2289, %v5638, 0
      %v5681 = vsel %vm503, %v5640, 0
      %5683 = vmatprep.subr.bf16.mxu0 0
      %5684 = vmatpush1.bf16.msra.mxu0 0
      %5685 = vmatprep.subr.bf16.mxu0 0
      %5686 = vmatpush1.bf16.msra.mxu0 0
      %5687 = vmatprep.subr.bf16.mxu0 0
      %5688 = vmatpush1.bf16.msra.mxu0 0
      %5689 = vmatprep.subr.bf16.mxu0 0
      %5690 = vmatpush1.bf16.msra.mxu0 0
      %5691 = vmatprep.subr.bf16.mxu0 0
      %5692 = vmatpush1.bf16.msra.mxu0 0
      %5693 = vmatprep.subr.bf16.mxu0 0
      %5694 = vmatpush1.bf16.msra.mxu0 0
      %5695 = vmatprep.subr.bf16.mxu0 0
      %5696 = vmatpush1.bf16.msra.mxu0 0
      %5697 = vmatprep.subr.bf16.mxu0 0
      %5698 = vmatpush1.bf16.msra.mxu0 %v5681
      %5699 = vmatprep.subr.bf16.mxu0 0
      %5700 = vmatpush2.bf16.msra.mxu0 0
      %5701 = vmatprep.subr.bf16.mxu0 0
      %5702 = vmatpush2.bf16.msra.mxu0 0
      %5703 = vmatprep.subr.bf16.mxu0 0
      %5704 = vmatpush2.bf16.msra.mxu0 0
      %5705 = vmatprep.subr.bf16.mxu0 0
      %5706 = vmatpush2.bf16.msra.mxu0 0
      %5707 = vmatprep.subr.bf16.mxu0 0
      %5708 = vmatpush2.bf16.msra.mxu0 0
      %5709 = vmatprep.subr.bf16.mxu0 0
      %5710 = vmatpush2.bf16.msra.mxu0 0
      %5711 = vmatprep.subr.bf16.mxu0 0
      %5712 = vmatpush2.bf16.msra.mxu0 0
      %5713 = vmatprep.subr.bf16.mxu0 0
      %5714 = vmatpush2.bf16.msra.mxu0 0
      %5715 = vmatprep.mubr.bf16.mxu0 0
      %5716 = vmatmul.mubr.bf16.gmra.mxu0 %v5642
      %v5717 = vpop.f32.mrf.mxu0
      %v5718 = vadd.f32 0.0, %v5717
      %v5719 = vpop.f32.mrf.mxu0
      %v5720 = vpop.f32.mrf.mxu0
      %v5721 = vadd.f32 0.0, %v5720
      %v5722 = vpop.f32.mrf.mxu0
      %5723 = vmatprep.mubr.bf16.mxu0 0
      %5724 = vmatmul.mubr.bf16.gmra.mxu0 %v5645
      %v5725 = vpop.f32.mrf.mxu0
      %v5726 = vadd.f32 0.0, %v5725
      %v5727 = vpop.f32.mrf.mxu0
      %v5728 = vpop.f32.mrf.mxu0
      %v5729 = vadd.f32 0.0, %v5728
      %v5730 = vpop.f32.mrf.mxu0
      %5731 = vmatprep.mubr.bf16.mxu0 0
      %5732 = vmatmul.mubr.bf16.gmra.mxu0 %v5648
      %v5733 = vpop.f32.mrf.mxu0
      %v5734 = vadd.f32 0.0, %v5733
      %v5735 = vpop.f32.mrf.mxu0
      %v5736 = vpop.f32.mrf.mxu0
      %v5737 = vadd.f32 0.0, %v5736
      %v5738 = vpop.f32.mrf.mxu0
      %5739 = vmatprep.mubr.bf16.mxu0 0
      %5740 = vmatmul.mubr.bf16.gmra.mxu0 %v5651
      %v5741 = vpop.f32.mrf.mxu0
      %v5742 = vadd.f32 0.0, %v5741
      %v5743 = vpop.f32.mrf.mxu0
      %v5744 = vpop.f32.mrf.mxu0
      %v5745 = vadd.f32 0.0, %v5744
      %v5746 = vpop.f32.mrf.mxu0
      %5747 = vmatprep.mubr.bf16.mxu0 0
      %5748 = vmatmul.mubr.bf16.gmra.mxu0 %v5654
      %v5749 = vpop.f32.mrf.mxu0
      %v5750 = vadd.f32 0.0, %v5749
      %v5751 = vpop.f32.mrf.mxu0
      %v5752 = vpop.f32.mrf.mxu0
      %v5753 = vadd.f32 0.0, %v5752
      %v5754 = vpop.f32.mrf.mxu0
      %5755 = vmatprep.mubr.bf16.mxu0 0
      %5756 = vmatmul.mubr.bf16.gmra.mxu0 %v5657
      %v5757 = vpop.f32.mrf.mxu0
      %v5758 = vadd.f32 0.0, %v5757
      %v5759 = vpop.f32.mrf.mxu0
      %v5760 = vpop.f32.mrf.mxu0
      %v5761 = vadd.f32 0.0, %v5760
      %v5762 = vpop.f32.mrf.mxu0
      %5763 = vmatprep.mubr.bf16.mxu0 0
      %5764 = vmatmul.mubr.bf16.gmra.mxu0 %v5660
      %v5765 = vpop.f32.mrf.mxu0
      %v5766 = vadd.f32 0.0, %v5765
      %v5767 = vpop.f32.mrf.mxu0
      %v5768 = vpop.f32.mrf.mxu0
      %v5769 = vadd.f32 0.0, %v5768
      %v5770 = vpop.f32.mrf.mxu0
      %5771 = vmatprep.mubr.bf16.mxu0 0
      %5772 = vmatmul.mubr.bf16.gmra.mxu0 %v5663
      %v5773 = vpop.f32.mrf.mxu0
      %v5774 = vadd.f32 0.0, %v5773
      %v5775 = vpop.f32.mrf.mxu0
      %v5776 = vpop.f32.mrf.mxu0
      %v5777 = vadd.f32 0.0, %v5776
      %v5778 = vpop.f32.mrf.mxu0
      %5779 = vmatprep.mubr.bf16.mxu0 0
      %5780 = vmatmul.mubr.bf16.gmra.mxu0 %v5666
      %v5781 = vpop.f32.mrf.mxu0
      %v5782 = vadd.f32 0.0, %v5781
      %v5783 = vpop.f32.mrf.mxu0
      %v5784 = vpop.f32.mrf.mxu0
      %v5785 = vadd.f32 0.0, %v5784
      %v5786 = vpop.f32.mrf.mxu0
      %5787 = vmatprep.mubr.bf16.mxu0 0
      %5788 = vmatmul.mubr.bf16.gmra.mxu0 %v5669
      %v5789 = vpop.f32.mrf.mxu0
      %v5790 = vadd.f32 0.0, %v5789
      %v5791 = vpop.f32.mrf.mxu0
      %v5792 = vpop.f32.mrf.mxu0
      %v5793 = vadd.f32 0.0, %v5792
      %v5794 = vpop.f32.mrf.mxu0
      %5795 = vmatprep.mubr.bf16.mxu0 0
      %5796 = vmatmul.mubr.bf16.gmra.mxu0 %v5672
      %v5797 = vpop.f32.mrf.mxu0
      %v5798 = vadd.f32 0.0, %v5797
      %v5799 = vpop.f32.mrf.mxu0
      %v5800 = vpop.f32.mrf.mxu0
      %v5801 = vadd.f32 0.0, %v5800
      %v5802 = vpop.f32.mrf.mxu0
      %5803 = vmatprep.mubr.bf16.mxu0 0
      %5804 = vmatmul.mubr.bf16.gmra.mxu0 %v5675
      %v5805 = vpop.f32.mrf.mxu0
      %v5806 = vadd.f32 0.0, %v5805
      %v5807 = vpop.f32.mrf.mxu0
      %v5808 = vpop.f32.mrf.mxu0
      %v5809 = vadd.f32 0.0, %v5808
      %v5810 = vpop.f32.mrf.mxu0
      %5811 = vmatprep.mubr.bf16.mxu0 0
      %5812 = vmatmul.mubr.bf16.gmra.mxu0 %v5678
      %v5813 = vpop.f32.mrf.mxu0
      %v5814 = vadd.f32 0.0, %v5813
      %v5815 = vpop.f32.mrf.mxu0
      %v5816 = vpop.f32.mrf.mxu0
      %v5817 = vpop.f32.mrf.mxu0
      %5818 = vdwg.mxu0
      %v5819 = vadd.f32 %v5286, %v5718
      %v5820 = vadd.f32 %v5287, %v5721
      %v5821 = vadd.f32 %v5288, %v5726
      %v5822 = vadd.f32 %v5289, %v5729
      %v5823 = vadd.f32 %v5290, %v5734
      %v5824 = vadd.f32 %v5291, %v5737
      %v5825 = vadd.f32 %v5292, %v5742
      %v5826 = vadd.f32 %v5293, %v5745
      %v5827 = vadd.f32 %v5294, %v5750
      %v5828 = vadd.f32 %v5295, %v5753
      %v5829 = vadd.f32 %v5296, %v5758
      %v5830 = vadd.f32 %v5297, %v5761
      %v5831 = vadd.f32 %v5298, %v5766
      %v5832 = vadd.f32 %v5299, %v5769
      %v5833 = vadd.f32 %v5300, %v5774
      %v5834 = vadd.f32 %v5301, %v5777
      %v5835 = vadd.f32 %v5302, %v5782
      %v5836 = vadd.f32 %v5303, %v5785
      %v5837 = vadd.f32 %v5304, %v5790
      %v5838 = vadd.f32 %v5305, %v5793
      %v5839 = vadd.f32 %v5306, %v5798
      %v5840 = vadd.f32 %v5307, %v5801
      %v5841 = vadd.f32 %v5308, %v5806
      %v5842 = vadd.f32 %v5309, %v5809
      %v5843 = vadd.f32 %v5310, %v5814
      %s5844 = scalar_lea.vmem %s3, 1600
      %v5845 = vld [vmem:[%s5844] sm:$0xff]
      %v5846 = vld [vmem:[%s5844 + $0x8] sm:$0xff]
      %v5847 = vld [vmem:[%s5844 + $0x10] sm:$0xff]
      %v5848 = vld [vmem:[%s5844 + $0x18] sm:$0xff]
      %v5849 = vld [vmem:[%s5844 + $0x20] sm:$0xff]
      %v5850 = vld [vmem:[%s5844 + $0x28] sm:$0xff]
      %v5851 = vld [vmem:[%s5844 + $0x30] sm:$0xff]
      %v5852 = vld [vmem:[%s5844 + $0x38] sm:$0xff]
      %v5853 = vld [vmem:[%s5844 + $0x40] sm:$0xff]
      %v5854 = vld [vmem:[%s5844 + $0x48] sm:$0xff]
      %v5855 = vld [vmem:[%s5844 + $0x50] sm:$0xff]
      %v5856 = vld [vmem:[%s5844 + $0x58] sm:$0xff]
      %v5857 = vld [vmem:[%s5844 + $0x60] sm:$0xff]
      %v5858 = vld [vmem:[%s5844 + $0x68] sm:$0xff]
      %v5859 = vld [vmem:[%s5844 + $0x70] sm:$0xff]
      %v5860 = vld [vmem:[%s5844 + $0x78] sm:$0xff]
      %v5861 = vld [vmem:[%s5844 + $0x80] sm:$0xff]
      %v5862 = vld [vmem:[%s5844 + $0x88] sm:$0xff]
      %v5863 = vld [vmem:[%s5844 + $0x90] sm:$0xff]
      %v5864 = vld [vmem:[%s5844 + $0x98] sm:$0xff]
      %v5865 = vld [vmem:[%s5844 + $0xa0] sm:$0xff]
      %v5866 = vld [vmem:[%s5844 + $0xa8] sm:$0xff]
      %v5867 = vld [vmem:[%s5844 + $0xb0] sm:$0xff]
      %v5868 = vld [vmem:[%s5844 + $0xb8] sm:$0xff]
      %v5869 = vld [vmem:[%s5844 + $0xc0] sm:$0x33]
      %v5895 = vunpack.c.l.b16 %v5845
      %v5896 = vunpack.c.h.b16 %v5845
      %v5897 = vunpack.c.l.b16 %v5846
      %v5898 = vunpack.c.h.b16 %v5846
      %v5899 = vunpack.c.l.b16 %v5847
      %v5900 = vunpack.c.h.b16 %v5847
      %v5901 = vunpack.c.l.b16 %v5848
      %v5902 = vunpack.c.h.b16 %v5848
      %v5903 = vunpack.c.l.b16 %v5849
      %v5904 = vunpack.c.h.b16 %v5849
      %v5905 = vunpack.c.l.b16 %v5850
      %v5906 = vunpack.c.h.b16 %v5850
      %v5907 = vunpack.c.l.b16 %v5851
      %v5908 = vunpack.c.h.b16 %v5851
      %v5909 = vunpack.c.l.b16 %v5852
      %v5910 = vunpack.c.h.b16 %v5852
      %v5911 = vunpack.c.l.b16 %v5853
      %v5912 = vunpack.c.h.b16 %v5853
      %v5913 = vunpack.c.l.b16 %v5854
      %v5914 = vunpack.c.h.b16 %v5854
      %v5915 = vunpack.c.l.b16 %v5855
      %v5916 = vunpack.c.h.b16 %v5855
      %v5917 = vunpack.c.l.b16 %v5856
      %v5918 = vunpack.c.h.b16 %v5856
      %v5919 = vunpack.c.l.b16 %v5857
      %v5920 = vunpack.c.h.b16 %v5857
      %v5921 = vunpack.c.l.b16 %v5858
      %v5922 = vunpack.c.h.b16 %v5858
      %v5923 = vunpack.c.l.b16 %v5859
      %v5924 = vunpack.c.h.b16 %v5859
      %v5925 = vunpack.c.l.b16 %v5860
      %v5926 = vunpack.c.h.b16 %v5860
      %v5927 = vunpack.c.l.b16 %v5861
      %v5928 = vunpack.c.h.b16 %v5861
      %v5929 = vunpack.c.l.b16 %v5862
      %v5930 = vunpack.c.h.b16 %v5862
      %v5931 = vunpack.c.l.b16 %v5863
      %v5932 = vunpack.c.h.b16 %v5863
      %v5933 = vunpack.c.l.b16 %v5864
      %v5934 = vunpack.c.h.b16 %v5864
      %v5935 = vunpack.c.l.b16 %v5865
      %v5936 = vunpack.c.h.b16 %v5865
      %v5937 = vunpack.c.l.b16 %v5866
      %v5938 = vunpack.c.h.b16 %v5866
      %v5939 = vunpack.c.l.b16 %v5867
      %v5940 = vunpack.c.h.b16 %v5867
      %v5941 = vunpack.c.l.b16 %v5868
      %v5942 = vunpack.c.h.b16 %v5868
      %v5943 = vunpack.c.l.b16 %v5869
      %v5944 = vunpack.c.h.b16 %v5869
      %v5945 = vpack.c.b16 %v5897, %v5895
      %v5946 = vpack.c.b16 %v5898, %v5896
      %v5947 = vpack.c.b16 %v5901, %v5899
      %v5948 = vpack.c.b16 %v5902, %v5900
      %v5949 = vpack.c.b16 %v5905, %v5903
      %v5950 = vpack.c.b16 %v5906, %v5904
      %v5951 = vpack.c.b16 %v5909, %v5907
      %v5952 = vpack.c.b16 %v5910, %v5908
      %v5953 = vpack.c.b16 %v5913, %v5911
      %v5954 = vpack.c.b16 %v5914, %v5912
      %v5955 = vpack.c.b16 %v5917, %v5915
      %v5956 = vpack.c.b16 %v5918, %v5916
      %v5957 = vpack.c.b16 %v5921, %v5919
      %v5958 = vpack.c.b16 %v5922, %v5920
      %v5959 = vpack.c.b16 %v5925, %v5923
      %v5960 = vpack.c.b16 %v5926, %v5924
      %v5961 = vpack.c.b16 %v5929, %v5927
      %v5962 = vpack.c.b16 %v5930, %v5928
      %v5963 = vpack.c.b16 %v5933, %v5931
      %v5964 = vpack.c.b16 %v5934, %v5932
      %v5965 = vpack.c.b16 %v5937, %v5935
      %v5966 = vpack.c.b16 %v5938, %v5936
      %v5967 = vpack.c.b16 %v5941, %v5939
      %v5968 = vpack.c.b16 %v5942, %v5940
      %v5969 = vpack.c.b16 %v5943, %v5943
      %v5970 = vpack.c.b16 %v5944, %v5944
      %v5985 = vsel %vm1765, %v5946, 0
      %v5988 = vsel %vm1765, %v5948, 0
      %v5991 = vsel %vm1765, %v5950, 0
      %v5994 = vsel %vm1765, %v5952, 0
      %v5997 = vsel %vm1765, %v5954, 0
      %v6000 = vsel %vm1765, %v5956, 0
      %v6003 = vsel %vm1765, %v5958, 0
      %v6006 = vsel %vm1765, %v5960, 0
      %v6009 = vsel %vm1765, %v5962, 0
      %v6012 = vsel %vm1765, %v5964, 0
      %v6015 = vsel %vm1765, %v5966, 0
      %v6018 = vsel %vm1765, %v5968, 0
      %v6021 = vsel %vm1765, %v5970, 0
      %6023 = vmatprep.subr.bf16.mxu0 0
      %6024 = vmatpush1.bf16.msra.mxu0 %v1620
      %6025 = vmatprep.subr.bf16.mxu0 0
      %6026 = vmatpush1.bf16.msra.mxu0 %v1619
      %6027 = vmatprep.subr.bf16.mxu0 0
      %6028 = vmatpush1.bf16.msra.mxu0 %v1618
      %6029 = vmatprep.subr.bf16.mxu0 0
      %6030 = vmatpush1.bf16.msra.mxu0 %v1617
      %6031 = vmatprep.subr.bf16.mxu0 0
      %6032 = vmatpush1.bf16.msra.mxu0 %v1616
      %6033 = vmatprep.subr.bf16.mxu0 0
      %6034 = vmatpush1.bf16.msra.mxu0 %v1615
      %6035 = vmatprep.subr.bf16.mxu0 0
      %6036 = vmatpush1.bf16.msra.mxu0 %v1614
      %6037 = vmatprep.subr.bf16.mxu0 0
      %6038 = vmatpush1.bf16.msra.mxu0 %v1613
      %6039 = vmatprep.subr.bf16.mxu0 0
      %6040 = vmatpush2.bf16.msra.mxu0 0
      %6041 = vmatprep.subr.bf16.mxu0 0
      %6042 = vmatpush2.bf16.msra.mxu0 0
      %6043 = vmatprep.subr.bf16.mxu0 0
      %6044 = vmatpush2.bf16.msra.mxu0 0
      %6045 = vmatprep.subr.bf16.mxu0 0
      %6046 = vmatpush2.bf16.msra.mxu0 %v1807
      %6047 = vmatprep.subr.bf16.mxu0 0
      %6048 = vmatpush2.bf16.msra.mxu0 %v1624
      %6049 = vmatprep.subr.bf16.mxu0 0
      %6050 = vmatpush2.bf16.msra.mxu0 %v1623
      %6051 = vmatprep.subr.bf16.mxu0 0
      %6052 = vmatpush2.bf16.msra.mxu0 %v1622
      %6053 = vmatprep.subr.bf16.mxu0 0
      %6054 = vmatpush2.bf16.msra.mxu0 %v1621
      %6055 = vmatprep.mubr.bf16.mxu0 %v5985
      %6056 = vmatmul.mubr.bf16.gmra.mxu0 %v5945
      %v6057 = vpop.f32.mrf.mxu0
      %v6058 = vadd.f32 0.0, %v6057
      %v6059 = vpop.f32.mrf.mxu0
      %v6060 = vpop.f32.mrf.mxu0
      %v6061 = vadd.f32 0.0, %v6060
      %v6062 = vpop.f32.mrf.mxu0
      %6063 = vmatprep.mubr.bf16.mxu0 %v5988
      %6064 = vmatmul.mubr.bf16.gmra.mxu0 %v5947
      %v6065 = vpop.f32.mrf.mxu0
      %v6066 = vadd.f32 0.0, %v6065
      %v6067 = vpop.f32.mrf.mxu0
      %v6068 = vpop.f32.mrf.mxu0
      %v6069 = vadd.f32 0.0, %v6068
      %v6070 = vpop.f32.mrf.mxu0
      %6071 = vmatprep.mubr.bf16.mxu0 %v5991
      %6072 = vmatmul.mubr.bf16.gmra.mxu0 %v5949
      %v6073 = vpop.f32.mrf.mxu0
      %v6074 = vadd.f32 0.0, %v6073
      %v6075 = vpop.f32.mrf.mxu0
      %v6076 = vpop.f32.mrf.mxu0
      %v6077 = vadd.f32 0.0, %v6076
      %v6078 = vpop.f32.mrf.mxu0
      %6079 = vmatprep.mubr.bf16.mxu0 %v5994
      %6080 = vmatmul.mubr.bf16.gmra.mxu0 %v5951
      %v6081 = vpop.f32.mrf.mxu0
      %v6082 = vadd.f32 0.0, %v6081
      %v6083 = vpop.f32.mrf.mxu0
      %v6084 = vpop.f32.mrf.mxu0
      %v6085 = vadd.f32 0.0, %v6084
      %v6086 = vpop.f32.mrf.mxu0
      %6087 = vmatprep.mubr.bf16.mxu0 %v5997
      %6088 = vmatmul.mubr.bf16.gmra.mxu0 %v5953
      %v6089 = vpop.f32.mrf.mxu0
      %v6090 = vadd.f32 0.0, %v6089
      %v6091 = vpop.f32.mrf.mxu0
      %v6092 = vpop.f32.mrf.mxu0
      %v6093 = vadd.f32 0.0, %v6092
      %v6094 = vpop.f32.mrf.mxu0
      %6095 = vmatprep.mubr.bf16.mxu0 %v6000
      %6096 = vmatmul.mubr.bf16.gmra.mxu0 %v5955
      %v6097 = vpop.f32.mrf.mxu0
      %v6098 = vadd.f32 0.0, %v6097
      %v6099 = vpop.f32.mrf.mxu0
      %v6100 = vpop.f32.mrf.mxu0
      %v6101 = vadd.f32 0.0, %v6100
      %v6102 = vpop.f32.mrf.mxu0
      %6103 = vmatprep.mubr.bf16.mxu0 %v6003
      %6104 = vmatmul.mubr.bf16.gmra.mxu0 %v5957
      %v6105 = vpop.f32.mrf.mxu0
      %v6106 = vadd.f32 0.0, %v6105
      %v6107 = vpop.f32.mrf.mxu0
      %v6108 = vpop.f32.mrf.mxu0
      %v6109 = vadd.f32 0.0, %v6108
      %v6110 = vpop.f32.mrf.mxu0
      %6111 = vmatprep.mubr.bf16.mxu0 %v6006
      %6112 = vmatmul.mubr.bf16.gmra.mxu0 %v5959
      %v6113 = vpop.f32.mrf.mxu0
      %v6114 = vadd.f32 0.0, %v6113
      %v6115 = vpop.f32.mrf.mxu0
      %v6116 = vpop.f32.mrf.mxu0
      %v6117 = vadd.f32 0.0, %v6116
      %v6118 = vpop.f32.mrf.mxu0
      %6119 = vmatprep.mubr.bf16.mxu0 %v6009
      %6120 = vmatmul.mubr.bf16.gmra.mxu0 %v5961
      %v6121 = vpop.f32.mrf.mxu0
      %v6122 = vadd.f32 0.0, %v6121
      %v6123 = vpop.f32.mrf.mxu0
      %v6124 = vpop.f32.mrf.mxu0
      %v6125 = vadd.f32 0.0, %v6124
      %v6126 = vpop.f32.mrf.mxu0
      %6127 = vmatprep.mubr.bf16.mxu0 %v6012
      %6128 = vmatmul.mubr.bf16.gmra.mxu0 %v5963
      %v6129 = vpop.f32.mrf.mxu0
      %v6130 = vadd.f32 0.0, %v6129
      %v6131 = vpop.f32.mrf.mxu0
      %v6132 = vpop.f32.mrf.mxu0
      %v6133 = vadd.f32 0.0, %v6132
      %v6134 = vpop.f32.mrf.mxu0
      %6135 = vmatprep.mubr.bf16.mxu0 %v6015
      %6136 = vmatmul.mubr.bf16.gmra.mxu0 %v5965
      %v6137 = vpop.f32.mrf.mxu0
      %v6138 = vadd.f32 0.0, %v6137
      %v6139 = vpop.f32.mrf.mxu0
      %v6140 = vpop.f32.mrf.mxu0
      %v6141 = vadd.f32 0.0, %v6140
      %v6142 = vpop.f32.mrf.mxu0
      %6143 = vmatprep.mubr.bf16.mxu0 %v6018
      %6144 = vmatmul.mubr.bf16.gmra.mxu0 %v5967
      %v6145 = vpop.f32.mrf.mxu0
      %v6146 = vadd.f32 0.0, %v6145
      %v6147 = vpop.f32.mrf.mxu0
      %v6148 = vpop.f32.mrf.mxu0
      %v6149 = vadd.f32 0.0, %v6148
      %v6150 = vpop.f32.mrf.mxu0
      %6151 = vmatprep.mubr.bf16.mxu0 %v6021
      %6152 = vmatmul.mubr.bf16.gmra.mxu0 %v5969
      %v6153 = vpop.f32.mrf.mxu0
      %v6154 = vadd.f32 0.0, %v6153
      %v6155 = vpop.f32.mrf.mxu0
      %v6156 = vpop.f32.mrf.mxu0
      %v6157 = vpop.f32.mrf.mxu0
      %6158 = vdwg.mxu0
      %v6159 = vpack.c.bf16 %v6061, %v6058
      %v6160 = vpack.c.bf16 %v6069, %v6066
      %v6161 = vpack.c.bf16 %v6077, %v6074
      %v6162 = vpack.c.bf16 %v6085, %v6082
      %v6163 = vpack.c.bf16 %v6093, %v6090
      %v6164 = vpack.c.bf16 %v6101, %v6098
      %v6165 = vpack.c.bf16 %v6109, %v6106
      %v6166 = vpack.c.bf16 %v6117, %v6114
      %v6167 = vpack.c.bf16 %v6125, %v6122
      %v6168 = vpack.c.bf16 %v6133, %v6130
      %v6169 = vpack.c.bf16 %v6141, %v6138
      %v6170 = vpack.c.bf16 %v6149, %v6146
      %v6171 = vpack.c.bf16 %v6154, %v6154
      %s6172 = scalar_lea.vmem %s4, 32
      %v6173 = vld [vmem:[%s6172] sm:$0xf]
      %v6175 = vsel %vm2289, %v6159, 0
      %v6178 = vsel %vm2289, %v6160, 0
      %v6181 = vsel %vm2289, %v6161, 0
      %v6184 = vsel %vm2289, %v6162, 0
      %v6187 = vsel %vm2289, %v6163, 0
      %v6190 = vsel %vm2289, %v6164, 0
      %v6193 = vsel %vm2289, %v6165, 0
      %v6196 = vsel %vm2289, %v6166, 0
      %v6199 = vsel %vm2289, %v6167, 0
      %v6202 = vsel %vm2289, %v6168, 0
      %v6205 = vsel %vm2289, %v6169, 0
      %v6208 = vsel %vm2289, %v6170, 0
      %v6211 = vsel %vm2289, %v6171, 0
      %v6214 = vsel %vm503, %v6173, 0
      %6216 = vmatprep.subr.bf16.mxu0 0
      %6217 = vmatpush1.bf16.msra.mxu0 0
      %6218 = vmatprep.subr.bf16.mxu0 0
      %6219 = vmatpush1.bf16.msra.mxu0 0
      %6220 = vmatprep.subr.bf16.mxu0 0
      %6221 = vmatpush1.bf16.msra.mxu0 0
      %6222 = vmatprep.subr.bf16.mxu0 0
      %6223 = vmatpush1.bf16.msra.mxu0 0
      %6224 = vmatprep.subr.bf16.mxu0 0
      %6225 = vmatpush1.bf16.msra.mxu0 0
      %6226 = vmatprep.subr.bf16.mxu0 0
      %6227 = vmatpush1.bf16.msra.mxu0 0
      %6228 = vmatprep.subr.bf16.mxu0 0
      %6229 = vmatpush1.bf16.msra.mxu0 0
      %6230 = vmatprep.subr.bf16.mxu0 0
      %6231 = vmatpush1.bf16.msra.mxu0 %v6214
      %6232 = vmatprep.subr.bf16.mxu0 0
      %6233 = vmatpush2.bf16.msra.mxu0 0
      %6234 = vmatprep.subr.bf16.mxu0 0
      %6235 = vmatpush2.bf16.msra.mxu0 0
      %6236 = vmatprep.subr.bf16.mxu0 0
      %6237 = vmatpush2.bf16.msra.mxu0 0
      %6238 = vmatprep.subr.bf16.mxu0 0
      %6239 = vmatpush2.bf16.msra.mxu0 0
      %6240 = vmatprep.subr.bf16.mxu0 0
      %6241 = vmatpush2.bf16.msra.mxu0 0
      %6242 = vmatprep.subr.bf16.mxu0 0
      %6243 = vmatpush2.bf16.msra.mxu0 0
      %6244 = vmatprep.subr.bf16.mxu0 0
      %6245 = vmatpush2.bf16.msra.mxu0 0
      %6246 = vmatprep.subr.bf16.mxu0 0
      %6247 = vmatpush2.bf16.msra.mxu0 0
      %6248 = vmatprep.mubr.bf16.mxu0 0
      %6249 = vmatmul.mubr.bf16.gmra.mxu0 %v6175
      %v6250 = vpop.f32.mrf.mxu0
      %v6251 = vadd.f32 0.0, %v6250
      %v6252 = vpop.f32.mrf.mxu0
      %v6253 = vpop.f32.mrf.mxu0
      %v6254 = vadd.f32 0.0, %v6253
      %v6255 = vpop.f32.mrf.mxu0
      %6256 = vmatprep.mubr.bf16.mxu0 0
      %6257 = vmatmul.mubr.bf16.gmra.mxu0 %v6178
      %v6258 = vpop.f32.mrf.mxu0
      %v6259 = vadd.f32 0.0, %v6258
      %v6260 = vpop.f32.mrf.mxu0
      %v6261 = vpop.f32.mrf.mxu0
      %v6262 = vadd.f32 0.0, %v6261
      %v6263 = vpop.f32.mrf.mxu0
      %6264 = vmatprep.mubr.bf16.mxu0 0
      %6265 = vmatmul.mubr.bf16.gmra.mxu0 %v6181
      %v6266 = vpop.f32.mrf.mxu0
      %v6267 = vadd.f32 0.0, %v6266
      %v6268 = vpop.f32.mrf.mxu0
      %v6269 = vpop.f32.mrf.mxu0
      %v6270 = vadd.f32 0.0, %v6269
      %v6271 = vpop.f32.mrf.mxu0
      %6272 = vmatprep.mubr.bf16.mxu0 0
      %6273 = vmatmul.mubr.bf16.gmra.mxu0 %v6184
      %v6274 = vpop.f32.mrf.mxu0
      %v6275 = vadd.f32 0.0, %v6274
      %v6276 = vpop.f32.mrf.mxu0
      %v6277 = vpop.f32.mrf.mxu0
      %v6278 = vadd.f32 0.0, %v6277
      %v6279 = vpop.f32.mrf.mxu0
      %6280 = vmatprep.mubr.bf16.mxu0 0
      %6281 = vmatmul.mubr.bf16.gmra.mxu0 %v6187
      %v6282 = vpop.f32.mrf.mxu0
      %v6283 = vadd.f32 0.0, %v6282
      %v6284 = vpop.f32.mrf.mxu0
      %v6285 = vpop.f32.mrf.mxu0
      %v6286 = vadd.f32 0.0, %v6285
      %v6287 = vpop.f32.mrf.mxu0
      %6288 = vmatprep.mubr.bf16.mxu0 0
      %6289 = vmatmul.mubr.bf16.gmra.mxu0 %v6190
      %v6290 = vpop.f32.mrf.mxu0
      %v6291 = vadd.f32 0.0, %v6290
      %v6292 = vpop.f32.mrf.mxu0
      %v6293 = vpop.f32.mrf.mxu0
      %v6294 = vadd.f32 0.0, %v6293
      %v6295 = vpop.f32.mrf.mxu0
      %6296 = vmatprep.mubr.bf16.mxu0 0
      %6297 = vmatmul.mubr.bf16.gmra.mxu0 %v6193
      %v6298 = vpop.f32.mrf.mxu0
      %v6299 = vadd.f32 0.0, %v6298
      %v6300 = vpop.f32.mrf.mxu0
      %v6301 = vpop.f32.mrf.mxu0
      %v6302 = vadd.f32 0.0, %v6301
      %v6303 = vpop.f32.mrf.mxu0
      %6304 = vmatprep.mubr.bf16.mxu0 0
      %6305 = vmatmul.mubr.bf16.gmra.mxu0 %v6196
      %v6306 = vpop.f32.mrf.mxu0
      %v6307 = vadd.f32 0.0, %v6306
      %v6308 = vpop.f32.mrf.mxu0
      %v6309 = vpop.f32.mrf.mxu0
      %v6310 = vadd.f32 0.0, %v6309
      %v6311 = vpop.f32.mrf.mxu0
      %6312 = vmatprep.mubr.bf16.mxu0 0
      %6313 = vmatmul.mubr.bf16.gmra.mxu0 %v6199
      %v6314 = vpop.f32.mrf.mxu0
      %v6315 = vadd.f32 0.0, %v6314
      %v6316 = vpop.f32.mrf.mxu0
      %v6317 = vpop.f32.mrf.mxu0
      %v6318 = vadd.f32 0.0, %v6317
      %v6319 = vpop.f32.mrf.mxu0
      %6320 = vmatprep.mubr.bf16.mxu0 0
      %6321 = vmatmul.mubr.bf16.gmra.mxu0 %v6202
      %v6322 = vpop.f32.mrf.mxu0
      %v6323 = vadd.f32 0.0, %v6322
      %v6324 = vpop.f32.mrf.mxu0
      %v6325 = vpop.f32.mrf.mxu0
      %v6326 = vadd.f32 0.0, %v6325
      %v6327 = vpop.f32.mrf.mxu0
      %6328 = vmatprep.mubr.bf16.mxu0 0
      %6329 = vmatmul.mubr.bf16.gmra.mxu0 %v6205
      %v6330 = vpop.f32.mrf.mxu0
      %v6331 = vadd.f32 0.0, %v6330
      %v6332 = vpop.f32.mrf.mxu0
      %v6333 = vpop.f32.mrf.mxu0
      %v6334 = vadd.f32 0.0, %v6333
      %v6335 = vpop.f32.mrf.mxu0
      %6336 = vmatprep.mubr.bf16.mxu0 0
      %6337 = vmatmul.mubr.bf16.gmra.mxu0 %v6208
      %v6338 = vpop.f32.mrf.mxu0
      %v6339 = vadd.f32 0.0, %v6338
      %v6340 = vpop.f32.mrf.mxu0
      %v6341 = vpop.f32.mrf.mxu0
      %v6342 = vadd.f32 0.0, %v6341
      %v6343 = vpop.f32.mrf.mxu0
      %6344 = vmatprep.mubr.bf16.mxu0 0
      %6345 = vmatmul.mubr.bf16.gmra.mxu0 %v6211
      %v6346 = vpop.f32.mrf.mxu0
      %v6347 = vadd.f32 0.0, %v6346
      %v6348 = vpop.f32.mrf.mxu0
      %v6349 = vpop.f32.mrf.mxu0
      %v6350 = vpop.f32.mrf.mxu0
      %6351 = vdwg.mxu0
      %v6352 = vadd.f32 %v5819, %v6251
      %v6353 = vadd.f32 %v5820, %v6254
      %v6354 = vadd.f32 %v5821, %v6259
      %v6355 = vadd.f32 %v5822, %v6262
      %v6356 = vadd.f32 %v5823, %v6267
      %v6357 = vadd.f32 %v5824, %v6270
      %v6358 = vadd.f32 %v5825, %v6275
      %v6359 = vadd.f32 %v5826, %v6278
      %v6360 = vadd.f32 %v5827, %v6283
      %v6361 = vadd.f32 %v5828, %v6286
      %v6362 = vadd.f32 %v5829, %v6291
      %v6363 = vadd.f32 %v5830, %v6294
      %v6364 = vadd.f32 %v5831, %v6299
      %v6365 = vadd.f32 %v5832, %v6302
      %v6366 = vadd.f32 %v5833, %v6307
      %v6367 = vadd.f32 %v5834, %v6310
      %v6368 = vadd.f32 %v5835, %v6315
      %v6369 = vadd.f32 %v5836, %v6318
      %v6370 = vadd.f32 %v5837, %v6323
      %v6371 = vadd.f32 %v5838, %v6326
      %v6372 = vadd.f32 %v5839, %v6331
      %v6373 = vadd.f32 %v5840, %v6334
      %v6374 = vadd.f32 %v5841, %v6339
      %v6375 = vadd.f32 %v5842, %v6342
      %v6376 = vadd.f32 %v5843, %v6347
      %v6377 = vld [vmem:[%s5] sm:$0x1]
      %v6379 = vlaneseq
      %v6380 = vshrl.u32 %v6379, 7
      %v6381 = vsub.s32 0, %v6380
      %v6382 = vrot.slane %v6377, %v6381
      %v6384 = vadd.f32 %v6352, %v6382
      %v6385 = vadd.f32 %v6353, %v6382
      %v6386 = vadd.f32 %v6354, %v6382
      %v6387 = vadd.f32 %v6355, %v6382
      %v6388 = vadd.f32 %v6356, %v6382
      %v6389 = vadd.f32 %v6357, %v6382
      %v6390 = vadd.f32 %v6358, %v6382
      %v6391 = vadd.f32 %v6359, %v6382
      %v6392 = vadd.f32 %v6360, %v6382
      %v6393 = vadd.f32 %v6361, %v6382
      %v6394 = vadd.f32 %v6362, %v6382
      %v6395 = vadd.f32 %v6363, %v6382
      %v6396 = vadd.f32 %v6364, %v6382
      %v6397 = vadd.f32 %v6365, %v6382
      %v6398 = vadd.f32 %v6366, %v6382
      %v6399 = vadd.f32 %v6367, %v6382
      %v6400 = vadd.f32 %v6368, %v6382
      %v6401 = vadd.f32 %v6369, %v6382
      %v6402 = vadd.f32 %v6370, %v6382
      %v6403 = vadd.f32 %v6371, %v6382
      %v6404 = vadd.f32 %v6372, %v6382
      %v6405 = vadd.f32 %v6373, %v6382
      %v6406 = vadd.f32 %v6374, %v6382
      %v6407 = vadd.f32 %v6375, %v6382
      %v6408 = vadd.f32 %v6376, %v6382
      %v6409 = vmax.f32 %v6384, 0.0
      %v6410 = vmax.f32 %v6385, 0.0
      %v6411 = vmax.f32 %v6386, 0.0
      %v6412 = vmax.f32 %v6387, 0.0
      %v6413 = vmax.f32 %v6388, 0.0
      %v6414 = vmax.f32 %v6389, 0.0
      %v6415 = vmax.f32 %v6390, 0.0
      %v6416 = vmax.f32 %v6391, 0.0
      %v6417 = vmax.f32 %v6392, 0.0
      %v6418 = vmax.f32 %v6393, 0.0
      %v6419 = vmax.f32 %v6394, 0.0
      %v6420 = vmax.f32 %v6395, 0.0
      %v6421 = vmax.f32 %v6396, 0.0
      %v6422 = vmax.f32 %v6397, 0.0
      %v6423 = vmax.f32 %v6398, 0.0
      %v6424 = vmax.f32 %v6399, 0.0
      %v6425 = vmax.f32 %v6400, 0.0
      %v6426 = vmax.f32 %v6401, 0.0
      %v6427 = vmax.f32 %v6402, 0.0
      %v6428 = vmax.f32 %v6403, 0.0
      %v6429 = vmax.f32 %v6404, 0.0
      %v6430 = vmax.f32 %v6405, 0.0
      %v6431 = vmax.f32 %v6406, 0.0
      %v6432 = vmax.f32 %v6407, 0.0
      %v6433 = vmax.f32 %v6408, 0.0
      %v6434 = vpack.c.bf16 %v6410, %v6409
      %v6435 = vpack.c.bf16 %v6412, %v6411
      %v6436 = vpack.c.bf16 %v6414, %v6413
      %v6437 = vpack.c.bf16 %v6416, %v6415
      %v6438 = vpack.c.bf16 %v6418, %v6417
      %v6439 = vpack.c.bf16 %v6420, %v6419
      %v6440 = vpack.c.bf16 %v6422, %v6421
      %v6441 = vpack.c.bf16 %v6424, %v6423
      %v6442 = vpack.c.bf16 %v6426, %v6425
      %v6443 = vpack.c.bf16 %v6428, %v6427
      %v6444 = vpack.c.bf16 %v6430, %v6429
      %v6445 = vpack.c.bf16 %v6432, %v6431
      %v6446 = vpack.c.bf16 %v6433, %v6433
      %v6447 = vld [vmem:[%s6] sm:$0xff]
      %v6448 = vld [vmem:[%s6 + $0x8] sm:$0xff]
      %v6449 = vld [vmem:[%s6 + $0x10] sm:$0xff]
      %v6450 = vld [vmem:[%s6 + $0x18] sm:$0xff]
      %v6451 = vld [vmem:[%s6 + $0x20] sm:$0xff]
      %v6452 = vld [vmem:[%s6 + $0x28] sm:$0xff]
      %v6453 = vld [vmem:[%s6 + $0x30] sm:$0x11]
      %v6461 = vunpack.c.l.b16 %v6447
      %v6462 = vunpack.c.h.b16 %v6447
      %v6463 = vunpack.c.l.b16 %v6448
      %v6464 = vunpack.c.h.b16 %v6448
      %v6465 = vunpack.c.l.b16 %v6449
      %v6466 = vunpack.c.h.b16 %v6449
      %v6467 = vunpack.c.l.b16 %v6450
      %v6468 = vunpack.c.h.b16 %v6450
      %v6469 = vunpack.c.l.b16 %v6451
      %v6470 = vunpack.c.h.b16 %v6451
      %v6471 = vunpack.c.l.b16 %v6452
      %v6472 = vunpack.c.h.b16 %v6452
      %v6473 = vunpack.c.l.b16 %v6453
      %v6474 = vunpack.c.h.b16 %v6453
      %v6475 = vpack.c.b16 %v6463, %v6461
      %v6476 = vpack.c.b16 %v6464, %v6462
      %v6477 = vpack.c.b16 %v6467, %v6465
      %v6478 = vpack.c.b16 %v6468, %v6466
      %v6479 = vpack.c.b16 %v6471, %v6469
      %v6480 = vpack.c.b16 %v6472, %v6470
      %v6481 = vpack.c.b16 %v6473, %v6473
      %v6482 = vpack.c.b16 %v6474, %v6474
      %v6488 = vsel %vm1765, %v6476, 0
      %v6491 = vsel %vm1765, %v6478, 0
      %v6494 = vsel %vm1765, %v6480, 0
      %v6497 = vsel %vm1765, %v6482, 0
      %v6500 = vsel %vm1805, %v6446, 0
      %6502 = vmatprep.subr.bf16.mxu0 0
      %6503 = vmatpush1.bf16.msra.mxu0 %v6441
      %6504 = vmatprep.subr.bf16.mxu0 0
      %6505 = vmatpush1.bf16.msra.mxu0 %v6440
      %6506 = vmatprep.subr.bf16.mxu0 0
      %6507 = vmatpush1.bf16.msra.mxu0 %v6439
      %6508 = vmatprep.subr.bf16.mxu0 0
      %6509 = vmatpush1.bf16.msra.mxu0 %v6438
      %6510 = vmatprep.subr.bf16.mxu0 0
      %6511 = vmatpush1.bf16.msra.mxu0 %v6437
      %6512 = vmatprep.subr.bf16.mxu0 0
      %6513 = vmatpush1.bf16.msra.mxu0 %v6436
      %6514 = vmatprep.subr.bf16.mxu0 0
      %6515 = vmatpush1.bf16.msra.mxu0 %v6435
      %6516 = vmatprep.subr.bf16.mxu0 0
      %6517 = vmatpush1.bf16.msra.mxu0 %v6434
      %6518 = vmatprep.subr.bf16.mxu0 0
      %6519 = vmatpush2.bf16.msra.mxu0 0
      %6520 = vmatprep.subr.bf16.mxu0 0
      %6521 = vmatpush2.bf16.msra.mxu0 0
      %6522 = vmatprep.subr.bf16.mxu0 0
      %6523 = vmatpush2.bf16.msra.mxu0 0
      %6524 = vmatprep.subr.bf16.mxu0 0
      %6525 = vmatpush2.bf16.msra.mxu0 %v6500
      %6526 = vmatprep.subr.bf16.mxu0 0
      %6527 = vmatpush2.bf16.msra.mxu0 %v6445
      %6528 = vmatprep.subr.bf16.mxu0 0
      %6529 = vmatpush2.bf16.msra.mxu0 %v6444
      %6530 = vmatprep.subr.bf16.mxu0 0
      %6531 = vmatpush2.bf16.msra.mxu0 %v6443
      %6532 = vmatprep.subr.bf16.mxu0 0
      %6533 = vmatpush2.bf16.msra.mxu0 %v6442
      %6534 = vmatprep.mubr.bf16.mxu0 %v6488
      %6535 = vmatmul.mubr.bf16.gmra.mxu0 %v6475
      %v6536 = vpop.f32.mrf.mxu0
      %v6537 = vadd.f32 0.0, %v6536
      %v6538 = vpop.f32.mrf.mxu0
      %v6539 = vpop.f32.mrf.mxu0
      %v6540 = vadd.f32 0.0, %v6539
      %v6541 = vpop.f32.mrf.mxu0
      %6542 = vmatprep.mubr.bf16.mxu0 %v6491
      %6543 = vmatmul.mubr.bf16.gmra.mxu0 %v6477
      %v6544 = vpop.f32.mrf.mxu0
      %v6545 = vadd.f32 0.0, %v6544
      %v6546 = vpop.f32.mrf.mxu0
      %v6547 = vpop.f32.mrf.mxu0
      %v6548 = vadd.f32 0.0, %v6547
      %v6549 = vpop.f32.mrf.mxu0
      %6550 = vmatprep.mubr.bf16.mxu0 %v6494
      %6551 = vmatmul.mubr.bf16.gmra.mxu0 %v6479
      %v6552 = vpop.f32.mrf.mxu0
      %v6553 = vadd.f32 0.0, %v6552
      %v6554 = vpop.f32.mrf.mxu0
      %v6555 = vpop.f32.mrf.mxu0
      %v6556 = vadd.f32 0.0, %v6555
      %v6557 = vpop.f32.mrf.mxu0
      %6558 = vmatprep.mubr.bf16.mxu0 %v6497
      %6559 = vmatmul.mubr.bf16.gmra.mxu0 %v6481
      %v6560 = vpop.f32.mrf.mxu0
      %v6561 = vadd.f32 0.0, %v6560
      %v6562 = vpop.f32.mrf.mxu0
      %v6563 = vpop.f32.mrf.mxu0
      %v6564 = vpop.f32.mrf.mxu0
      %6565 = vdwg.mxu0
      %s6566 = scalar_lea.vmem %s6, 56
      %v6567 = vld [vmem:[%s6566] sm:$0xff]
      %v6568 = vld [vmem:[%s6566 + $0x8] sm:$0xff]
      %v6569 = vld [vmem:[%s6566 + $0x10] sm:$0xff]
      %v6570 = vld [vmem:[%s6566 + $0x18] sm:$0xff]
      %v6571 = vld [vmem:[%s6566 + $0x20] sm:$0xff]
      %v6572 = vld [vmem:[%s6566 + $0x28] sm:$0xff]
      %v6573 = vld [vmem:[%s6566 + $0x30] sm:$0x11]
      %v6581 = vunpack.c.l.b16 %v6567
      %v6582 = vunpack.c.h.b16 %v6567
      %v6583 = vunpack.c.l.b16 %v6568
      %v6584 = vunpack.c.h.b16 %v6568
      %v6585 = vunpack.c.l.b16 %v6569
      %v6586 = vunpack.c.h.b16 %v6569
      %v6587 = vunpack.c.l.b16 %v6570
      %v6588 = vunpack.c.h.b16 %v6570
      %v6589 = vunpack.c.l.b16 %v6571
      %v6590 = vunpack.c.h.b16 %v6571
      %v6591 = vunpack.c.l.b16 %v6572
      %v6592 = vunpack.c.h.b16 %v6572
      %v6593 = vunpack.c.l.b16 %v6573
      %v6594 = vunpack.c.h.b16 %v6573
      %v6595 = vpack.c.b16 %v6583, %v6581
      %v6596 = vpack.c.b16 %v6584, %v6582
      %v6597 = vpack.c.b16 %v6587, %v6585
      %v6598 = vpack.c.b16 %v6588, %v6586
      %v6599 = vpack.c.b16 %v6591, %v6589
      %v6600 = vpack.c.b16 %v6592, %v6590
      %v6601 = vpack.c.b16 %v6593, %v6593
      %v6602 = vpack.c.b16 %v6594, %v6594
      %v6608 = vsel %vm1765, %v6596, 0
      %v6611 = vsel %vm1765, %v6598, 0
      %v6614 = vsel %vm1765, %v6600, 0
      %v6617 = vsel %vm1765, %v6602, 0
      %6619 = vmatprep.subr.bf16.mxu0 0
      %6620 = vmatpush1.bf16.msra.mxu0 %v6441
      %6621 = vmatprep.subr.bf16.mxu0 0
      %6622 = vmatpush1.bf16.msra.mxu0 %v6440
      %6623 = vmatprep.subr.bf16.mxu0 0
      %6624 = vmatpush1.bf16.msra.mxu0 %v6439
      %6625 = vmatprep.subr.bf16.mxu0 0
      %6626 = vmatpush1.bf16.msra.mxu0 %v6438
      %6627 = vmatprep.subr.bf16.mxu0 0
      %6628 = vmatpush1.bf16.msra.mxu0 %v6437
      %6629 = vmatprep.subr.bf16.mxu0 0
      %6630 = vmatpush1.bf16.msra.mxu0 %v6436
      %6631 = vmatprep.subr.bf16.mxu0 0
      %6632 = vmatpush1.bf16.msra.mxu0 %v6435
      %6633 = vmatprep.subr.bf16.mxu0 0
      %6634 = vmatpush1.bf16.msra.mxu0 %v6434
      %6635 = vmatprep.subr.bf16.mxu0 0
      %6636 = vmatpush2.bf16.msra.mxu0 0
      %6637 = vmatprep.subr.bf16.mxu0 0
      %6638 = vmatpush2.bf16.msra.mxu0 0
      %6639 = vmatprep.subr.bf16.mxu0 0
      %6640 = vmatpush2.bf16.msra.mxu0 0
      %6641 = vmatprep.subr.bf16.mxu0 0
      %6642 = vmatpush2.bf16.msra.mxu0 %v6500
      %6643 = vmatprep.subr.bf16.mxu0 0
      %6644 = vmatpush2.bf16.msra.mxu0 %v6445
      %6645 = vmatprep.subr.bf16.mxu0 0
      %6646 = vmatpush2.bf16.msra.mxu0 %v6444
      %6647 = vmatprep.subr.bf16.mxu0 0
      %6648 = vmatpush2.bf16.msra.mxu0 %v6443
      %6649 = vmatprep.subr.bf16.mxu0 0
      %6650 = vmatpush2.bf16.msra.mxu0 %v6442
      %6651 = vmatprep.mubr.bf16.mxu0 %v6608
      %6652 = vmatmul.mubr.bf16.gmra.mxu0 %v6595
      %v6653 = vpop.f32.mrf.mxu0
      %v6654 = vadd.f32 0.0, %v6653
      %v6655 = vpop.f32.mrf.mxu0
      %v6656 = vpop.f32.mrf.mxu0
      %v6657 = vadd.f32 0.0, %v6656
      %v6658 = vpop.f32.mrf.mxu0
      %6659 = vmatprep.mubr.bf16.mxu0 %v6611
      %6660 = vmatmul.mubr.bf16.gmra.mxu0 %v6597
      %v6661 = vpop.f32.mrf.mxu0
      %v6662 = vadd.f32 0.0, %v6661
      %v6663 = vpop.f32.mrf.mxu0
      %v6664 = vpop.f32.mrf.mxu0
      %v6665 = vadd.f32 0.0, %v6664
      %v6666 = vpop.f32.mrf.mxu0
      %6667 = vmatprep.mubr.bf16.mxu0 %v6614
      %6668 = vmatmul.mubr.bf16.gmra.mxu0 %v6599
      %v6669 = vpop.f32.mrf.mxu0
      %v6670 = vadd.f32 0.0, %v6669
      %v6671 = vpop.f32.mrf.mxu0
      %v6672 = vpop.f32.mrf.mxu0
      %v6673 = vadd.f32 0.0, %v6672
      %v6674 = vpop.f32.mrf.mxu0
      %6675 = vmatprep.mubr.bf16.mxu0 %v6617
      %6676 = vmatmul.mubr.bf16.gmra.mxu0 %v6601
      %v6677 = vpop.f32.mrf.mxu0
      %v6678 = vadd.f32 0.0, %v6677
      %v6679 = vpop.f32.mrf.mxu0
      %v6680 = vpop.f32.mrf.mxu0
      %v6681 = vpop.f32.mrf.mxu0
      %6682 = vdwg.mxu0
      %v6683 = vmax.f32 %v6537, %v6654
      %v6684 = vmax.f32 %v6540, %v6657
      %v6685 = vmax.f32 %v6545, %v6662
      %v6686 = vmax.f32 %v6548, %v6665
      %v6687 = vmax.f32 %v6553, %v6670
      %v6688 = vmax.f32 %v6556, %v6673
      %v6689 = vmax.f32 %v6561, %v6678
      %s6690 = scalar_lea.vmem %s6, 112
      %v6691 = vld [vmem:[%s6690] sm:$0xff]
      %v6692 = vld [vmem:[%s6690 + $0x8] sm:$0xff]
      %v6693 = vld [vmem:[%s6690 + $0x10] sm:$0xff]
      %v6694 = vld [vmem:[%s6690 + $0x18] sm:$0xff]
      %v6695 = vld [vmem:[%s6690 + $0x20] sm:$0xff]
      %v6696 = vld [vmem:[%s6690 + $0x28] sm:$0xff]
      %v6697 = vld [vmem:[%s6690 + $0x30] sm:$0x11]
      %v6705 = vunpack.c.l.b16 %v6691
      %v6706 = vunpack.c.h.b16 %v6691
      %v6707 = vunpack.c.l.b16 %v6692
      %v6708 = vunpack.c.h.b16 %v6692
      %v6709 = vunpack.c.l.b16 %v6693
      %v6710 = vunpack.c.h.b16 %v6693
      %v6711 = vunpack.c.l.b16 %v6694
      %v6712 = vunpack.c.h.b16 %v6694
      %v6713 = vunpack.c.l.b16 %v6695
      %v6714 = vunpack.c.h.b16 %v6695
      %v6715 = vunpack.c.l.b16 %v6696
      %v6716 = vunpack.c.h.b16 %v6696
      %v6717 = vunpack.c.l.b16 %v6697
      %v6718 = vunpack.c.h.b16 %v6697
      %v6719 = vpack.c.b16 %v6707, %v6705
      %v6720 = vpack.c.b16 %v6708, %v6706
      %v6721 = vpack.c.b16 %v6711, %v6709
      %v6722 = vpack.c.b16 %v6712, %v6710
      %v6723 = vpack.c.b16 %v6715, %v6713
      %v6724 = vpack.c.b16 %v6716, %v6714
      %v6725 = vpack.c.b16 %v6717, %v6717
      %v6726 = vpack.c.b16 %v6718, %v6718
      %v6732 = vsel %vm1765, %v6720, 0
      %v6735 = vsel %vm1765, %v6722, 0
      %v6738 = vsel %vm1765, %v6724, 0
      %v6741 = vsel %vm1765, %v6726, 0
      %6743 = vmatprep.subr.bf16.mxu0 0
      %6744 = vmatpush1.bf16.msra.mxu0 %v6441
      %6745 = vmatprep.subr.bf16.mxu0 0
      %6746 = vmatpush1.bf16.msra.mxu0 %v6440
      %6747 = vmatprep.subr.bf16.mxu0 0
      %6748 = vmatpush1.bf16.msra.mxu0 %v6439
      %6749 = vmatprep.subr.bf16.mxu0 0
      %6750 = vmatpush1.bf16.msra.mxu0 %v6438
      %6751 = vmatprep.subr.bf16.mxu0 0
      %6752 = vmatpush1.bf16.msra.mxu0 %v6437
      %6753 = vmatprep.subr.bf16.mxu0 0
      %6754 = vmatpush1.bf16.msra.mxu0 %v6436
      %6755 = vmatprep.subr.bf16.mxu0 0
      %6756 = vmatpush1.bf16.msra.mxu0 %v6435
      %6757 = vmatprep.subr.bf16.mxu0 0
      %6758 = vmatpush1.bf16.msra.mxu0 %v6434
      %6759 = vmatprep.subr.bf16.mxu0 0
      %6760 = vmatpush2.bf16.msra.mxu0 0
      %6761 = vmatprep.subr.bf16.mxu0 0
      %6762 = vmatpush2.bf16.msra.mxu0 0
      %6763 = vmatprep.subr.bf16.mxu0 0
      %6764 = vmatpush2.bf16.msra.mxu0 0
      %6765 = vmatprep.subr.bf16.mxu0 0
      %6766 = vmatpush2.bf16.msra.mxu0 %v6500
      %6767 = vmatprep.subr.bf16.mxu0 0
      %6768 = vmatpush2.bf16.msra.mxu0 %v6445
      %6769 = vmatprep.subr.bf16.mxu0 0
      %6770 = vmatpush2.bf16.msra.mxu0 %v6444
      %6771 = vmatprep.subr.bf16.mxu0 0
      %6772 = vmatpush2.bf16.msra.mxu0 %v6443
      %6773 = vmatprep.subr.bf16.mxu0 0
      %6774 = vmatpush2.bf16.msra.mxu0 %v6442
      %6775 = vmatprep.mubr.bf16.mxu0 %v6732
      %6776 = vmatmul.mubr.bf16.gmra.mxu0 %v6719
      %v6777 = vpop.f32.mrf.mxu0
      %v6778 = vadd.f32 0.0, %v6777
      %v6779 = vpop.f32.mrf.mxu0
      %v6780 = vpop.f32.mrf.mxu0
      %v6781 = vadd.f32 0.0, %v6780
      %v6782 = vpop.f32.mrf.mxu0
      %6783 = vmatprep.mubr.bf16.mxu0 %v6735
      %6784 = vmatmul.mubr.bf16.gmra.mxu0 %v6721
      %v6785 = vpop.f32.mrf.mxu0
      %v6786 = vadd.f32 0.0, %v6785
      %v6787 = vpop.f32.mrf.mxu0
      %v6788 = vpop.f32.mrf.mxu0
      %v6789 = vadd.f32 0.0, %v6788
      %v6790 = vpop.f32.mrf.mxu0
      %6791 = vmatprep.mubr.bf16.mxu0 %v6738
      %6792 = vmatmul.mubr.bf16.gmra.mxu0 %v6723
      %v6793 = vpop.f32.mrf.mxu0
      %v6794 = vadd.f32 0.0, %v6793
      %v6795 = vpop.f32.mrf.mxu0
      %v6796 = vpop.f32.mrf.mxu0
      %v6797 = vadd.f32 0.0, %v6796
      %v6798 = vpop.f32.mrf.mxu0
      %6799 = vmatprep.mubr.bf16.mxu0 %v6741
      %6800 = vmatmul.mubr.bf16.gmra.mxu0 %v6725
      %v6801 = vpop.f32.mrf.mxu0
      %v6802 = vadd.f32 0.0, %v6801
      %v6803 = vpop.f32.mrf.mxu0
      %v6804 = vpop.f32.mrf.mxu0
      %v6805 = vpop.f32.mrf.mxu0
      %6806 = vdwg.mxu0
      %v6807 = vmax.f32 %v6683, %v6778
      %v6808 = vmax.f32 %v6684, %v6781
      %v6809 = vmax.f32 %v6685, %v6786
      %v6810 = vmax.f32 %v6686, %v6789
      %v6811 = vmax.f32 %v6687, %v6794
      %v6812 = vmax.f32 %v6688, %v6797
      %v6813 = vmax.f32 %v6689, %v6802
      %s6814 = scalar_lea.vmem %s6, 168
      %v6815 = vld [vmem:[%s6814] sm:$0xff]
      %v6816 = vld [vmem:[%s6814 + $0x8] sm:$0xff]
      %v6817 = vld [vmem:[%s6814 + $0x10] sm:$0xff]
      %v6818 = vld [vmem:[%s6814 + $0x18] sm:$0xff]
      %v6819 = vld [vmem:[%s6814 + $0x20] sm:$0xff]
      %v6820 = vld [vmem:[%s6814 + $0x28] sm:$0xff]
      %v6821 = vld [vmem:[%s6814 + $0x30] sm:$0x11]
      %v6829 = vunpack.c.l.b16 %v6815
      %v6830 = vunpack.c.h.b16 %v6815
      %v6831 = vunpack.c.l.b16 %v6816
      %v6832 = vunpack.c.h.b16 %v6816
      %v6833 = vunpack.c.l.b16 %v6817
      %v6834 = vunpack.c.h.b16 %v6817
      %v6835 = vunpack.c.l.b16 %v6818
      %v6836 = vunpack.c.h.b16 %v6818
      %v6837 = vunpack.c.l.b16 %v6819
      %v6838 = vunpack.c.h.b16 %v6819
      %v6839 = vunpack.c.l.b16 %v6820
      %v6840 = vunpack.c.h.b16 %v6820
      %v6841 = vunpack.c.l.b16 %v6821
      %v6842 = vunpack.c.h.b16 %v6821
      %v6843 = vpack.c.b16 %v6831, %v6829
      %v6844 = vpack.c.b16 %v6832, %v6830
      %v6845 = vpack.c.b16 %v6835, %v6833
      %v6846 = vpack.c.b16 %v6836, %v6834
      %v6847 = vpack.c.b16 %v6839, %v6837
      %v6848 = vpack.c.b16 %v6840, %v6838
      %v6849 = vpack.c.b16 %v6841, %v6841
      %v6850 = vpack.c.b16 %v6842, %v6842
      %v6856 = vsel %vm1765, %v6844, 0
      %v6859 = vsel %vm1765, %v6846, 0
      %v6862 = vsel %vm1765, %v6848, 0
      %v6865 = vsel %vm1765, %v6850, 0
      %6867 = vmatprep.subr.bf16.mxu0 0
      %6868 = vmatpush1.bf16.msra.mxu0 %v6441
      %6869 = vmatprep.subr.bf16.mxu0 0
      %6870 = vmatpush1.bf16.msra.mxu0 %v6440
      %6871 = vmatprep.subr.bf16.mxu0 0
      %6872 = vmatpush1.bf16.msra.mxu0 %v6439
      %6873 = vmatprep.subr.bf16.mxu0 0
      %6874 = vmatpush1.bf16.msra.mxu0 %v6438
      %6875 = vmatprep.subr.bf16.mxu0 0
      %6876 = vmatpush1.bf16.msra.mxu0 %v6437
      %6877 = vmatprep.subr.bf16.mxu0 0
      %6878 = vmatpush1.bf16.msra.mxu0 %v6436
      %6879 = vmatprep.subr.bf16.mxu0 0
      %6880 = vmatpush1.bf16.msra.mxu0 %v6435
      %6881 = vmatprep.subr.bf16.mxu0 0
      %6882 = vmatpush1.bf16.msra.mxu0 %v6434
      %6883 = vmatprep.subr.bf16.mxu0 0
      %6884 = vmatpush2.bf16.msra.mxu0 0
      %6885 = vmatprep.subr.bf16.mxu0 0
      %6886 = vmatpush2.bf16.msra.mxu0 0
      %6887 = vmatprep.subr.bf16.mxu0 0
      %6888 = vmatpush2.bf16.msra.mxu0 0
      %6889 = vmatprep.subr.bf16.mxu0 0
      %6890 = vmatpush2.bf16.msra.mxu0 %v6500
      %6891 = vmatprep.subr.bf16.mxu0 0
      %6892 = vmatpush2.bf16.msra.mxu0 %v6445
      %6893 = vmatprep.subr.bf16.mxu0 0
      %6894 = vmatpush2.bf16.msra.mxu0 %v6444
      %6895 = vmatprep.subr.bf16.mxu0 0
      %6896 = vmatpush2.bf16.msra.mxu0 %v6443
      %6897 = vmatprep.subr.bf16.mxu0 0
      %6898 = vmatpush2.bf16.msra.mxu0 %v6442
      %6899 = vmatprep.mubr.bf16.mxu0 %v6856
      %6900 = vmatmul.mubr.bf16.gmra.mxu0 %v6843
      %v6901 = vpop.f32.mrf.mxu0
      %v6902 = vadd.f32 0.0, %v6901
      %v6903 = vpop.f32.mrf.mxu0
      %v6904 = vpop.f32.mrf.mxu0
      %v6905 = vadd.f32 0.0, %v6904
      %v6906 = vpop.f32.mrf.mxu0
      %6907 = vmatprep.mubr.bf16.mxu0 %v6859
      %6908 = vmatmul.mubr.bf16.gmra.mxu0 %v6845
      %v6909 = vpop.f32.mrf.mxu0
      %v6910 = vadd.f32 0.0, %v6909
      %v6911 = vpop.f32.mrf.mxu0
      %v6912 = vpop.f32.mrf.mxu0
      %v6913 = vadd.f32 0.0, %v6912
      %v6914 = vpop.f32.mrf.mxu0
      %6915 = vmatprep.mubr.bf16.mxu0 %v6862
      %6916 = vmatmul.mubr.bf16.gmra.mxu0 %v6847
      %v6917 = vpop.f32.mrf.mxu0
      %v6918 = vadd.f32 0.0, %v6917
      %v6919 = vpop.f32.mrf.mxu0
      %v6920 = vpop.f32.mrf.mxu0
      %v6921 = vadd.f32 0.0, %v6920
      %v6922 = vpop.f32.mrf.mxu0
      %6923 = vmatprep.mubr.bf16.mxu0 %v6865
      %6924 = vmatmul.mubr.bf16.gmra.mxu0 %v6849
      %v6925 = vpop.f32.mrf.mxu0
      %v6926 = vadd.f32 0.0, %v6925
      %v6927 = vpop.f32.mrf.mxu0
      %v6928 = vpop.f32.mrf.mxu0
      %v6929 = vpop.f32.mrf.mxu0
      %6930 = vdwg.mxu0
      %v6931 = vmax.f32 %v6807, %v6902
      %v6932 = vmax.f32 %v6808, %v6905
      %v6933 = vmax.f32 %v6809, %v6910
      %v6934 = vmax.f32 %v6810, %v6913
      %v6935 = vmax.f32 %v6811, %v6918
      %v6936 = vmax.f32 %v6812, %v6921
      %v6937 = vmax.f32 %v6813, %v6926
      %v6938 = vpack.c.bf16 %v6932, %v6931
      %v6939 = vpack.c.bf16 %v6934, %v6933
      %v6940 = vpack.c.bf16 %v6936, %v6935
      %v6941 = vpack.c.bf16 %v6937, %v6937
      %v6942 = vld [vmem:[%s7] sm:$0xf]
      %v6943 = vld [vmem:[%s7 + $0x4] sm:$0xf]
      %v6944 = vld [vmem:[%s7 + $0x8] sm:$0xf]
      %v6945 = vld [vmem:[%s7 + $0xc] sm:$0xf]
      %v6946 = vld [vmem:[%s7 + $0x10] sm:$0xf]
      %v6947 = vld [vmem:[%s7 + $0x14] sm:$0xf]
      %v6948 = vld [vmem:[%s7 + $0x18] sm:$0x1]
      %v6956 = vunpack.c.l.b16 %v6942
      %v6957 = vunpack.c.l.b16 %v6943
      %v6958 = vunpack.c.l.b16 %v6944
      %v6959 = vunpack.c.l.b16 %v6945
      %v6960 = vunpack.c.l.b16 %v6946
      %v6961 = vunpack.c.l.b16 %v6947
      %v6962 = vunpack.c.l.b16 %v6948
      %v6963 = vpack.c.b16 %v6957, %v6956
      %v6964 = vpack.c.b16 %v6959, %v6958
      %v6965 = vpack.c.b16 %v6961, %v6960
      %v6966 = vpack.c.b16 %v6962, %v6962
      %vm6967 = vcmask 400384
      %v6969 = vsel %vm6967, %v6963, 0
      %v6972 = vsel %vm6967, %v6964, 0
      %v6975 = vsel %vm6967, %v6965, 0
      %v6978 = vsel %vm6967, %v6966, 0
      %vm6980 = vcmask 1040384
      %v6981 = vsel 0, 4294967295, 65535
      %v6982 = vsel %vm6980, %v6981, 0
      %v6984 = vand.u32 %v6941, %v6982
      %6986 = vmatprep.subr.bf16.mxu0 0
      %6987 = vmatpush1.bf16.msra.mxu0 0
      %6988 = vmatprep.subr.bf16.mxu0 0
      %6989 = vmatpush1.bf16.msra.mxu0 0
      %6990 = vmatprep.subr.bf16.mxu0 0
      %6991 = vmatpush1.bf16.msra.mxu0 0
      %6992 = vmatprep.subr.bf16.mxu0 0
      %6993 = vmatpush1.bf16.msra.mxu0 0
      %6994 = vmatprep.subr.bf16.mxu0 0
      %6995 = vmatpush1.bf16.msra.mxu0 %v6984
      %6996 = vmatprep.subr.bf16.mxu0 0
      %6997 = vmatpush1.bf16.msra.mxu0 %v6940
      %6998 = vmatprep.subr.bf16.mxu0 0
      %6999 = vmatpush1.bf16.msra.mxu0 %v6939
      %7000 = vmatprep.subr.bf16.mxu0 0
      %7001 = vmatpush1.bf16.msra.mxu0 %v6938
      %7002 = vmatprep.subr.bf16.mxu0 0
      %7003 = vmatpush2.bf16.msra.mxu0 0
      %7004 = vmatprep.subr.bf16.mxu0 0
      %7005 = vmatpush2.bf16.msra.mxu0 0
      %7006 = vmatprep.subr.bf16.mxu0 0
      %7007 = vmatpush2.bf16.msra.mxu0 0
      %7008 = vmatprep.subr.bf16.mxu0 0
      %7009 = vmatpush2.bf16.msra.mxu0 0
      %7010 = vmatprep.subr.bf16.mxu0 0
      %7011 = vmatpush2.bf16.msra.mxu0 0
      %7012 = vmatprep.subr.bf16.mxu0 0
      %7013 = vmatpush2.bf16.msra.mxu0 0
      %7014 = vmatprep.subr.bf16.mxu0 0
      %7015 = vmatpush2.bf16.msra.mxu0 0
      %7016 = vmatprep.subr.bf16.mxu0 0
      %7017 = vmatpush2.bf16.msra.mxu0 0
      %7018 = vmatprep.mubr.bf16.mxu0 0
      %7019 = vmatmul.mubr.bf16.gmra.mxu0 %v6969
      %v7020 = vpop.f32.mrf.mxu0
      %v7021 = vadd.f32 0.0, %v7020
      %v7022 = vpop.f32.mrf.mxu0
      %v7023 = vpop.f32.mrf.mxu0
      %v7024 = vadd.f32 0.0, %v7023
      %v7025 = vpop.f32.mrf.mxu0
      %7026 = vmatprep.mubr.bf16.mxu0 0
      %7027 = vmatmul.mubr.bf16.gmra.mxu0 %v6972
      %v7028 = vpop.f32.mrf.mxu0
      %v7029 = vadd.f32 0.0, %v7028
      %v7030 = vpop.f32.mrf.mxu0
      %v7031 = vpop.f32.mrf.mxu0
      %v7032 = vadd.f32 0.0, %v7031
      %v7033 = vpop.f32.mrf.mxu0
      %7034 = vmatprep.mubr.bf16.mxu0 0
      %7035 = vmatmul.mubr.bf16.gmra.mxu0 %v6975
      %v7036 = vpop.f32.mrf.mxu0
      %v7037 = vadd.f32 0.0, %v7036
      %v7038 = vpop.f32.mrf.mxu0
      %v7039 = vpop.f32.mrf.mxu0
      %v7040 = vadd.f32 0.0, %v7039
      %v7041 = vpop.f32.mrf.mxu0
      %7042 = vmatprep.mubr.bf16.mxu0 0
      %7043 = vmatmul.mubr.bf16.gmra.mxu0 %v6978
      %v7044 = vpop.f32.mrf.mxu0
      %v7045 = vadd.f32 0.0, %v7044
      %v7046 = vpop.f32.mrf.mxu0
      %v7047 = vpop.f32.mrf.mxu0
      %v7048 = vpop.f32.mrf.mxu0
      %7049 = vdwg.mxu0
      %v7050 = vpack.c.bf16 %v7024, %v7021
      %v7051 = vpack.c.bf16 %v7032, %v7029
      %v7052 = vpack.c.bf16 %v7040, %v7037
      %v7053 = vpack.c.bf16 %v7045, %v7045
      %v7054 = vld [vmem:[%s8] sm:$0xf]
      %v7055 = vld [vmem:[%s8 + $0x4] sm:$0xf]
      %v7056 = vld [vmem:[%s8 + $0x8] sm:$0xf]
      %v7057 = vld [vmem:[%s8 + $0xc] sm:$0xf]
      %s7058 = scalar_lea.vmem %s7, 28
      %v7059 = vld [vmem:[%s7058] sm:$0xf]
      %v7060 = vld [vmem:[%s7058 + $0x4] sm:$0xf]
      %v7061 = vld [vmem:[%s7058 + $0x8] sm:$0xf]
      %v7062 = vld [vmem:[%s7058 + $0xc] sm:$0xf]
      %v7063 = vld [vmem:[%s7058 + $0x10] sm:$0xf]
      %v7064 = vld [vmem:[%s7058 + $0x14] sm:$0xf]
      %v7065 = vld [vmem:[%s7058 + $0x18] sm:$0x1]
      %v7073 = vunpack.c.l.b16 %v7059
      %v7074 = vunpack.c.l.b16 %v7060
      %v7075 = vunpack.c.l.b16 %v7061
      %v7076 = vunpack.c.l.b16 %v7062
      %v7077 = vunpack.c.l.b16 %v7063
      %v7078 = vunpack.c.l.b16 %v7064
      %v7079 = vunpack.c.l.b16 %v7065
      %v7080 = vpack.c.b16 %v7074, %v7073
      %v7081 = vpack.c.b16 %v7076, %v7075
      %v7082 = vpack.c.b16 %v7078, %v7077
      %v7083 = vpack.c.b16 %v7079, %v7079
      %v7085 = vsel %vm6967, %v7080, 0
      %v7088 = vsel %vm6967, %v7081, 0
      %v7091 = vsel %vm6967, %v7082, 0
      %v7094 = vsel %vm6967, %v7083, 0
      %7096 = vmatprep.subr.bf16.mxu0 0
      %7097 = vmatpush1.bf16.msra.mxu0 0
      %7098 = vmatprep.subr.bf16.mxu0 0
      %7099 = vmatpush1.bf16.msra.mxu0 0
      %7100 = vmatprep.subr.bf16.mxu0 0
      %7101 = vmatpush1.bf16.msra.mxu0 0
      %7102 = vmatprep.subr.bf16.mxu0 0
      %7103 = vmatpush1.bf16.msra.mxu0 0
      %7104 = vmatprep.subr.bf16.mxu0 0
      %7105 = vmatpush1.bf16.msra.mxu0 %v6984
      %7106 = vmatprep.subr.bf16.mxu0 0
      %7107 = vmatpush1.bf16.msra.mxu0 %v6940
      %7108 = vmatprep.subr.bf16.mxu0 0
      %7109 = vmatpush1.bf16.msra.mxu0 %v6939
      %7110 = vmatprep.subr.bf16.mxu0 0
      %7111 = vmatpush1.bf16.msra.mxu0 %v6938
      %7112 = vmatprep.subr.bf16.mxu0 0
      %7113 = vmatpush2.bf16.msra.mxu0 0
      %7114 = vmatprep.subr.bf16.mxu0 0
      %7115 = vmatpush2.bf16.msra.mxu0 0
      %7116 = vmatprep.subr.bf16.mxu0 0
      %7117 = vmatpush2.bf16.msra.mxu0 0
      %7118 = vmatprep.subr.bf16.mxu0 0
      %7119 = vmatpush2.bf16.msra.mxu0 0
      %7120 = vmatprep.subr.bf16.mxu0 0
      %7121 = vmatpush2.bf16.msra.mxu0 0
      %7122 = vmatprep.subr.bf16.mxu0 0
      %7123 = vmatpush2.bf16.msra.mxu0 0
      %7124 = vmatprep.subr.bf16.mxu0 0
      %7125 = vmatpush2.bf16.msra.mxu0 0
      %7126 = vmatprep.subr.bf16.mxu0 0
      %7127 = vmatpush2.bf16.msra.mxu0 0
      %7128 = vmatprep.mubr.bf16.mxu0 0
      %7129 = vmatmul.mubr.bf16.gmra.mxu0 %v7085
      %v7130 = vpop.f32.mrf.mxu0
      %v7131 = vadd.f32 0.0, %v7130
      %v7132 = vpop.f32.mrf.mxu0
      %v7133 = vpop.f32.mrf.mxu0
      %v7134 = vadd.f32 0.0, %v7133
      %v7135 = vpop.f32.mrf.mxu0
      %7136 = vmatprep.mubr.bf16.mxu0 0
      %7137 = vmatmul.mubr.bf16.gmra.mxu0 %v7088
      %v7138 = vpop.f32.mrf.mxu0
      %v7139 = vadd.f32 0.0, %v7138
      %v7140 = vpop.f32.mrf.mxu0
      %v7141 = vpop.f32.mrf.mxu0
      %v7142 = vadd.f32 0.0, %v7141
      %v7143 = vpop.f32.mrf.mxu0
      %7144 = vmatprep.mubr.bf16.mxu0 0
      %7145 = vmatmul.mubr.bf16.gmra.mxu0 %v7091
      %v7146 = vpop.f32.mrf.mxu0
      %v7147 = vadd.f32 0.0, %v7146
      %v7148 = vpop.f32.mrf.mxu0
      %v7149 = vpop.f32.mrf.mxu0
      %v7150 = vadd.f32 0.0, %v7149
      %v7151 = vpop.f32.mrf.mxu0
      %7152 = vmatprep.mubr.bf16.mxu0 0
      %7153 = vmatmul.mubr.bf16.gmra.mxu0 %v7094
      %v7154 = vpop.f32.mrf.mxu0
      %v7155 = vadd.f32 0.0, %v7154
      %v7156 = vpop.f32.mrf.mxu0
      %v7157 = vpop.f32.mrf.mxu0
      %v7158 = vpop.f32.mrf.mxu0
      %7159 = vdwg.mxu0
      %v7160 = vpack.c.bf16 %v7134, %v7131
      %v7161 = vpack.c.bf16 %v7142, %v7139
      %v7162 = vpack.c.bf16 %v7150, %v7147
      %v7163 = vpack.c.bf16 %v7155, %v7155
      %s7164 = scalar_lea.vmem %s8, 16
      %v7165 = vld [vmem:[%s7164] sm:$0xf]
      %v7166 = vld [vmem:[%s7164 + $0x4] sm:$0xf]
      %v7167 = vld [vmem:[%s7164 + $0x8] sm:$0xf]
      %v7168 = vld [vmem:[%s7164 + $0xc] sm:$0xf]
      %v7173 = vunpack.c.l.b16 %v7165
      %v7174 = vunpack.c.l.b16 %v7166
      %v7175 = vunpack.c.l.b16 %v7167
      %v7176 = vunpack.c.l.b16 %v7168
      %v7177 = vpack.c.b16 %v7174, %v7173
      %v7178 = vpack.c.b16 %v7176, %v7175
      %vm7181 = vcmask 261120
      %v7183 = vsel %vm7181, %v7160, 0
      %v7186 = vsel %vm7181, %v7161, 0
      %v7189 = vsel %vm7181, %v7162, 0
      %v7192 = vsel %vm7181, %v7163, 0
      %7194 = vmatprep.subr.bf16.mxu0 0
      %7195 = vmatpush1.bf16.msra.mxu0 0
      %7196 = vmatprep.subr.bf16.mxu0 0
      %7197 = vmatpush1.bf16.msra.mxu0 0
      %7198 = vmatprep.subr.bf16.mxu0 0
      %7199 = vmatpush1.bf16.msra.mxu0 0
      %7200 = vmatprep.subr.bf16.mxu0 0
      %7201 = vmatpush1.bf16.msra.mxu0 0
      %7202 = vmatprep.subr.bf16.mxu0 0
      %7203 = vmatpush1.bf16.msra.mxu0 0
      %7204 = vmatprep.subr.bf16.mxu0 0
      %7205 = vmatpush1.bf16.msra.mxu0 0
      %7206 = vmatprep.subr.bf16.mxu0 0
      %7207 = vmatpush1.bf16.msra.mxu0 %v7178
      %7208 = vmatprep.subr.bf16.mxu0 0
      %7209 = vmatpush1.bf16.msra.mxu0 %v7177
      %7210 = vmatprep.subr.bf16.mxu0 0
      %7211 = vmatpush2.bf16.msra.mxu0 0
      %7212 = vmatprep.subr.bf16.mxu0 0
      %7213 = vmatpush2.bf16.msra.mxu0 0
      %7214 = vmatprep.subr.bf16.mxu0 0
      %7215 = vmatpush2.bf16.msra.mxu0 0
      %7216 = vmatprep.subr.bf16.mxu0 0
      %7217 = vmatpush2.bf16.msra.mxu0 0
      %7218 = vmatprep.subr.bf16.mxu0 0
      %7219 = vmatpush2.bf16.msra.mxu0 0
      %7220 = vmatprep.subr.bf16.mxu0 0
      %7221 = vmatpush2.bf16.msra.mxu0 0
      %7222 = vmatprep.subr.bf16.mxu0 0
      %7223 = vmatpush2.bf16.msra.mxu0 0
      %7224 = vmatprep.subr.bf16.mxu0 0
      %7225 = vmatpush2.bf16.msra.mxu0 0
      %7226 = vmatprep.mubr.bf16.mxu0 0
      %7227 = vmatmul.mubr.bf16.gmra.mxu0 %v7183
      %v7228 = vpop.f32.mrf.mxu0
      %v7229 = vadd.f32 0.0, %v7228
      %v7230 = vpop.f32.mrf.mxu0
      %v7231 = vpop.f32.mrf.mxu0
      %v7232 = vadd.f32 0.0, %v7231
      %v7233 = vpop.f32.mrf.mxu0
      %7234 = vmatprep.mubr.bf16.mxu0 0
      %7235 = vmatmul.mubr.bf16.gmra.mxu0 %v7186
      %v7236 = vpop.f32.mrf.mxu0
      %v7237 = vadd.f32 0.0, %v7236
      %v7238 = vpop.f32.mrf.mxu0
      %v7239 = vpop.f32.mrf.mxu0
      %v7240 = vadd.f32 0.0, %v7239
      %v7241 = vpop.f32.mrf.mxu0
      %7242 = vmatprep.mubr.bf16.mxu0 0
      %7243 = vmatmul.mubr.bf16.gmra.mxu0 %v7189
      %v7244 = vpop.f32.mrf.mxu0
      %v7245 = vadd.f32 0.0, %v7244
      %v7246 = vpop.f32.mrf.mxu0
      %v7247 = vpop.f32.mrf.mxu0
      %v7248 = vadd.f32 0.0, %v7247
      %v7249 = vpop.f32.mrf.mxu0
      %7250 = vmatprep.mubr.bf16.mxu0 0
      %7251 = vmatmul.mubr.bf16.gmra.mxu0 %v7192
      %v7252 = vpop.f32.mrf.mxu0
      %v7253 = vadd.f32 0.0, %v7252
      %v7254 = vpop.f32.mrf.mxu0
      %v7255 = vpop.f32.mrf.mxu0
      %v7256 = vpop.f32.mrf.mxu0
      %7257 = vdwg.mxu0
      %v7262 = vunpack.c.l.b16 %v7054
      %v7263 = vunpack.c.l.b16 %v7055
      %v7264 = vunpack.c.l.b16 %v7056
      %v7265 = vunpack.c.l.b16 %v7057
      %v7266 = vpack.c.b16 %v7263, %v7262
      %v7267 = vpack.c.b16 %v7265, %v7264
      %v7271 = vsel %vm7181, %v7050, 0
      %v7274 = vsel %vm7181, %v7051, 0
      %v7277 = vsel %vm7181, %v7052, 0
      %v7280 = vsel %vm7181, %v7053, 0
      %7282 = vmatprep.subr.bf16.mxu0 0
      %7283 = vmatpush1.bf16.msra.mxu0 0
      %7284 = vmatprep.subr.bf16.mxu0 0
      %7285 = vmatpush1.bf16.msra.mxu0 0
      %7286 = vmatprep.subr.bf16.mxu0 0
      %7287 = vmatpush1.bf16.msra.mxu0 0
      %7288 = vmatprep.subr.bf16.mxu0 0
      %7289 = vmatpush1.bf16.msra.mxu0 0
      %7290 = vmatprep.subr.bf16.mxu0 0
      %7291 = vmatpush1.bf16.msra.mxu0 0
      %7292 = vmatprep.subr.bf16.mxu0 0
      %7293 = vmatpush1.bf16.msra.mxu0 0
      %7294 = vmatprep.subr.bf16.mxu0 0
      %7295 = vmatpush1.bf16.msra.mxu0 %v7267
      %7296 = vmatprep.subr.bf16.mxu0 0
      %7297 = vmatpush1.bf16.msra.mxu0 %v7266
      %7298 = vmatprep.subr.bf16.mxu0 0
      %7299 = vmatpush2.bf16.msra.mxu0 0
      %7300 = vmatprep.subr.bf16.mxu0 0
      %7301 = vmatpush2.bf16.msra.mxu0 0
      %7302 = vmatprep.subr.bf16.mxu0 0
      %7303 = vmatpush2.bf16.msra.mxu0 0
      %7304 = vmatprep.subr.bf16.mxu0 0
      %7305 = vmatpush2.bf16.msra.mxu0 0
      %7306 = vmatprep.subr.bf16.mxu0 0
      %7307 = vmatpush2.bf16.msra.mxu0 0
      %7308 = vmatprep.subr.bf16.mxu0 0
      %7309 = vmatpush2.bf16.msra.mxu0 0
      %7310 = vmatprep.subr.bf16.mxu0 0
      %7311 = vmatpush2.bf16.msra.mxu0 0
      %7312 = vmatprep.subr.bf16.mxu0 0
      %7313 = vmatpush2.bf16.msra.mxu0 0
      %7314 = vmatprep.mubr.bf16.mxu0 0
      %7315 = vmatmul.mubr.bf16.gmra.mxu0 %v7271
      %v7316 = vpop.f32.mrf.mxu0
      %v7317 = vadd.f32 %v7229, %v7316
      %v7318 = vpop.f32.mrf.mxu0
      %v7319 = vpop.f32.mrf.mxu0
      %v7320 = vadd.f32 %v7232, %v7319
      %v7321 = vpop.f32.mrf.mxu0
      %7322 = vmatprep.mubr.bf16.mxu0 0
      %7323 = vmatmul.mubr.bf16.gmra.mxu0 %v7274
      %v7324 = vpop.f32.mrf.mxu0
      %v7325 = vadd.f32 %v7237, %v7324
      %v7326 = vpop.f32.mrf.mxu0
      %v7327 = vpop.f32.mrf.mxu0
      %v7328 = vadd.f32 %v7240, %v7327
      %v7329 = vpop.f32.mrf.mxu0
      %7330 = vmatprep.mubr.bf16.mxu0 0
      %7331 = vmatmul.mubr.bf16.gmra.mxu0 %v7277
      %v7332 = vpop.f32.mrf.mxu0
      %v7333 = vadd.f32 %v7245, %v7332
      %v7334 = vpop.f32.mrf.mxu0
      %v7335 = vpop.f32.mrf.mxu0
      %v7336 = vadd.f32 %v7248, %v7335
      %v7337 = vpop.f32.mrf.mxu0
      %7338 = vmatprep.mubr.bf16.mxu0 0
      %7339 = vmatmul.mubr.bf16.gmra.mxu0 %v7280
      %v7340 = vpop.f32.mrf.mxu0
      %v7341 = vadd.f32 %v7253, %v7340
      %v7342 = vpop.f32.mrf.mxu0
      %v7343 = vpop.f32.mrf.mxu0
      %v7344 = vpop.f32.mrf.mxu0
      %7345 = vdwg.mxu0
      %s7346 = scalar_lea.vmem %s7, 56
      %v7347 = vld [vmem:[%s7346] sm:$0xf]
      %v7348 = vld [vmem:[%s7346 + $0x4] sm:$0xf]
      %v7349 = vld [vmem:[%s7346 + $0x8] sm:$0xf]
      %v7350 = vld [vmem:[%s7346 + $0xc] sm:$0xf]
      %v7351 = vld [vmem:[%s7346 + $0x10] sm:$0xf]
      %v7352 = vld [vmem:[%s7346 + $0x14] sm:$0xf]
      %v7353 = vld [vmem:[%s7346 + $0x18] sm:$0x1]
      %v7361 = vunpack.c.l.b16 %v7347
      %v7362 = vunpack.c.l.b16 %v7348
      %v7363 = vunpack.c.l.b16 %v7349
      %v7364 = vunpack.c.l.b16 %v7350
      %v7365 = vunpack.c.l.b16 %v7351
      %v7366 = vunpack.c.l.b16 %v7352
      %v7367 = vunpack.c.l.b16 %v7353
      %v7368 = vpack.c.b16 %v7362, %v7361
      %v7369 = vpack.c.b16 %v7364, %v7363
      %v7370 = vpack.c.b16 %v7366, %v7365
      %v7371 = vpack.c.b16 %v7367, %v7367
      %v7373 = vsel %vm6967, %v7368, 0
      %v7376 = vsel %vm6967, %v7369, 0
      %v7379 = vsel %vm6967, %v7370, 0
      %v7382 = vsel %vm6967, %v7371, 0
      %7384 = vmatprep.subr.bf16.mxu0 0
      %7385 = vmatpush1.bf16.msra.mxu0 0
      %7386 = vmatprep.subr.bf16.mxu0 0
      %7387 = vmatpush1.bf16.msra.mxu0 0
      %7388 = vmatprep.subr.bf16.mxu0 0
      %7389 = vmatpush1.bf16.msra.mxu0 0
      %7390 = vmatprep.subr.bf16.mxu0 0
      %7391 = vmatpush1.bf16.msra.mxu0 0
      %7392 = vmatprep.subr.bf16.mxu0 0
      %7393 = vmatpush1.bf16.msra.mxu0 %v6984
      %7394 = vmatprep.subr.bf16.mxu0 0
      %7395 = vmatpush1.bf16.msra.mxu0 %v6940
      %7396 = vmatprep.subr.bf16.mxu0 0
      %7397 = vmatpush1.bf16.msra.mxu0 %v6939
      %7398 = vmatprep.subr.bf16.mxu0 0
      %7399 = vmatpush1.bf16.msra.mxu0 %v6938
      %7400 = vmatprep.subr.bf16.mxu0 0
      %7401 = vmatpush2.bf16.msra.mxu0 0
      %7402 = vmatprep.subr.bf16.mxu0 0
      %7403 = vmatpush2.bf16.msra.mxu0 0
      %7404 = vmatprep.subr.bf16.mxu0 0
      %7405 = vmatpush2.bf16.msra.mxu0 0
      %7406 = vmatprep.subr.bf16.mxu0 0
      %7407 = vmatpush2.bf16.msra.mxu0 0
      %7408 = vmatprep.subr.bf16.mxu0 0
      %7409 = vmatpush2.bf16.msra.mxu0 0
      %7410 = vmatprep.subr.bf16.mxu0 0
      %7411 = vmatpush2.bf16.msra.mxu0 0
      %7412 = vmatprep.subr.bf16.mxu0 0
      %7413 = vmatpush2.bf16.msra.mxu0 0
      %7414 = vmatprep.subr.bf16.mxu0 0
      %7415 = vmatpush2.bf16.msra.mxu0 0
      %7416 = vmatprep.mubr.bf16.mxu0 0
      %7417 = vmatmul.mubr.bf16.gmra.mxu0 %v7373
      %v7418 = vpop.f32.mrf.mxu0
      %v7419 = vadd.f32 0.0, %v7418
      %v7420 = vpop.f32.mrf.mxu0
      %v7421 = vpop.f32.mrf.mxu0
      %v7422 = vadd.f32 0.0, %v7421
      %v7423 = vpop.f32.mrf.mxu0
      %7424 = vmatprep.mubr.bf16.mxu0 0
      %7425 = vmatmul.mubr.bf16.gmra.mxu0 %v7376
      %v7426 = vpop.f32.mrf.mxu0
      %v7427 = vadd.f32 0.0, %v7426
      %v7428 = vpop.f32.mrf.mxu0
      %v7429 = vpop.f32.mrf.mxu0
      %v7430 = vadd.f32 0.0, %v7429
      %v7431 = vpop.f32.mrf.mxu0
      %7432 = vmatprep.mubr.bf16.mxu0 0
      %7433 = vmatmul.mubr.bf16.gmra.mxu0 %v7379
      %v7434 = vpop.f32.mrf.mxu0
      %v7435 = vadd.f32 0.0, %v7434
      %v7436 = vpop.f32.mrf.mxu0
      %v7437 = vpop.f32.mrf.mxu0
      %v7438 = vadd.f32 0.0, %v7437
      %v7439 = vpop.f32.mrf.mxu0
      %7440 = vmatprep.mubr.bf16.mxu0 0
      %7441 = vmatmul.mubr.bf16.gmra.mxu0 %v7382
      %v7442 = vpop.f32.mrf.mxu0
      %v7443 = vadd.f32 0.0, %v7442
      %v7444 = vpop.f32.mrf.mxu0
      %v7445 = vpop.f32.mrf.mxu0
      %v7446 = vpop.f32.mrf.mxu0
      %7447 = vdwg.mxu0
      %v7448 = vpack.c.bf16 %v7422, %v7419
      %v7449 = vpack.c.bf16 %v7430, %v7427
      %v7450 = vpack.c.bf16 %v7438, %v7435
      %v7451 = vpack.c.bf16 %v7443, %v7443
      %s7452 = scalar_lea.vmem %s8, 32
      %v7453 = vld [vmem:[%s7452] sm:$0xf]
      %v7454 = vld [vmem:[%s7452 + $0x4] sm:$0xf]
      %v7455 = vld [vmem:[%s7452 + $0x8] sm:$0xf]
      %v7456 = vld [vmem:[%s7452 + $0xc] sm:$0xf]
      %v7461 = vunpack.c.l.b16 %v7453
      %v7462 = vunpack.c.l.b16 %v7454
      %v7463 = vunpack.c.l.b16 %v7455
      %v7464 = vunpack.c.l.b16 %v7456
      %v7465 = vpack.c.b16 %v7462, %v7461
      %v7466 = vpack.c.b16 %v7464, %v7463
      %v7470 = vsel %vm7181, %v7448, 0
      %v7473 = vsel %vm7181, %v7449, 0
      %v7476 = vsel %vm7181, %v7450, 0
      %v7479 = vsel %vm7181, %v7451, 0
      %7481 = vmatprep.subr.bf16.mxu0 0
      %7482 = vmatpush1.bf16.msra.mxu0 0
      %7483 = vmatprep.subr.bf16.mxu0 0
      %7484 = vmatpush1.bf16.msra.mxu0 0
      %7485 = vmatprep.subr.bf16.mxu0 0
      %7486 = vmatpush1.bf16.msra.mxu0 0
      %7487 = vmatprep.subr.bf16.mxu0 0
      %7488 = vmatpush1.bf16.msra.mxu0 0
      %7489 = vmatprep.subr.bf16.mxu0 0
      %7490 = vmatpush1.bf16.msra.mxu0 0
      %7491 = vmatprep.subr.bf16.mxu0 0
      %7492 = vmatpush1.bf16.msra.mxu0 0
      %7493 = vmatprep.subr.bf16.mxu0 0
      %7494 = vmatpush1.bf16.msra.mxu0 %v7466
      %7495 = vmatprep.subr.bf16.mxu0 0
      %7496 = vmatpush1.bf16.msra.mxu0 %v7465
      %7497 = vmatprep.subr.bf16.mxu0 0
      %7498 = vmatpush2.bf16.msra.mxu0 0
      %7499 = vmatprep.subr.bf16.mxu0 0
      %7500 = vmatpush2.bf16.msra.mxu0 0
      %7501 = vmatprep.subr.bf16.mxu0 0
      %7502 = vmatpush2.bf16.msra.mxu0 0
      %7503 = vmatprep.subr.bf16.mxu0 0
      %7504 = vmatpush2.bf16.msra.mxu0 0
      %7505 = vmatprep.subr.bf16.mxu0 0
      %7506 = vmatpush2.bf16.msra.mxu0 0
      %7507 = vmatprep.subr.bf16.mxu0 0
      %7508 = vmatpush2.bf16.msra.mxu0 0
      %7509 = vmatprep.subr.bf16.mxu0 0
      %7510 = vmatpush2.bf16.msra.mxu0 0
      %7511 = vmatprep.subr.bf16.mxu0 0
      %7512 = vmatpush2.bf16.msra.mxu0 0
      %7513 = vmatprep.mubr.bf16.mxu0 0
      %7514 = vmatmul.mubr.bf16.gmra.mxu0 %v7470
      %v7515 = vpop.f32.mrf.mxu0
      %v7516 = vadd.f32 0.0, %v7515
      %v7517 = vpop.f32.mrf.mxu0
      %v7518 = vpop.f32.mrf.mxu0
      %v7519 = vadd.f32 0.0, %v7518
      %v7520 = vpop.f32.mrf.mxu0
      %7521 = vmatprep.mubr.bf16.mxu0 0
      %7522 = vmatmul.mubr.bf16.gmra.mxu0 %v7473
      %v7523 = vpop.f32.mrf.mxu0
      %v7524 = vadd.f32 0.0, %v7523
      %v7525 = vpop.f32.mrf.mxu0
      %v7526 = vpop.f32.mrf.mxu0
      %v7527 = vadd.f32 0.0, %v7526
      %v7528 = vpop.f32.mrf.mxu0
      %7529 = vmatprep.mubr.bf16.mxu0 0
      %7530 = vmatmul.mubr.bf16.gmra.mxu0 %v7476
      %v7531 = vpop.f32.mrf.mxu0
      %v7532 = vadd.f32 0.0, %v7531
      %v7533 = vpop.f32.mrf.mxu0
      %v7534 = vpop.f32.mrf.mxu0
      %v7535 = vadd.f32 0.0, %v7534
      %v7536 = vpop.f32.mrf.mxu0
      %7537 = vmatprep.mubr.bf16.mxu0 0
      %7538 = vmatmul.mubr.bf16.gmra.mxu0 %v7479
      %v7539 = vpop.f32.mrf.mxu0
      %v7540 = vadd.f32 0.0, %v7539
      %v7541 = vpop.f32.mrf.mxu0
      %v7542 = vpop.f32.mrf.mxu0
      %v7543 = vpop.f32.mrf.mxu0
      %7544 = vdwg.mxu0
      %v7545 = vadd.f32 %v7317, %v7516
      %v7546 = vadd.f32 %v7320, %v7519
      %v7547 = vadd.f32 %v7325, %v7524
      %v7548 = vadd.f32 %v7328, %v7527
      %v7549 = vadd.f32 %v7333, %v7532
      %v7550 = vadd.f32 %v7336, %v7535
      %v7551 = vadd.f32 %v7341, %v7540
      %s7552 = scalar_lea.vmem %s7, 84
      %v7553 = vld [vmem:[%s7552] sm:$0xf]
      %v7554 = vld [vmem:[%s7552 + $0x4] sm:$0xf]
      %v7555 = vld [vmem:[%s7552 + $0x8] sm:$0xf]
      %v7556 = vld [vmem:[%s7552 + $0xc] sm:$0xf]
      %v7557 = vld [vmem:[%s7552 + $0x10] sm:$0xf]
      %v7558 = vld [vmem:[%s7552 + $0x14] sm:$0xf]
      %v7559 = vld [vmem:[%s7552 + $0x18] sm:$0x1]
      %v7567 = vunpack.c.l.b16 %v7553
      %v7568 = vunpack.c.l.b16 %v7554
      %v7569 = vunpack.c.l.b16 %v7555
      %v7570 = vunpack.c.l.b16 %v7556
      %v7571 = vunpack.c.l.b16 %v7557
      %v7572 = vunpack.c.l.b16 %v7558
      %v7573 = vunpack.c.l.b16 %v7559
      %v7574 = vpack.c.b16 %v7568, %v7567
      %v7575 = vpack.c.b16 %v7570, %v7569
      %v7576 = vpack.c.b16 %v7572, %v7571
      %v7577 = vpack.c.b16 %v7573, %v7573
      %v7579 = vsel %vm6967, %v7574, 0
      %v7582 = vsel %vm6967, %v7575, 0
      %v7585 = vsel %vm6967, %v7576, 0
      %v7588 = vsel %vm6967, %v7577, 0
      %7590 = vmatprep.subr.bf16.mxu0 0
      %7591 = vmatpush1.bf16.msra.mxu0 0
      %7592 = vmatprep.subr.bf16.mxu0 0
      %7593 = vmatpush1.bf16.msra.mxu0 0
      %7594 = vmatprep.subr.bf16.mxu0 0
      %7595 = vmatpush1.bf16.msra.mxu0 0
      %7596 = vmatprep.subr.bf16.mxu0 0
      %7597 = vmatpush1.bf16.msra.mxu0 0
      %7598 = vmatprep.subr.bf16.mxu0 0
      %7599 = vmatpush1.bf16.msra.mxu0 %v6984
      %7600 = vmatprep.subr.bf16.mxu0 0
      %7601 = vmatpush1.bf16.msra.mxu0 %v6940
      %7602 = vmatprep.subr.bf16.mxu0 0
      %7603 = vmatpush1.bf16.msra.mxu0 %v6939
      %7604 = vmatprep.subr.bf16.mxu0 0
      %7605 = vmatpush1.bf16.msra.mxu0 %v6938
      %7606 = vmatprep.subr.bf16.mxu0 0
      %7607 = vmatpush2.bf16.msra.mxu0 0
      %7608 = vmatprep.subr.bf16.mxu0 0
      %7609 = vmatpush2.bf16.msra.mxu0 0
      %7610 = vmatprep.subr.bf16.mxu0 0
      %7611 = vmatpush2.bf16.msra.mxu0 0
      %7612 = vmatprep.subr.bf16.mxu0 0
      %7613 = vmatpush2.bf16.msra.mxu0 0
      %7614 = vmatprep.subr.bf16.mxu0 0
      %7615 = vmatpush2.bf16.msra.mxu0 0
      %7616 = vmatprep.subr.bf16.mxu0 0
      %7617 = vmatpush2.bf16.msra.mxu0 0
      %7618 = vmatprep.subr.bf16.mxu0 0
      %7619 = vmatpush2.bf16.msra.mxu0 0
      %7620 = vmatprep.subr.bf16.mxu0 0
      %7621 = vmatpush2.bf16.msra.mxu0 0
      %7622 = vmatprep.mubr.bf16.mxu0 0
      %7623 = vmatmul.mubr.bf16.gmra.mxu0 %v7579
      %v7624 = vpop.f32.mrf.mxu0
      %v7625 = vadd.f32 0.0, %v7624
      %v7626 = vpop.f32.mrf.mxu0
      %v7627 = vpop.f32.mrf.mxu0
      %v7628 = vadd.f32 0.0, %v7627
      %v7629 = vpop.f32.mrf.mxu0
      %7630 = vmatprep.mubr.bf16.mxu0 0
      %7631 = vmatmul.mubr.bf16.gmra.mxu0 %v7582
      %v7632 = vpop.f32.mrf.mxu0
      %v7633 = vadd.f32 0.0, %v7632
      %v7634 = vpop.f32.mrf.mxu0
      %v7635 = vpop.f32.mrf.mxu0
      %v7636 = vadd.f32 0.0, %v7635
      %v7637 = vpop.f32.mrf.mxu0
      %7638 = vmatprep.mubr.bf16.mxu0 0
      %7639 = vmatmul.mubr.bf16.gmra.mxu0 %v7585
      %v7640 = vpop.f32.mrf.mxu0
      %v7641 = vadd.f32 0.0, %v7640
      %v7642 = vpop.f32.mrf.mxu0
      %v7643 = vpop.f32.mrf.mxu0
      %v7644 = vadd.f32 0.0, %v7643
      %v7645 = vpop.f32.mrf.mxu0
      %7646 = vmatprep.mubr.bf16.mxu0 0
      %7647 = vmatmul.mubr.bf16.gmra.mxu0 %v7588
      %v7648 = vpop.f32.mrf.mxu0
      %v7649 = vadd.f32 0.0, %v7648
      %v7650 = vpop.f32.mrf.mxu0
      %v7651 = vpop.f32.mrf.mxu0
      %v7652 = vpop.f32.mrf.mxu0
      %7653 = vdwg.mxu0
      %v7654 = vpack.c.bf16 %v7628, %v7625
      %v7655 = vpack.c.bf16 %v7636, %v7633
      %v7656 = vpack.c.bf16 %v7644, %v7641
      %v7657 = vpack.c.bf16 %v7649, %v7649
      %s7658 = scalar_lea.vmem %s8, 48
      %v7659 = vld [vmem:[%s7658] sm:$0xf]
      %v7660 = vld [vmem:[%s7658 + $0x4] sm:$0xf]
      %v7661 = vld [vmem:[%s7658 + $0x8] sm:$0xf]
      %v7662 = vld [vmem:[%s7658 + $0xc] sm:$0xf]
      %v7667 = vunpack.c.l.b16 %v7659
      %v7668 = vunpack.c.l.b16 %v7660
      %v7669 = vunpack.c.l.b16 %v7661
      %v7670 = vunpack.c.l.b16 %v7662
      %v7671 = vpack.c.b16 %v7668, %v7667
      %v7672 = vpack.c.b16 %v7670, %v7669
      %v7676 = vsel %vm7181, %v7654, 0
      %v7679 = vsel %vm7181, %v7655, 0
      %v7682 = vsel %vm7181, %v7656, 0
      %v7685 = vsel %vm7181, %v7657, 0
      %7687 = vmatprep.subr.bf16.mxu0 0
      %7688 = vmatpush1.bf16.msra.mxu0 0
      %7689 = vmatprep.subr.bf16.mxu0 0
      %7690 = vmatpush1.bf16.msra.mxu0 0
      %7691 = vmatprep.subr.bf16.mxu0 0
      %7692 = vmatpush1.bf16.msra.mxu0 0
      %7693 = vmatprep.subr.bf16.mxu0 0
      %7694 = vmatpush1.bf16.msra.mxu0 0
      %7695 = vmatprep.subr.bf16.mxu0 0
      %7696 = vmatpush1.bf16.msra.mxu0 0
      %7697 = vmatprep.subr.bf16.mxu0 0
      %7698 = vmatpush1.bf16.msra.mxu0 0
      %7699 = vmatprep.subr.bf16.mxu0 0
      %7700 = vmatpush1.bf16.msra.mxu0 %v7672
      %7701 = vmatprep.subr.bf16.mxu0 0
      %7702 = vmatpush1.bf16.msra.mxu0 %v7671
      %7703 = vmatprep.subr.bf16.mxu0 0
      %7704 = vmatpush2.bf16.msra.mxu0 0
      %7705 = vmatprep.subr.bf16.mxu0 0
      %7706 = vmatpush2.bf16.msra.mxu0 0
      %7707 = vmatprep.subr.bf16.mxu0 0
      %7708 = vmatpush2.bf16.msra.mxu0 0
      %7709 = vmatprep.subr.bf16.mxu0 0
      %7710 = vmatpush2.bf16.msra.mxu0 0
      %7711 = vmatprep.subr.bf16.mxu0 0
      %7712 = vmatpush2.bf16.msra.mxu0 0
      %7713 = vmatprep.subr.bf16.mxu0 0
      %7714 = vmatpush2.bf16.msra.mxu0 0
      %7715 = vmatprep.subr.bf16.mxu0 0
      %7716 = vmatpush2.bf16.msra.mxu0 0
      %7717 = vmatprep.subr.bf16.mxu0 0
      %7718 = vmatpush2.bf16.msra.mxu0 0
      %7719 = vmatprep.mubr.bf16.mxu0 0
      %7720 = vmatmul.mubr.bf16.gmra.mxu0 %v7676
      %v7721 = vpop.f32.mrf.mxu0
      %v7722 = vadd.f32 0.0, %v7721
      %v7723 = vpop.f32.mrf.mxu0
      %v7724 = vpop.f32.mrf.mxu0
      %v7725 = vadd.f32 0.0, %v7724
      %v7726 = vpop.f32.mrf.mxu0
      %7727 = vmatprep.mubr.bf16.mxu0 0
      %7728 = vmatmul.mubr.bf16.gmra.mxu0 %v7679
      %v7729 = vpop.f32.mrf.mxu0
      %v7730 = vadd.f32 0.0, %v7729
      %v7731 = vpop.f32.mrf.mxu0
      %v7732 = vpop.f32.mrf.mxu0
      %v7733 = vadd.f32 0.0, %v7732
      %v7734 = vpop.f32.mrf.mxu0
      %7735 = vmatprep.mubr.bf16.mxu0 0
      %7736 = vmatmul.mubr.bf16.gmra.mxu0 %v7682
      %v7737 = vpop.f32.mrf.mxu0
      %v7738 = vadd.f32 0.0, %v7737
      %v7739 = vpop.f32.mrf.mxu0
      %v7740 = vpop.f32.mrf.mxu0
      %v7741 = vadd.f32 0.0, %v7740
      %v7742 = vpop.f32.mrf.mxu0
      %7743 = vmatprep.mubr.bf16.mxu0 0
      %7744 = vmatmul.mubr.bf16.gmra.mxu0 %v7685
      %v7745 = vpop.f32.mrf.mxu0
      %v7746 = vadd.f32 0.0, %v7745
      %v7747 = vpop.f32.mrf.mxu0
      %v7748 = vpop.f32.mrf.mxu0
      %v7749 = vpop.f32.mrf.mxu0
      %7750 = vdwg.mxu0
      %v7751 = vadd.f32 %v7545, %v7722
      %v7752 = vadd.f32 %v7546, %v7725
      %v7753 = vadd.f32 %v7547, %v7730
      %v7754 = vadd.f32 %v7548, %v7733
      %v7755 = vadd.f32 %v7549, %v7738
      %v7756 = vadd.f32 %v7550, %v7741
      %v7757 = vadd.f32 %v7551, %v7746
      %s7758 = scalar_lea.vmem %s7, 112
      %v7759 = vld [vmem:[%s7758] sm:$0xf]
      %v7760 = vld [vmem:[%s7758 + $0x4] sm:$0xf]
      %v7761 = vld [vmem:[%s7758 + $0x8] sm:$0xf]
      %v7762 = vld [vmem:[%s7758 + $0xc] sm:$0xf]
      %v7763 = vld [vmem:[%s7758 + $0x10] sm:$0xf]
      %v7764 = vld [vmem:[%s7758 + $0x14] sm:$0xf]
      %v7765 = vld [vmem:[%s7758 + $0x18] sm:$0x1]
      %v7773 = vunpack.c.l.b16 %v7759
      %v7774 = vunpack.c.l.b16 %v7760
      %v7775 = vunpack.c.l.b16 %v7761
      %v7776 = vunpack.c.l.b16 %v7762
      %v7777 = vunpack.c.l.b16 %v7763
      %v7778 = vunpack.c.l.b16 %v7764
      %v7779 = vunpack.c.l.b16 %v7765
      %v7780 = vpack.c.b16 %v7774, %v7773
      %v7781 = vpack.c.b16 %v7776, %v7775
      %v7782 = vpack.c.b16 %v7778, %v7777
      %v7783 = vpack.c.b16 %v7779, %v7779
      %v7785 = vsel %vm6967, %v7780, 0
      %v7788 = vsel %vm6967, %v7781, 0
      %v7791 = vsel %vm6967, %v7782, 0
      %v7794 = vsel %vm6967, %v7783, 0
      %7796 = vmatprep.subr.bf16.mxu0 0
      %7797 = vmatpush1.bf16.msra.mxu0 0
      %7798 = vmatprep.subr.bf16.mxu0 0
      %7799 = vmatpush1.bf16.msra.mxu0 0
      %7800 = vmatprep.subr.bf16.mxu0 0
      %7801 = vmatpush1.bf16.msra.mxu0 0
      %7802 = vmatprep.subr.bf16.mxu0 0
      %7803 = vmatpush1.bf16.msra.mxu0 0
      %7804 = vmatprep.subr.bf16.mxu0 0
      %7805 = vmatpush1.bf16.msra.mxu0 %v6984
      %7806 = vmatprep.subr.bf16.mxu0 0
      %7807 = vmatpush1.bf16.msra.mxu0 %v6940
      %7808 = vmatprep.subr.bf16.mxu0 0
      %7809 = vmatpush1.bf16.msra.mxu0 %v6939
      %7810 = vmatprep.subr.bf16.mxu0 0
      %7811 = vmatpush1.bf16.msra.mxu0 %v6938
      %7812 = vmatprep.subr.bf16.mxu0 0
      %7813 = vmatpush2.bf16.msra.mxu0 0
      %7814 = vmatprep.subr.bf16.mxu0 0
      %7815 = vmatpush2.bf16.msra.mxu0 0
      %7816 = vmatprep.subr.bf16.mxu0 0
      %7817 = vmatpush2.bf16.msra.mxu0 0
      %7818 = vmatprep.subr.bf16.mxu0 0
      %7819 = vmatpush2.bf16.msra.mxu0 0
      %7820 = vmatprep.subr.bf16.mxu0 0
      %7821 = vmatpush2.bf16.msra.mxu0 0
      %7822 = vmatprep.subr.bf16.mxu0 0
      %7823 = vmatpush2.bf16.msra.mxu0 0
      %7824 = vmatprep.subr.bf16.mxu0 0
      %7825 = vmatpush2.bf16.msra.mxu0 0
      %7826 = vmatprep.subr.bf16.mxu0 0
      %7827 = vmatpush2.bf16.msra.mxu0 0
      %7828 = vmatprep.mubr.bf16.mxu0 0
      %7829 = vmatmul.mubr.bf16.gmra.mxu0 %v7785
      %v7830 = vpop.f32.mrf.mxu0
      %v7831 = vadd.f32 0.0, %v7830
      %v7832 = vpop.f32.mrf.mxu0
      %v7833 = vpop.f32.mrf.mxu0
      %v7834 = vadd.f32 0.0, %v7833
      %v7835 = vpop.f32.mrf.mxu0
      %7836 = vmatprep.mubr.bf16.mxu0 0
      %7837 = vmatmul.mubr.bf16.gmra.mxu0 %v7788
      %v7838 = vpop.f32.mrf.mxu0
      %v7839 = vadd.f32 0.0, %v7838
      %v7840 = vpop.f32.mrf.mxu0
      %v7841 = vpop.f32.mrf.mxu0
      %v7842 = vadd.f32 0.0, %v7841
      %v7843 = vpop.f32.mrf.mxu0
      %7844 = vmatprep.mubr.bf16.mxu0 0
      %7845 = vmatmul.mubr.bf16.gmra.mxu0 %v7791
      %v7846 = vpop.f32.mrf.mxu0
      %v7847 = vadd.f32 0.0, %v7846
      %v7848 = vpop.f32.mrf.mxu0
      %v7849 = vpop.f32.mrf.mxu0
      %v7850 = vadd.f32 0.0, %v7849
      %v7851 = vpop.f32.mrf.mxu0
      %7852 = vmatprep.mubr.bf16.mxu0 0
      %7853 = vmatmul.mubr.bf16.gmra.mxu0 %v7794
      %v7854 = vpop.f32.mrf.mxu0
      %v7855 = vadd.f32 0.0, %v7854
      %v7856 = vpop.f32.mrf.mxu0
      %v7857 = vpop.f32.mrf.mxu0
      %v7858 = vpop.f32.mrf.mxu0
      %7859 = vdwg.mxu0
      %v7860 = vpack.c.bf16 %v7834, %v7831
      %v7861 = vpack.c.bf16 %v7842, %v7839
      %v7862 = vpack.c.bf16 %v7850, %v7847
      %v7863 = vpack.c.bf16 %v7855, %v7855
      %s7864 = scalar_lea.vmem %s8, 64
      %v7865 = vld [vmem:[%s7864] sm:$0xf]
      %v7866 = vld [vmem:[%s7864 + $0x4] sm:$0xf]
      %v7867 = vld [vmem:[%s7864 + $0x8] sm:$0xf]
      %v7868 = vld [vmem:[%s7864 + $0xc] sm:$0xf]
      %v7873 = vunpack.c.l.b16 %v7865
      %v7874 = vunpack.c.l.b16 %v7866
      %v7875 = vunpack.c.l.b16 %v7867
      %v7876 = vunpack.c.l.b16 %v7868
      %v7877 = vpack.c.b16 %v7874, %v7873
      %v7878 = vpack.c.b16 %v7876, %v7875
      %v7882 = vsel %vm7181, %v7860, 0
      %v7885 = vsel %vm7181, %v7861, 0
      %v7888 = vsel %vm7181, %v7862, 0
      %v7891 = vsel %vm7181, %v7863, 0
      %7893 = vmatprep.subr.bf16.mxu0 0
      %7894 = vmatpush1.bf16.msra.mxu0 0
      %7895 = vmatprep.subr.bf16.mxu0 0
      %7896 = vmatpush1.bf16.msra.mxu0 0
      %7897 = vmatprep.subr.bf16.mxu0 0
      %7898 = vmatpush1.bf16.msra.mxu0 0
      %7899 = vmatprep.subr.bf16.mxu0 0
      %7900 = vmatpush1.bf16.msra.mxu0 0
      %7901 = vmatprep.subr.bf16.mxu0 0
      %7902 = vmatpush1.bf16.msra.mxu0 0
      %7903 = vmatprep.subr.bf16.mxu0 0
      %7904 = vmatpush1.bf16.msra.mxu0 0
      %7905 = vmatprep.subr.bf16.mxu0 0
      %7906 = vmatpush1.bf16.msra.mxu0 %v7878
      %7907 = vmatprep.subr.bf16.mxu0 0
      %7908 = vmatpush1.bf16.msra.mxu0 %v7877
      %7909 = vmatprep.subr.bf16.mxu0 0
      %7910 = vmatpush2.bf16.msra.mxu0 0
      %7911 = vmatprep.subr.bf16.mxu0 0
      %7912 = vmatpush2.bf16.msra.mxu0 0
      %7913 = vmatprep.subr.bf16.mxu0 0
      %7914 = vmatpush2.bf16.msra.mxu0 0
      %7915 = vmatprep.subr.bf16.mxu0 0
      %7916 = vmatpush2.bf16.msra.mxu0 0
      %7917 = vmatprep.subr.bf16.mxu0 0
      %7918 = vmatpush2.bf16.msra.mxu0 0
      %7919 = vmatprep.subr.bf16.mxu0 0
      %7920 = vmatpush2.bf16.msra.mxu0 0
      %7921 = vmatprep.subr.bf16.mxu0 0
      %7922 = vmatpush2.bf16.msra.mxu0 0
      %7923 = vmatprep.subr.bf16.mxu0 0
      %7924 = vmatpush2.bf16.msra.mxu0 0
      %7925 = vmatprep.mubr.bf16.mxu0 0
      %7926 = vmatmul.mubr.bf16.gmra.mxu0 %v7882
      %v7927 = vpop.f32.mrf.mxu0
      %v7928 = vadd.f32 0.0, %v7927
      %v7929 = vpop.f32.mrf.mxu0
      %v7930 = vpop.f32.mrf.mxu0
      %v7931 = vadd.f32 0.0, %v7930
      %v7932 = vpop.f32.mrf.mxu0
      %7933 = vmatprep.mubr.bf16.mxu0 0
      %7934 = vmatmul.mubr.bf16.gmra.mxu0 %v7885
      %v7935 = vpop.f32.mrf.mxu0
      %v7936 = vadd.f32 0.0, %v7935
      %v7937 = vpop.f32.mrf.mxu0
      %v7938 = vpop.f32.mrf.mxu0
      %v7939 = vadd.f32 0.0, %v7938
      %v7940 = vpop.f32.mrf.mxu0
      %7941 = vmatprep.mubr.bf16.mxu0 0
      %7942 = vmatmul.mubr.bf16.gmra.mxu0 %v7888
      %v7943 = vpop.f32.mrf.mxu0
      %v7944 = vadd.f32 0.0, %v7943
      %v7945 = vpop.f32.mrf.mxu0
      %v7946 = vpop.f32.mrf.mxu0
      %v7947 = vadd.f32 0.0, %v7946
      %v7948 = vpop.f32.mrf.mxu0
      %7949 = vmatprep.mubr.bf16.mxu0 0
      %7950 = vmatmul.mubr.bf16.gmra.mxu0 %v7891
      %v7951 = vpop.f32.mrf.mxu0
      %v7952 = vadd.f32 0.0, %v7951
      %v7953 = vpop.f32.mrf.mxu0
      %v7954 = vpop.f32.mrf.mxu0
      %v7955 = vpop.f32.mrf.mxu0
      %7956 = vdwg.mxu0
      %v7957 = vadd.f32 %v7751, %v7928
      %v7958 = vadd.f32 %v7752, %v7931
      %v7959 = vadd.f32 %v7753, %v7936
      %v7960 = vadd.f32 %v7754, %v7939
      %v7961 = vadd.f32 %v7755, %v7944
      %v7962 = vadd.f32 %v7756, %v7947
      %v7963 = vadd.f32 %v7757, %v7952
      %s7964 = scalar_lea.vmem %s7, 140
      %v7965 = vld [vmem:[%s7964] sm:$0xf]
      %v7966 = vld [vmem:[%s7964 + $0x4] sm:$0xf]
      %v7967 = vld [vmem:[%s7964 + $0x8] sm:$0xf]
      %v7968 = vld [vmem:[%s7964 + $0xc] sm:$0xf]
      %v7969 = vld [vmem:[%s7964 + $0x10] sm:$0xf]
      %v7970 = vld [vmem:[%s7964 + $0x14] sm:$0xf]
      %v7971 = vld [vmem:[%s7964 + $0x18] sm:$0x1]
      %v7979 = vunpack.c.l.b16 %v7965
      %v7980 = vunpack.c.l.b16 %v7966
      %v7981 = vunpack.c.l.b16 %v7967
      %v7982 = vunpack.c.l.b16 %v7968
      %v7983 = vunpack.c.l.b16 %v7969
      %v7984 = vunpack.c.l.b16 %v7970
      %v7985 = vunpack.c.l.b16 %v7971
      %v7986 = vpack.c.b16 %v7980, %v7979
      %v7987 = vpack.c.b16 %v7982, %v7981
      %v7988 = vpack.c.b16 %v7984, %v7983
      %v7989 = vpack.c.b16 %v7985, %v7985
      %v7991 = vsel %vm6967, %v7986, 0
      %v7994 = vsel %vm6967, %v7987, 0
      %v7997 = vsel %vm6967, %v7988, 0
      %v8000 = vsel %vm6967, %v7989, 0
      %8002 = vmatprep.subr.bf16.mxu0 0
      %8003 = vmatpush1.bf16.msra.mxu0 0
      %8004 = vmatprep.subr.bf16.mxu0 0
      %8005 = vmatpush1.bf16.msra.mxu0 0
      %8006 = vmatprep.subr.bf16.mxu0 0
      %8007 = vmatpush1.bf16.msra.mxu0 0
      %8008 = vmatprep.subr.bf16.mxu0 0
      %8009 = vmatpush1.bf16.msra.mxu0 0
      %8010 = vmatprep.subr.bf16.mxu0 0
      %8011 = vmatpush1.bf16.msra.mxu0 %v6984
      %8012 = vmatprep.subr.bf16.mxu0 0
      %8013 = vmatpush1.bf16.msra.mxu0 %v6940
      %8014 = vmatprep.subr.bf16.mxu0 0
      %8015 = vmatpush1.bf16.msra.mxu0 %v6939
      %8016 = vmatprep.subr.bf16.mxu0 0
      %8017 = vmatpush1.bf16.msra.mxu0 %v6938
      %8018 = vmatprep.subr.bf16.mxu0 0
      %8019 = vmatpush2.bf16.msra.mxu0 0
      %8020 = vmatprep.subr.bf16.mxu0 0
      %8021 = vmatpush2.bf16.msra.mxu0 0
      %8022 = vmatprep.subr.bf16.mxu0 0
      %8023 = vmatpush2.bf16.msra.mxu0 0
      %8024 = vmatprep.subr.bf16.mxu0 0
      %8025 = vmatpush2.bf16.msra.mxu0 0
      %8026 = vmatprep.subr.bf16.mxu0 0
      %8027 = vmatpush2.bf16.msra.mxu0 0
      %8028 = vmatprep.subr.bf16.mxu0 0
      %8029 = vmatpush2.bf16.msra.mxu0 0
      %8030 = vmatprep.subr.bf16.mxu0 0
      %8031 = vmatpush2.bf16.msra.mxu0 0
      %8032 = vmatprep.subr.bf16.mxu0 0
      %8033 = vmatpush2.bf16.msra.mxu0 0
      %8034 = vmatprep.mubr.bf16.mxu0 0
      %8035 = vmatmul.mubr.bf16.gmra.mxu0 %v7991
      %v8036 = vpop.f32.mrf.mxu0
      %v8037 = vadd.f32 0.0, %v8036
      %v8038 = vpop.f32.mrf.mxu0
      %v8039 = vpop.f32.mrf.mxu0
      %v8040 = vadd.f32 0.0, %v8039
      %v8041 = vpop.f32.mrf.mxu0
      %8042 = vmatprep.mubr.bf16.mxu0 0
      %8043 = vmatmul.mubr.bf16.gmra.mxu0 %v7994
      %v8044 = vpop.f32.mrf.mxu0
      %v8045 = vadd.f32 0.0, %v8044
      %v8046 = vpop.f32.mrf.mxu0
      %v8047 = vpop.f32.mrf.mxu0
      %v8048 = vadd.f32 0.0, %v8047
      %v8049 = vpop.f32.mrf.mxu0
      %8050 = vmatprep.mubr.bf16.mxu0 0
      %8051 = vmatmul.mubr.bf16.gmra.mxu0 %v7997
      %v8052 = vpop.f32.mrf.mxu0
      %v8053 = vadd.f32 0.0, %v8052
      %v8054 = vpop.f32.mrf.mxu0
      %v8055 = vpop.f32.mrf.mxu0
      %v8056 = vadd.f32 0.0, %v8055
      %v8057 = vpop.f32.mrf.mxu0
      %8058 = vmatprep.mubr.bf16.mxu0 0
      %8059 = vmatmul.mubr.bf16.gmra.mxu0 %v8000
      %v8060 = vpop.f32.mrf.mxu0
      %v8061 = vadd.f32 0.0, %v8060
      %v8062 = vpop.f32.mrf.mxu0
      %v8063 = vpop.f32.mrf.mxu0
      %v8064 = vpop.f32.mrf.mxu0
      %8065 = vdwg.mxu0
      %v8066 = vpack.c.bf16 %v8040, %v8037
      %v8067 = vpack.c.bf16 %v8048, %v8045
      %v8068 = vpack.c.bf16 %v8056, %v8053
      %v8069 = vpack.c.bf16 %v8061, %v8061
      %s8070 = scalar_lea.vmem %s8, 80
      %v8071 = vld [vmem:[%s8070] sm:$0xf]
      %v8072 = vld [vmem:[%s8070 + $0x4] sm:$0xf]
      %v8073 = vld [vmem:[%s8070 + $0x8] sm:$0xf]
      %v8074 = vld [vmem:[%s8070 + $0xc] sm:$0xf]
      %v8079 = vunpack.c.l.b16 %v8071
      %v8080 = vunpack.c.l.b16 %v8072
      %v8081 = vunpack.c.l.b16 %v8073
      %v8082 = vunpack.c.l.b16 %v8074
      %v8083 = vpack.c.b16 %v8080, %v8079
      %v8084 = vpack.c.b16 %v8082, %v8081
      %v8088 = vsel %vm7181, %v8066, 0
      %v8091 = vsel %vm7181, %v8067, 0
      %v8094 = vsel %vm7181, %v8068, 0
      %v8097 = vsel %vm7181, %v8069, 0
      %8099 = vmatprep.subr.bf16.mxu0 0
      %8100 = vmatpush1.bf16.msra.mxu0 0
      %8101 = vmatprep.subr.bf16.mxu0 0
      %8102 = vmatpush1.bf16.msra.mxu0 0
      %8103 = vmatprep.subr.bf16.mxu0 0
      %8104 = vmatpush1.bf16.msra.mxu0 0
      %8105 = vmatprep.subr.bf16.mxu0 0
      %8106 = vmatpush1.bf16.msra.mxu0 0
      %8107 = vmatprep.subr.bf16.mxu0 0
      %8108 = vmatpush1.bf16.msra.mxu0 0
      %8109 = vmatprep.subr.bf16.mxu0 0
      %8110 = vmatpush1.bf16.msra.mxu0 0
      %8111 = vmatprep.subr.bf16.mxu0 0
      %8112 = vmatpush1.bf16.msra.mxu0 %v8084
      %8113 = vmatprep.subr.bf16.mxu0 0
      %8114 = vmatpush1.bf16.msra.mxu0 %v8083
      %8115 = vmatprep.subr.bf16.mxu0 0
      %8116 = vmatpush2.bf16.msra.mxu0 0
      %8117 = vmatprep.subr.bf16.mxu0 0
      %8118 = vmatpush2.bf16.msra.mxu0 0
      %8119 = vmatprep.subr.bf16.mxu0 0
      %8120 = vmatpush2.bf16.msra.mxu0 0
      %8121 = vmatprep.subr.bf16.mxu0 0
      %8122 = vmatpush2.bf16.msra.mxu0 0
      %8123 = vmatprep.subr.bf16.mxu0 0
      %8124 = vmatpush2.bf16.msra.mxu0 0
      %8125 = vmatprep.subr.bf16.mxu0 0
      %8126 = vmatpush2.bf16.msra.mxu0 0
      %8127 = vmatprep.subr.bf16.mxu0 0
      %8128 = vmatpush2.bf16.msra.mxu0 0
      %8129 = vmatprep.subr.bf16.mxu0 0
      %8130 = vmatpush2.bf16.msra.mxu0 0
      %8131 = vmatprep.mubr.bf16.mxu0 0
      %8132 = vmatmul.mubr.bf16.gmra.mxu0 %v8088
      %v8133 = vpop.f32.mrf.mxu0
      %v8134 = vadd.f32 0.0, %v8133
      %v8135 = vpop.f32.mrf.mxu0
      %v8136 = vpop.f32.mrf.mxu0
      %v8137 = vadd.f32 0.0, %v8136
      %v8138 = vpop.f32.mrf.mxu0
      %8139 = vmatprep.mubr.bf16.mxu0 0
      %8140 = vmatmul.mubr.bf16.gmra.mxu0 %v8091
      %v8141 = vpop.f32.mrf.mxu0
      %v8142 = vadd.f32 0.0, %v8141
      %v8143 = vpop.f32.mrf.mxu0
      %v8144 = vpop.f32.mrf.mxu0
      %v8145 = vadd.f32 0.0, %v8144
      %v8146 = vpop.f32.mrf.mxu0
      %8147 = vmatprep.mubr.bf16.mxu0 0
      %8148 = vmatmul.mubr.bf16.gmra.mxu0 %v8094
      %v8149 = vpop.f32.mrf.mxu0
      %v8150 = vadd.f32 0.0, %v8149
      %v8151 = vpop.f32.mrf.mxu0
      %v8152 = vpop.f32.mrf.mxu0
      %v8153 = vadd.f32 0.0, %v8152
      %v8154 = vpop.f32.mrf.mxu0
      %8155 = vmatprep.mubr.bf16.mxu0 0
      %8156 = vmatmul.mubr.bf16.gmra.mxu0 %v8097
      %v8157 = vpop.f32.mrf.mxu0
      %v8158 = vadd.f32 0.0, %v8157
      %v8159 = vpop.f32.mrf.mxu0
      %v8160 = vpop.f32.mrf.mxu0
      %v8161 = vpop.f32.mrf.mxu0
      %8162 = vdwg.mxu0
      %v8163 = vadd.f32 %v7957, %v8134
      %v8164 = vadd.f32 %v7958, %v8137
      %v8165 = vadd.f32 %v7959, %v8142
      %v8166 = vadd.f32 %v7960, %v8145
      %v8167 = vadd.f32 %v7961, %v8150
      %v8168 = vadd.f32 %v7962, %v8153
      %v8169 = vadd.f32 %v7963, %v8158
      %s8170 = scalar_lea.vmem %s7, 168
      %v8171 = vld [vmem:[%s8170] sm:$0xf]
      %v8172 = vld [vmem:[%s8170 + $0x4] sm:$0xf]
      %v8173 = vld [vmem:[%s8170 + $0x8] sm:$0xf]
      %v8174 = vld [vmem:[%s8170 + $0xc] sm:$0xf]
      %v8175 = vld [vmem:[%s8170 + $0x10] sm:$0xf]
      %v8176 = vld [vmem:[%s8170 + $0x14] sm:$0xf]
      %v8177 = vld [vmem:[%s8170 + $0x18] sm:$0x1]
      %v8185 = vunpack.c.l.b16 %v8171
      %v8186 = vunpack.c.l.b16 %v8172
      %v8187 = vunpack.c.l.b16 %v8173
      %v8188 = vunpack.c.l.b16 %v8174
      %v8189 = vunpack.c.l.b16 %v8175
      %v8190 = vunpack.c.l.b16 %v8176
      %v8191 = vunpack.c.l.b16 %v8177
      %v8192 = vpack.c.b16 %v8186, %v8185
      %v8193 = vpack.c.b16 %v8188, %v8187
      %v8194 = vpack.c.b16 %v8190, %v8189
      %v8195 = vpack.c.b16 %v8191, %v8191
      %v8197 = vsel %vm6967, %v8192, 0
      %v8200 = vsel %vm6967, %v8193, 0
      %v8203 = vsel %vm6967, %v8194, 0
      %v8206 = vsel %vm6967, %v8195, 0
      %8208 = vmatprep.subr.bf16.mxu0 0
      %8209 = vmatpush1.bf16.msra.mxu0 0
      %8210 = vmatprep.subr.bf16.mxu0 0
      %8211 = vmatpush1.bf16.msra.mxu0 0
      %8212 = vmatprep.subr.bf16.mxu0 0
      %8213 = vmatpush1.bf16.msra.mxu0 0
      %8214 = vmatprep.subr.bf16.mxu0 0
      %8215 = vmatpush1.bf16.msra.mxu0 0
      %8216 = vmatprep.subr.bf16.mxu0 0
      %8217 = vmatpush1.bf16.msra.mxu0 %v6984
      %8218 = vmatprep.subr.bf16.mxu0 0
      %8219 = vmatpush1.bf16.msra.mxu0 %v6940
      %8220 = vmatprep.subr.bf16.mxu0 0
      %8221 = vmatpush1.bf16.msra.mxu0 %v6939
      %8222 = vmatprep.subr.bf16.mxu0 0
      %8223 = vmatpush1.bf16.msra.mxu0 %v6938
      %8224 = vmatprep.subr.bf16.mxu0 0
      %8225 = vmatpush2.bf16.msra.mxu0 0
      %8226 = vmatprep.subr.bf16.mxu0 0
      %8227 = vmatpush2.bf16.msra.mxu0 0
      %8228 = vmatprep.subr.bf16.mxu0 0
      %8229 = vmatpush2.bf16.msra.mxu0 0
      %8230 = vmatprep.subr.bf16.mxu0 0
      %8231 = vmatpush2.bf16.msra.mxu0 0
      %8232 = vmatprep.subr.bf16.mxu0 0
      %8233 = vmatpush2.bf16.msra.mxu0 0
      %8234 = vmatprep.subr.bf16.mxu0 0
      %8235 = vmatpush2.bf16.msra.mxu0 0
      %8236 = vmatprep.subr.bf16.mxu0 0
      %8237 = vmatpush2.bf16.msra.mxu0 0
      %8238 = vmatprep.subr.bf16.mxu0 0
      %8239 = vmatpush2.bf16.msra.mxu0 0
      %8240 = vmatprep.mubr.bf16.mxu0 0
      %8241 = vmatmul.mubr.bf16.gmra.mxu0 %v8197
      %v8242 = vpop.f32.mrf.mxu0
      %v8243 = vadd.f32 0.0, %v8242
      %v8244 = vpop.f32.mrf.mxu0
      %v8245 = vpop.f32.mrf.mxu0
      %v8246 = vadd.f32 0.0, %v8245
      %v8247 = vpop.f32.mrf.mxu0
      %8248 = vmatprep.mubr.bf16.mxu0 0
      %8249 = vmatmul.mubr.bf16.gmra.mxu0 %v8200
      %v8250 = vpop.f32.mrf.mxu0
      %v8251 = vadd.f32 0.0, %v8250
      %v8252 = vpop.f32.mrf.mxu0
      %v8253 = vpop.f32.mrf.mxu0
      %v8254 = vadd.f32 0.0, %v8253
      %v8255 = vpop.f32.mrf.mxu0
      %8256 = vmatprep.mubr.bf16.mxu0 0
      %8257 = vmatmul.mubr.bf16.gmra.mxu0 %v8203
      %v8258 = vpop.f32.mrf.mxu0
      %v8259 = vadd.f32 0.0, %v8258
      %v8260 = vpop.f32.mrf.mxu0
      %v8261 = vpop.f32.mrf.mxu0
      %v8262 = vadd.f32 0.0, %v8261
      %v8263 = vpop.f32.mrf.mxu0
      %8264 = vmatprep.mubr.bf16.mxu0 0
      %8265 = vmatmul.mubr.bf16.gmra.mxu0 %v8206
      %v8266 = vpop.f32.mrf.mxu0
      %v8267 = vadd.f32 0.0, %v8266
      %v8268 = vpop.f32.mrf.mxu0
      %v8269 = vpop.f32.mrf.mxu0
      %v8270 = vpop.f32.mrf.mxu0
      %8271 = vdwg.mxu0
      %v8272 = vpack.c.bf16 %v8246, %v8243
      %v8273 = vpack.c.bf16 %v8254, %v8251
      %v8274 = vpack.c.bf16 %v8262, %v8259
      %v8275 = vpack.c.bf16 %v8267, %v8267
      %s8276 = scalar_lea.vmem %s8, 96
      %v8277 = vld [vmem:[%s8276] sm:$0xf]
      %v8278 = vld [vmem:[%s8276 + $0x4] sm:$0xf]
      %v8279 = vld [vmem:[%s8276 + $0x8] sm:$0xf]
      %v8280 = vld [vmem:[%s8276 + $0xc] sm:$0xf]
      %v8285 = vunpack.c.l.b16 %v8277
      %v8286 = vunpack.c.l.b16 %v8278
      %v8287 = vunpack.c.l.b16 %v8279
      %v8288 = vunpack.c.l.b16 %v8280
      %v8289 = vpack.c.b16 %v8286, %v8285
      %v8290 = vpack.c.b16 %v8288, %v8287
      %v8294 = vsel %vm7181, %v8272, 0
      %v8297 = vsel %vm7181, %v8273, 0
      %v8300 = vsel %vm7181, %v8274, 0
      %v8303 = vsel %vm7181, %v8275, 0
      %8305 = vmatprep.subr.bf16.mxu0 0
      %8306 = vmatpush1.bf16.msra.mxu0 0
      %8307 = vmatprep.subr.bf16.mxu0 0
      %8308 = vmatpush1.bf16.msra.mxu0 0
      %8309 = vmatprep.subr.bf16.mxu0 0
      %8310 = vmatpush1.bf16.msra.mxu0 0
      %8311 = vmatprep.subr.bf16.mxu0 0
      %8312 = vmatpush1.bf16.msra.mxu0 0
      %8313 = vmatprep.subr.bf16.mxu0 0
      %8314 = vmatpush1.bf16.msra.mxu0 0
      %8315 = vmatprep.subr.bf16.mxu0 0
      %8316 = vmatpush1.bf16.msra.mxu0 0
      %8317 = vmatprep.subr.bf16.mxu0 0
      %8318 = vmatpush1.bf16.msra.mxu0 %v8290
      %8319 = vmatprep.subr.bf16.mxu0 0
      %8320 = vmatpush1.bf16.msra.mxu0 %v8289
      %8321 = vmatprep.subr.bf16.mxu0 0
      %8322 = vmatpush2.bf16.msra.mxu0 0
      %8323 = vmatprep.subr.bf16.mxu0 0
      %8324 = vmatpush2.bf16.msra.mxu0 0
      %8325 = vmatprep.subr.bf16.mxu0 0
      %8326 = vmatpush2.bf16.msra.mxu0 0
      %8327 = vmatprep.subr.bf16.mxu0 0
      %8328 = vmatpush2.bf16.msra.mxu0 0
      %8329 = vmatprep.subr.bf16.mxu0 0
      %8330 = vmatpush2.bf16.msra.mxu0 0
      %8331 = vmatprep.subr.bf16.mxu0 0
      %8332 = vmatpush2.bf16.msra.mxu0 0
      %8333 = vmatprep.subr.bf16.mxu0 0
      %8334 = vmatpush2.bf16.msra.mxu0 0
      %8335 = vmatprep.subr.bf16.mxu0 0
      %8336 = vmatpush2.bf16.msra.mxu0 0
      %8337 = vmatprep.mubr.bf16.mxu0 0
      %8338 = vmatmul.mubr.bf16.gmra.mxu0 %v8294
      %v8339 = vpop.f32.mrf.mxu0
      %v8340 = vadd.f32 0.0, %v8339
      %v8341 = vpop.f32.mrf.mxu0
      %v8342 = vpop.f32.mrf.mxu0
      %v8343 = vadd.f32 0.0, %v8342
      %v8344 = vpop.f32.mrf.mxu0
      %8345 = vmatprep.mubr.bf16.mxu0 0
      %8346 = vmatmul.mubr.bf16.gmra.mxu0 %v8297
      %v8347 = vpop.f32.mrf.mxu0
      %v8348 = vadd.f32 0.0, %v8347
      %v8349 = vpop.f32.mrf.mxu0
      %v8350 = vpop.f32.mrf.mxu0
      %v8351 = vadd.f32 0.0, %v8350
      %v8352 = vpop.f32.mrf.mxu0
      %8353 = vmatprep.mubr.bf16.mxu0 0
      %8354 = vmatmul.mubr.bf16.gmra.mxu0 %v8300
      %v8355 = vpop.f32.mrf.mxu0
      %v8356 = vadd.f32 0.0, %v8355
      %v8357 = vpop.f32.mrf.mxu0
      %v8358 = vpop.f32.mrf.mxu0
      %v8359 = vadd.f32 0.0, %v8358
      %v8360 = vpop.f32.mrf.mxu0
      %8361 = vmatprep.mubr.bf16.mxu0 0
      %8362 = vmatmul.mubr.bf16.gmra.mxu0 %v8303
      %v8363 = vpop.f32.mrf.mxu0
      %v8364 = vadd.f32 0.0, %v8363
      %v8365 = vpop.f32.mrf.mxu0
      %v8366 = vpop.f32.mrf.mxu0
      %v8367 = vpop.f32.mrf.mxu0
      %8368 = vdwg.mxu0
      %v8369 = vadd.f32 %v8163, %v8340
      %v8370 = vadd.f32 %v8164, %v8343
      %v8371 = vadd.f32 %v8165, %v8348
      %v8372 = vadd.f32 %v8166, %v8351
      %v8373 = vadd.f32 %v8167, %v8356
      %v8374 = vadd.f32 %v8168, %v8359
      %v8375 = vadd.f32 %v8169, %v8364
      %s8376 = scalar_lea.vmem %s7, 196
      %v8377 = vld [vmem:[%s8376] sm:$0xf]
      %v8378 = vld [vmem:[%s8376 + $0x4] sm:$0xf]
      %v8379 = vld [vmem:[%s8376 + $0x8] sm:$0xf]
      %v8380 = vld [vmem:[%s8376 + $0xc] sm:$0xf]
      %v8381 = vld [vmem:[%s8376 + $0x10] sm:$0xf]
      %v8382 = vld [vmem:[%s8376 + $0x14] sm:$0xf]
      %v8383 = vld [vmem:[%s8376 + $0x18] sm:$0x1]
      %v8391 = vunpack.c.l.b16 %v8377
      %v8392 = vunpack.c.l.b16 %v8378
      %v8393 = vunpack.c.l.b16 %v8379
      %v8394 = vunpack.c.l.b16 %v8380
      %v8395 = vunpack.c.l.b16 %v8381
      %v8396 = vunpack.c.l.b16 %v8382
      %v8397 = vunpack.c.l.b16 %v8383
      %v8398 = vpack.c.b16 %v8392, %v8391
      %v8399 = vpack.c.b16 %v8394, %v8393
      %v8400 = vpack.c.b16 %v8396, %v8395
      %v8401 = vpack.c.b16 %v8397, %v8397
      %v8403 = vsel %vm6967, %v8398, 0
      %v8406 = vsel %vm6967, %v8399, 0
      %v8409 = vsel %vm6967, %v8400, 0
      %v8412 = vsel %vm6967, %v8401, 0
      %8414 = vmatprep.subr.bf16.mxu0 0
      %8415 = vmatpush1.bf16.msra.mxu0 0
      %8416 = vmatprep.subr.bf16.mxu0 0
      %8417 = vmatpush1.bf16.msra.mxu0 0
      %8418 = vmatprep.subr.bf16.mxu0 0
      %8419 = vmatpush1.bf16.msra.mxu0 0
      %8420 = vmatprep.subr.bf16.mxu0 0
      %8421 = vmatpush1.bf16.msra.mxu0 0
      %8422 = vmatprep.subr.bf16.mxu0 0
      %8423 = vmatpush1.bf16.msra.mxu0 %v6984
      %8424 = vmatprep.subr.bf16.mxu0 0
      %8425 = vmatpush1.bf16.msra.mxu0 %v6940
      %8426 = vmatprep.subr.bf16.mxu0 0
      %8427 = vmatpush1.bf16.msra.mxu0 %v6939
      %8428 = vmatprep.subr.bf16.mxu0 0
      %8429 = vmatpush1.bf16.msra.mxu0 %v6938
      %8430 = vmatprep.subr.bf16.mxu0 0
      %8431 = vmatpush2.bf16.msra.mxu0 0
      %8432 = vmatprep.subr.bf16.mxu0 0
      %8433 = vmatpush2.bf16.msra.mxu0 0
      %8434 = vmatprep.subr.bf16.mxu0 0
      %8435 = vmatpush2.bf16.msra.mxu0 0
      %8436 = vmatprep.subr.bf16.mxu0 0
      %8437 = vmatpush2.bf16.msra.mxu0 0
      %8438 = vmatprep.subr.bf16.mxu0 0
      %8439 = vmatpush2.bf16.msra.mxu0 0
      %8440 = vmatprep.subr.bf16.mxu0 0
      %8441 = vmatpush2.bf16.msra.mxu0 0
      %8442 = vmatprep.subr.bf16.mxu0 0
      %8443 = vmatpush2.bf16.msra.mxu0 0
      %8444 = vmatprep.subr.bf16.mxu0 0
      %8445 = vmatpush2.bf16.msra.mxu0 0
      %8446 = vmatprep.mubr.bf16.mxu0 0
      %8447 = vmatmul.mubr.bf16.gmra.mxu0 %v8403
      %v8448 = vpop.f32.mrf.mxu0
      %v8449 = vadd.f32 0.0, %v8448
      %v8450 = vpop.f32.mrf.mxu0
      %v8451 = vpop.f32.mrf.mxu0
      %v8452 = vadd.f32 0.0, %v8451
      %v8453 = vpop.f32.mrf.mxu0
      %8454 = vmatprep.mubr.bf16.mxu0 0
      %8455 = vmatmul.mubr.bf16.gmra.mxu0 %v8406
      %v8456 = vpop.f32.mrf.mxu0
      %v8457 = vadd.f32 0.0, %v8456
      %v8458 = vpop.f32.mrf.mxu0
      %v8459 = vpop.f32.mrf.mxu0
      %v8460 = vadd.f32 0.0, %v8459
      %v8461 = vpop.f32.mrf.mxu0
      %8462 = vmatprep.mubr.bf16.mxu0 0
      %8463 = vmatmul.mubr.bf16.gmra.mxu0 %v8409
      %v8464 = vpop.f32.mrf.mxu0
      %v8465 = vadd.f32 0.0, %v8464
      %v8466 = vpop.f32.mrf.mxu0
      %v8467 = vpop.f32.mrf.mxu0
      %v8468 = vadd.f32 0.0, %v8467
      %v8469 = vpop.f32.mrf.mxu0
      %8470 = vmatprep.mubr.bf16.mxu0 0
      %8471 = vmatmul.mubr.bf16.gmra.mxu0 %v8412
      %v8472 = vpop.f32.mrf.mxu0
      %v8473 = vadd.f32 0.0, %v8472
      %v8474 = vpop.f32.mrf.mxu0
      %v8475 = vpop.f32.mrf.mxu0
      %v8476 = vpop.f32.mrf.mxu0
      %8477 = vdwg.mxu0
      %v8478 = vpack.c.bf16 %v8452, %v8449
      %v8479 = vpack.c.bf16 %v8460, %v8457
      %v8480 = vpack.c.bf16 %v8468, %v8465
      %v8481 = vpack.c.bf16 %v8473, %v8473
      %s8482 = scalar_lea.vmem %s8, 112
      %v8483 = vld [vmem:[%s8482] sm:$0xf]
      %v8484 = vld [vmem:[%s8482 + $0x4] sm:$0xf]
      %v8485 = vld [vmem:[%s8482 + $0x8] sm:$0xf]
      %v8486 = vld [vmem:[%s8482 + $0xc] sm:$0xf]
      %v8491 = vunpack.c.l.b16 %v8483
      %v8492 = vunpack.c.l.b16 %v8484
      %v8493 = vunpack.c.l.b16 %v8485
      %v8494 = vunpack.c.l.b16 %v8486
      %v8495 = vpack.c.b16 %v8492, %v8491
      %v8496 = vpack.c.b16 %v8494, %v8493
      %v8500 = vsel %vm7181, %v8478, 0
      %v8503 = vsel %vm7181, %v8479, 0
      %v8506 = vsel %vm7181, %v8480, 0
      %v8509 = vsel %vm7181, %v8481, 0
      %8511 = vmatprep.subr.bf16.mxu0 0
      %8512 = vmatpush1.bf16.msra.mxu0 0
      %8513 = vmatprep.subr.bf16.mxu0 0
      %8514 = vmatpush1.bf16.msra.mxu0 0
      %8515 = vmatprep.subr.bf16.mxu0 0
      %8516 = vmatpush1.bf16.msra.mxu0 0
      %8517 = vmatprep.subr.bf16.mxu0 0
      %8518 = vmatpush1.bf16.msra.mxu0 0
      %8519 = vmatprep.subr.bf16.mxu0 0
      %8520 = vmatpush1.bf16.msra.mxu0 0
      %8521 = vmatprep.subr.bf16.mxu0 0
      %8522 = vmatpush1.bf16.msra.mxu0 0
      %8523 = vmatprep.subr.bf16.mxu0 0
      %8524 = vmatpush1.bf16.msra.mxu0 %v8496
      %8525 = vmatprep.subr.bf16.mxu0 0
      %8526 = vmatpush1.bf16.msra.mxu0 %v8495
      %8527 = vmatprep.subr.bf16.mxu0 0
      %8528 = vmatpush2.bf16.msra.mxu0 0
      %8529 = vmatprep.subr.bf16.mxu0 0
      %8530 = vmatpush2.bf16.msra.mxu0 0
      %8531 = vmatprep.subr.bf16.mxu0 0
      %8532 = vmatpush2.bf16.msra.mxu0 0
      %8533 = vmatprep.subr.bf16.mxu0 0
      %8534 = vmatpush2.bf16.msra.mxu0 0
      %8535 = vmatprep.subr.bf16.mxu0 0
      %8536 = vmatpush2.bf16.msra.mxu0 0
      %8537 = vmatprep.subr.bf16.mxu0 0
      %8538 = vmatpush2.bf16.msra.mxu0 0
      %8539 = vmatprep.subr.bf16.mxu0 0
      %8540 = vmatpush2.bf16.msra.mxu0 0
      %8541 = vmatprep.subr.bf16.mxu0 0
      %8542 = vmatpush2.bf16.msra.mxu0 0
      %8543 = vmatprep.mubr.bf16.mxu0 0
      %8544 = vmatmul.mubr.bf16.gmra.mxu0 %v8500
      %v8545 = vpop.f32.mrf.mxu0
      %v8546 = vadd.f32 0.0, %v8545
      %v8547 = vpop.f32.mrf.mxu0
      %v8548 = vpop.f32.mrf.mxu0
      %v8549 = vadd.f32 0.0, %v8548
      %v8550 = vpop.f32.mrf.mxu0
      %8551 = vmatprep.mubr.bf16.mxu0 0
      %8552 = vmatmul.mubr.bf16.gmra.mxu0 %v8503
      %v8553 = vpop.f32.mrf.mxu0
      %v8554 = vadd.f32 0.0, %v8553
      %v8555 = vpop.f32.mrf.mxu0
      %v8556 = vpop.f32.mrf.mxu0
      %v8557 = vadd.f32 0.0, %v8556
      %v8558 = vpop.f32.mrf.mxu0
      %8559 = vmatprep.mubr.bf16.mxu0 0
      %8560 = vmatmul.mubr.bf16.gmra.mxu0 %v8506
      %v8561 = vpop.f32.mrf.mxu0
      %v8562 = vadd.f32 0.0, %v8561
      %v8563 = vpop.f32.mrf.mxu0
      %v8564 = vpop.f32.mrf.mxu0
      %v8565 = vadd.f32 0.0, %v8564
      %v8566 = vpop.f32.mrf.mxu0
      %8567 = vmatprep.mubr.bf16.mxu0 0
      %8568 = vmatmul.mubr.bf16.gmra.mxu0 %v8509
      %v8569 = vpop.f32.mrf.mxu0
      %v8570 = vadd.f32 0.0, %v8569
      %v8571 = vpop.f32.mrf.mxu0
      %v8572 = vpop.f32.mrf.mxu0
      %v8573 = vpop.f32.mrf.mxu0
      %8574 = vdwg.mxu0
      %v8575 = vadd.f32 %v8369, %v8546
      %v8576 = vadd.f32 %v8370, %v8549
      %v8577 = vadd.f32 %v8371, %v8554
      %v8578 = vadd.f32 %v8372, %v8557
      %v8579 = vadd.f32 %v8373, %v8562
      %v8580 = vadd.f32 %v8374, %v8565
      %v8581 = vadd.f32 %v8375, %v8570
      %s8582 = scalar_lea.vmem %s7, 224
      %v8583 = vld [vmem:[%s8582] sm:$0xf]
      %v8584 = vld [vmem:[%s8582 + $0x4] sm:$0xf]
      %v8585 = vld [vmem:[%s8582 + $0x8] sm:$0xf]
      %v8586 = vld [vmem:[%s8582 + $0xc] sm:$0xf]
      %v8587 = vld [vmem:[%s8582 + $0x10] sm:$0xf]
      %v8588 = vld [vmem:[%s8582 + $0x14] sm:$0xf]
      %v8589 = vld [vmem:[%s8582 + $0x18] sm:$0x1]
      %v8597 = vunpack.c.l.b16 %v8583
      %v8598 = vunpack.c.l.b16 %v8584
      %v8599 = vunpack.c.l.b16 %v8585
      %v8600 = vunpack.c.l.b16 %v8586
      %v8601 = vunpack.c.l.b16 %v8587
      %v8602 = vunpack.c.l.b16 %v8588
      %v8603 = vunpack.c.l.b16 %v8589
      %v8604 = vpack.c.b16 %v8598, %v8597
      %v8605 = vpack.c.b16 %v8600, %v8599
      %v8606 = vpack.c.b16 %v8602, %v8601
      %v8607 = vpack.c.b16 %v8603, %v8603
      %v8609 = vsel %vm6967, %v8604, 0
      %v8612 = vsel %vm6967, %v8605, 0
      %v8615 = vsel %vm6967, %v8606, 0
      %v8618 = vsel %vm6967, %v8607, 0
      %8620 = vmatprep.subr.bf16.mxu0 0
      %8621 = vmatpush1.bf16.msra.mxu0 0
      %8622 = vmatprep.subr.bf16.mxu0 0
      %8623 = vmatpush1.bf16.msra.mxu0 0
      %8624 = vmatprep.subr.bf16.mxu0 0
      %8625 = vmatpush1.bf16.msra.mxu0 0
      %8626 = vmatprep.subr.bf16.mxu0 0
      %8627 = vmatpush1.bf16.msra.mxu0 0
      %8628 = vmatprep.subr.bf16.mxu0 0
      %8629 = vmatpush1.bf16.msra.mxu0 %v6984
      %8630 = vmatprep.subr.bf16.mxu0 0
      %8631 = vmatpush1.bf16.msra.mxu0 %v6940
      %8632 = vmatprep.subr.bf16.mxu0 0
      %8633 = vmatpush1.bf16.msra.mxu0 %v6939
      %8634 = vmatprep.subr.bf16.mxu0 0
      %8635 = vmatpush1.bf16.msra.mxu0 %v6938
      %8636 = vmatprep.subr.bf16.mxu0 0
      %8637 = vmatpush2.bf16.msra.mxu0 0
      %8638 = vmatprep.subr.bf16.mxu0 0
      %8639 = vmatpush2.bf16.msra.mxu0 0
      %8640 = vmatprep.subr.bf16.mxu0 0
      %8641 = vmatpush2.bf16.msra.mxu0 0
      %8642 = vmatprep.subr.bf16.mxu0 0
      %8643 = vmatpush2.bf16.msra.mxu0 0
      %8644 = vmatprep.subr.bf16.mxu0 0
      %8645 = vmatpush2.bf16.msra.mxu0 0
      %8646 = vmatprep.subr.bf16.mxu0 0
      %8647 = vmatpush2.bf16.msra.mxu0 0
      %8648 = vmatprep.subr.bf16.mxu0 0
      %8649 = vmatpush2.bf16.msra.mxu0 0
      %8650 = vmatprep.subr.bf16.mxu0 0
      %8651 = vmatpush2.bf16.msra.mxu0 0
      %8652 = vmatprep.mubr.bf16.mxu0 0
      %8653 = vmatmul.mubr.bf16.gmra.mxu0 %v8609
      %v8654 = vpop.f32.mrf.mxu0
      %v8655 = vadd.f32 0.0, %v8654
      %v8656 = vpop.f32.mrf.mxu0
      %v8657 = vpop.f32.mrf.mxu0
      %v8658 = vadd.f32 0.0, %v8657
      %v8659 = vpop.f32.mrf.mxu0
      %8660 = vmatprep.mubr.bf16.mxu0 0
      %8661 = vmatmul.mubr.bf16.gmra.mxu0 %v8612
      %v8662 = vpop.f32.mrf.mxu0
      %v8663 = vadd.f32 0.0, %v8662
      %v8664 = vpop.f32.mrf.mxu0
      %v8665 = vpop.f32.mrf.mxu0
      %v8666 = vadd.f32 0.0, %v8665
      %v8667 = vpop.f32.mrf.mxu0
      %8668 = vmatprep.mubr.bf16.mxu0 0
      %8669 = vmatmul.mubr.bf16.gmra.mxu0 %v8615
      %v8670 = vpop.f32.mrf.mxu0
      %v8671 = vadd.f32 0.0, %v8670
      %v8672 = vpop.f32.mrf.mxu0
      %v8673 = vpop.f32.mrf.mxu0
      %v8674 = vadd.f32 0.0, %v8673
      %v8675 = vpop.f32.mrf.mxu0
      %8676 = vmatprep.mubr.bf16.mxu0 0
      %8677 = vmatmul.mubr.bf16.gmra.mxu0 %v8618
      %v8678 = vpop.f32.mrf.mxu0
      %v8679 = vadd.f32 0.0, %v8678
      %v8680 = vpop.f32.mrf.mxu0
      %v8681 = vpop.f32.mrf.mxu0
      %v8682 = vpop.f32.mrf.mxu0
      %8683 = vdwg.mxu0
      %v8684 = vpack.c.bf16 %v8658, %v8655
      %v8685 = vpack.c.bf16 %v8666, %v8663
      %v8686 = vpack.c.bf16 %v8674, %v8671
      %v8687 = vpack.c.bf16 %v8679, %v8679
      %s8688 = scalar_lea.vmem %s8, 128
      %v8689 = vld [vmem:[%s8688] sm:$0xf]
      %v8690 = vld [vmem:[%s8688 + $0x4] sm:$0xf]
      %v8691 = vld [vmem:[%s8688 + $0x8] sm:$0xf]
      %v8692 = vld [vmem:[%s8688 + $0xc] sm:$0xf]
      %v8697 = vunpack.c.l.b16 %v8689
      %v8698 = vunpack.c.l.b16 %v8690
      %v8699 = vunpack.c.l.b16 %v8691
      %v8700 = vunpack.c.l.b16 %v8692
      %v8701 = vpack.c.b16 %v8698, %v8697
      %v8702 = vpack.c.b16 %v8700, %v8699
      %v8706 = vsel %vm7181, %v8684, 0
      %v8709 = vsel %vm7181, %v8685, 0
      %v8712 = vsel %vm7181, %v8686, 0
      %v8715 = vsel %vm7181, %v8687, 0
      %8717 = vmatprep.subr.bf16.mxu0 0
      %8718 = vmatpush1.bf16.msra.mxu0 0
      %8719 = vmatprep.subr.bf16.mxu0 0
      %8720 = vmatpush1.bf16.msra.mxu0 0
      %8721 = vmatprep.subr.bf16.mxu0 0
      %8722 = vmatpush1.bf16.msra.mxu0 0
      %8723 = vmatprep.subr.bf16.mxu0 0
      %8724 = vmatpush1.bf16.msra.mxu0 0
      %8725 = vmatprep.subr.bf16.mxu0 0
      %8726 = vmatpush1.bf16.msra.mxu0 0
      %8727 = vmatprep.subr.bf16.mxu0 0
      %8728 = vmatpush1.bf16.msra.mxu0 0
      %8729 = vmatprep.subr.bf16.mxu0 0
      %8730 = vmatpush1.bf16.msra.mxu0 %v8702
      %8731 = vmatprep.subr.bf16.mxu0 0
      %8732 = vmatpush1.bf16.msra.mxu0 %v8701
      %8733 = vmatprep.subr.bf16.mxu0 0
      %8734 = vmatpush2.bf16.msra.mxu0 0
      %8735 = vmatprep.subr.bf16.mxu0 0
      %8736 = vmatpush2.bf16.msra.mxu0 0
      %8737 = vmatprep.subr.bf16.mxu0 0
      %8738 = vmatpush2.bf16.msra.mxu0 0
      %8739 = vmatprep.subr.bf16.mxu0 0
      %8740 = vmatpush2.bf16.msra.mxu0 0
      %8741 = vmatprep.subr.bf16.mxu0 0
      %8742 = vmatpush2.bf16.msra.mxu0 0
      %8743 = vmatprep.subr.bf16.mxu0 0
      %8744 = vmatpush2.bf16.msra.mxu0 0
      %8745 = vmatprep.subr.bf16.mxu0 0
      %8746 = vmatpush2.bf16.msra.mxu0 0
      %8747 = vmatprep.subr.bf16.mxu0 0
      %8748 = vmatpush2.bf16.msra.mxu0 0
      %8749 = vmatprep.mubr.bf16.mxu0 0
      %8750 = vmatmul.mubr.bf16.gmra.mxu0 %v8706
      %v8751 = vpop.f32.mrf.mxu0
      %v8752 = vadd.f32 0.0, %v8751
      %v8753 = vpop.f32.mrf.mxu0
      %v8754 = vpop.f32.mrf.mxu0
      %v8755 = vadd.f32 0.0, %v8754
      %v8756 = vpop.f32.mrf.mxu0
      %8757 = vmatprep.mubr.bf16.mxu0 0
      %8758 = vmatmul.mubr.bf16.gmra.mxu0 %v8709
      %v8759 = vpop.f32.mrf.mxu0
      %v8760 = vadd.f32 0.0, %v8759
      %v8761 = vpop.f32.mrf.mxu0
      %v8762 = vpop.f32.mrf.mxu0
      %v8763 = vadd.f32 0.0, %v8762
      %v8764 = vpop.f32.mrf.mxu0
      %8765 = vmatprep.mubr.bf16.mxu0 0
      %8766 = vmatmul.mubr.bf16.gmra.mxu0 %v8712
      %v8767 = vpop.f32.mrf.mxu0
      %v8768 = vadd.f32 0.0, %v8767
      %v8769 = vpop.f32.mrf.mxu0
      %v8770 = vpop.f32.mrf.mxu0
      %v8771 = vadd.f32 0.0, %v8770
      %v8772 = vpop.f32.mrf.mxu0
      %8773 = vmatprep.mubr.bf16.mxu0 0
      %8774 = vmatmul.mubr.bf16.gmra.mxu0 %v8715
      %v8775 = vpop.f32.mrf.mxu0
      %v8776 = vadd.f32 0.0, %v8775
      %v8777 = vpop.f32.mrf.mxu0
      %v8778 = vpop.f32.mrf.mxu0
      %v8779 = vpop.f32.mrf.mxu0
      %8780 = vdwg.mxu0
      %v8781 = vadd.f32 %v8575, %v8752
      %v8782 = vadd.f32 %v8576, %v8755
      %v8783 = vadd.f32 %v8577, %v8760
      %v8784 = vadd.f32 %v8578, %v8763
      %v8785 = vadd.f32 %v8579, %v8768
      %v8786 = vadd.f32 %v8580, %v8771
      %v8787 = vadd.f32 %v8581, %v8776
      %v8788 = vld [vmem:[%s9] sm:$0x1]
      %v8790 = vlaneseq
      %v8791 = vshrl.u32 %v8790, 7
      %v8792 = vsub.s32 0, %v8791
      %v8793 = vrot.slane %v8788, %v8792
      %v8795 = vadd.f32 %v8781, %v8793
      %v8796 = vadd.f32 %v8782, %v8793
      %v8797 = vadd.f32 %v8783, %v8793
      %v8798 = vadd.f32 %v8784, %v8793
      %v8799 = vadd.f32 %v8785, %v8793
      %v8800 = vadd.f32 %v8786, %v8793
      %v8801 = vadd.f32 %v8787, %v8793
      %v8802 = vmax.f32 %v8795, 0.0
      %v8803 = vmax.f32 %v8796, 0.0
      %v8804 = vmax.f32 %v8797, 0.0
      %v8805 = vmax.f32 %v8798, 0.0
      %v8806 = vmax.f32 %v8799, 0.0
      %v8807 = vmax.f32 %v8800, 0.0
      %v8808 = vmax.f32 %v8801, 0.0
      %v8809 = vpack.c.bf16 %v8803, %v8802
      %v8810 = vpack.c.bf16 %v8805, %v8804
      %v8811 = vpack.c.bf16 %v8807, %v8806
      %v8812 = vpack.c.bf16 %v8808, %v8808
      %v8817 = vunpack.c.l.b16 %v8809
      %v8818 = vunpack.c.h.b16 %v8809
      %v8819 = vunpack.c.l.b16 %v8810
      %v8820 = vunpack.c.h.b16 %v8810
      %v8821 = vunpack.c.l.b16 %v8811
      %v8822 = vunpack.c.h.b16 %v8811
      %v8823 = vunpack.c.l.b16 %v8812
      %v8824 = vpack.c.b16 %v8817, %v8817
      %v8825 = vpack.c.b16 %v8818, %v8818
      %v8826 = vpack.c.b16 %v8819, %v8819
      %v8827 = vpack.c.b16 %v8820, %v8820
      %v8828 = vpack.c.b16 %v8821, %v8821
      %v8829 = vpack.c.b16 %v8822, %v8822
      %v8830 = vpack.c.b16 %v8823, %v8823
      %vm8838 = vcmask 519168
      %8839 = vst.msk [vmem:[%s359] sm:$0xf] %vm8838, %v8824
      %8840 = vst.msk [vmem:[%s359 + $0x4] sm:$0xf] %vm8838, %v8825
      %8841 = vst.msk [vmem:[%s359 + $0x8] sm:$0xf] %vm8838, %v8826
      %8842 = vst.msk [vmem:[%s359 + $0xc] sm:$0xf] %vm8838, %v8827
      %8843 = vst.msk [vmem:[%s359 + $0x10] sm:$0xf] %vm8838, %v8828
      %8844 = vst.msk [vmem:[%s359 + $0x14] sm:$0xf] %vm8838, %v8829
      %vm8845 = vcmask 516096
      %vm8846 = vsmask.f32 256
      %vm8847 = vmand %vm8845, %vm8846
      %v8848 = vld [vmem:[%s359 + $0x18] sm:$0x1]
      %v8849 = vsel %vm8847, %v8830, %v8848
      %8850 = vst [vmem:[%s359 + $0x18] sm:$0x1] %v8849
      %p8851 = scmp.lt.s32.totalorder %s21, 1
      %s8852 = scalar_select %p8851, %s21, 1
      %s8853 = smul.addr %s8852, 7
      %s8854 = smul.addr %s8853, 4
      %s8855 = scalar_lea.vmem %s10, %s8854
      // Predicated region
      $region61: #{model_forward.2} parent=59 // pred_check
        %p8856 = pneg %p254
      $region62: #{model_forward.2} parent=59 // pred_check_branch
        %8858 = sbr.rel (%p8856) target = $region64
      $region63: #{model_forward.2} parent=59 // pred_region
        _
      $region64: #{model_forward.2} parent=59 // pred_fallthru
        _
    $region60: #{model_forward.2} parent=5 // pred_fallthru
      _
    %p8859 = scmp.le.s32.totalorder 2, %s16
    // Predicated region
    $region65: #{model_forward.2} parent=5 // pred_check
      %p8860 = pneg %p8859
    $region66: #{model_forward.2} parent=5 // pred_check_branch
      %8862 = sbr.rel (%p8860) target = $region68
    $region67: #{model_forward.2} parent=5 // pred_region
      %s8863 = ssub.s32 %s16, 2
      // Predicated region
      $region69: #{model_forward.2} parent=67 // pred_check
        %p8864 = pneg %p260
      $region70: #{model_forward.2} parent=67 // pred_check_branch
        %8866 = sbr.rel (%p8864) target = $region72
      $region71: #{model_forward.2} parent=67 // pred_region
        %p8867 = scmp.lt.s32.totalorder %s22, 1
        %s8868 = scalar_select %p8867, %s22, 1
        %s8869 = smul.addr %s8868, 7
        %s8870 = smul.addr %s8869, 4
        %s8871 = scalar_lea.vmem %s10, %s8870
      $region72: #{model_forward.2} parent=67 // pred_fallthru
        _
    $region68: #{model_forward.2} parent=5 // pred_fallthru
      _
  $region6: #{model_forward.2} parent=0 // loop_footer
    %s20 = sadd.s32 1, %s16
  $region7: #{model_forward.2} parent=0 // loop_footer_branch
    %15 = sbr.rel target = $region3
  $region8: #{model_forward.2} parent=0 // loop_exit
    _

</llo_original>
